<compile_context>
chip_gen: v6e
topology: v6e:2x2x1
jax: 0.10.0
libtpu: 0.0.40
codegen_flags: <defaults>
</compile_context>

<pallas_src>
import functools

import jax
import jax.numpy as jnp
from jax.experimental import pallas as pl
from jax.experimental.pallas import tpu as pltpu


# ------------------------------- small helpers -------------------------------

def _prod(xs):
    r = 1
    for v in xs:
        r *= int(v)
    return r


def _nbytes(shape, dtype):
    return _prod(shape) * jnp.dtype(dtype).itemsize


def _pick_nb(n, rows_per_image, bytes_per_image, budget=24 << 20):
    """Batch-block size: largest divisor of n that fits the VMEM budget
    (double-buffered), stopping once the per-step matmul M reaches ~512."""
    best = 1
    for nb in range(1, n + 1):
        if n % nb:
            continue
        if 2 * nb * bytes_per_image > budget:
            break
        best = nb
        if nb * rows_per_image >= 512:
            break
    return best


# ----------------------------- fused conv kernel -----------------------------

def _conv_block_kernel(*refs, tap_plan, n_src, ho, wo,
                       has_out_affine, has_extra_mm, has_residual):
    """One 3x3 conv (9 tap matmuls on bf16, f32 accumulation) with optional
    fused epilogues:
      * out_affine : relu(acc * scale + shift)   (BN2 + ReLU)
      * extra_mm   : acc += extra_x @ extra_w    (fused 1x1 projection shortcut)
      * residual   : acc += residual             (identity shortcut)
    Taps are unit-stride offset slices of the VMEM-resident source blocks."""
    idx = 0
    srcs = refs[idx:idx + n_src]; idx += n_src
    w_ref = refs[idx]; idx += 1
    if has_out_affine:
        aff_ref = refs[idx]; idx += 1
    if has_extra_mm:
        ex_ref = refs[idx]; exw_ref = refs[idx + 1]; idx += 2
    if has_residual:
        res_ref = refs[idx]; idx += 1
    o_ref = refs[idx]

    nb, _, _, cout = o_ref.shape
    m = nb * ho * wo

    acc = jnp.zeros((m, cout), jnp.float32)
    for t, (s_idx, r0, c0) in enumerate(tap_plan):
        src = srcs[s_idx]
        cin = src.shape[-1]
        tap = src[:, r0:r0 + ho, c0:c0 + wo, :].reshape(m, cin)
        acc = acc + jnp.dot(tap, w_ref[t], preferred_element_type=jnp.float32)

    if has_extra_mm:
        cin_e = ex_ref.shape[-1]
        ex = ex_ref[...].reshape(m, cin_e)
        acc = acc + jnp.dot(ex, exw_ref[0], preferred_element_type=jnp.float32)

    if has_out_affine:
        scale = aff_ref[0:1, :]
        shift = aff_ref[1:2, :]
        acc = jnp.maximum(acc * scale + shift, 0.0)

    if has_residual:
        acc = acc + res_ref[...].reshape(m, cout).astype(jnp.float32)

    o_ref[...] = acc.reshape(o_ref.shape).astype(o_ref.dtype)


def conv3x3_block(srcs, tap_plan, w, *, ho, wo, out_affine=None,
                  extra=None, residual=None, out_dtype=jnp.bfloat16):
    """srcs: list of (N, Hs, Ws, Cin) bf16 source buffers.
    tap_plan: 9 tuples (src_index, row_offset, col_offset).
    w: (9, Cin, Cout) bf16.  extra: (x (N,ho,wo,Cin2) bf16, w (1,Cin2,Cout) bf16).
    residual: (N,ho,wo,Cout)."""
    n = srcs[0].shape[0]
    cout = w.shape[-1]

    # per-image VMEM footprint (pipelined blocks) used for tiling / vmem limit
    per_img = sum(_nbytes(s.shape[1:], s.dtype) for s in srcs)
    per_img += _nbytes((ho, wo, cout), out_dtype)
    if extra is not None:
        per_img += _nbytes(extra[0].shape[1:], extra[0].dtype)
    if residual is not None:
        per_img += _nbytes(residual.shape[1:], residual.dtype)
    fixed = _nbytes(w.shape, w.dtype)
    if extra is not None:
        fixed += _nbytes(extra[1].shape, extra[1].dtype)

    nb = _pick_nb(n, ho * wo, per_img)
    grid = (n // nb,)

    inputs, in_specs = [], []
    for s in srcs:
        inputs.append(s)
        in_specs.append(pl.BlockSpec((nb,) + tuple(s.shape[1:]),
                                     lambda i: (i, 0, 0, 0)))
    inputs.append(w)
    in_specs.append(pl.BlockSpec(tuple(w.shape), lambda i: (0, 0, 0)))
    if out_affine is not None:
        scale, shift = out_affine
        aff = jnp.stack([scale, shift]).astype(jnp.float32)       # (2, Cout)
        inputs.append(aff)
        in_specs.append(pl.BlockSpec(tuple(aff.shape), lambda i: (0, 0)))
    if extra is not None:
        x_e, w_e = extra
        inputs.append(x_e)
        in_specs.append(pl.BlockSpec((nb,) + tuple(x_e.shape[1:]),
                                     lambda i: (i, 0, 0, 0)))
        inputs.append(w_e)
        in_specs.append(pl.BlockSpec(tuple(w_e.shape), lambda i: (0, 0, 0)))
    if residual is not None:
        inputs.append(residual)
        in_specs.append(pl.BlockSpec((nb,) + tuple(residual.shape[1:]),
                                     lambda i: (i, 0, 0, 0)))

    kernel = functools.partial(
        _conv_block_kernel,
        tap_plan=tuple(tap_plan), n_src=len(srcs), ho=ho, wo=wo,
        has_out_affine=out_affine is not None,
        has_extra_mm=extra is not None,
        has_residual=residual is not None)

    est = 2 * nb * per_img + 2 * fixed
    vmem_limit = int(min(48 << 20, max(16 << 20, 2 * est)))

    return pl.pallas_call(
        kernel,
        out_shape=jax.ShapeDtypeStruct((n, ho, wo, cout), out_dtype),
        grid=grid,
        in_specs=in_specs,
        out_specs=pl.BlockSpec((nb, ho, wo, cout), lambda i: (i, 0, 0, 0)),
        compiler_params=pltpu.CompilerParams(
            dimension_semantics=("parallel",) if grid[0] > 1 else ("arbitrary",),
            vmem_limit_bytes=vmem_limit),
    )(*inputs)


# ------------------------------- parameters ----------------------------------

def _bn_affine(bn, eps=1e-5):
    scale = bn["gamma"] * jax.lax.rsqrt(bn["var"] + eps)
    shift = bn["beta"] - bn["mean"] * scale
    return scale, shift


def _conv_w(key, cin, cout, k):
    # PyTorch layout (Cout, Cin, kh, kw) -> per-tap matmul layout (k*k, Cin, Cout)
    fan_in = cin * k * k
    w = jax.random.normal(key, (cout, cin, k, k), jnp.float32) * jnp.sqrt(2.0 / fan_in)
    return jnp.transpose(w, (2, 3, 1, 0)).reshape(k * k, cin, cout).astype(jnp.bfloat16)


def _bn_params(key, c):
    k1, k2, k3, k4 = jax.random.split(key, 4)
    return dict(
        gamma=1.0 + 0.1 * jax.random.normal(k1, (c,), jnp.float32),
        beta=0.1 * jax.random.normal(k2, (c,), jnp.float32),
        mean=0.1 * jax.random.normal(k3, (c,), jnp.float32),
        var=1.0 + 0.1 * jax.random.uniform(k4, (c,), jnp.float32),
    )


def init_preact_block(key, in_planes, planes, stride):
    ks = jax.random.split(key, 5)
    p = dict(stride=stride,
             bn1=_bn_params(ks[0], in_planes),
             w1=_conv_w(ks[1], in_planes, planes, 3),
             bn2=_bn_params(ks[2], planes),
             w2=_conv_w(ks[3], planes, planes, 3))
    if stride != 1 or in_planes != planes:
        p["w_sc"] = _conv_w(ks[4], in_planes, planes, 1)   # 1x1 projection shortcut
    return p


# --------------------------------- forward -----------------------------------

def preact_block_forward(x_nhwc, p, *, out_dtype=jnp.float32):
    """PyTorch PreActBlock.forward on an NHWC tensor (inference BN)."""
    n, h, w, cin = x_nhwc.shape
    stride = p["stride"]
    cout = p["w1"].shape[-1]
    ho = (h + 2 - 3) // stride + 1
    wo = (w + 2 - 3) // stride + 1

    s1, b1 = _bn_affine(p["bn1"])
    s2, b2 = _bn_affine(p["bn2"])

    # BN1+ReLU applied ONCE into a bf16 buffer; the conv padding is a true
    # zero-pad of the post-ReLU activations (= PyTorch conv1 pad semantics).
    a = jnp.maximum(x_nhwc.astype(jnp.float32) * s1 + b1, 0.0).astype(jnp.bfloat16)
    a_pad = jnp.pad(a, ((0, 0), (1, 1), (1, 1), (0, 0)))

    if stride == 1:
        srcs1 = [a_pad]
        taps1 = [(0, kh, kw) for kh in range(3) for kw in range(3)]
    else:
        assert stride == 2 and h % 2 == 0 and w % 2 == 0
        # polyphase (space-to-depth) split: every tap of the stride-2 conv
        # becomes a unit-stride offset slice of one of 4 phase buffers.
        srcs1 = [a_pad[:, hp::2, wp::2, :] for hp in (0, 1) for wp in (0, 1)]
        taps1 = [(2 * (kh % 2) + (kw % 2), kh // 2, kw // 2)
                 for kh in range(3) for kw in range(3)]

    # kernel 1: conv1 (3x3, stride) with BN2+ReLU fused as output epilogue.
    mid = conv3x3_block(srcs1, taps1, p["w1"], ho=ho, wo=wo,
                        out_affine=(s2, b2), out_dtype=jnp.bfloat16)

    mid_pad = jnp.pad(mid, ((0, 0), (1, 1), (1, 1), (0, 0)))
    taps2 = [(0, kh, kw) for kh in range(3) for kw in range(3)]

    # kernel 2: conv2 (3x3, stride 1) with the shortcut fused in.
    if "w_sc" in p:
        xs = a[:, ::stride, ::stride, :]                 # bf16 (N, ho, wo, Cin)
        out = conv3x3_block([mid_pad], taps2, p["w2"], ho=ho, wo=wo,
                            extra=(xs, p["w_sc"]), out_dtype=out_dtype)
    else:
        out = conv3x3_block([mid_pad], taps2, p["w2"], ho=ho, wo=wo,
                            residual=x_nhwc, out_dtype=out_dtype)
    return out


if __name__ == "__main__":
    key = jax.random.PRNGKey(0)
    kx, kb1, kb2 = jax.random.split(key, 3)

    # PyTorch-style NCHW input: (N=2, C=64, H=16, W=16)
    x_nchw = jax.random.normal(kx, (2, 64, 16, 16), jnp.float32)
    x = jnp.transpose(x_nchw, (0, 2, 3, 1))   # NCHW -> NHWC (channels on lanes)

    # Two configurations exercising both shortcut paths:
    blk_a = init_preact_block(kb1, 64, 128, stride=2)    # 1x1-conv projection shortcut
    blk_b = init_preact_block(kb2, 128, 128, stride=1)   # identity shortcut

    @jax.jit
    def fwd(inp):
        hmid = preact_block_forward(inp, blk_a, out_dtype=jnp.bfloat16)  # bf16 inter-block
        return preact_block_forward(hmid, blk_b, out_dtype=jnp.float32)

    y = fwd(x)
    jax.block_until_ready(y)
    assert y.shape == (2, 8, 8, 128) and bool(jnp.all(jnp.isfinite(y)))
    print("KERNEL_OK")
</pallas_src>

<mosaic_0001>
module attributes {stable_mosaic.version = 11 : i64} {
  func.func @_conv_block_kernel(%arg0: i32, %arg1: memref<2x10x10x128xbf16, #tpu.memory_space<vmem>>, %arg2: memref<9x128x128xbf16, #tpu.memory_space<vmem>>, %arg3: memref<2x128xf32, #tpu.memory_space<vmem>>, %arg4: memref<2x8x8x128xbf16, #tpu.memory_space<vmem>>) attributes {dimension_semantics = [#tpu.dimension_semantics<arbitrary>], iteration_bounds = array<i64: 1>, scalar_prefetch = 0 : i64, scratch_operands = 0 : i64, tpu.core_type = #tpu.core_type<tc>, window_params = [{transform_indices = @transform_0, window_bounds = array<i64: 2, 10, 10, 128>}, {pipeline_mode = #tpu.pipeline_mode<synchronous>, transform_indices = @transform_1, window_bounds = array<i64: 9, 128, 128>}, {pipeline_mode = #tpu.pipeline_mode<synchronous>, transform_indices = @transform_2, window_bounds = array<i64: 2, 128>}, {transform_indices = @transform_3, window_bounds = array<i64: 2, 8, 8, 128>}]} {
    %cst = arith.constant 0.000000e+00 : f32
    %0 = vector.broadcast %cst : f32 to vector<128x128xf32>
    %c0 = arith.constant 0 : index
    %c0_0 = arith.constant 0 : index
    %c0_1 = arith.constant 0 : index
    %c0_2 = arith.constant 0 : index
    %1 = vector.load %arg1[%c0, %c0_0, %c0_1, %c0_2] : memref<2x10x10x128xbf16, #tpu.memory_space<vmem>>, vector<2x8x8x128xbf16>
    %2 = vector.shape_cast %1 : vector<2x8x8x128xbf16> to vector<128x128xbf16>
    %c0_3 = arith.constant 0 : index
    %c0_4 = arith.constant 0 : index
    %c0_5 = arith.constant 0 : index
    %3 = vector.load %arg2[%c0_3, %c0_4, %c0_5] : memref<9x128x128xbf16, #tpu.memory_space<vmem>>, vector<1x128x128xbf16>
    %4 = vector.shape_cast %3 : vector<1x128x128xbf16> to vector<128x128xbf16>
    %cst_6 = arith.constant dense<0.000000e+00> : vector<128x128xf32>
    %5 = tpu.matmul %2, %4, %cst_6 {dimension_numbers = #tpu.dot_dimension_numbers<[1], [0], [0], [1], [0, 0, 1, 1], [], []>} : vector<128x128xbf16>, vector<128x128xbf16>, vector<128x128xf32> -> vector<128x128xf32>
    %6 = arith.addf %0, %5 : vector<128x128xf32>
    %c0_7 = arith.constant 0 : index
    %c0_8 = arith.constant 0 : index
    %c1 = arith.constant 1 : index
    %c0_9 = arith.constant 0 : index
    %7 = vector.load %arg1[%c0_7, %c0_8, %c1, %c0_9] : memref<2x10x10x128xbf16, #tpu.memory_space<vmem>>, vector<2x8x8x128xbf16>
    %8 = vector.shape_cast %7 : vector<2x8x8x128xbf16> to vector<128x128xbf16>
    %c1_10 = arith.constant 1 : index
    %c0_11 = arith.constant 0 : index
    %c0_12 = arith.constant 0 : index
    %9 = vector.load %arg2[%c1_10, %c0_11, %c0_12] : memref<9x128x128xbf16, #tpu.memory_space<vmem>>, vector<1x128x128xbf16>
    %10 = vector.shape_cast %9 : vector<1x128x128xbf16> to vector<128x128xbf16>
    %cst_13 = arith.constant dense<0.000000e+00> : vector<128x128xf32>
    %11 = tpu.matmul %8, %10, %cst_13 {dimension_numbers = #tpu.dot_dimension_numbers<[1], [0], [0], [1], [0, 0, 1, 1], [], []>} : vector<128x128xbf16>, vector<128x128xbf16>, vector<128x128xf32> -> vector<128x128xf32>
    %12 = arith.addf %6, %11 : vector<128x128xf32>
    %c0_14 = arith.constant 0 : index
    %c0_15 = arith.constant 0 : index
    %c2 = arith.constant 2 : index
    %c0_16 = arith.constant 0 : index
    %13 = vector.load %arg1[%c0_14, %c0_15, %c2, %c0_16] : memref<2x10x10x128xbf16, #tpu.memory_space<vmem>>, vector<2x8x8x128xbf16>
    %14 = vector.shape_cast %13 : vector<2x8x8x128xbf16> to vector<128x128xbf16>
    %c2_17 = arith.constant 2 : index
    %c0_18 = arith.constant 0 : index
    %c0_19 = arith.constant 0 : index
    %15 = vector.load %arg2[%c2_17, %c0_18, %c0_19] : memref<9x128x128xbf16, #tpu.memory_space<vmem>>, vector<1x128x128xbf16>
    %16 = vector.shape_cast %15 : vector<1x128x128xbf16> to vector<128x128xbf16>
    %cst_20 = arith.constant dense<0.000000e+00> : vector<128x128xf32>
    %17 = tpu.matmul %14, %16, %cst_20 {dimension_numbers = #tpu.dot_dimension_numbers<[1], [0], [0], [1], [0, 0, 1, 1], [], []>} : vector<128x128xbf16>, vector<128x128xbf16>, vector<128x128xf32> -> vector<128x128xf32>
    %18 = arith.addf %12, %17 : vector<128x128xf32>
    %c0_21 = arith.constant 0 : index
    %c1_22 = arith.constant 1 : index
    %c0_23 = arith.constant 0 : index
    %c0_24 = arith.constant 0 : index
    %19 = vector.load %arg1[%c0_21, %c1_22, %c0_23, %c0_24] : memref<2x10x10x128xbf16, #tpu.memory_space<vmem>>, vector<2x8x8x128xbf16>
    %20 = vector.shape_cast %19 : vector<2x8x8x128xbf16> to vector<128x128xbf16>
    %c3 = arith.constant 3 : index
    %c0_25 = arith.constant 0 : index
    %c0_26 = arith.constant 0 : index
    %21 = vector.load %arg2[%c3, %c0_25, %c0_26] : memref<9x128x128xbf16, #tpu.memory_space<vmem>>, vector<1x128x128xbf16>
    %22 = vector.shape_cast %21 : vector<1x128x128xbf16> to vector<128x128xbf16>
    %cst_27 = arith.constant dense<0.000000e+00> : vector<128x128xf32>
    %23 = tpu.matmul %20, %22, %cst_27 {dimension_numbers = #tpu.dot_dimension_numbers<[1], [0], [0], [1], [0, 0, 1, 1], [], []>} : vector<128x128xbf16>, vector<128x128xbf16>, vector<128x128xf32> -> vector<128x128xf32>
    %24 = arith.addf %18, %23 : vector<128x128xf32>
    %c0_28 = arith.constant 0 : index
    %c1_29 = arith.constant 1 : index
    %c1_30 = arith.constant 1 : index
    %c0_31 = arith.constant 0 : index
    %25 = vector.load %arg1[%c0_28, %c1_29, %c1_30, %c0_31] : memref<2x10x10x128xbf16, #tpu.memory_space<vmem>>, vector<2x8x8x128xbf16>
    %26 = vector.shape_cast %25 : vector<2x8x8x128xbf16> to vector<128x128xbf16>
    %c4 = arith.constant 4 : index
    %c0_32 = arith.constant 0 : index
    %c0_33 = arith.constant 0 : index
    %27 = vector.load %arg2[%c4, %c0_32, %c0_33] : memref<9x128x128xbf16, #tpu.memory_space<vmem>>, vector<1x128x128xbf16>
    %28 = vector.shape_cast %27 : vector<1x128x128xbf16> to vector<128x128xbf16>
    %cst_34 = arith.constant dense<0.000000e+00> : vector<128x128xf32>
    %29 = tpu.matmul %26, %28, %cst_34 {dimension_numbers = #tpu.dot_dimension_numbers<[1], [0], [0], [1], [0, 0, 1, 1], [], []>} : vector<128x128xbf16>, vector<128x128xbf16>, vector<128x128xf32> -> vector<128x128xf32>
    %30 = arith.addf %24, %29 : vector<128x128xf32>
    %c0_35 = arith.constant 0 : index
    %c1_36 = arith.constant 1 : index
    %c2_37 = arith.constant 2 : index
    %c0_38 = arith.constant 0 : index
    %31 = vector.load %arg1[%c0_35, %c1_36, %c2_37, %c0_38] : memref<2x10x10x128xbf16, #tpu.memory_space<vmem>>, vector<2x8x8x128xbf16>
    %32 = vector.shape_cast %31 : vector<2x8x8x128xbf16> to vector<128x128xbf16>
    %c5 = arith.constant 5 : index
    %c0_39 = arith.constant 0 : index
    %c0_40 = arith.constant 0 : index
    %33 = vector.load %arg2[%c5, %c0_39, %c0_40] : memref<9x128x128xbf16, #tpu.memory_space<vmem>>, vector<1x128x128xbf16>
    %34 = vector.shape_cast %33 : vector<1x128x128xbf16> to vector<128x128xbf16>
    %cst_41 = arith.constant dense<0.000000e+00> : vector<128x128xf32>
    %35 = tpu.matmul %32, %34, %cst_41 {dimension_numbers = #tpu.dot_dimension_numbers<[1], [0], [0], [1], [0, 0, 1, 1], [], []>} : vector<128x128xbf16>, vector<128x128xbf16>, vector<128x128xf32> -> vector<128x128xf32>
    %36 = arith.addf %30, %35 : vector<128x128xf32>
    %c0_42 = arith.constant 0 : index
    %c2_43 = arith.constant 2 : index
    %c0_44 = arith.constant 0 : index
    %c0_45 = arith.constant 0 : index
    %37 = vector.load %arg1[%c0_42, %c2_43, %c0_44, %c0_45] : memref<2x10x10x128xbf16, #tpu.memory_space<vmem>>, vector<2x8x8x128xbf16>
    %38 = vector.shape_cast %37 : vector<2x8x8x128xbf16> to vector<128x128xbf16>
    %c6 = arith.constant 6 : index
    %c0_46 = arith.constant 0 : index
    %c0_47 = arith.constant 0 : index
    %39 = vector.load %arg2[%c6, %c0_46, %c0_47] : memref<9x128x128xbf16, #tpu.memory_space<vmem>>, vector<1x128x128xbf16>
    %40 = vector.shape_cast %39 : vector<1x128x128xbf16> to vector<128x128xbf16>
    %cst_48 = arith.constant dense<0.000000e+00> : vector<128x128xf32>
    %41 = tpu.matmul %38, %40, %cst_48 {dimension_numbers = #tpu.dot_dimension_numbers<[1], [0], [0], [1], [0, 0, 1, 1], [], []>} : vector<128x128xbf16>, vector<128x128xbf16>, vector<128x128xf32> -> vector<128x128xf32>
    %42 = arith.addf %36, %41 : vector<128x128xf32>
    %c0_49 = arith.constant 0 : index
    %c2_50 = arith.constant 2 : index
    %c1_51 = arith.constant 1 : index
    %c0_52 = arith.constant 0 : index
    %43 = vector.load %arg1[%c0_49, %c2_50, %c1_51, %c0_52] : memref<2x10x10x128xbf16, #tpu.memory_space<vmem>>, vector<2x8x8x128xbf16>
    %44 = vector.shape_cast %43 : vector<2x8x8x128xbf16> to vector<128x128xbf16>
    %c7 = arith.constant 7 : index
    %c0_53 = arith.constant 0 : index
    %c0_54 = arith.constant 0 : index
    %45 = vector.load %arg2[%c7, %c0_53, %c0_54] : memref<9x128x128xbf16, #tpu.memory_space<vmem>>, vector<1x128x128xbf16>
    %46 = vector.shape_cast %45 : vector<1x128x128xbf16> to vector<128x128xbf16>
    %cst_55 = arith.constant dense<0.000000e+00> : vector<128x128xf32>
    %47 = tpu.matmul %44, %46, %cst_55 {dimension_numbers = #tpu.dot_dimension_numbers<[1], [0], [0], [1], [0, 0, 1, 1], [], []>} : vector<128x128xbf16>, vector<128x128xbf16>, vector<128x128xf32> -> vector<128x128xf32>
    %48 = arith.addf %42, %47 : vector<128x128xf32>
    %c0_56 = arith.constant 0 : index
    %c2_57 = arith.constant 2 : index
    %c2_58 = arith.constant 2 : index
    %c0_59 = arith.constant 0 : index
    %49 = vector.load %arg1[%c0_56, %c2_57, %c2_58, %c0_59] : memref<2x10x10x128xbf16, #tpu.memory_space<vmem>>, vector<2x8x8x128xbf16>
    %50 = vector.shape_cast %49 : vector<2x8x8x128xbf16> to vector<128x128xbf16>
    %c8 = arith.constant 8 : index
    %c0_60 = arith.constant 0 : index
    %c0_61 = arith.constant 0 : index
    %51 = vector.load %arg2[%c8, %c0_60, %c0_61] : memref<9x128x128xbf16, #tpu.memory_space<vmem>>, vector<1x128x128xbf16>
    %52 = vector.shape_cast %51 : vector<1x128x128xbf16> to vector<128x128xbf16>
    %cst_62 = arith.constant dense<0.000000e+00> : vector<128x128xf32>
    %53 = tpu.matmul %50, %52, %cst_62 {dimension_numbers = #tpu.dot_dimension_numbers<[1], [0], [0], [1], [0, 0, 1, 1], [], []>} : vector<128x128xbf16>, vector<128x128xbf16>, vector<128x128xf32> -> vector<128x128xf32>
    %54 = arith.addf %48, %53 : vector<128x128xf32>
    %c0_63 = arith.constant 0 : index
    %c0_64 = arith.constant 0 : index
    %55 = vector.load %arg3[%c0_63, %c0_64] : memref<2x128xf32, #tpu.memory_space<vmem>>, vector<1x128xf32>
    %c1_65 = arith.constant 1 : index
    %c0_66 = arith.constant 0 : index
    %56 = vector.load %arg3[%c1_65, %c0_66] : memref<2x128xf32, #tpu.memory_space<vmem>>, vector<1x128xf32>
    %57 = vector.broadcast %55 : vector<1x128xf32> to vector<128x128xf32>
    %58 = arith.mulf %54, %57 : vector<128x128xf32>
    %59 = vector.broadcast %56 : vector<1x128xf32> to vector<128x128xf32>
    %60 = arith.addf %58, %59 : vector<128x128xf32>
    %cst_67 = arith.constant 0.000000e+00 : f32
    %61 = vector.broadcast %cst_67 : f32 to vector<128x128xf32>
    %62 = arith.maximumf %60, %61 : vector<128x128xf32>
    %63 = vector.shape_cast %62 : vector<128x128xf32> to vector<2x8x8x128xf32>
    %64 = arith.truncf %63 : vector<2x8x8x128xf32> to vector<2x8x8x128xbf16>
    %c0_68 = arith.constant 0 : index
    %c0_69 = arith.constant 0 : index
    %c0_70 = arith.constant 0 : index
    %c0_71 = arith.constant 0 : index
    %65 = vector.load %arg4[%c0_68, %c0_69, %c0_70, %c0_71] : memref<2x8x8x128xbf16, #tpu.memory_space<vmem>>, vector<2x8x8x128xbf16>
    tpu.vector_store %arg4[%c0_68, %c0_69, %c0_70, %c0_71], %64 {strides = array<i32>} : memref<2x8x8x128xbf16, #tpu.memory_space<vmem>>, vector<2x8x8x128xbf16>,
    return
  }
  func.func @transform_0(%arg0: i32) -> (i32, i32, i32, i32) {
    %c0_i32 = arith.constant 0 : i32
    %c0_i32_0 = arith.constant 0 : i32
    %c0_i32_1 = arith.constant 0 : i32
    %c0_i32_2 = arith.constant 0 : i32
    return %arg0, %c0_i32, %c0_i32_0, %c0_i32_1 : i32, i32, i32, i32
  }
  func.func @transform_1(%arg0: i32) -> (i32, i32, i32) {
    %c0_i32 = arith.constant 0 : i32
    %c0_i32_0 = arith.constant 0 : i32
    %c0_i32_1 = arith.constant 0 : i32
    %c0_i32_2 = arith.constant 0 : i32
    return %c0_i32, %c0_i32_0, %c0_i32_1 : i32, i32, i32
  }
  func.func @transform_2(%arg0: i32) -> (i32, i32) {
    %c0_i32 = arith.constant 0 : i32
    %c0_i32_0 = arith.constant 0 : i32
    %c0_i32_1 = arith.constant 0 : i32
    return %c0_i32, %c0_i32_0 : i32, i32
  }
  func.func @transform_3(%arg0: i32) -> (i32, i32, i32, i32) {
    %c0_i32 = arith.constant 0 : i32
    %c0_i32_0 = arith.constant 0 : i32
    %c0_i32_1 = arith.constant 0 : i32
    %c0_i32_2 = arith.constant 0 : i32
    return %arg0, %c0_i32, %c0_i32_0, %c0_i32_1 : i32, i32, i32, i32
  }
}

module attributes {stable_mosaic.version = 11 : i64} {
  func.func @_conv_block_kernel(%arg0: i32, %arg1: memref<2x9x9x64xbf16, #tpu.memory_space<vmem>>, %arg2: memref<2x9x9x64xbf16, #tpu.memory_space<vmem>>, %arg3: memref<2x9x9x64xbf16, #tpu.memory_space<vmem>>, %arg4: memref<2x9x9x64xbf16, #tpu.memory_space<vmem>>, %arg5: memref<9x64x128xbf16, #tpu.memory_space<vmem>>, %arg6: memref<2x128xf32, #tpu.memory_space<vmem>>, %arg7: memref<2x8x8x128xbf16, #tpu.memory_space<vmem>>) attributes {dimension_semantics = [#tpu.dimension_semantics<arbitrary>], iteration_bounds = array<i64: 1>, scalar_prefetch = 0 : i64, scratch_operands = 0 : i64, tpu.core_type = #tpu.core_type<tc>, window_params = [{transform_indices = @transform_0, window_bounds = array<i64: 2, 9, 9, 64>}, {transform_indices = @transform_1, window_bounds = array<i64: 2, 9, 9, 64>}, {transform_indices = @transform_2, window_bounds = array<i64: 2, 9, 9, 64>}, {transform_indices = @transform_3, window_bounds = array<i64: 2, 9, 9, 64>}, {pipeline_mode = #tpu.pipeline_mode<synchronous>, transform_indices = @transform_4, window_bounds = array<i64: 9, 64, 128>}, {pipeline_mode = #tpu.pipeline_mode<synchronous>, transform_indices = @transform_5, window_bounds = array<i64: 2, 128>}, {transform_indices = @transform_6, window_bounds = array<i64: 2, 8, 8, 128>}]} {
    %cst = arith.constant 0.000000e+00 : f32
    %0 = vector.broadcast %cst : f32 to vector<128x128xf32>
    %c0 = arith.constant 0 : index
    %c0_0 = arith.constant 0 : index
    %c0_1 = arith.constant 0 : index
    %c0_2 = arith.constant 0 : index
    %1 = vector.load %arg1[%c0, %c0_0, %c0_1, %c0_2] : memref<2x9x9x64xbf16, #tpu.memory_space<vmem>>, vector<2x8x8x64xbf16>
    %2 = vector.shape_cast %1 : vector<2x8x8x64xbf16> to vector<128x64xbf16>
    %c0_3 = arith.constant 0 : index
    %c0_4 = arith.constant 0 : index
    %c0_5 = arith.constant 0 : index
    %3 = vector.load %arg5[%c0_3, %c0_4, %c0_5] : memref<9x64x128xbf16, #tpu.memory_space<vmem>>, vector<1x64x128xbf16>
    %4 = vector.shape_cast %3 : vector<1x64x128xbf16> to vector<64x128xbf16>
    %cst_6 = arith.constant dense<0.000000e+00> : vector<128x128xf32>
    %5 = tpu.matmul %2, %4, %cst_6 {dimension_numbers = #tpu.dot_dimension_numbers<[1], [0], [0], [1], [0, 0, 1, 1], [], []>} : vector<128x64xbf16>, vector<64x128xbf16>, vector<128x128xf32> -> vector<128x128xf32>
    %6 = arith.addf %0, %5 : vector<128x128xf32>
    %c0_7 = arith.constant 0 : index
    %c0_8 = arith.constant 0 : index
    %c0_9 = arith.constant 0 : index
    %c0_10 = arith.constant 0 : index
    %7 = vector.load %arg2[%c0_7, %c0_8, %c0_9, %c0_10] : memref<2x9x9x64xbf16, #tpu.memory_space<vmem>>, vector<2x8x8x64xbf16>
    %8 = vector.shape_cast %7 : vector<2x8x8x64xbf16> to vector<128x64xbf16>
    %c1 = arith.constant 1 : index
    %c0_11 = arith.constant 0 : index
    %c0_12 = arith.constant 0 : index
    %9 = vector.load %arg5[%c1, %c0_11, %c0_12] : memref<9x64x128xbf16, #tpu.memory_space<vmem>>, vector<1x64x128xbf16>
    %10 = vector.shape_cast %9 : vector<1x64x128xbf16> to vector<64x128xbf16>
    %cst_13 = arith.constant dense<0.000000e+00> : vector<128x128xf32>
    %11 = tpu.matmul %8, %10, %cst_13 {dimension_numbers = #tpu.dot_dimension_numbers<[1], [0], [0], [1], [0, 0, 1, 1], [], []>} : vector<128x64xbf16>, vector<64x128xbf16>, vector<128x128xf32> -> vector<128x128xf32>
    %12 = arith.addf %6, %11 : vector<128x128xf32>
    %c0_14 = arith.constant 0 : index
    %c0_15 = arith.constant 0 : index
    %c1_16 = arith.constant 1 : index
    %c0_17 = arith.constant 0 : index
    %13 = vector.load %arg1[%c0_14, %c0_15, %c1_16, %c0_17] : memref<2x9x9x64xbf16, #tpu.memory_space<vmem>>, vector<2x8x8x64xbf16>
    %14 = vector.shape_cast %13 : vector<2x8x8x64xbf16> to vector<128x64xbf16>
    %c2 = arith.constant 2 : index
    %c0_18 = arith.constant 0 : index
    %c0_19 = arith.constant 0 : index
    %15 = vector.load %arg5[%c2, %c0_18, %c0_19] : memref<9x64x128xbf16, #tpu.memory_space<vmem>>, vector<1x64x128xbf16>
    %16 = vector.shape_cast %15 : vector<1x64x128xbf16> to vector<64x128xbf16>
    %cst_20 = arith.constant dense<0.000000e+00> : vector<128x128xf32>
    %17 = tpu.matmul %14, %16, %cst_20 {dimension_numbers = #tpu.dot_dimension_numbers<[1], [0], [0], [1], [0, 0, 1, 1], [], []>} : vector<128x64xbf16>, vector<64x128xbf16>, vector<128x128xf32> -> vector<128x128xf32>
    %18 = arith.addf %12, %17 : vector<128x128xf32>
    %c0_21 = arith.constant 0 : index
    %c0_22 = arith.constant 0 : index
    %c0_23 = arith.constant 0 : index
    %c0_24 = arith.constant 0 : index
    %19 = vector.load %arg3[%c0_21, %c0_22, %c0_23, %c0_24] : memref<2x9x9x64xbf16, #tpu.memory_space<vmem>>, vector<2x8x8x64xbf16>
    %20 = vector.shape_cast %19 : vector<2x8x8x64xbf16> to vector<128x64xbf16>
    %c3 = arith.constant 3 : index
    %c0_25 = arith.constant 0 : index
    %c0_26 = arith.constant 0 : index
    %21 = vector.load %arg5[%c3, %c0_25, %c0_26] : memref<9x64x128xbf16, #tpu.memory_space<vmem>>, vector<1x64x128xbf16>
    %22 = vector.shape_cast %21 : vector<1x64x128xbf16> to vector<64x128xbf16>
    %cst_27 = arith.constant dense<0.000000e+00> : vector<128x128xf32>
    %23 = tpu.matmul %20, %22, %cst_27 {dimension_numbers = #tpu.dot_dimension_numbers<[1], [0], [0], [1], [0, 0, 1, 1], [], []>} : vector<128x64xbf16>, vector<64x128xbf16>, vector<128x128xf32> -> vector<128x128xf32>
    %24 = arith.addf %18, %23 : vector<128x128xf32>
    %c0_28 = arith.constant 0 : index
    %c0_29 = arith.constant 0 : index
    %c0_30 = arith.constant 0 : index
    %c0_31 = arith.constant 0 : index
    %25 = vector.load %arg4[%c0_28, %c0_29, %c0_30, %c0_31] : memref<2x9x9x64xbf16, #tpu.memory_space<vmem>>, vector<2x8x8x64xbf16>
    %26 = vector.shape_cast %25 : vector<2x8x8x64xbf16> to vector<128x64xbf16>
    %c4 = arith.constant 4 : index
    %c0_32 = arith.constant 0 : index
    %c0_33 = arith.constant 0 : index
    %27 = vector.load %arg5[%c4, %c0_32, %c0_33] : memref<9x64x128xbf16, #tpu.memory_space<vmem>>, vector<1x64x128xbf16>
    %28 = vector.shape_cast %27 : vector<1x64x128xbf16> to vector<64x128xbf16>
    %cst_34 = arith.constant dense<0.000000e+00> : vector<128x128xf32>
    %29 = tpu.matmul %26, %28, %cst_34 {dimension_numbers = #tpu.dot_dimension_numbers<[1], [0], [0], [1], [0, 0, 1, 1], [], []>} : vector<128x64xbf16>, vector<64x128xbf16>, vector<128x128xf32> -> vector<128x128xf32>
    %30 = arith.addf %24, %29 : vector<128x128xf32>
    %c0_35 = arith.constant 0 : index
    %c0_36 = arith.constant 0 : index
    %c1_37 = arith.constant 1 : index
    %c0_38 = arith.constant 0 : index
    %31 = vector.load %arg3[%c0_35, %c0_36, %c1_37, %c0_38] : memref<2x9x9x64xbf16, #tpu.memory_space<vmem>>, vector<2x8x8x64xbf16>
    %32 = vector.shape_cast %31 : vector<2x8x8x64xbf16> to vector<128x64xbf16>
    %c5 = arith.constant 5 : index
    %c0_39 = arith.constant 0 : index
    %c0_40 = arith.constant 0 : index
    %33 = vector.load %arg5[%c5, %c0_39, %c0_40] : memref<9x64x128xbf16, #tpu.memory_space<vmem>>, vector<1x64x128xbf16>
    %34 = vector.shape_cast %33 : vector<1x64x128xbf16> to vector<64x128xbf16>
    %cst_41 = arith.constant dense<0.000000e+00> : vector<128x128xf32>
    %35 = tpu.matmul %32, %34, %cst_41 {dimension_numbers = #tpu.dot_dimension_numbers<[1], [0], [0], [1], [0, 0, 1, 1], [], []>} : vector<128x64xbf16>, vector<64x128xbf16>, vector<128x128xf32> -> vector<128x128xf32>
    %36 = arith.addf %30, %35 : vector<128x128xf32>
    %c0_42 = arith.constant 0 : index
    %c1_43 = arith.constant 1 : index
    %c0_44 = arith.constant 0 : index
    %c0_45 = arith.constant 0 : index
    %37 = vector.load %arg1[%c0_42, %c1_43, %c0_44, %c0_45] : memref<2x9x9x64xbf16, #tpu.memory_space<vmem>>, vector<2x8x8x64xbf16>
    %38 = vector.shape_cast %37 : vector<2x8x8x64xbf16> to vector<128x64xbf16>
    %c6 = arith.constant 6 : index
    %c0_46 = arith.constant 0 : index
    %c0_47 = arith.constant 0 : index
    %39 = vector.load %arg5[%c6, %c0_46, %c0_47] : memref<9x64x128xbf16, #tpu.memory_space<vmem>>, vector<1x64x128xbf16>
    %40 = vector.shape_cast %39 : vector<1x64x128xbf16> to vector<64x128xbf16>
    %cst_48 = arith.constant dense<0.000000e+00> : vector<128x128xf32>
    %41 = tpu.matmul %38, %40, %cst_48 {dimension_numbers = #tpu.dot_dimension_numbers<[1], [0], [0], [1], [0, 0, 1, 1], [], []>} : vector<128x64xbf16>, vector<64x128xbf16>, vector<128x128xf32> -> vector<128x128xf32>
    %42 = arith.addf %36, %41 : vector<128x128xf32>
    %c0_49 = arith.constant 0 : index
    %c1_50 = arith.constant 1 : index
    %c0_51 = arith.constant 0 : index
    %c0_52 = arith.constant 0 : index
    %43 = vector.load %arg2[%c0_49, %c1_50, %c0_51, %c0_52] : memref<2x9x9x64xbf16, #tpu.memory_space<vmem>>, vector<2x8x8x64xbf16>
    %44 = vector.shape_cast %43 : vector<2x8x8x64xbf16> to vector<128x64xbf16>
    %c7 = arith.constant 7 : index
    %c0_53 = arith.constant 0 : index
    %c0_54 = arith.constant 0 : index
    %45 = vector.load %arg5[%c7, %c0_53, %c0_54] : memref<9x64x128xbf16, #tpu.memory_space<vmem>>, vector<1x64x128xbf16>
    %46 = vector.shape_cast %45 : vector<1x64x128xbf16> to vector<64x128xbf16>
    %cst_55 = arith.constant dense<0.000000e+00> : vector<128x128xf32>
    %47 = tpu.matmul %44, %46, %cst_55 {dimension_numbers = #tpu.dot_dimension_numbers<[1], [0], [0], [1], [0, 0, 1, 1], [], []>} : vector<128x64xbf16>, vector<64x128xbf16>, vector<128x128xf32> -> vector<128x128xf32>
    %48 = arith.addf %42, %47 : vector<128x128xf32>
    %c0_56 = arith.constant 0 : index
    %c1_57 = arith.constant 1 : index
    %c1_58 = arith.constant 1 : index
    %c0_59 = arith.constant 0 : index
    %49 = vector.load %arg1[%c0_56, %c1_57, %c1_58, %c0_59] : memref<2x9x9x64xbf16, #tpu.memory_space<vmem>>, vector<2x8x8x64xbf16>
    %50 = vector.shape_cast %49 : vector<2x8x8x64xbf16> to vector<128x64xbf16>
    %c8 = arith.constant 8 : index
    %c0_60 = arith.constant 0 : index
    %c0_61 = arith.constant 0 : index
    %51 = vector.load %arg5[%c8, %c0_60, %c0_61] : memref<9x64x128xbf16, #tpu.memory_space<vmem>>, vector<1x64x128xbf16>
    %52 = vector.shape_cast %51 : vector<1x64x128xbf16> to vector<64x128xbf16>
    %cst_62 = arith.constant dense<0.000000e+00> : vector<128x128xf32>
    %53 = tpu.matmul %50, %52, %cst_62 {dimension_numbers = #tpu.dot_dimension_numbers<[1], [0], [0], [1], [0, 0, 1, 1], [], []>} : vector<128x64xbf16>, vector<64x128xbf16>, vector<128x128xf32> -> vector<128x128xf32>
    %54 = arith.addf %48, %53 : vector<128x128xf32>
    %c0_63 = arith.constant 0 : index
    %c0_64 = arith.constant 0 : index
    %55 = vector.load %arg6[%c0_63, %c0_64] : memref<2x128xf32, #tpu.memory_space<vmem>>, vector<1x128xf32>
    %c1_65 = arith.constant 1 : index
    %c0_66 = arith.constant 0 : index
    %56 = vector.load %arg6[%c1_65, %c0_66] : memref<2x128xf32, #tpu.memory_space<vmem>>, vector<1x128xf32>
    %57 = vector.broadcast %55 : vector<1x128xf32> to vector<128x128xf32>
    %58 = arith.mulf %54, %57 : vector<128x128xf32>
    %59 = vector.broadcast %56 : vector<1x128xf32> to vector<128x128xf32>
    %60 = arith.addf %58, %59 : vector<128x128xf32>
    %cst_67 = arith.constant 0.000000e+00 : f32
    %61 = vector.broadcast %cst_67 : f32 to vector<128x128xf32>
    %62 = arith.maximumf %60, %61 : vector<128x128xf32>
    %63 = vector.shape_cast %62 : vector<128x128xf32> to vector<2x8x8x128xf32>
    %64 = arith.truncf %63 : vector<2x8x8x128xf32> to vector<2x8x8x128xbf16>
    %c0_68 = arith.constant 0 : index
    %c0_69 = arith.constant 0 : index
    %c0_70 = arith.constant 0 : index
    %c0_71 = arith.constant 0 : index
    %65 = vector.load %arg7[%c0_68, %c0_69, %c0_70, %c0_71] : memref<2x8x8x128xbf16, #tpu.memory_space<vmem>>, vector<2x8x8x128xbf16>
    tpu.vector_store %arg7[%c0_68, %c0_69, %c0_70, %c0_71], %64 {strides = array<i32>} : memref<2x8x8x128xbf16, #tpu.memory_space<vmem>>, vector<2x8x8x128xbf16>,
    return
  }
  func.func @transform_0(%arg0: i32) -> (i32, i32, i32, i32) {
    %c0_i32 = arith.constant 0 : i32
    %c0_i32_0 = arith.constant 0 : i32
    %c0_i32_1 = arith.constant 0 : i32
    %c0_i32_2 = arith.constant 0 : i32
    return %arg0, %c0_i32, %c0_i32_0, %c0_i32_1 : i32, i32, i32, i32
  }
  func.func @transform_1(%arg0: i32) -> (i32, i32, i32, i32) {
    %c0_i32 = arith.constant 0 : i32
    %c0_i32_0 = arith.constant 0 : i32
    %c0_i32_1 = arith.constant 0 : i32
    %c0_i32_2 = arith.constant 0 : i32
    return %arg0, %c0_i32, %c0_i32_0, %c0_i32_1 : i32, i32, i32, i32
  }
  func.func @transform_2(%arg0: i32) -> (i32, i32, i32, i32) {
    %c0_i32 = arith.constant 0 : i32
    %c0_i32_0 = arith.constant 0 : i32
    %c0_i32_1 = arith.constant 0 : i32
    %c0_i32_2 = arith.constant 0 : i32
    return %arg0, %c0_i32, %c0_i32_0, %c0_i32_1 : i32, i32, i32, i32
  }
  func.func @transform_3(%arg0: i32) -> (i32, i32, i32, i32) {
    %c0_i32 = arith.constant 0 : i32
    %c0_i32_0 = arith.constant 0 : i32
    %c0_i32_1 = arith.constant 0 : i32
    %c0_i32_2 = arith.constant 0 : i32
    return %arg0, %c0_i32, %c0_i32_0, %c0_i32_1 : i32, i32, i32, i32
  }
  func.func @transform_4(%arg0: i32) -> (i32, i32, i32) {
    %c0_i32 = arith.constant 0 : i32
    %c0_i32_0 = arith.constant 0 : i32
    %c0_i32_1 = arith.constant 0 : i32
    %c0_i32_2 = arith.constant 0 : i32
    return %c0_i32, %c0_i32_0, %c0_i32_1 : i32, i32, i32
  }
  func.func @transform_5(%arg0: i32) -> (i32, i32) {
    %c0_i32 = arith.constant 0 : i32
    %c0_i32_0 = arith.constant 0 : i32
    %c0_i32_1 = arith.constant 0 : i32
    return %c0_i32, %c0_i32_0 : i32, i32
  }
  func.func @transform_6(%arg0: i32) -> (i32, i32, i32, i32) {
    %c0_i32 = arith.constant 0 : i32
    %c0_i32_0 = arith.constant 0 : i32
    %c0_i32_1 = arith.constant 0 : i32
    %c0_i32_2 = arith.constant 0 : i32
    return %arg0, %c0_i32, %c0_i32_0, %c0_i32_1 : i32, i32, i32, i32
  }
}

module attributes {stable_mosaic.version = 11 : i64} {
  func.func @_conv_block_kernel(%arg0: i32, %arg1: memref<2x10x10x128xbf16, #tpu.memory_space<vmem>>, %arg2: memref<9x128x128xbf16, #tpu.memory_space<vmem>>, %arg3: memref<2x8x8x64xbf16, #tpu.memory_space<vmem>>, %arg4: memref<1x64x128xbf16, #tpu.memory_space<vmem>>, %arg5: memref<2x8x8x128xbf16, #tpu.memory_space<vmem>>) attributes {dimension_semantics = [#tpu.dimension_semantics<arbitrary>], iteration_bounds = array<i64: 1>, scalar_prefetch = 0 : i64, scratch_operands = 0 : i64, tpu.core_type = #tpu.core_type<tc>, window_params = [{transform_indices = @transform_0, window_bounds = array<i64: 2, 10, 10, 128>}, {pipeline_mode = #tpu.pipeline_mode<synchronous>, transform_indices = @transform_1, window_bounds = array<i64: 9, 128, 128>}, {transform_indices = @transform_2, window_bounds = array<i64: 2, 8, 8, 64>}, {pipeline_mode = #tpu.pipeline_mode<synchronous>, transform_indices = @transform_3, window_bounds = array<i64: 1, 64, 128>}, {transform_indices = @transform_4, window_bounds = array<i64: 2, 8, 8, 128>}]} {
    %cst = arith.constant 0.000000e+00 : f32
    %0 = vector.broadcast %cst : f32 to vector<128x128xf32>
    %c0 = arith.constant 0 : index
    %c0_0 = arith.constant 0 : index
    %c0_1 = arith.constant 0 : index
    %c0_2 = arith.constant 0 : index
    %1 = vector.load %arg1[%c0, %c0_0, %c0_1, %c0_2] : memref<2x10x10x128xbf16, #tpu.memory_space<vmem>>, vector<2x8x8x128xbf16>
    %2 = vector.shape_cast %1 : vector<2x8x8x128xbf16> to vector<128x128xbf16>
    %c0_3 = arith.constant 0 : index
    %c0_4 = arith.constant 0 : index
    %c0_5 = arith.constant 0 : index
    %3 = vector.load %arg2[%c0_3, %c0_4, %c0_5] : memref<9x128x128xbf16, #tpu.memory_space<vmem>>, vector<1x128x128xbf16>
    %4 = vector.shape_cast %3 : vector<1x128x128xbf16> to vector<128x128xbf16>
    %cst_6 = arith.constant dense<0.000000e+00> : vector<128x128xf32>
    %5 = tpu.matmul %2, %4, %cst_6 {dimension_numbers = #tpu.dot_dimension_numbers<[1], [0], [0], [1], [0, 0, 1, 1], [], []>} : vector<128x128xbf16>, vector<128x128xbf16>, vector<128x128xf32> -> vector<128x128xf32>
    %6 = arith.addf %0, %5 : vector<128x128xf32>
    %c0_7 = arith.constant 0 : index
    %c0_8 = arith.constant 0 : index
    %c1 = arith.constant 1 : index
    %c0_9 = arith.constant 0 : index
    %7 = vector.load %arg1[%c0_7, %c0_8, %c1, %c0_9] : memref<2x10x10x128xbf16, #tpu.memory_space<vmem>>, vector<2x8x8x128xbf16>
    %8 = vector.shape_cast %7 : vector<2x8x8x128xbf16> to vector<128x128xbf16>
    %c1_10 = arith.constant 1 : index
    %c0_11 = arith.constant 0 : index
    %c0_12 = arith.constant 0 : index
    %9 = vector.load %arg2[%c1_10, %c0_11, %c0_12] : memref<9x128x128xbf16, #tpu.memory_space<vmem>>, vector<1x128x128xbf16>
    %10 = vector.shape_cast %9 : vector<1x128x128xbf16> to vector<128x128xbf16>
    %cst_13 = arith.constant dense<0.000000e+00> : vector<128x128xf32>
    %11 = tpu.matmul %8, %10, %cst_13 {dimension_numbers = #tpu.dot_dimension_numbers<[1], [0], [0], [1], [0, 0, 1, 1], [], []>} : vector<128x128xbf16>, vector<128x128xbf16>, vector<128x128xf32> -> vector<128x128xf32>
    %12 = arith.addf %6, %11 : vector<128x128xf32>
    %c0_14 = arith.constant 0 : index
    %c0_15 = arith.constant 0 : index
    %c2 = arith.constant 2 : index
    %c0_16 = arith.constant 0 : index
    %13 = vector.load %arg1[%c0_14, %c0_15, %c2, %c0_16] : memref<2x10x10x128xbf16, #tpu.memory_space<vmem>>, vector<2x8x8x128xbf16>
    %14 = vector.shape_cast %13 : vector<2x8x8x128xbf16> to vector<128x128xbf16>
    %c2_17 = arith.constant 2 : index
    %c0_18 = arith.constant 0 : index
    %c0_19 = arith.constant 0 : index
    %15 = vector.load %arg2[%c2_17, %c0_18, %c0_19] : memref<9x128x128xbf16, #tpu.memory_space<vmem>>, vector<1x128x128xbf16>
    %16 = vector.shape_cast %15 : vector<1x128x128xbf16> to vector<128x128xbf16>
    %cst_20 = arith.constant dense<0.000000e+00> : vector<128x128xf32>
    %17 = tpu.matmul %14, %16, %cst_20 {dimension_numbers = #tpu.dot_dimension_numbers<[1], [0], [0], [1], [0, 0, 1, 1], [], []>} : vector<128x128xbf16>, vector<128x128xbf16>, vector<128x128xf32> -> vector<128x128xf32>
    %18 = arith.addf %12, %17 : vector<128x128xf32>
    %c0_21 = arith.constant 0 : index
    %c1_22 = arith.constant 1 : index
    %c0_23 = arith.constant 0 : index
    %c0_24 = arith.constant 0 : index
    %19 = vector.load %arg1[%c0_21, %c1_22, %c0_23, %c0_24] : memref<2x10x10x128xbf16, #tpu.memory_space<vmem>>, vector<2x8x8x128xbf16>
    %20 = vector.shape_cast %19 : vector<2x8x8x128xbf16> to vector<128x128xbf16>
    %c3 = arith.constant 3 : index
    %c0_25 = arith.constant 0 : index
    %c0_26 = arith.constant 0 : index
    %21 = vector.load %arg2[%c3, %c0_25, %c0_26] : memref<9x128x128xbf16, #tpu.memory_space<vmem>>, vector<1x128x128xbf16>
    %22 = vector.shape_cast %21 : vector<1x128x128xbf16> to vector<128x128xbf16>
    %cst_27 = arith.constant dense<0.000000e+00> : vector<128x128xf32>
    %23 = tpu.matmul %20, %22, %cst_27 {dimension_numbers = #tpu.dot_dimension_numbers<[1], [0], [0], [1], [0, 0, 1, 1], [], []>} : vector<128x128xbf16>, vector<128x128xbf16>, vector<128x128xf32> -> vector<128x128xf32>
    %24 = arith.addf %18, %23 : vector<128x128xf32>
    %c0_28 = arith.constant 0 : index
    %c1_29 = arith.constant 1 : index
    %c1_30 = arith.constant 1 : index
    %c0_31 = arith.constant 0 : index
    %25 = vector.load %arg1[%c0_28, %c1_29, %c1_30, %c0_31] : memref<2x10x10x128xbf16, #tpu.memory_space<vmem>>, vector<2x8x8x128xbf16>
    %26 = vector.shape_cast %25 : vector<2x8x8x128xbf16> to vector<128x128xbf16>
    %c4 = arith.constant 4 : index
    %c0_32 = arith.constant 0 : index
    %c0_33 = arith.constant 0 : index
    %27 = vector.load %arg2[%c4, %c0_32, %c0_33] : memref<9x128x128xbf16, #tpu.memory_space<vmem>>, vector<1x128x128xbf16>
    %28 = vector.shape_cast %27 : vector<1x128x128xbf16> to vector<128x128xbf16>
    %cst_34 = arith.constant dense<0.000000e+00> : vector<128x128xf32>
    %29 = tpu.matmul %26, %28, %cst_34 {dimension_numbers = #tpu.dot_dimension_numbers<[1], [0], [0], [1], [0, 0, 1, 1], [], []>} : vector<128x128xbf16>, vector<128x128xbf16>, vector<128x128xf32> -> vector<128x128xf32>
    %30 = arith.addf %24, %29 : vector<128x128xf32>
    %c0_35 = arith.constant 0 : index
    %c1_36 = arith.constant 1 : index
    %c2_37 = arith.constant 2 : index
    %c0_38 = arith.constant 0 : index
    %31 = vector.load %arg1[%c0_35, %c1_36, %c2_37, %c0_38] : memref<2x10x10x128xbf16, #tpu.memory_space<vmem>>, vector<2x8x8x128xbf16>
    %32 = vector.shape_cast %31 : vector<2x8x8x128xbf16> to vector<128x128xbf16>
    %c5 = arith.constant 5 : index
    %c0_39 = arith.constant 0 : index
    %c0_40 = arith.constant 0 : index
    %33 = vector.load %arg2[%c5, %c0_39, %c0_40] : memref<9x128x128xbf16, #tpu.memory_space<vmem>>, vector<1x128x128xbf16>
    %34 = vector.shape_cast %33 : vector<1x128x128xbf16> to vector<128x128xbf16>
    %cst_41 = arith.constant dense<0.000000e+00> : vector<128x128xf32>
    %35 = tpu.matmul %32, %34, %cst_41 {dimension_numbers = #tpu.dot_dimension_numbers<[1], [0], [0], [1], [0, 0, 1, 1], [], []>} : vector<128x128xbf16>, vector<128x128xbf16>, vector<128x128xf32> -> vector<128x128xf32>
    %36 = arith.addf %30, %35 : vector<128x128xf32>
    %c0_42 = arith.constant 0 : index
    %c2_43 = arith.constant 2 : index
    %c0_44 = arith.constant 0 : index
    %c0_45 = arith.constant 0 : index
    %37 = vector.load %arg1[%c0_42, %c2_43, %c0_44, %c0_45] : memref<2x10x10x128xbf16, #tpu.memory_space<vmem>>, vector<2x8x8x128xbf16>
    %38 = vector.shape_cast %37 : vector<2x8x8x128xbf16> to vector<128x128xbf16>
    %c6 = arith.constant 6 : index
    %c0_46 = arith.constant 0 : index
    %c0_47 = arith.constant 0 : index
    %39 = vector.load %arg2[%c6, %c0_46, %c0_47] : memref<9x128x128xbf16, #tpu.memory_space<vmem>>, vector<1x128x128xbf16>
    %40 = vector.shape_cast %39 : vector<1x128x128xbf16> to vector<128x128xbf16>
    %cst_48 = arith.constant dense<0.000000e+00> : vector<128x128xf32>
    %41 = tpu.matmul %38, %40, %cst_48 {dimension_numbers = #tpu.dot_dimension_numbers<[1], [0], [0], [1], [0, 0, 1, 1], [], []>} : vector<128x128xbf16>, vector<128x128xbf16>, vector<128x128xf32> -> vector<128x128xf32>
    %42 = arith.addf %36, %41 : vector<128x128xf32>
    %c0_49 = arith.constant 0 : index
    %c2_50 = arith.constant 2 : index
    %c1_51 = arith.constant 1 : index
    %c0_52 = arith.constant 0 : index
    %43 = vector.load %arg1[%c0_49, %c2_50, %c1_51, %c0_52] : memref<2x10x10x128xbf16, #tpu.memory_space<vmem>>, vector<2x8x8x128xbf16>
    %44 = vector.shape_cast %43 : vector<2x8x8x128xbf16> to vector<128x128xbf16>
    %c7 = arith.constant 7 : index
    %c0_53 = arith.constant 0 : index
    %c0_54 = arith.constant 0 : index
    %45 = vector.load %arg2[%c7, %c0_53, %c0_54] : memref<9x128x128xbf16, #tpu.memory_space<vmem>>, vector<1x128x128xbf16>
    %46 = vector.shape_cast %45 : vector<1x128x128xbf16> to vector<128x128xbf16>
    %cst_55 = arith.constant dense<0.000000e+00> : vector<128x128xf32>
    %47 = tpu.matmul %44, %46, %cst_55 {dimension_numbers = #tpu.dot_dimension_numbers<[1], [0], [0], [1], [0, 0, 1, 1], [], []>} : vector<128x128xbf16>, vector<128x128xbf16>, vector<128x128xf32> -> vector<128x128xf32>
    %48 = arith.addf %42, %47 : vector<128x128xf32>
    %c0_56 = arith.constant 0 : index
    %c2_57 = arith.constant 2 : index
    %c2_58 = arith.constant 2 : index
    %c0_59 = arith.constant 0 : index
    %49 = vector.load %arg1[%c0_56, %c2_57, %c2_58, %c0_59] : memref<2x10x10x128xbf16, #tpu.memory_space<vmem>>, vector<2x8x8x128xbf16>
    %50 = vector.shape_cast %49 : vector<2x8x8x128xbf16> to vector<128x128xbf16>
    %c8 = arith.constant 8 : index
    %c0_60 = arith.constant 0 : index
    %c0_61 = arith.constant 0 : index
    %51 = vector.load %arg2[%c8, %c0_60, %c0_61] : memref<9x128x128xbf16, #tpu.memory_space<vmem>>, vector<1x128x128xbf16>
    %52 = vector.shape_cast %51 : vector<1x128x128xbf16> to vector<128x128xbf16>
    %cst_62 = arith.constant dense<0.000000e+00> : vector<128x128xf32>
    %53 = tpu.matmul %50, %52, %cst_62 {dimension_numbers = #tpu.dot_dimension_numbers<[1], [0], [0], [1], [0, 0, 1, 1], [], []>} : vector<128x128xbf16>, vector<128x128xbf16>, vector<128x128xf32> -> vector<128x128xf32>
    %54 = arith.addf %48, %53 : vector<128x128xf32>
    %c0_63 = arith.constant 0 : index
    %c0_64 = arith.constant 0 : index
    %c0_65 = arith.constant 0 : index
    %c0_66 = arith.constant 0 : index
    %55 = vector.load %arg3[%c0_63, %c0_64, %c0_65, %c0_66] : memref<2x8x8x64xbf16, #tpu.memory_space<vmem>>, vector<2x8x8x64xbf16>
    %56 = vector.shape_cast %55 : vector<2x8x8x64xbf16> to vector<128x64xbf16>
    %c0_67 = arith.constant 0 : index
    %c0_68 = arith.constant 0 : index
    %c0_69 = arith.constant 0 : index
    %57 = vector.load %arg4[%c0_67, %c0_68, %c0_69] : memref<1x64x128xbf16, #tpu.memory_space<vmem>>, vector<1x64x128xbf16>
    %58 = vector.shape_cast %57 : vector<1x64x128xbf16> to vector<64x128xbf16>
    %cst_70 = arith.constant dense<0.000000e+00> : vector<128x128xf32>
    %59 = tpu.matmul %56, %58, %cst_70 {dimension_numbers = #tpu.dot_dimension_numbers<[1], [0], [0], [1], [0, 0, 1, 1], [], []>} : vector<128x64xbf16>, vector<64x128xbf16>, vector<128x128xf32> -> vector<128x128xf32>
    %60 = arith.addf %54, %59 : vector<128x128xf32>
    %61 = vector.shape_cast %60 : vector<128x128xf32> to vector<2x8x8x128xf32>
    %62 = arith.truncf %61 : vector<2x8x8x128xf32> to vector<2x8x8x128xbf16>
    %c0_71 = arith.constant 0 : index
    %c0_72 = arith.constant 0 : index
    %c0_73 = arith.constant 0 : index
    %c0_74 = arith.constant 0 : index
    %63 = vector.load %arg5[%c0_71, %c0_72, %c0_73, %c0_74] : memref<2x8x8x128xbf16, #tpu.memory_space<vmem>>, vector<2x8x8x128xbf16>
    tpu.vector_store %arg5[%c0_71, %c0_72, %c0_73, %c0_74], %62 {strides = array<i32>} : memref<2x8x8x128xbf16, #tpu.memory_space<vmem>>, vector<2x8x8x128xbf16>,
    return
  }
  func.func @transform_0(%arg0: i32) -> (i32, i32, i32, i32) {
    %c0_i32 = arith.constant 0 : i32
    %c0_i32_0 = arith.constant 0 : i32
    %c0_i32_1 = arith.constant 0 : i32
    %c0_i32_2 = arith.constant 0 : i32
    return %arg0, %c0_i32, %c0_i32_0, %c0_i32_1 : i32, i32, i32, i32
  }
  func.func @transform_1(%arg0: i32) -> (i32, i32, i32) {
    %c0_i32 = arith.constant 0 : i32
    %c0_i32_0 = arith.constant 0 : i32
    %c0_i32_1 = arith.constant 0 : i32
    %c0_i32_2 = arith.constant 0 : i32
    return %c0_i32, %c0_i32_0, %c0_i32_1 : i32, i32, i32
  }
  func.func @transform_2(%arg0: i32) -> (i32, i32, i32, i32) {
    %c0_i32 = arith.constant 0 : i32
    %c0_i32_0 = arith.constant 0 : i32
    %c0_i32_1 = arith.constant 0 : i32
    %c0_i32_2 = arith.constant 0 : i32
    return %arg0, %c0_i32, %c0_i32_0, %c0_i32_1 : i32, i32, i32, i32
  }
  func.func @transform_3(%arg0: i32) -> (i32, i32, i32) {
    %c0_i32 = arith.constant 0 : i32
    %c0_i32_0 = arith.constant 0 : i32
    %c0_i32_1 = arith.constant 0 : i32
    %c0_i32_2 = arith.constant 0 : i32
    return %c0_i32, %c0_i32_0, %c0_i32_1 : i32, i32, i32
  }
  func.func @transform_4(%arg0: i32) -> (i32, i32, i32, i32) {
    %c0_i32 = arith.constant 0 : i32
    %c0_i32_0 = arith.constant 0 : i32
    %c0_i32_1 = arith.constant 0 : i32
    %c0_i32_2 = arith.constant 0 : i32
    return %arg0, %c0_i32, %c0_i32_0, %c0_i32_1 : i32, i32, i32, i32
  }
}

module attributes {stable_mosaic.version = 11 : i64} {
  func.func @_conv_block_kernel(%arg0: i32, %arg1: memref<2x10x10x128xbf16, #tpu.memory_space<vmem>>, %arg2: memref<9x128x128xbf16, #tpu.memory_space<vmem>>, %arg3: memref<2x8x8x128xbf16, #tpu.memory_space<vmem>>, %arg4: memref<2x8x8x128xf32, #tpu.memory_space<vmem>>) attributes {dimension_semantics = [#tpu.dimension_semantics<arbitrary>], iteration_bounds = array<i64: 1>, scalar_prefetch = 0 : i64, scratch_operands = 0 : i64, tpu.core_type = #tpu.core_type<tc>, window_params = [{transform_indices = @transform_0, window_bounds = array<i64: 2, 10, 10, 128>}, {pipeline_mode = #tpu.pipeline_mode<synchronous>, transform_indices = @transform_1, window_bounds = array<i64: 9, 128, 128>}, {transform_indices = @transform_2, window_bounds = array<i64: 2, 8, 8, 128>}, {transform_indices = @transform_3, window_bounds = array<i64: 2, 8, 8, 128>}]} {
    %cst = arith.constant 0.000000e+00 : f32
    %0 = vector.broadcast %cst : f32 to vector<128x128xf32>
    %c0 = arith.constant 0 : index
    %c0_0 = arith.constant 0 : index
    %c0_1 = arith.constant 0 : index
    %c0_2 = arith.constant 0 : index
    %1 = vector.load %arg1[%c0, %c0_0, %c0_1, %c0_2] : memref<2x10x10x128xbf16, #tpu.memory_space<vmem>>, vector<2x8x8x128xbf16>
    %2 = vector.shape_cast %1 : vector<2x8x8x128xbf16> to vector<128x128xbf16>
    %c0_3 = arith.constant 0 : index
    %c0_4 = arith.constant 0 : index
    %c0_5 = arith.constant 0 : index
    %3 = vector.load %arg2[%c0_3, %c0_4, %c0_5] : memref<9x128x128xbf16, #tpu.memory_space<vmem>>, vector<1x128x128xbf16>
    %4 = vector.shape_cast %3 : vector<1x128x128xbf16> to vector<128x128xbf16>
    %cst_6 = arith.constant dense<0.000000e+00> : vector<128x128xf32>
    %5 = tpu.matmul %2, %4, %cst_6 {dimension_numbers = #tpu.dot_dimension_numbers<[1], [0], [0], [1], [0, 0, 1, 1], [], []>} : vector<128x128xbf16>, vector<128x128xbf16>, vector<128x128xf32> -> vector<128x128xf32>
    %6 = arith.addf %0, %5 : vector<128x128xf32>
    %c0_7 = arith.constant 0 : index
    %c0_8 = arith.constant 0 : index
    %c1 = arith.constant 1 : index
    %c0_9 = arith.constant 0 : index
    %7 = vector.load %arg1[%c0_7, %c0_8, %c1, %c0_9] : memref<2x10x10x128xbf16, #tpu.memory_space<vmem>>, vector<2x8x8x128xbf16>
    %8 = vector.shape_cast %7 : vector<2x8x8x128xbf16> to vector<128x128xbf16>
    %c1_10 = arith.constant 1 : index
    %c0_11 = arith.constant 0 : index
    %c0_12 = arith.constant 0 : index
    %9 = vector.load %arg2[%c1_10, %c0_11, %c0_12] : memref<9x128x128xbf16, #tpu.memory_space<vmem>>, vector<1x128x128xbf16>
    %10 = vector.shape_cast %9 : vector<1x128x128xbf16> to vector<128x128xbf16>
    %cst_13 = arith.constant dense<0.000000e+00> : vector<128x128xf32>
    %11 = tpu.matmul %8, %10, %cst_13 {dimension_numbers = #tpu.dot_dimension_numbers<[1], [0], [0], [1], [0, 0, 1, 1], [], []>} : vector<128x128xbf16>, vector<128x128xbf16>, vector<128x128xf32> -> vector<128x128xf32>
    %12 = arith.addf %6, %11 : vector<128x128xf32>
    %c0_14 = arith.constant 0 : index
    %c0_15 = arith.constant 0 : index
    %c2 = arith.constant 2 : index
    %c0_16 = arith.constant 0 : index
    %13 = vector.load %arg1[%c0_14, %c0_15, %c2, %c0_16] : memref<2x10x10x128xbf16, #tpu.memory_space<vmem>>, vector<2x8x8x128xbf16>
    %14 = vector.shape_cast %13 : vector<2x8x8x128xbf16> to vector<128x128xbf16>
    %c2_17 = arith.constant 2 : index
    %c0_18 = arith.constant 0 : index
    %c0_19 = arith.constant 0 : index
    %15 = vector.load %arg2[%c2_17, %c0_18, %c0_19] : memref<9x128x128xbf16, #tpu.memory_space<vmem>>, vector<1x128x128xbf16>
    %16 = vector.shape_cast %15 : vector<1x128x128xbf16> to vector<128x128xbf16>
    %cst_20 = arith.constant dense<0.000000e+00> : vector<128x128xf32>
    %17 = tpu.matmul %14, %16, %cst_20 {dimension_numbers = #tpu.dot_dimension_numbers<[1], [0], [0], [1], [0, 0, 1, 1], [], []>} : vector<128x128xbf16>, vector<128x128xbf16>, vector<128x128xf32> -> vector<128x128xf32>
    %18 = arith.addf %12, %17 : vector<128x128xf32>
    %c0_21 = arith.constant 0 : index
    %c1_22 = arith.constant 1 : index
    %c0_23 = arith.constant 0 : index
    %c0_24 = arith.constant 0 : index
    %19 = vector.load %arg1[%c0_21, %c1_22, %c0_23, %c0_24] : memref<2x10x10x128xbf16, #tpu.memory_space<vmem>>, vector<2x8x8x128xbf16>
    %20 = vector.shape_cast %19 : vector<2x8x8x128xbf16> to vector<128x128xbf16>
    %c3 = arith.constant 3 : index
    %c0_25 = arith.constant 0 : index
    %c0_26 = arith.constant 0 : index
    %21 = vector.load %arg2[%c3, %c0_25, %c0_26] : memref<9x128x128xbf16, #tpu.memory_space<vmem>>, vector<1x128x128xbf16>
    %22 = vector.shape_cast %21 : vector<1x128x128xbf16> to vector<128x128xbf16>
    %cst_27 = arith.constant dense<0.000000e+00> : vector<128x128xf32>
    %23 = tpu.matmul %20, %22, %cst_27 {dimension_numbers = #tpu.dot_dimension_numbers<[1], [0], [0], [1], [0, 0, 1, 1], [], []>} : vector<128x128xbf16>, vector<128x128xbf16>, vector<128x128xf32> -> vector<128x128xf32>
    %24 = arith.addf %18, %23 : vector<128x128xf32>
    %c0_28 = arith.constant 0 : index
    %c1_29 = arith.constant 1 : index
    %c1_30 = arith.constant 1 : index
    %c0_31 = arith.constant 0 : index
    %25 = vector.load %arg1[%c0_28, %c1_29, %c1_30, %c0_31] : memref<2x10x10x128xbf16, #tpu.memory_space<vmem>>, vector<2x8x8x128xbf16>
    %26 = vector.shape_cast %25 : vector<2x8x8x128xbf16> to vector<128x128xbf16>
    %c4 = arith.constant 4 : index
    %c0_32 = arith.constant 0 : index
    %c0_33 = arith.constant 0 : index
    %27 = vector.load %arg2[%c4, %c0_32, %c0_33] : memref<9x128x128xbf16, #tpu.memory_space<vmem>>, vector<1x128x128xbf16>
    %28 = vector.shape_cast %27 : vector<1x128x128xbf16> to vector<128x128xbf16>
    %cst_34 = arith.constant dense<0.000000e+00> : vector<128x128xf32>
    %29 = tpu.matmul %26, %28, %cst_34 {dimension_numbers = #tpu.dot_dimension_numbers<[1], [0], [0], [1], [0, 0, 1, 1], [], []>} : vector<128x128xbf16>, vector<128x128xbf16>, vector<128x128xf32> -> vector<128x128xf32>
    %30 = arith.addf %24, %29 : vector<128x128xf32>
    %c0_35 = arith.constant 0 : index
    %c1_36 = arith.constant 1 : index
    %c2_37 = arith.constant 2 : index
    %c0_38 = arith.constant 0 : index
    %31 = vector.load %arg1[%c0_35, %c1_36, %c2_37, %c0_38] : memref<2x10x10x128xbf16, #tpu.memory_space<vmem>>, vector<2x8x8x128xbf16>
    %32 = vector.shape_cast %31 : vector<2x8x8x128xbf16> to vector<128x128xbf16>
    %c5 = arith.constant 5 : index
    %c0_39 = arith.constant 0 : index
    %c0_40 = arith.constant 0 : index
    %33 = vector.load %arg2[%c5, %c0_39, %c0_40] : memref<9x128x128xbf16, #tpu.memory_space<vmem>>, vector<1x128x128xbf16>
    %34 = vector.shape_cast %33 : vector<1x128x128xbf16> to vector<128x128xbf16>
    %cst_41 = arith.constant dense<0.000000e+00> : vector<128x128xf32>
    %35 = tpu.matmul %32, %34, %cst_41 {dimension_numbers = #tpu.dot_dimension_numbers<[1], [0], [0], [1], [0, 0, 1, 1], [], []>} : vector<128x128xbf16>, vector<128x128xbf16>, vector<128x128xf32> -> vector<128x128xf32>
    %36 = arith.addf %30, %35 : vector<128x128xf32>
    %c0_42 = arith.constant 0 : index
    %c2_43 = arith.constant 2 : index
    %c0_44 = arith.constant 0 : index
    %c0_45 = arith.constant 0 : index
    %37 = vector.load %arg1[%c0_42, %c2_43, %c0_44, %c0_45] : memref<2x10x10x128xbf16, #tpu.memory_space<vmem>>, vector<2x8x8x128xbf16>
    %38 = vector.shape_cast %37 : vector<2x8x8x128xbf16> to vector<128x128xbf16>
    %c6 = arith.constant 6 : index
    %c0_46 = arith.constant 0 : index
    %c0_47 = arith.constant 0 : index
    %39 = vector.load %arg2[%c6, %c0_46, %c0_47] : memref<9x128x128xbf16, #tpu.memory_space<vmem>>, vector<1x128x128xbf16>
    %40 = vector.shape_cast %39 : vector<1x128x128xbf16> to vector<128x128xbf16>
    %cst_48 = arith.constant dense<0.000000e+00> : vector<128x128xf32>
    %41 = tpu.matmul %38, %40, %cst_48 {dimension_numbers = #tpu.dot_dimension_numbers<[1], [0], [0], [1], [0, 0, 1, 1], [], []>} : vector<128x128xbf16>, vector<128x128xbf16>, vector<128x128xf32> -> vector<128x128xf32>
    %42 = arith.addf %36, %41 : vector<128x128xf32>
    %c0_49 = arith.constant 0 : index
    %c2_50 = arith.constant 2 : index
    %c1_51 = arith.constant 1 : index
    %c0_52 = arith.constant 0 : index
    %43 = vector.load %arg1[%c0_49, %c2_50, %c1_51, %c0_52] : memref<2x10x10x128xbf16, #tpu.memory_space<vmem>>, vector<2x8x8x128xbf16>
    %44 = vector.shape_cast %43 : vector<2x8x8x128xbf16> to vector<128x128xbf16>
    %c7 = arith.constant 7 : index
    %c0_53 = arith.constant 0 : index
    %c0_54 = arith.constant 0 : index
    %45 = vector.load %arg2[%c7, %c0_53, %c0_54] : memref<9x128x128xbf16, #tpu.memory_space<vmem>>, vector<1x128x128xbf16>
    %46 = vector.shape_cast %45 : vector<1x128x128xbf16> to vector<128x128xbf16>
    %cst_55 = arith.constant dense<0.000000e+00> : vector<128x128xf32>
    %47 = tpu.matmul %44, %46, %cst_55 {dimension_numbers = #tpu.dot_dimension_numbers<[1], [0], [0], [1], [0, 0, 1, 1], [], []>} : vector<128x128xbf16>, vector<128x128xbf16>, vector<128x128xf32> -> vector<128x128xf32>
    %48 = arith.addf %42, %47 : vector<128x128xf32>
    %c0_56 = arith.constant 0 : index
    %c2_57 = arith.constant 2 : index
    %c2_58 = arith.constant 2 : index
    %c0_59 = arith.constant 0 : index
    %49 = vector.load %arg1[%c0_56, %c2_57, %c2_58, %c0_59] : memref<2x10x10x128xbf16, #tpu.memory_space<vmem>>, vector<2x8x8x128xbf16>
    %50 = vector.shape_cast %49 : vector<2x8x8x128xbf16> to vector<128x128xbf16>
    %c8 = arith.constant 8 : index
    %c0_60 = arith.constant 0 : index
    %c0_61 = arith.constant 0 : index
    %51 = vector.load %arg2[%c8, %c0_60, %c0_61] : memref<9x128x128xbf16, #tpu.memory_space<vmem>>, vector<1x128x128xbf16>
    %52 = vector.shape_cast %51 : vector<1x128x128xbf16> to vector<128x128xbf16>
    %cst_62 = arith.constant dense<0.000000e+00> : vector<128x128xf32>
    %53 = tpu.matmul %50, %52, %cst_62 {dimension_numbers = #tpu.dot_dimension_numbers<[1], [0], [0], [1], [0, 0, 1, 1], [], []>} : vector<128x128xbf16>, vector<128x128xbf16>, vector<128x128xf32> -> vector<128x128xf32>
    %54 = arith.addf %48, %53 : vector<128x128xf32>
    %c0_63 = arith.constant 0 : index
    %c0_64 = arith.constant 0 : index
    %c0_65 = arith.constant 0 : index
    %c0_66 = arith.constant 0 : index
    %55 = vector.load %arg3[%c0_63, %c0_64, %c0_65, %c0_66] : memref<2x8x8x128xbf16, #tpu.memory_space<vmem>>, vector<2x8x8x128xbf16>
    %56 = vector.shape_cast %55 : vector<2x8x8x128xbf16> to vector<128x128xbf16>
    %57 = arith.extf %56 : vector<128x128xbf16> to vector<128x128xf32>
    %58 = arith.addf %54, %57 : vector<128x128xf32>
    %59 = vector.shape_cast %58 : vector<128x128xf32> to vector<2x8x8x128xf32>
    %c0_67 = arith.constant 0 : index
    %c0_68 = arith.constant 0 : index
    %c0_69 = arith.constant 0 : index
    %c0_70 = arith.constant 0 : index
    %60 = vector.load %arg4[%c0_67, %c0_68, %c0_69, %c0_70] : memref<2x8x8x128xf32, #tpu.memory_space<vmem>>, vector<2x8x8x128xf32>
    tpu.vector_store %arg4[%c0_67, %c0_68, %c0_69, %c0_70], %59 {strides = array<i32>} : memref<2x8x8x128xf32, #tpu.memory_space<vmem>>, vector<2x8x8x128xf32>,
    return
  }
  func.func @transform_0(%arg0: i32) -> (i32, i32, i32, i32) {
    %c0_i32 = arith.constant 0 : i32
    %c0_i32_0 = arith.constant 0 : i32
    %c0_i32_1 = arith.constant 0 : i32
    %c0_i32_2 = arith.constant 0 : i32
    return %arg0, %c0_i32, %c0_i32_0, %c0_i32_1 : i32, i32, i32, i32
  }
  func.func @transform_1(%arg0: i32) -> (i32, i32, i32) {
    %c0_i32 = arith.constant 0 : i32
    %c0_i32_0 = arith.constant 0 : i32
    %c0_i32_1 = arith.constant 0 : i32
    %c0_i32_2 = arith.constant 0 : i32
    return %c0_i32, %c0_i32_0, %c0_i32_1 : i32, i32, i32
  }
  func.func @transform_2(%arg0: i32) -> (i32, i32, i32, i32) {
    %c0_i32 = arith.constant 0 : i32
    %c0_i32_0 = arith.constant 0 : i32
    %c0_i32_1 = arith.constant 0 : i32
    %c0_i32_2 = arith.constant 0 : i32
    return %arg0, %c0_i32, %c0_i32_0, %c0_i32_1 : i32, i32, i32, i32
  }
  func.func @transform_3(%arg0: i32) -> (i32, i32, i32, i32) {
    %c0_i32 = arith.constant 0 : i32
    %c0_i32_0 = arith.constant 0 : i32
    %c0_i32_1 = arith.constant 0 : i32
    %c0_i32_2 = arith.constant 0 : i32
    return %arg0, %c0_i32, %c0_i32_0, %c0_i32_1 : i32, i32, i32, i32
  }
}

</mosaic_0001>

<llo_original>
// kernel: fwd.4
$region0: #{fwd.4}
  #allocation0 [shape = 'u32[]', space=smem, size = 0x4, offset = 0x4, fixed_abs, tag = 'smem constant byte address 0x4 - core index']
  #allocation1 [shape = 'u32[144,128]{1,0:T(1,128)}', space=vmem, size = 0x12000, scoped, tag = 'internal scratch']
  %s0 = inlined_call_operand.vmem [shape: bf16[2,9,9,64], index: 0, kind: input, shape index: {}]
  %s1 = inlined_call_operand.vmem [shape: bf16[2,9,9,64], index: 1, kind: input, shape index: {}]
  %s2 = inlined_call_operand.vmem [shape: bf16[2,9,9,64], index: 2, kind: input, shape index: {}]
  %s3 = inlined_call_operand.vmem [shape: bf16[2,9,9,64], index: 3, kind: input, shape index: {}]
  %s4 = inlined_call_operand.vmem [shape: bf16[9,64,128], index: 4, kind: input, shape index: {}]
  %s5 = inlined_call_operand.vmem [shape: f32[2,128], index: 5, kind: input, shape index: {}]
  %s6 = inlined_call_operand.vmem [shape: bf16[2,8,8,128], index: 6, kind: output, shape index: {}]
  %s7 = sld [smem:[#allocation0]]
  $region34: #{fwd.4} parent=0
    _
  %s9 = ssub.s32 1, %s7
  %s10 = scalar_select 0, %s9, %s7
  // Predicated region
  $region2: #{fwd.4} parent=0 // pred_check
    _
  $region3: #{fwd.4} parent=0 // pred_check_branch
    %12 = sbr.rel (0) target = $region5
  $region4: #{fwd.4} parent=0 // pred_region
    _
  $region5: #{fwd.4} parent=0 // pred_fallthru
    _
  // Predicated region
  $region6: #{fwd.4} parent=0 // pred_check
    _
  $region7: #{fwd.4} parent=0 // pred_check_branch
    %14 = sbr.rel (0) target = $region9
  $region8: #{fwd.4} parent=0 // pred_region
    _
  $region9: #{fwd.4} parent=0 // pred_fallthru
    _
  // Predicated region
  $region10: #{fwd.4} parent=0 // pred_check
    _
  $region11: #{fwd.4} parent=0 // pred_check_branch
    %16 = sbr.rel (0) target = $region13
  $region12: #{fwd.4} parent=0 // pred_region
    _
  $region13: #{fwd.4} parent=0 // pred_fallthru
    _
  // Predicated region
  $region14: #{fwd.4} parent=0 // pred_check
    _
  $region15: #{fwd.4} parent=0 // pred_check_branch
    %18 = sbr.rel (0) target = $region17
  $region16: #{fwd.4} parent=0 // pred_region
    _
  $region17: #{fwd.4} parent=0 // pred_fallthru
    _
  // Predicated region
  $region18: #{fwd.4} parent=0 // pred_check
    _
  $region19: #{fwd.4} parent=0 // pred_check_branch
    %20 = sbr.rel (0) target = $region21
  $region20: #{fwd.4} parent=0 // pred_region
    _
  $region21: #{fwd.4} parent=0 // pred_fallthru
    _
  // Predicated region
  $region22: #{fwd.4} parent=0 // pred_check
    _
  $region23: #{fwd.4} parent=0 // pred_check_branch
    %22 = sbr.rel (0) target = $region25
  $region24: #{fwd.4} parent=0 // pred_region
    _
  $region25: #{fwd.4} parent=0 // pred_fallthru
    _
  %v24 = vld [vmem:[%s0] sm:$0xf]
  %v25 = vld [vmem:[%s0 + $0x8] sm:$0xf]
  %v26 = vld [vmem:[%s0 + $0x10] sm:$0xf]
  %v27 = vld [vmem:[%s0 + $0x18] sm:$0xf]
  %v28 = vld [vmem:[%s0 + $0x20] sm:$0xf]
  %v29 = vld [vmem:[%s0 + $0x28] sm:$0xf]
  %v30 = vld [vmem:[%s0 + $0x30] sm:$0xf]
  %v31 = vld [vmem:[%s0 + $0x38] sm:$0xf]
  %v32 = vld [vmem:[%s0 + $0x48] sm:$0xf]
  %v33 = vld [vmem:[%s0 + $0x50] sm:$0xf]
  %v34 = vld [vmem:[%s0 + $0x58] sm:$0xf]
  %v35 = vld [vmem:[%s0 + $0x60] sm:$0xf]
  %v36 = vld [vmem:[%s0 + $0x68] sm:$0xf]
  %v37 = vld [vmem:[%s0 + $0x70] sm:$0xf]
  %v38 = vld [vmem:[%s0 + $0x78] sm:$0xf]
  %v39 = vld [vmem:[%s0 + $0x80] sm:$0xf]
  %v40 = vld [vmem:[%s4] sm:$0xf]
  %v41 = vld [vmem:[%s4 + $0x4] sm:$0xf]
  %v42 = vld [vmem:[%s4 + $0x8] sm:$0xf]
  %v43 = vld [vmem:[%s4 + $0xc] sm:$0xf]
  %v44 = vld [vmem:[%s4 + $0x10] sm:$0xf]
  %v45 = vld [vmem:[%s4 + $0x14] sm:$0xf]
  %v46 = vld [vmem:[%s4 + $0x18] sm:$0xf]
  %v47 = vld [vmem:[%s4 + $0x1c] sm:$0xf]
  %v48 = vld [vmem:[%s1] sm:$0xf]
  %v49 = vld [vmem:[%s1 + $0x8] sm:$0xf]
  %v50 = vld [vmem:[%s1 + $0x10] sm:$0xf]
  %v51 = vld [vmem:[%s1 + $0x18] sm:$0xf]
  %v52 = vld [vmem:[%s1 + $0x20] sm:$0xf]
  %v53 = vld [vmem:[%s1 + $0x28] sm:$0xf]
  %v54 = vld [vmem:[%s1 + $0x30] sm:$0xf]
  %v55 = vld [vmem:[%s1 + $0x38] sm:$0xf]
  %v56 = vld [vmem:[%s1 + $0x48] sm:$0xf]
  %v57 = vld [vmem:[%s1 + $0x50] sm:$0xf]
  %v58 = vld [vmem:[%s1 + $0x58] sm:$0xf]
  %v59 = vld [vmem:[%s1 + $0x60] sm:$0xf]
  %v60 = vld [vmem:[%s1 + $0x68] sm:$0xf]
  %v61 = vld [vmem:[%s1 + $0x70] sm:$0xf]
  %v62 = vld [vmem:[%s1 + $0x78] sm:$0xf]
  %v63 = vld [vmem:[%s1 + $0x80] sm:$0xf]
  %s64 = scalar_lea.vmem %s4, 32
  %v65 = vld [vmem:[%s64] sm:$0xf]
  %v66 = vld [vmem:[%s64 + $0x4] sm:$0xf]
  %v67 = vld [vmem:[%s64 + $0x8] sm:$0xf]
  %v68 = vld [vmem:[%s64 + $0xc] sm:$0xf]
  %v69 = vld [vmem:[%s64 + $0x10] sm:$0xf]
  %v70 = vld [vmem:[%s64 + $0x14] sm:$0xf]
  %v71 = vld [vmem:[%s64 + $0x18] sm:$0xf]
  %v72 = vld [vmem:[%s64 + $0x1c] sm:$0xf]
  %v89 = vunpack.c.l.b16 %v48
  %v90 = vunpack.c.l.b16 %v49
  %v91 = vunpack.c.l.b16 %v50
  %v92 = vunpack.c.l.b16 %v51
  %v93 = vunpack.c.l.b16 %v52
  %v94 = vunpack.c.l.b16 %v53
  %v95 = vunpack.c.l.b16 %v54
  %v96 = vunpack.c.l.b16 %v55
  %v97 = vunpack.c.l.b16 %v56
  %v98 = vunpack.c.l.b16 %v57
  %v99 = vunpack.c.l.b16 %v58
  %v100 = vunpack.c.l.b16 %v59
  %v101 = vunpack.c.l.b16 %v60
  %v102 = vunpack.c.l.b16 %v61
  %v103 = vunpack.c.l.b16 %v62
  %v104 = vunpack.c.l.b16 %v63
  %v105 = vpack.c.b16 %v90, %v89
  %v106 = vpack.c.b16 %v92, %v91
  %v107 = vpack.c.b16 %v94, %v93
  %v108 = vpack.c.b16 %v96, %v95
  %v109 = vpack.c.b16 %v98, %v97
  %v110 = vpack.c.b16 %v100, %v99
  %v111 = vpack.c.b16 %v102, %v101
  %v112 = vpack.c.b16 %v104, %v103
  %v121 = vunpack.c.l.b16 %v65
  %v122 = vunpack.c.l.b16 %v66
  %v123 = vunpack.c.l.b16 %v67
  %v124 = vunpack.c.l.b16 %v68
  %v125 = vunpack.c.l.b16 %v69
  %v126 = vunpack.c.l.b16 %v70
  %v127 = vunpack.c.l.b16 %v71
  %v128 = vunpack.c.l.b16 %v72
  %v129 = vpack.c.b16 %v122, %v121
  %v130 = vpack.c.b16 %v124, %v123
  %v131 = vpack.c.b16 %v126, %v125
  %v132 = vpack.c.b16 %v128, %v127
  %vm137 = vcmask 523264
  %v139 = vsel %vm137, %v105, 0
  %v142 = vsel %vm137, %v106, 0
  %v145 = vsel %vm137, %v107, 0
  %v148 = vsel %vm137, %v108, 0
  %v151 = vsel %vm137, %v109, 0
  %v154 = vsel %vm137, %v110, 0
  %v157 = vsel %vm137, %v111, 0
  %v160 = vsel %vm137, %v112, 0
  %162 = vmatprep.subr.bf16.mxu0 0
  %163 = vmatpush1.bf16.msra.mxu0 0
  %164 = vmatprep.subr.bf16.mxu0 0
  %165 = vmatpush1.bf16.msra.mxu0 0
  %166 = vmatprep.subr.bf16.mxu0 0
  %167 = vmatpush1.bf16.msra.mxu0 0
  %168 = vmatprep.subr.bf16.mxu0 0
  %169 = vmatpush1.bf16.msra.mxu0 0
  %170 = vmatprep.subr.bf16.mxu0 0
  %171 = vmatpush1.bf16.msra.mxu0 %v132
  %172 = vmatprep.subr.bf16.mxu0 0
  %173 = vmatpush1.bf16.msra.mxu0 %v131
  %174 = vmatprep.subr.bf16.mxu0 0
  %175 = vmatpush1.bf16.msra.mxu0 %v130
  %176 = vmatprep.subr.bf16.mxu0 0
  %177 = vmatpush1.bf16.msra.mxu0 %v129
  %178 = vmatprep.subr.bf16.mxu0 0
  %179 = vmatpush2.bf16.msra.mxu0 0
  %180 = vmatprep.subr.bf16.mxu0 0
  %181 = vmatpush2.bf16.msra.mxu0 0
  %182 = vmatprep.subr.bf16.mxu0 0
  %183 = vmatpush2.bf16.msra.mxu0 0
  %184 = vmatprep.subr.bf16.mxu0 0
  %185 = vmatpush2.bf16.msra.mxu0 0
  %186 = vmatprep.subr.bf16.mxu0 0
  %187 = vmatpush2.bf16.msra.mxu0 0
  %188 = vmatprep.subr.bf16.mxu0 0
  %189 = vmatpush2.bf16.msra.mxu0 0
  %190 = vmatprep.subr.bf16.mxu0 0
  %191 = vmatpush2.bf16.msra.mxu0 0
  %192 = vmatprep.subr.bf16.mxu0 0
  %193 = vmatpush2.bf16.msra.mxu0 0
  %194 = vmatprep.mubr.bf16.mxu0 0
  %195 = vmatmul.mubr.bf16.gmra.mxu0 %v139
  %v196 = vpop.f32.mrf.mxu0
  %v197 = vadd.f32 0.0, %v196
  %v198 = vpop.f32.mrf.mxu0
  %v199 = vpop.f32.mrf.mxu0
  %v200 = vadd.f32 0.0, %v199
  %v201 = vpop.f32.mrf.mxu0
  %202 = vmatprep.mubr.bf16.mxu0 0
  %203 = vmatmul.mubr.bf16.gmra.mxu0 %v142
  %v204 = vpop.f32.mrf.mxu0
  %v205 = vadd.f32 0.0, %v204
  %v206 = vpop.f32.mrf.mxu0
  %v207 = vpop.f32.mrf.mxu0
  %v208 = vadd.f32 0.0, %v207
  %v209 = vpop.f32.mrf.mxu0
  %210 = vmatprep.mubr.bf16.mxu0 0
  %211 = vmatmul.mubr.bf16.gmra.mxu0 %v145
  %v212 = vpop.f32.mrf.mxu0
  %v213 = vadd.f32 0.0, %v212
  %v214 = vpop.f32.mrf.mxu0
  %v215 = vpop.f32.mrf.mxu0
  %v216 = vadd.f32 0.0, %v215
  %v217 = vpop.f32.mrf.mxu0
  %218 = vmatprep.mubr.bf16.mxu0 0
  %219 = vmatmul.mubr.bf16.gmra.mxu0 %v148
  %v220 = vpop.f32.mrf.mxu0
  %v221 = vadd.f32 0.0, %v220
  %v222 = vpop.f32.mrf.mxu0
  %v223 = vpop.f32.mrf.mxu0
  %v224 = vadd.f32 0.0, %v223
  %v225 = vpop.f32.mrf.mxu0
  %226 = vmatprep.mubr.bf16.mxu0 0
  %227 = vmatmul.mubr.bf16.gmra.mxu0 %v151
  %v228 = vpop.f32.mrf.mxu0
  %v229 = vadd.f32 0.0, %v228
  %v230 = vpop.f32.mrf.mxu0
  %v231 = vpop.f32.mrf.mxu0
  %v232 = vadd.f32 0.0, %v231
  %v233 = vpop.f32.mrf.mxu0
  %234 = vmatprep.mubr.bf16.mxu0 0
  %235 = vmatmul.mubr.bf16.gmra.mxu0 %v154
  %v236 = vpop.f32.mrf.mxu0
  %v237 = vadd.f32 0.0, %v236
  %v238 = vpop.f32.mrf.mxu0
  %v239 = vpop.f32.mrf.mxu0
  %v240 = vadd.f32 0.0, %v239
  %v241 = vpop.f32.mrf.mxu0
  %242 = vmatprep.mubr.bf16.mxu0 0
  %243 = vmatmul.mubr.bf16.gmra.mxu0 %v157
  %v244 = vpop.f32.mrf.mxu0
  %v245 = vadd.f32 0.0, %v244
  %v246 = vpop.f32.mrf.mxu0
  %v247 = vpop.f32.mrf.mxu0
  %v248 = vadd.f32 0.0, %v247
  %v249 = vpop.f32.mrf.mxu0
  %250 = vmatprep.mubr.bf16.mxu0 0
  %251 = vmatmul.mubr.bf16.gmra.mxu0 %v160
  %v252 = vpop.f32.mrf.mxu0
  %v253 = vadd.f32 0.0, %v252
  %v254 = vpop.f32.mrf.mxu0
  %v255 = vpop.f32.mrf.mxu0
  %v256 = vadd.f32 0.0, %v255
  %v257 = vpop.f32.mrf.mxu0
  %258 = vdwg.mxu0
  %v275 = vunpack.c.l.b16 %v24
  %v276 = vunpack.c.l.b16 %v25
  %v277 = vunpack.c.l.b16 %v26
  %v278 = vunpack.c.l.b16 %v27
  %v279 = vunpack.c.l.b16 %v28
  %v280 = vunpack.c.l.b16 %v29
  %v281 = vunpack.c.l.b16 %v30
  %v282 = vunpack.c.l.b16 %v31
  %v283 = vunpack.c.l.b16 %v32
  %v284 = vunpack.c.l.b16 %v33
  %v285 = vunpack.c.l.b16 %v34
  %v286 = vunpack.c.l.b16 %v35
  %v287 = vunpack.c.l.b16 %v36
  %v288 = vunpack.c.l.b16 %v37
  %v289 = vunpack.c.l.b16 %v38
  %v290 = vunpack.c.l.b16 %v39
  %v291 = vpack.c.b16 %v276, %v275
  %v292 = vpack.c.b16 %v278, %v277
  %v293 = vpack.c.b16 %v280, %v279
  %v294 = vpack.c.b16 %v282, %v281
  %v295 = vpack.c.b16 %v284, %v283
  %v296 = vpack.c.b16 %v286, %v285
  %v297 = vpack.c.b16 %v288, %v287
  %v298 = vpack.c.b16 %v290, %v289
  %v307 = vunpack.c.l.b16 %v40
  %v308 = vunpack.c.l.b16 %v41
  %v309 = vunpack.c.l.b16 %v42
  %v310 = vunpack.c.l.b16 %v43
  %v311 = vunpack.c.l.b16 %v44
  %v312 = vunpack.c.l.b16 %v45
  %v313 = vunpack.c.l.b16 %v46
  %v314 = vunpack.c.l.b16 %v47
  %v315 = vpack.c.b16 %v308, %v307
  %v316 = vpack.c.b16 %v310, %v309
  %v317 = vpack.c.b16 %v312, %v311
  %v318 = vpack.c.b16 %v314, %v313
  %v324 = vsel %vm137, %v291, 0
  %v327 = vsel %vm137, %v292, 0
  %v330 = vsel %vm137, %v293, 0
  %v333 = vsel %vm137, %v294, 0
  %v336 = vsel %vm137, %v295, 0
  %v339 = vsel %vm137, %v296, 0
  %v342 = vsel %vm137, %v297, 0
  %v345 = vsel %vm137, %v298, 0
  %347 = vmatprep.subr.bf16.mxu0 0
  %348 = vmatpush1.bf16.msra.mxu0 0
  %349 = vmatprep.subr.bf16.mxu0 0
  %350 = vmatpush1.bf16.msra.mxu0 0
  %351 = vmatprep.subr.bf16.mxu0 0
  %352 = vmatpush1.bf16.msra.mxu0 0
  %353 = vmatprep.subr.bf16.mxu0 0
  %354 = vmatpush1.bf16.msra.mxu0 0
  %355 = vmatprep.subr.bf16.mxu0 0
  %356 = vmatpush1.bf16.msra.mxu0 %v318
  %357 = vmatprep.subr.bf16.mxu0 0
  %358 = vmatpush1.bf16.msra.mxu0 %v317
  %359 = vmatprep.subr.bf16.mxu0 0
  %360 = vmatpush1.bf16.msra.mxu0 %v316
  %361 = vmatprep.subr.bf16.mxu0 0
  %362 = vmatpush1.bf16.msra.mxu0 %v315
  %363 = vmatprep.subr.bf16.mxu0 0
  %364 = vmatpush2.bf16.msra.mxu0 0
  %365 = vmatprep.subr.bf16.mxu0 0
  %366 = vmatpush2.bf16.msra.mxu0 0
  %367 = vmatprep.subr.bf16.mxu0 0
  %368 = vmatpush2.bf16.msra.mxu0 0
  %369 = vmatprep.subr.bf16.mxu0 0
  %370 = vmatpush2.bf16.msra.mxu0 0
  %371 = vmatprep.subr.bf16.mxu0 0
  %372 = vmatpush2.bf16.msra.mxu0 0
  %373 = vmatprep.subr.bf16.mxu0 0
  %374 = vmatpush2.bf16.msra.mxu0 0
  %375 = vmatprep.subr.bf16.mxu0 0
  %376 = vmatpush2.bf16.msra.mxu0 0
  %377 = vmatprep.subr.bf16.mxu0 0
  %378 = vmatpush2.bf16.msra.mxu0 0
  %379 = vmatprep.mubr.bf16.mxu0 0
  %380 = vmatmul.mubr.bf16.gmra.mxu0 %v324
  %v381 = vpop.f32.mrf.mxu0
  %v382 = vadd.f32 %v197, %v381
  %v383 = vpop.f32.mrf.mxu0
  %v384 = vpop.f32.mrf.mxu0
  %v385 = vadd.f32 %v200, %v384
  %v386 = vpop.f32.mrf.mxu0
  %387 = vmatprep.mubr.bf16.mxu0 0
  %388 = vmatmul.mubr.bf16.gmra.mxu0 %v327
  %v389 = vpop.f32.mrf.mxu0
  %v390 = vadd.f32 %v205, %v389
  %v391 = vpop.f32.mrf.mxu0
  %v392 = vpop.f32.mrf.mxu0
  %v393 = vadd.f32 %v208, %v392
  %v394 = vpop.f32.mrf.mxu0
  %395 = vmatprep.mubr.bf16.mxu0 0
  %396 = vmatmul.mubr.bf16.gmra.mxu0 %v330
  %v397 = vpop.f32.mrf.mxu0
  %v398 = vadd.f32 %v213, %v397
  %v399 = vpop.f32.mrf.mxu0
  %v400 = vpop.f32.mrf.mxu0
  %v401 = vadd.f32 %v216, %v400
  %v402 = vpop.f32.mrf.mxu0
  %403 = vmatprep.mubr.bf16.mxu0 0
  %404 = vmatmul.mubr.bf16.gmra.mxu0 %v333
  %v405 = vpop.f32.mrf.mxu0
  %v406 = vadd.f32 %v221, %v405
  %v407 = vpop.f32.mrf.mxu0
  %v408 = vpop.f32.mrf.mxu0
  %v409 = vadd.f32 %v224, %v408
  %v410 = vpop.f32.mrf.mxu0
  %411 = vmatprep.mubr.bf16.mxu0 0
  %412 = vmatmul.mubr.bf16.gmra.mxu0 %v336
  %v413 = vpop.f32.mrf.mxu0
  %v414 = vadd.f32 %v229, %v413
  %v415 = vpop.f32.mrf.mxu0
  %v416 = vpop.f32.mrf.mxu0
  %v417 = vadd.f32 %v232, %v416
  %v418 = vpop.f32.mrf.mxu0
  %419 = vmatprep.mubr.bf16.mxu0 0
  %420 = vmatmul.mubr.bf16.gmra.mxu0 %v339
  %v421 = vpop.f32.mrf.mxu0
  %v422 = vadd.f32 %v237, %v421
  %v423 = vpop.f32.mrf.mxu0
  %v424 = vpop.f32.mrf.mxu0
  %v425 = vadd.f32 %v240, %v424
  %v426 = vpop.f32.mrf.mxu0
  %427 = vmatprep.mubr.bf16.mxu0 0
  %428 = vmatmul.mubr.bf16.gmra.mxu0 %v342
  %v429 = vpop.f32.mrf.mxu0
  %v430 = vadd.f32 %v245, %v429
  %v431 = vpop.f32.mrf.mxu0
  %v432 = vpop.f32.mrf.mxu0
  %v433 = vadd.f32 %v248, %v432
  %v434 = vpop.f32.mrf.mxu0
  %435 = vmatprep.mubr.bf16.mxu0 0
  %436 = vmatmul.mubr.bf16.gmra.mxu0 %v345
  %v437 = vpop.f32.mrf.mxu0
  %v438 = vadd.f32 %v253, %v437
  %v439 = vpop.f32.mrf.mxu0
  %v440 = vpop.f32.mrf.mxu0
  %v441 = vadd.f32 %v256, %v440
  %v442 = vpop.f32.mrf.mxu0
  %443 = vdwg.mxu0
  %v444 = vld [vmem:[%s0] sm:$0xf]
  %v445 = vld [vmem:[%s0 + $0x4] sm:$0x1]
  %v446 = vld [vmem:[%s0 + $0x8] sm:$0xf]
  %v447 = vld [vmem:[%s0 + $0xc] sm:$0x1]
  %v448 = vld [vmem:[%s0 + $0x10] sm:$0xf]
  %v449 = vld [vmem:[%s0 + $0x14] sm:$0x1]
  %v450 = vld [vmem:[%s0 + $0x18] sm:$0xf]
  %v451 = vld [vmem:[%s0 + $0x1c] sm:$0x1]
  %v452 = vld [vmem:[%s0 + $0x20] sm:$0xf]
  %v453 = vld [vmem:[%s0 + $0x24] sm:$0x1]
  %v454 = vld [vmem:[%s0 + $0x28] sm:$0xf]
  %v455 = vld [vmem:[%s0 + $0x2c] sm:$0x1]
  %v456 = vld [vmem:[%s0 + $0x30] sm:$0xf]
  %v457 = vld [vmem:[%s0 + $0x34] sm:$0x1]
  %v458 = vld [vmem:[%s0 + $0x38] sm:$0xf]
  %v459 = vld [vmem:[%s0 + $0x3c] sm:$0x1]
  %v460 = vld [vmem:[%s0 + $0x48] sm:$0xf]
  %v461 = vld [vmem:[%s0 + $0x4c] sm:$0x1]
  %v462 = vld [vmem:[%s0 + $0x50] sm:$0xf]
  %v463 = vld [vmem:[%s0 + $0x54] sm:$0x1]
  %v464 = vld [vmem:[%s0 + $0x58] sm:$0xf]
  %v465 = vld [vmem:[%s0 + $0x5c] sm:$0x1]
  %v466 = vld [vmem:[%s0 + $0x60] sm:$0xf]
  %v467 = vld [vmem:[%s0 + $0x64] sm:$0x1]
  %v468 = vld [vmem:[%s0 + $0x68] sm:$0xf]
  %v469 = vld [vmem:[%s0 + $0x6c] sm:$0x1]
  %v470 = vld [vmem:[%s0 + $0x70] sm:$0xf]
  %v471 = vld [vmem:[%s0 + $0x74] sm:$0x1]
  %v472 = vld [vmem:[%s0 + $0x78] sm:$0xf]
  %v473 = vld [vmem:[%s0 + $0x7c] sm:$0x1]
  %v474 = vld [vmem:[%s0 + $0x80] sm:$0xf]
  %v475 = vld [vmem:[%s0 + $0x84] sm:$0x1]
  %vm476 = vsmask.f32 3328
  %vm477 = vsmask.f32 7440
  %vm478 = vmor %vm476, %vm477
  %v480 = vshrl.u32 %v444, 16
  %v482 = vrot.slane %v480, 4
  %v483 = vshll.u32 %v444, 16
  %v485 = vrot.slane %v483, 5
  %v486 = vor.u32 %v482, %v485
  %v487 = vrot.slane %v486, 4
  %v489 = vshll.u32 %v445, 16
  %v491 = vrot.slane %v489, 5
  %v492 = vsel %vm478, %v487, %v491
  %v494 = vshrl.u32 %v446, 16
  %v496 = vrot.slane %v494, 4
  %v497 = vshll.u32 %v446, 16
  %v499 = vrot.slane %v497, 5
  %v500 = vor.u32 %v496, %v499
  %v501 = vrot.slane %v500, 4
  %v503 = vshll.u32 %v447, 16
  %v505 = vrot.slane %v503, 5
  %v506 = vsel %vm478, %v501, %v505
  %v508 = vshrl.u32 %v448, 16
  %v510 = vrot.slane %v508, 4
  %v511 = vshll.u32 %v448, 16
  %v513 = vrot.slane %v511, 5
  %v514 = vor.u32 %v510, %v513
  %v515 = vrot.slane %v514, 4
  %v517 = vshll.u32 %v449, 16
  %v519 = vrot.slane %v517, 5
  %v520 = vsel %vm478, %v515, %v519
  %v522 = vshrl.u32 %v450, 16
  %v524 = vrot.slane %v522, 4
  %v525 = vshll.u32 %v450, 16
  %v527 = vrot.slane %v525, 5
  %v528 = vor.u32 %v524, %v527
  %v529 = vrot.slane %v528, 4
  %v531 = vshll.u32 %v451, 16
  %v533 = vrot.slane %v531, 5
  %v534 = vsel %vm478, %v529, %v533
  %v536 = vshrl.u32 %v452, 16
  %v538 = vrot.slane %v536, 4
  %v539 = vshll.u32 %v452, 16
  %v541 = vrot.slane %v539, 5
  %v542 = vor.u32 %v538, %v541
  %v543 = vrot.slane %v542, 4
  %v545 = vshll.u32 %v453, 16
  %v547 = vrot.slane %v545, 5
  %v548 = vsel %vm478, %v543, %v547
  %v550 = vshrl.u32 %v454, 16
  %v552 = vrot.slane %v550, 4
  %v553 = vshll.u32 %v454, 16
  %v555 = vrot.slane %v553, 5
  %v556 = vor.u32 %v552, %v555
  %v557 = vrot.slane %v556, 4
  %v559 = vshll.u32 %v455, 16
  %v561 = vrot.slane %v559, 5
  %v562 = vsel %vm478, %v557, %v561
  %v564 = vshrl.u32 %v456, 16
  %v566 = vrot.slane %v564, 4
  %v567 = vshll.u32 %v456, 16
  %v569 = vrot.slane %v567, 5
  %v570 = vor.u32 %v566, %v569
  %v571 = vrot.slane %v570, 4
  %v573 = vshll.u32 %v457, 16
  %v575 = vrot.slane %v573, 5
  %v576 = vsel %vm478, %v571, %v575
  %v578 = vshrl.u32 %v458, 16
  %v580 = vrot.slane %v578, 4
  %v581 = vshll.u32 %v458, 16
  %v583 = vrot.slane %v581, 5
  %v584 = vor.u32 %v580, %v583
  %v585 = vrot.slane %v584, 4
  %v587 = vshll.u32 %v459, 16
  %v589 = vrot.slane %v587, 5
  %v590 = vsel %vm478, %v585, %v589
  %v592 = vshrl.u32 %v460, 16
  %v594 = vrot.slane %v592, 4
  %v595 = vshll.u32 %v460, 16
  %v597 = vrot.slane %v595, 5
  %v598 = vor.u32 %v594, %v597
  %v599 = vrot.slane %v598, 4
  %v601 = vshll.u32 %v461, 16
  %v603 = vrot.slane %v601, 5
  %v604 = vsel %vm478, %v599, %v603
  %v606 = vshrl.u32 %v462, 16
  %v608 = vrot.slane %v606, 4
  %v609 = vshll.u32 %v462, 16
  %v611 = vrot.slane %v609, 5
  %v612 = vor.u32 %v608, %v611
  %v613 = vrot.slane %v612, 4
  %v615 = vshll.u32 %v463, 16
  %v617 = vrot.slane %v615, 5
  %v618 = vsel %vm478, %v613, %v617
  %v620 = vshrl.u32 %v464, 16
  %v622 = vrot.slane %v620, 4
  %v623 = vshll.u32 %v464, 16
  %v625 = vrot.slane %v623, 5
  %v626 = vor.u32 %v622, %v625
  %v627 = vrot.slane %v626, 4
  %v629 = vshll.u32 %v465, 16
  %v631 = vrot.slane %v629, 5
  %v632 = vsel %vm478, %v627, %v631
  %v634 = vshrl.u32 %v466, 16
  %v636 = vrot.slane %v634, 4
  %v637 = vshll.u32 %v466, 16
  %v639 = vrot.slane %v637, 5
  %v640 = vor.u32 %v636, %v639
  %v641 = vrot.slane %v640, 4
  %v643 = vshll.u32 %v467, 16
  %v645 = vrot.slane %v643, 5
  %v646 = vsel %vm478, %v641, %v645
  %v648 = vshrl.u32 %v468, 16
  %v650 = vrot.slane %v648, 4
  %v651 = vshll.u32 %v468, 16
  %v653 = vrot.slane %v651, 5
  %v654 = vor.u32 %v650, %v653
  %v655 = vrot.slane %v654, 4
  %v657 = vshll.u32 %v469, 16
  %v659 = vrot.slane %v657, 5
  %v660 = vsel %vm478, %v655, %v659
  %v662 = vshrl.u32 %v470, 16
  %v664 = vrot.slane %v662, 4
  %v665 = vshll.u32 %v470, 16
  %v667 = vrot.slane %v665, 5
  %v668 = vor.u32 %v664, %v667
  %v669 = vrot.slane %v668, 4
  %v671 = vshll.u32 %v471, 16
  %v673 = vrot.slane %v671, 5
  %v674 = vsel %vm478, %v669, %v673
  %v676 = vshrl.u32 %v472, 16
  %v678 = vrot.slane %v676, 4
  %v679 = vshll.u32 %v472, 16
  %v681 = vrot.slane %v679, 5
  %v682 = vor.u32 %v678, %v681
  %v683 = vrot.slane %v682, 4
  %v685 = vshll.u32 %v473, 16
  %v687 = vrot.slane %v685, 5
  %v688 = vsel %vm478, %v683, %v687
  %v690 = vshrl.u32 %v474, 16
  %v692 = vrot.slane %v690, 4
  %v693 = vshll.u32 %v474, 16
  %v695 = vrot.slane %v693, 5
  %v696 = vor.u32 %v692, %v695
  %v697 = vrot.slane %v696, 4
  %v699 = vshll.u32 %v475, 16
  %v701 = vrot.slane %v699, 5
  %v702 = vsel %vm478, %v697, %v701
  %s703 = scalar_lea.vmem %s4, 64
  %v704 = vld [vmem:[%s703] sm:$0xf]
  %v705 = vld [vmem:[%s703 + $0x4] sm:$0xf]
  %v706 = vld [vmem:[%s703 + $0x8] sm:$0xf]
  %v707 = vld [vmem:[%s703 + $0xc] sm:$0xf]
  %v708 = vld [vmem:[%s703 + $0x10] sm:$0xf]
  %v709 = vld [vmem:[%s703 + $0x14] sm:$0xf]
  %v710 = vld [vmem:[%s703 + $0x18] sm:$0xf]
  %v711 = vld [vmem:[%s703 + $0x1c] sm:$0xf]
  %v712 = vunpack.c.l.b16 %v492
  %v713 = vunpack.c.l.b16 %v506
  %v714 = vunpack.c.l.b16 %v520
  %v715 = vunpack.c.l.b16 %v534
  %v716 = vunpack.c.l.b16 %v548
  %v717 = vunpack.c.l.b16 %v562
  %v718 = vunpack.c.l.b16 %v576
  %v719 = vunpack.c.l.b16 %v590
  %v720 = vunpack.c.l.b16 %v604
  %v721 = vunpack.c.l.b16 %v618
  %v722 = vunpack.c.l.b16 %v632
  %v723 = vunpack.c.l.b16 %v646
  %v724 = vunpack.c.l.b16 %v660
  %v725 = vunpack.c.l.b16 %v674
  %v726 = vunpack.c.l.b16 %v688
  %v727 = vunpack.c.l.b16 %v702
  %v728 = vpack.c.b16 %v713, %v712
  %v729 = vpack.c.b16 %v715, %v714
  %v730 = vpack.c.b16 %v717, %v716
  %v731 = vpack.c.b16 %v719, %v718
  %v732 = vpack.c.b16 %v721, %v720
  %v733 = vpack.c.b16 %v723, %v722
  %v734 = vpack.c.b16 %v725, %v724
  %v735 = vpack.c.b16 %v727, %v726
  %v744 = vunpack.c.l.b16 %v704
  %v745 = vunpack.c.l.b16 %v705
  %v746 = vunpack.c.l.b16 %v706
  %v747 = vunpack.c.l.b16 %v707
  %v748 = vunpack.c.l.b16 %v708
  %v749 = vunpack.c.l.b16 %v709
  %v750 = vunpack.c.l.b16 %v710
  %v751 = vunpack.c.l.b16 %v711
  %v752 = vpack.c.b16 %v745, %v744
  %v753 = vpack.c.b16 %v747, %v746
  %v754 = vpack.c.b16 %v749, %v748
  %v755 = vpack.c.b16 %v751, %v750
  %v761 = vsel %vm137, %v728, 0
  %v764 = vsel %vm137, %v729, 0
  %v767 = vsel %vm137, %v730, 0
  %v770 = vsel %vm137, %v731, 0
  %v773 = vsel %vm137, %v732, 0
  %v776 = vsel %vm137, %v733, 0
  %v779 = vsel %vm137, %v734, 0
  %v782 = vsel %vm137, %v735, 0
  %784 = vmatprep.subr.bf16.mxu0 0
  %785 = vmatpush1.bf16.msra.mxu0 0
  %786 = vmatprep.subr.bf16.mxu0 0
  %787 = vmatpush1.bf16.msra.mxu0 0
  %788 = vmatprep.subr.bf16.mxu0 0
  %789 = vmatpush1.bf16.msra.mxu0 0
  %790 = vmatprep.subr.bf16.mxu0 0
  %791 = vmatpush1.bf16.msra.mxu0 0
  %792 = vmatprep.subr.bf16.mxu0 0
  %793 = vmatpush1.bf16.msra.mxu0 %v755
  %794 = vmatprep.subr.bf16.mxu0 0
  %795 = vmatpush1.bf16.msra.mxu0 %v754
  %796 = vmatprep.subr.bf16.mxu0 0
  %797 = vmatpush1.bf16.msra.mxu0 %v753
  %798 = vmatprep.subr.bf16.mxu0 0
  %799 = vmatpush1.bf16.msra.mxu0 %v752
  %800 = vmatprep.subr.bf16.mxu0 0
  %801 = vmatpush2.bf16.msra.mxu0 0
  %802 = vmatprep.subr.bf16.mxu0 0
  %803 = vmatpush2.bf16.msra.mxu0 0
  %804 = vmatprep.subr.bf16.mxu0 0
  %805 = vmatpush2.bf16.msra.mxu0 0
  %806 = vmatprep.subr.bf16.mxu0 0
  %807 = vmatpush2.bf16.msra.mxu0 0
  %808 = vmatprep.subr.bf16.mxu0 0
  %809 = vmatpush2.bf16.msra.mxu0 0
  %810 = vmatprep.subr.bf16.mxu0 0
  %811 = vmatpush2.bf16.msra.mxu0 0
  %812 = vmatprep.subr.bf16.mxu0 0
  %813 = vmatpush2.bf16.msra.mxu0 0
  %814 = vmatprep.subr.bf16.mxu0 0
  %815 = vmatpush2.bf16.msra.mxu0 0
  %816 = vmatprep.mubr.bf16.mxu0 0
  %817 = vmatmul.mubr.bf16.gmra.mxu0 %v761
  %v818 = vpop.f32.mrf.mxu0
  %v819 = vadd.f32 0.0, %v818
  %v820 = vpop.f32.mrf.mxu0
  %v821 = vpop.f32.mrf.mxu0
  %v822 = vadd.f32 0.0, %v821
  %v823 = vpop.f32.mrf.mxu0
  %824 = vmatprep.mubr.bf16.mxu0 0
  %825 = vmatmul.mubr.bf16.gmra.mxu0 %v764
  %v826 = vpop.f32.mrf.mxu0
  %v827 = vadd.f32 0.0, %v826
  %v828 = vpop.f32.mrf.mxu0
  %v829 = vpop.f32.mrf.mxu0
  %v830 = vadd.f32 0.0, %v829
  %v831 = vpop.f32.mrf.mxu0
  %832 = vmatprep.mubr.bf16.mxu0 0
  %833 = vmatmul.mubr.bf16.gmra.mxu0 %v767
  %v834 = vpop.f32.mrf.mxu0
  %v835 = vadd.f32 0.0, %v834
  %v836 = vpop.f32.mrf.mxu0
  %v837 = vpop.f32.mrf.mxu0
  %v838 = vadd.f32 0.0, %v837
  %v839 = vpop.f32.mrf.mxu0
  %840 = vmatprep.mubr.bf16.mxu0 0
  %841 = vmatmul.mubr.bf16.gmra.mxu0 %v770
  %v842 = vpop.f32.mrf.mxu0
  %v843 = vadd.f32 0.0, %v842
  %v844 = vpop.f32.mrf.mxu0
  %v845 = vpop.f32.mrf.mxu0
  %v846 = vadd.f32 0.0, %v845
  %v847 = vpop.f32.mrf.mxu0
  %848 = vmatprep.mubr.bf16.mxu0 0
  %849 = vmatmul.mubr.bf16.gmra.mxu0 %v773
  %v850 = vpop.f32.mrf.mxu0
  %v851 = vadd.f32 0.0, %v850
  %v852 = vpop.f32.mrf.mxu0
  %v853 = vpop.f32.mrf.mxu0
  %v854 = vadd.f32 0.0, %v853
  %v855 = vpop.f32.mrf.mxu0
  %856 = vmatprep.mubr.bf16.mxu0 0
  %857 = vmatmul.mubr.bf16.gmra.mxu0 %v776
  %v858 = vpop.f32.mrf.mxu0
  %v859 = vadd.f32 0.0, %v858
  %v860 = vpop.f32.mrf.mxu0
  %v861 = vpop.f32.mrf.mxu0
  %v862 = vadd.f32 0.0, %v861
  %v863 = vpop.f32.mrf.mxu0
  %864 = vmatprep.mubr.bf16.mxu0 0
  %865 = vmatmul.mubr.bf16.gmra.mxu0 %v779
  %v866 = vpop.f32.mrf.mxu0
  %v867 = vadd.f32 0.0, %v866
  %v868 = vpop.f32.mrf.mxu0
  %v869 = vpop.f32.mrf.mxu0
  %v870 = vadd.f32 0.0, %v869
  %v871 = vpop.f32.mrf.mxu0
  %872 = vmatprep.mubr.bf16.mxu0 0
  %873 = vmatmul.mubr.bf16.gmra.mxu0 %v782
  %v874 = vpop.f32.mrf.mxu0
  %v875 = vadd.f32 0.0, %v874
  %v876 = vpop.f32.mrf.mxu0
  %v877 = vpop.f32.mrf.mxu0
  %v878 = vadd.f32 0.0, %v877
  %v879 = vpop.f32.mrf.mxu0
  %880 = vdwg.mxu0
  %v881 = vadd.f32 %v382, %v819
  %v882 = vadd.f32 %v385, %v822
  %v883 = vadd.f32 %v390, %v827
  %v884 = vadd.f32 %v393, %v830
  %v885 = vadd.f32 %v398, %v835
  %v886 = vadd.f32 %v401, %v838
  %v887 = vadd.f32 %v406, %v843
  %v888 = vadd.f32 %v409, %v846
  %v889 = vadd.f32 %v414, %v851
  %v890 = vadd.f32 %v417, %v854
  %v891 = vadd.f32 %v422, %v859
  %v892 = vadd.f32 %v425, %v862
  %v893 = vadd.f32 %v430, %v867
  %v894 = vadd.f32 %v433, %v870
  %v895 = vadd.f32 %v438, %v875
  %v896 = vadd.f32 %v441, %v878
  %v897 = vld [vmem:[%s2] sm:$0xf]
  %v898 = vld [vmem:[%s2 + $0x8] sm:$0xf]
  %v899 = vld [vmem:[%s2 + $0x10] sm:$0xf]
  %v900 = vld [vmem:[%s2 + $0x18] sm:$0xf]
  %v901 = vld [vmem:[%s2 + $0x20] sm:$0xf]
  %v902 = vld [vmem:[%s2 + $0x28] sm:$0xf]
  %v903 = vld [vmem:[%s2 + $0x30] sm:$0xf]
  %v904 = vld [vmem:[%s2 + $0x38] sm:$0xf]
  %v905 = vld [vmem:[%s2 + $0x48] sm:$0xf]
  %v906 = vld [vmem:[%s2 + $0x50] sm:$0xf]
  %v907 = vld [vmem:[%s2 + $0x58] sm:$0xf]
  %v908 = vld [vmem:[%s2 + $0x60] sm:$0xf]
  %v909 = vld [vmem:[%s2 + $0x68] sm:$0xf]
  %v910 = vld [vmem:[%s2 + $0x70] sm:$0xf]
  %v911 = vld [vmem:[%s2 + $0x78] sm:$0xf]
  %v912 = vld [vmem:[%s2 + $0x80] sm:$0xf]
  %s913 = scalar_lea.vmem %s4, 96
  %v914 = vld [vmem:[%s913] sm:$0xf]
  %v915 = vld [vmem:[%s913 + $0x4] sm:$0xf]
  %v916 = vld [vmem:[%s913 + $0x8] sm:$0xf]
  %v917 = vld [vmem:[%s913 + $0xc] sm:$0xf]
  %v918 = vld [vmem:[%s913 + $0x10] sm:$0xf]
  %v919 = vld [vmem:[%s913 + $0x14] sm:$0xf]
  %v920 = vld [vmem:[%s913 + $0x18] sm:$0xf]
  %v921 = vld [vmem:[%s913 + $0x1c] sm:$0xf]
  %v938 = vunpack.c.l.b16 %v897
  %v939 = vunpack.c.l.b16 %v898
  %v940 = vunpack.c.l.b16 %v899
  %v941 = vunpack.c.l.b16 %v900
  %v942 = vunpack.c.l.b16 %v901
  %v943 = vunpack.c.l.b16 %v902
  %v944 = vunpack.c.l.b16 %v903
  %v945 = vunpack.c.l.b16 %v904
  %v946 = vunpack.c.l.b16 %v905
  %v947 = vunpack.c.l.b16 %v906
  %v948 = vunpack.c.l.b16 %v907
  %v949 = vunpack.c.l.b16 %v908
  %v950 = vunpack.c.l.b16 %v909
  %v951 = vunpack.c.l.b16 %v910
  %v952 = vunpack.c.l.b16 %v911
  %v953 = vunpack.c.l.b16 %v912
  %v954 = vpack.c.b16 %v939, %v938
  %v955 = vpack.c.b16 %v941, %v940
  %v956 = vpack.c.b16 %v943, %v942
  %v957 = vpack.c.b16 %v945, %v944
  %v958 = vpack.c.b16 %v947, %v946
  %v959 = vpack.c.b16 %v949, %v948
  %v960 = vpack.c.b16 %v951, %v950
  %v961 = vpack.c.b16 %v953, %v952
  %v970 = vunpack.c.l.b16 %v914
  %v971 = vunpack.c.l.b16 %v915
  %v972 = vunpack.c.l.b16 %v916
  %v973 = vunpack.c.l.b16 %v917
  %v974 = vunpack.c.l.b16 %v918
  %v975 = vunpack.c.l.b16 %v919
  %v976 = vunpack.c.l.b16 %v920
  %v977 = vunpack.c.l.b16 %v921
  %v978 = vpack.c.b16 %v971, %v970
  %v979 = vpack.c.b16 %v973, %v972
  %v980 = vpack.c.b16 %v975, %v974
  %v981 = vpack.c.b16 %v977, %v976
  %v987 = vsel %vm137, %v954, 0
  %v990 = vsel %vm137, %v955, 0
  %v993 = vsel %vm137, %v956, 0
  %v996 = vsel %vm137, %v957, 0
  %v999 = vsel %vm137, %v958, 0
  %v1002 = vsel %vm137, %v959, 0
  %v1005 = vsel %vm137, %v960, 0
  %v1008 = vsel %vm137, %v961, 0
  %1010 = vmatprep.subr.bf16.mxu0 0
  %1011 = vmatpush1.bf16.msra.mxu0 0
  %1012 = vmatprep.subr.bf16.mxu0 0
  %1013 = vmatpush1.bf16.msra.mxu0 0
  %1014 = vmatprep.subr.bf16.mxu0 0
  %1015 = vmatpush1.bf16.msra.mxu0 0
  %1016 = vmatprep.subr.bf16.mxu0 0
  %1017 = vmatpush1.bf16.msra.mxu0 0
  %1018 = vmatprep.subr.bf16.mxu0 0
  %1019 = vmatpush1.bf16.msra.mxu0 %v981
  %1020 = vmatprep.subr.bf16.mxu0 0
  %1021 = vmatpush1.bf16.msra.mxu0 %v980
  %1022 = vmatprep.subr.bf16.mxu0 0
  %1023 = vmatpush1.bf16.msra.mxu0 %v979
  %1024 = vmatprep.subr.bf16.mxu0 0
  %1025 = vmatpush1.bf16.msra.mxu0 %v978
  %1026 = vmatprep.subr.bf16.mxu0 0
  %1027 = vmatpush2.bf16.msra.mxu0 0
  %1028 = vmatprep.subr.bf16.mxu0 0
  %1029 = vmatpush2.bf16.msra.mxu0 0
  %1030 = vmatprep.subr.bf16.mxu0 0
  %1031 = vmatpush2.bf16.msra.mxu0 0
  %1032 = vmatprep.subr.bf16.mxu0 0
  %1033 = vmatpush2.bf16.msra.mxu0 0
  %1034 = vmatprep.subr.bf16.mxu0 0
  %1035 = vmatpush2.bf16.msra.mxu0 0
  %1036 = vmatprep.subr.bf16.mxu0 0
  %1037 = vmatpush2.bf16.msra.mxu0 0
  %1038 = vmatprep.subr.bf16.mxu0 0
  %1039 = vmatpush2.bf16.msra.mxu0 0
  %1040 = vmatprep.subr.bf16.mxu0 0
  %1041 = vmatpush2.bf16.msra.mxu0 0
  %1042 = vmatprep.mubr.bf16.mxu0 0
  %1043 = vmatmul.mubr.bf16.gmra.mxu0 %v987
  %v1044 = vpop.f32.mrf.mxu0
  %v1045 = vadd.f32 0.0, %v1044
  %v1046 = vpop.f32.mrf.mxu0
  %v1047 = vpop.f32.mrf.mxu0
  %v1048 = vadd.f32 0.0, %v1047
  %v1049 = vpop.f32.mrf.mxu0
  %1050 = vmatprep.mubr.bf16.mxu0 0
  %1051 = vmatmul.mubr.bf16.gmra.mxu0 %v990
  %v1052 = vpop.f32.mrf.mxu0
  %v1053 = vadd.f32 0.0, %v1052
  %v1054 = vpop.f32.mrf.mxu0
  %v1055 = vpop.f32.mrf.mxu0
  %v1056 = vadd.f32 0.0, %v1055
  %v1057 = vpop.f32.mrf.mxu0
  %1058 = vmatprep.mubr.bf16.mxu0 0
  %1059 = vmatmul.mubr.bf16.gmra.mxu0 %v993
  %v1060 = vpop.f32.mrf.mxu0
  %v1061 = vadd.f32 0.0, %v1060
  %v1062 = vpop.f32.mrf.mxu0
  %v1063 = vpop.f32.mrf.mxu0
  %v1064 = vadd.f32 0.0, %v1063
  %v1065 = vpop.f32.mrf.mxu0
  %1066 = vmatprep.mubr.bf16.mxu0 0
  %1067 = vmatmul.mubr.bf16.gmra.mxu0 %v996
  %v1068 = vpop.f32.mrf.mxu0
  %v1069 = vadd.f32 0.0, %v1068
  %v1070 = vpop.f32.mrf.mxu0
  %v1071 = vpop.f32.mrf.mxu0
  %v1072 = vadd.f32 0.0, %v1071
  %v1073 = vpop.f32.mrf.mxu0
  %1074 = vmatprep.mubr.bf16.mxu0 0
  %1075 = vmatmul.mubr.bf16.gmra.mxu0 %v999
  %v1076 = vpop.f32.mrf.mxu0
  %v1077 = vadd.f32 0.0, %v1076
  %v1078 = vpop.f32.mrf.mxu0
  %v1079 = vpop.f32.mrf.mxu0
  %v1080 = vadd.f32 0.0, %v1079
  %v1081 = vpop.f32.mrf.mxu0
  %1082 = vmatprep.mubr.bf16.mxu0 0
  %1083 = vmatmul.mubr.bf16.gmra.mxu0 %v1002
  %v1084 = vpop.f32.mrf.mxu0
  %v1085 = vadd.f32 0.0, %v1084
  %v1086 = vpop.f32.mrf.mxu0
  %v1087 = vpop.f32.mrf.mxu0
  %v1088 = vadd.f32 0.0, %v1087
  %v1089 = vpop.f32.mrf.mxu0
  %1090 = vmatprep.mubr.bf16.mxu0 0
  %1091 = vmatmul.mubr.bf16.gmra.mxu0 %v1005
  %v1092 = vpop.f32.mrf.mxu0
  %v1093 = vadd.f32 0.0, %v1092
  %v1094 = vpop.f32.mrf.mxu0
  %v1095 = vpop.f32.mrf.mxu0
  %v1096 = vadd.f32 0.0, %v1095
  %v1097 = vpop.f32.mrf.mxu0
  %1098 = vmatprep.mubr.bf16.mxu0 0
  %1099 = vmatmul.mubr.bf16.gmra.mxu0 %v1008
  %v1100 = vpop.f32.mrf.mxu0
  %v1101 = vadd.f32 0.0, %v1100
  %v1102 = vpop.f32.mrf.mxu0
  %v1103 = vpop.f32.mrf.mxu0
  %v1104 = vadd.f32 0.0, %v1103
  %v1105 = vpop.f32.mrf.mxu0
  %1106 = vdwg.mxu0
  %v1107 = vadd.f32 %v881, %v1045
  %v1108 = vadd.f32 %v882, %v1048
  %v1109 = vadd.f32 %v883, %v1053
  %v1110 = vadd.f32 %v884, %v1056
  %v1111 = vadd.f32 %v885, %v1061
  %v1112 = vadd.f32 %v886, %v1064
  %v1113 = vadd.f32 %v887, %v1069
  %v1114 = vadd.f32 %v888, %v1072
  %v1115 = vadd.f32 %v889, %v1077
  %v1116 = vadd.f32 %v890, %v1080
  %v1117 = vadd.f32 %v891, %v1085
  %v1118 = vadd.f32 %v892, %v1088
  %v1119 = vadd.f32 %v893, %v1093
  %v1120 = vadd.f32 %v894, %v1096
  %v1121 = vadd.f32 %v895, %v1101
  %v1122 = vadd.f32 %v896, %v1104
  %v1123 = vld [vmem:[%s3] sm:$0xf]
  %v1124 = vld [vmem:[%s3 + $0x8] sm:$0xf]
  %v1125 = vld [vmem:[%s3 + $0x10] sm:$0xf]
  %v1126 = vld [vmem:[%s3 + $0x18] sm:$0xf]
  %v1127 = vld [vmem:[%s3 + $0x20] sm:$0xf]
  %v1128 = vld [vmem:[%s3 + $0x28] sm:$0xf]
  %v1129 = vld [vmem:[%s3 + $0x30] sm:$0xf]
  %v1130 = vld [vmem:[%s3 + $0x38] sm:$0xf]
  %v1131 = vld [vmem:[%s3 + $0x48] sm:$0xf]
  %v1132 = vld [vmem:[%s3 + $0x50] sm:$0xf]
  %v1133 = vld [vmem:[%s3 + $0x58] sm:$0xf]
  %v1134 = vld [vmem:[%s3 + $0x60] sm:$0xf]
  %v1135 = vld [vmem:[%s3 + $0x68] sm:$0xf]
  %v1136 = vld [vmem:[%s3 + $0x70] sm:$0xf]
  %v1137 = vld [vmem:[%s3 + $0x78] sm:$0xf]
  %v1138 = vld [vmem:[%s3 + $0x80] sm:$0xf]
  %s1139 = scalar_lea.vmem %s4, 128
  %v1140 = vld [vmem:[%s1139] sm:$0xf]
  %v1141 = vld [vmem:[%s1139 + $0x4] sm:$0xf]
  %v1142 = vld [vmem:[%s1139 + $0x8] sm:$0xf]
  %v1143 = vld [vmem:[%s1139 + $0xc] sm:$0xf]
  %v1144 = vld [vmem:[%s1139 + $0x10] sm:$0xf]
  %v1145 = vld [vmem:[%s1139 + $0x14] sm:$0xf]
  %v1146 = vld [vmem:[%s1139 + $0x18] sm:$0xf]
  %v1147 = vld [vmem:[%s1139 + $0x1c] sm:$0xf]
  %v1164 = vunpack.c.l.b16 %v1123
  %v1165 = vunpack.c.l.b16 %v1124
  %v1166 = vunpack.c.l.b16 %v1125
  %v1167 = vunpack.c.l.b16 %v1126
  %v1168 = vunpack.c.l.b16 %v1127
  %v1169 = vunpack.c.l.b16 %v1128
  %v1170 = vunpack.c.l.b16 %v1129
  %v1171 = vunpack.c.l.b16 %v1130
  %v1172 = vunpack.c.l.b16 %v1131
  %v1173 = vunpack.c.l.b16 %v1132
  %v1174 = vunpack.c.l.b16 %v1133
  %v1175 = vunpack.c.l.b16 %v1134
  %v1176 = vunpack.c.l.b16 %v1135
  %v1177 = vunpack.c.l.b16 %v1136
  %v1178 = vunpack.c.l.b16 %v1137
  %v1179 = vunpack.c.l.b16 %v1138
  %v1180 = vpack.c.b16 %v1165, %v1164
  %v1181 = vpack.c.b16 %v1167, %v1166
  %v1182 = vpack.c.b16 %v1169, %v1168
  %v1183 = vpack.c.b16 %v1171, %v1170
  %v1184 = vpack.c.b16 %v1173, %v1172
  %v1185 = vpack.c.b16 %v1175, %v1174
  %v1186 = vpack.c.b16 %v1177, %v1176
  %v1187 = vpack.c.b16 %v1179, %v1178
  %v1196 = vunpack.c.l.b16 %v1140
  %v1197 = vunpack.c.l.b16 %v1141
  %v1198 = vunpack.c.l.b16 %v1142
  %v1199 = vunpack.c.l.b16 %v1143
  %v1200 = vunpack.c.l.b16 %v1144
  %v1201 = vunpack.c.l.b16 %v1145
  %v1202 = vunpack.c.l.b16 %v1146
  %v1203 = vunpack.c.l.b16 %v1147
  %v1204 = vpack.c.b16 %v1197, %v1196
  %v1205 = vpack.c.b16 %v1199, %v1198
  %v1206 = vpack.c.b16 %v1201, %v1200
  %v1207 = vpack.c.b16 %v1203, %v1202
  %v1213 = vsel %vm137, %v1180, 0
  %v1216 = vsel %vm137, %v1181, 0
  %v1219 = vsel %vm137, %v1182, 0
  %v1222 = vsel %vm137, %v1183, 0
  %v1225 = vsel %vm137, %v1184, 0
  %v1228 = vsel %vm137, %v1185, 0
  %v1231 = vsel %vm137, %v1186, 0
  %v1234 = vsel %vm137, %v1187, 0
  %1236 = vmatprep.subr.bf16.mxu0 0
  %1237 = vmatpush1.bf16.msra.mxu0 0
  %1238 = vmatprep.subr.bf16.mxu0 0
  %1239 = vmatpush1.bf16.msra.mxu0 0
  %1240 = vmatprep.subr.bf16.mxu0 0
  %1241 = vmatpush1.bf16.msra.mxu0 0
  %1242 = vmatprep.subr.bf16.mxu0 0
  %1243 = vmatpush1.bf16.msra.mxu0 0
  %1244 = vmatprep.subr.bf16.mxu0 0
  %1245 = vmatpush1.bf16.msra.mxu0 %v1207
  %1246 = vmatprep.subr.bf16.mxu0 0
  %1247 = vmatpush1.bf16.msra.mxu0 %v1206
  %1248 = vmatprep.subr.bf16.mxu0 0
  %1249 = vmatpush1.bf16.msra.mxu0 %v1205
  %1250 = vmatprep.subr.bf16.mxu0 0
  %1251 = vmatpush1.bf16.msra.mxu0 %v1204
  %1252 = vmatprep.subr.bf16.mxu0 0
  %1253 = vmatpush2.bf16.msra.mxu0 0
  %1254 = vmatprep.subr.bf16.mxu0 0
  %1255 = vmatpush2.bf16.msra.mxu0 0
  %1256 = vmatprep.subr.bf16.mxu0 0
  %1257 = vmatpush2.bf16.msra.mxu0 0
  %1258 = vmatprep.subr.bf16.mxu0 0
  %1259 = vmatpush2.bf16.msra.mxu0 0
  %1260 = vmatprep.subr.bf16.mxu0 0
  %1261 = vmatpush2.bf16.msra.mxu0 0
  %1262 = vmatprep.subr.bf16.mxu0 0
  %1263 = vmatpush2.bf16.msra.mxu0 0
  %1264 = vmatprep.subr.bf16.mxu0 0
  %1265 = vmatpush2.bf16.msra.mxu0 0
  %1266 = vmatprep.subr.bf16.mxu0 0
  %1267 = vmatpush2.bf16.msra.mxu0 0
  %1268 = vmatprep.mubr.bf16.mxu0 0
  %1269 = vmatmul.mubr.bf16.gmra.mxu0 %v1213
  %v1270 = vpop.f32.mrf.mxu0
  %v1271 = vadd.f32 0.0, %v1270
  %v1272 = vpop.f32.mrf.mxu0
  %v1273 = vpop.f32.mrf.mxu0
  %v1274 = vadd.f32 0.0, %v1273
  %v1275 = vpop.f32.mrf.mxu0
  %1276 = vmatprep.mubr.bf16.mxu0 0
  %1277 = vmatmul.mubr.bf16.gmra.mxu0 %v1216
  %v1278 = vpop.f32.mrf.mxu0
  %v1279 = vadd.f32 0.0, %v1278
  %v1280 = vpop.f32.mrf.mxu0
  %v1281 = vpop.f32.mrf.mxu0
  %v1282 = vadd.f32 0.0, %v1281
  %v1283 = vpop.f32.mrf.mxu0
  %1284 = vmatprep.mubr.bf16.mxu0 0
  %1285 = vmatmul.mubr.bf16.gmra.mxu0 %v1219
  %v1286 = vpop.f32.mrf.mxu0
  %v1287 = vadd.f32 0.0, %v1286
  %v1288 = vpop.f32.mrf.mxu0
  %v1289 = vpop.f32.mrf.mxu0
  %v1290 = vadd.f32 0.0, %v1289
  %v1291 = vpop.f32.mrf.mxu0
  %1292 = vmatprep.mubr.bf16.mxu0 0
  %1293 = vmatmul.mubr.bf16.gmra.mxu0 %v1222
  %v1294 = vpop.f32.mrf.mxu0
  %v1295 = vadd.f32 0.0, %v1294
  %v1296 = vpop.f32.mrf.mxu0
  %v1297 = vpop.f32.mrf.mxu0
  %v1298 = vadd.f32 0.0, %v1297
  %v1299 = vpop.f32.mrf.mxu0
  %1300 = vmatprep.mubr.bf16.mxu0 0
  %1301 = vmatmul.mubr.bf16.gmra.mxu0 %v1225
  %v1302 = vpop.f32.mrf.mxu0
  %v1303 = vadd.f32 0.0, %v1302
  %v1304 = vpop.f32.mrf.mxu0
  %v1305 = vpop.f32.mrf.mxu0
  %v1306 = vadd.f32 0.0, %v1305
  %v1307 = vpop.f32.mrf.mxu0
  %1308 = vmatprep.mubr.bf16.mxu0 0
  %1309 = vmatmul.mubr.bf16.gmra.mxu0 %v1228
  %v1310 = vpop.f32.mrf.mxu0
  %v1311 = vadd.f32 0.0, %v1310
  %v1312 = vpop.f32.mrf.mxu0
  %v1313 = vpop.f32.mrf.mxu0
  %v1314 = vadd.f32 0.0, %v1313
  %v1315 = vpop.f32.mrf.mxu0
  %1316 = vmatprep.mubr.bf16.mxu0 0
  %1317 = vmatmul.mubr.bf16.gmra.mxu0 %v1231
  %v1318 = vpop.f32.mrf.mxu0
  %v1319 = vadd.f32 0.0, %v1318
  %v1320 = vpop.f32.mrf.mxu0
  %v1321 = vpop.f32.mrf.mxu0
  %v1322 = vadd.f32 0.0, %v1321
  %v1323 = vpop.f32.mrf.mxu0
  %1324 = vmatprep.mubr.bf16.mxu0 0
  %1325 = vmatmul.mubr.bf16.gmra.mxu0 %v1234
  %v1326 = vpop.f32.mrf.mxu0
  %v1327 = vadd.f32 0.0, %v1326
  %v1328 = vpop.f32.mrf.mxu0
  %v1329 = vpop.f32.mrf.mxu0
  %v1330 = vadd.f32 0.0, %v1329
  %v1331 = vpop.f32.mrf.mxu0
  %1332 = vdwg.mxu0
  %v1333 = vadd.f32 %v1107, %v1271
  %v1334 = vadd.f32 %v1108, %v1274
  %v1335 = vadd.f32 %v1109, %v1279
  %v1336 = vadd.f32 %v1110, %v1282
  %v1337 = vadd.f32 %v1111, %v1287
  %v1338 = vadd.f32 %v1112, %v1290
  %v1339 = vadd.f32 %v1113, %v1295
  %v1340 = vadd.f32 %v1114, %v1298
  %v1341 = vadd.f32 %v1115, %v1303
  %v1342 = vadd.f32 %v1116, %v1306
  %v1343 = vadd.f32 %v1117, %v1311
  %v1344 = vadd.f32 %v1118, %v1314
  %v1345 = vadd.f32 %v1119, %v1319
  %v1346 = vadd.f32 %v1120, %v1322
  %v1347 = vadd.f32 %v1121, %v1327
  %v1348 = vadd.f32 %v1122, %v1330
  %v1349 = vld [vmem:[%s2] sm:$0xf]
  %v1350 = vld [vmem:[%s2 + $0x4] sm:$0x1]
  %v1351 = vld [vmem:[%s2 + $0x8] sm:$0xf]
  %v1352 = vld [vmem:[%s2 + $0xc] sm:$0x1]
  %v1353 = vld [vmem:[%s2 + $0x10] sm:$0xf]
  %v1354 = vld [vmem:[%s2 + $0x14] sm:$0x1]
  %v1355 = vld [vmem:[%s2 + $0x18] sm:$0xf]
  %v1356 = vld [vmem:[%s2 + $0x1c] sm:$0x1]
  %v1357 = vld [vmem:[%s2 + $0x20] sm:$0xf]
  %v1358 = vld [vmem:[%s2 + $0x24] sm:$0x1]
  %v1359 = vld [vmem:[%s2 + $0x28] sm:$0xf]
  %v1360 = vld [vmem:[%s2 + $0x2c] sm:$0x1]
  %v1361 = vld [vmem:[%s2 + $0x30] sm:$0xf]
  %v1362 = vld [vmem:[%s2 + $0x34] sm:$0x1]
  %v1363 = vld [vmem:[%s2 + $0x38] sm:$0xf]
  %v1364 = vld [vmem:[%s2 + $0x3c] sm:$0x1]
  %v1365 = vld [vmem:[%s2 + $0x48] sm:$0xf]
  %v1366 = vld [vmem:[%s2 + $0x4c] sm:$0x1]
  %v1367 = vld [vmem:[%s2 + $0x50] sm:$0xf]
  %v1368 = vld [vmem:[%s2 + $0x54] sm:$0x1]
  %v1369 = vld [vmem:[%s2 + $0x58] sm:$0xf]
  %v1370 = vld [vmem:[%s2 + $0x5c] sm:$0x1]
  %v1371 = vld [vmem:[%s2 + $0x60] sm:$0xf]
  %v1372 = vld [vmem:[%s2 + $0x64] sm:$0x1]
  %v1373 = vld [vmem:[%s2 + $0x68] sm:$0xf]
  %v1374 = vld [vmem:[%s2 + $0x6c] sm:$0x1]
  %v1375 = vld [vmem:[%s2 + $0x70] sm:$0xf]
  %v1376 = vld [vmem:[%s2 + $0x74] sm:$0x1]
  %v1377 = vld [vmem:[%s2 + $0x78] sm:$0xf]
  %v1378 = vld [vmem:[%s2 + $0x7c] sm:$0x1]
  %v1379 = vld [vmem:[%s2 + $0x80] sm:$0xf]
  %v1380 = vld [vmem:[%s2 + $0x84] sm:$0x1]
  %v1382 = vshrl.u32 %v1349, 16
  %v1384 = vrot.slane %v1382, 4
  %v1385 = vshll.u32 %v1349, 16
  %v1387 = vrot.slane %v1385, 5
  %v1388 = vor.u32 %v1384, %v1387
  %v1389 = vrot.slane %v1388, 4
  %v1391 = vshll.u32 %v1350, 16
  %v1393 = vrot.slane %v1391, 5
  %v1394 = vsel %vm478, %v1389, %v1393
  %v1396 = vshrl.u32 %v1351, 16
  %v1398 = vrot.slane %v1396, 4
  %v1399 = vshll.u32 %v1351, 16
  %v1401 = vrot.slane %v1399, 5
  %v1402 = vor.u32 %v1398, %v1401
  %v1403 = vrot.slane %v1402, 4
  %v1405 = vshll.u32 %v1352, 16
  %v1407 = vrot.slane %v1405, 5
  %v1408 = vsel %vm478, %v1403, %v1407
  %v1410 = vshrl.u32 %v1353, 16
  %v1412 = vrot.slane %v1410, 4
  %v1413 = vshll.u32 %v1353, 16
  %v1415 = vrot.slane %v1413, 5
  %v1416 = vor.u32 %v1412, %v1415
  %v1417 = vrot.slane %v1416, 4
  %v1419 = vshll.u32 %v1354, 16
  %v1421 = vrot.slane %v1419, 5
  %v1422 = vsel %vm478, %v1417, %v1421
  %v1424 = vshrl.u32 %v1355, 16
  %v1426 = vrot.slane %v1424, 4
  %v1427 = vshll.u32 %v1355, 16
  %v1429 = vrot.slane %v1427, 5
  %v1430 = vor.u32 %v1426, %v1429
  %v1431 = vrot.slane %v1430, 4
  %v1433 = vshll.u32 %v1356, 16
  %v1435 = vrot.slane %v1433, 5
  %v1436 = vsel %vm478, %v1431, %v1435
  %v1438 = vshrl.u32 %v1357, 16
  %v1440 = vrot.slane %v1438, 4
  %v1441 = vshll.u32 %v1357, 16
  %v1443 = vrot.slane %v1441, 5
  %v1444 = vor.u32 %v1440, %v1443
  %v1445 = vrot.slane %v1444, 4
  %v1447 = vshll.u32 %v1358, 16
  %v1449 = vrot.slane %v1447, 5
  %v1450 = vsel %vm478, %v1445, %v1449
  %v1452 = vshrl.u32 %v1359, 16
  %v1454 = vrot.slane %v1452, 4
  %v1455 = vshll.u32 %v1359, 16
  %v1457 = vrot.slane %v1455, 5
  %v1458 = vor.u32 %v1454, %v1457
  %v1459 = vrot.slane %v1458, 4
  %v1461 = vshll.u32 %v1360, 16
  %v1463 = vrot.slane %v1461, 5
  %v1464 = vsel %vm478, %v1459, %v1463
  %v1466 = vshrl.u32 %v1361, 16
  %v1468 = vrot.slane %v1466, 4
  %v1469 = vshll.u32 %v1361, 16
  %v1471 = vrot.slane %v1469, 5
  %v1472 = vor.u32 %v1468, %v1471
  %v1473 = vrot.slane %v1472, 4
  %v1475 = vshll.u32 %v1362, 16
  %v1477 = vrot.slane %v1475, 5
  %v1478 = vsel %vm478, %v1473, %v1477
  %v1480 = vshrl.u32 %v1363, 16
  %v1482 = vrot.slane %v1480, 4
  %v1483 = vshll.u32 %v1363, 16
  %v1485 = vrot.slane %v1483, 5
  %v1486 = vor.u32 %v1482, %v1485
  %v1487 = vrot.slane %v1486, 4
  %v1489 = vshll.u32 %v1364, 16
  %v1491 = vrot.slane %v1489, 5
  %v1492 = vsel %vm478, %v1487, %v1491
  %v1494 = vshrl.u32 %v1365, 16
  %v1496 = vrot.slane %v1494, 4
  %v1497 = vshll.u32 %v1365, 16
  %v1499 = vrot.slane %v1497, 5
  %v1500 = vor.u32 %v1496, %v1499
  %v1501 = vrot.slane %v1500, 4
  %v1503 = vshll.u32 %v1366, 16
  %v1505 = vrot.slane %v1503, 5
  %v1506 = vsel %vm478, %v1501, %v1505
  %v1508 = vshrl.u32 %v1367, 16
  %v1510 = vrot.slane %v1508, 4
  %v1511 = vshll.u32 %v1367, 16
  %v1513 = vrot.slane %v1511, 5
  %v1514 = vor.u32 %v1510, %v1513
  %v1515 = vrot.slane %v1514, 4
  %v1517 = vshll.u32 %v1368, 16
  %v1519 = vrot.slane %v1517, 5
  %v1520 = vsel %vm478, %v1515, %v1519
  %v1522 = vshrl.u32 %v1369, 16
  %v1524 = vrot.slane %v1522, 4
  %v1525 = vshll.u32 %v1369, 16
  %v1527 = vrot.slane %v1525, 5
  %v1528 = vor.u32 %v1524, %v1527
  %v1529 = vrot.slane %v1528, 4
  %v1531 = vshll.u32 %v1370, 16
  %v1533 = vrot.slane %v1531, 5
  %v1534 = vsel %vm478, %v1529, %v1533
  %v1536 = vshrl.u32 %v1371, 16
  %v1538 = vrot.slane %v1536, 4
  %v1539 = vshll.u32 %v1371, 16
  %v1541 = vrot.slane %v1539, 5
  %v1542 = vor.u32 %v1538, %v1541
  %v1543 = vrot.slane %v1542, 4
  %v1545 = vshll.u32 %v1372, 16
  %v1547 = vrot.slane %v1545, 5
  %v1548 = vsel %vm478, %v1543, %v1547
  %v1550 = vshrl.u32 %v1373, 16
  %v1552 = vrot.slane %v1550, 4
  %v1553 = vshll.u32 %v1373, 16
  %v1555 = vrot.slane %v1553, 5
  %v1556 = vor.u32 %v1552, %v1555
  %v1557 = vrot.slane %v1556, 4
  %v1559 = vshll.u32 %v1374, 16
  %v1561 = vrot.slane %v1559, 5
  %v1562 = vsel %vm478, %v1557, %v1561
  %v1564 = vshrl.u32 %v1375, 16
  %v1566 = vrot.slane %v1564, 4
  %v1567 = vshll.u32 %v1375, 16
  %v1569 = vrot.slane %v1567, 5
  %v1570 = vor.u32 %v1566, %v1569
  %v1571 = vrot.slane %v1570, 4
  %v1573 = vshll.u32 %v1376, 16
  %v1575 = vrot.slane %v1573, 5
  %v1576 = vsel %vm478, %v1571, %v1575
  %v1578 = vshrl.u32 %v1377, 16
  %v1580 = vrot.slane %v1578, 4
  %v1581 = vshll.u32 %v1377, 16
  %v1583 = vrot.slane %v1581, 5
  %v1584 = vor.u32 %v1580, %v1583
  %v1585 = vrot.slane %v1584, 4
  %v1587 = vshll.u32 %v1378, 16
  %v1589 = vrot.slane %v1587, 5
  %v1590 = vsel %vm478, %v1585, %v1589
  %v1592 = vshrl.u32 %v1379, 16
  %v1594 = vrot.slane %v1592, 4
  %v1595 = vshll.u32 %v1379, 16
  %v1597 = vrot.slane %v1595, 5
  %v1598 = vor.u32 %v1594, %v1597
  %v1599 = vrot.slane %v1598, 4
  %v1601 = vshll.u32 %v1380, 16
  %v1603 = vrot.slane %v1601, 5
  %v1604 = vsel %vm478, %v1599, %v1603
  %s1605 = scalar_lea.vmem %s4, 160
  %v1606 = vld [vmem:[%s1605] sm:$0xf]
  %v1607 = vld [vmem:[%s1605 + $0x4] sm:$0xf]
  %v1608 = vld [vmem:[%s1605 + $0x8] sm:$0xf]
  %v1609 = vld [vmem:[%s1605 + $0xc] sm:$0xf]
  %v1610 = vld [vmem:[%s1605 + $0x10] sm:$0xf]
  %v1611 = vld [vmem:[%s1605 + $0x14] sm:$0xf]
  %v1612 = vld [vmem:[%s1605 + $0x18] sm:$0xf]
  %v1613 = vld [vmem:[%s1605 + $0x1c] sm:$0xf]
  %v1614 = vunpack.c.l.b16 %v1394
  %v1615 = vunpack.c.l.b16 %v1408
  %v1616 = vunpack.c.l.b16 %v1422
  %v1617 = vunpack.c.l.b16 %v1436
  %v1618 = vunpack.c.l.b16 %v1450
  %v1619 = vunpack.c.l.b16 %v1464
  %v1620 = vunpack.c.l.b16 %v1478
  %v1621 = vunpack.c.l.b16 %v1492
  %v1622 = vunpack.c.l.b16 %v1506
  %v1623 = vunpack.c.l.b16 %v1520
  %v1624 = vunpack.c.l.b16 %v1534
  %v1625 = vunpack.c.l.b16 %v1548
  %v1626 = vunpack.c.l.b16 %v1562
  %v1627 = vunpack.c.l.b16 %v1576
  %v1628 = vunpack.c.l.b16 %v1590
  %v1629 = vunpack.c.l.b16 %v1604
  %v1630 = vpack.c.b16 %v1615, %v1614
  %v1631 = vpack.c.b16 %v1617, %v1616
  %v1632 = vpack.c.b16 %v1619, %v1618
  %v1633 = vpack.c.b16 %v1621, %v1620
  %v1634 = vpack.c.b16 %v1623, %v1622
  %v1635 = vpack.c.b16 %v1625, %v1624
  %v1636 = vpack.c.b16 %v1627, %v1626
  %v1637 = vpack.c.b16 %v1629, %v1628
  %v1646 = vunpack.c.l.b16 %v1606
  %v1647 = vunpack.c.l.b16 %v1607
  %v1648 = vunpack.c.l.b16 %v1608
  %v1649 = vunpack.c.l.b16 %v1609
  %v1650 = vunpack.c.l.b16 %v1610
  %v1651 = vunpack.c.l.b16 %v1611
  %v1652 = vunpack.c.l.b16 %v1612
  %v1653 = vunpack.c.l.b16 %v1613
  %v1654 = vpack.c.b16 %v1647, %v1646
  %v1655 = vpack.c.b16 %v1649, %v1648
  %v1656 = vpack.c.b16 %v1651, %v1650
  %v1657 = vpack.c.b16 %v1653, %v1652
  %v1663 = vsel %vm137, %v1630, 0
  %v1666 = vsel %vm137, %v1631, 0
  %v1669 = vsel %vm137, %v1632, 0
  %v1672 = vsel %vm137, %v1633, 0
  %v1675 = vsel %vm137, %v1634, 0
  %v1678 = vsel %vm137, %v1635, 0
  %v1681 = vsel %vm137, %v1636, 0
  %v1684 = vsel %vm137, %v1637, 0
  %1686 = vmatprep.subr.bf16.mxu0 0
  %1687 = vmatpush1.bf16.msra.mxu0 0
  %1688 = vmatprep.subr.bf16.mxu0 0
  %1689 = vmatpush1.bf16.msra.mxu0 0
  %1690 = vmatprep.subr.bf16.mxu0 0
  %1691 = vmatpush1.bf16.msra.mxu0 0
  %1692 = vmatprep.subr.bf16.mxu0 0
  %1693 = vmatpush1.bf16.msra.mxu0 0
  %1694 = vmatprep.subr.bf16.mxu0 0
  %1695 = vmatpush1.bf16.msra.mxu0 %v1657
  %1696 = vmatprep.subr.bf16.mxu0 0
  %1697 = vmatpush1.bf16.msra.mxu0 %v1656
  %1698 = vmatprep.subr.bf16.mxu0 0
  %1699 = vmatpush1.bf16.msra.mxu0 %v1655
  %1700 = vmatprep.subr.bf16.mxu0 0
  %1701 = vmatpush1.bf16.msra.mxu0 %v1654
  %1702 = vmatprep.subr.bf16.mxu0 0
  %1703 = vmatpush2.bf16.msra.mxu0 0
  %1704 = vmatprep.subr.bf16.mxu0 0
  %1705 = vmatpush2.bf16.msra.mxu0 0
  %1706 = vmatprep.subr.bf16.mxu0 0
  %1707 = vmatpush2.bf16.msra.mxu0 0
  %1708 = vmatprep.subr.bf16.mxu0 0
  %1709 = vmatpush2.bf16.msra.mxu0 0
  %1710 = vmatprep.subr.bf16.mxu0 0
  %1711 = vmatpush2.bf16.msra.mxu0 0
  %1712 = vmatprep.subr.bf16.mxu0 0
  %1713 = vmatpush2.bf16.msra.mxu0 0
  %1714 = vmatprep.subr.bf16.mxu0 0
  %1715 = vmatpush2.bf16.msra.mxu0 0
  %1716 = vmatprep.subr.bf16.mxu0 0
  %1717 = vmatpush2.bf16.msra.mxu0 0
  %1718 = vmatprep.mubr.bf16.mxu0 0
  %1719 = vmatmul.mubr.bf16.gmra.mxu0 %v1663
  %v1720 = vpop.f32.mrf.mxu0
  %v1721 = vadd.f32 0.0, %v1720
  %v1722 = vpop.f32.mrf.mxu0
  %v1723 = vpop.f32.mrf.mxu0
  %v1724 = vadd.f32 0.0, %v1723
  %v1725 = vpop.f32.mrf.mxu0
  %1726 = vmatprep.mubr.bf16.mxu0 0
  %1727 = vmatmul.mubr.bf16.gmra.mxu0 %v1666
  %v1728 = vpop.f32.mrf.mxu0
  %v1729 = vadd.f32 0.0, %v1728
  %v1730 = vpop.f32.mrf.mxu0
  %v1731 = vpop.f32.mrf.mxu0
  %v1732 = vadd.f32 0.0, %v1731
  %v1733 = vpop.f32.mrf.mxu0
  %1734 = vmatprep.mubr.bf16.mxu0 0
  %1735 = vmatmul.mubr.bf16.gmra.mxu0 %v1669
  %v1736 = vpop.f32.mrf.mxu0
  %v1737 = vadd.f32 0.0, %v1736
  %v1738 = vpop.f32.mrf.mxu0
  %v1739 = vpop.f32.mrf.mxu0
  %v1740 = vadd.f32 0.0, %v1739
  %v1741 = vpop.f32.mrf.mxu0
  %1742 = vmatprep.mubr.bf16.mxu0 0
  %1743 = vmatmul.mubr.bf16.gmra.mxu0 %v1672
  %v1744 = vpop.f32.mrf.mxu0
  %v1745 = vadd.f32 0.0, %v1744
  %v1746 = vpop.f32.mrf.mxu0
  %v1747 = vpop.f32.mrf.mxu0
  %v1748 = vadd.f32 0.0, %v1747
  %v1749 = vpop.f32.mrf.mxu0
  %1750 = vmatprep.mubr.bf16.mxu0 0
  %1751 = vmatmul.mubr.bf16.gmra.mxu0 %v1675
  %v1752 = vpop.f32.mrf.mxu0
  %v1753 = vadd.f32 0.0, %v1752
  %v1754 = vpop.f32.mrf.mxu0
  %v1755 = vpop.f32.mrf.mxu0
  %v1756 = vadd.f32 0.0, %v1755
  %v1757 = vpop.f32.mrf.mxu0
  %1758 = vmatprep.mubr.bf16.mxu0 0
  %1759 = vmatmul.mubr.bf16.gmra.mxu0 %v1678
  %v1760 = vpop.f32.mrf.mxu0
  %v1761 = vadd.f32 0.0, %v1760
  %v1762 = vpop.f32.mrf.mxu0
  %v1763 = vpop.f32.mrf.mxu0
  %v1764 = vadd.f32 0.0, %v1763
  %v1765 = vpop.f32.mrf.mxu0
  %1766 = vmatprep.mubr.bf16.mxu0 0
  %1767 = vmatmul.mubr.bf16.gmra.mxu0 %v1681
  %v1768 = vpop.f32.mrf.mxu0
  %v1769 = vadd.f32 0.0, %v1768
  %v1770 = vpop.f32.mrf.mxu0
  %v1771 = vpop.f32.mrf.mxu0
  %v1772 = vadd.f32 0.0, %v1771
  %v1773 = vpop.f32.mrf.mxu0
  %1774 = vmatprep.mubr.bf16.mxu0 0
  %1775 = vmatmul.mubr.bf16.gmra.mxu0 %v1684
  %v1776 = vpop.f32.mrf.mxu0
  %v1777 = vadd.f32 0.0, %v1776
  %v1778 = vpop.f32.mrf.mxu0
  %v1779 = vpop.f32.mrf.mxu0
  %v1780 = vadd.f32 0.0, %v1779
  %v1781 = vpop.f32.mrf.mxu0
  %1782 = vdwg.mxu0
  %v1783 = vadd.f32 %v1333, %v1721
  %v1784 = vadd.f32 %v1334, %v1724
  %v1785 = vadd.f32 %v1335, %v1729
  %v1786 = vadd.f32 %v1336, %v1732
  %v1787 = vadd.f32 %v1337, %v1737
  %v1788 = vadd.f32 %v1338, %v1740
  %v1789 = vadd.f32 %v1339, %v1745
  %v1790 = vadd.f32 %v1340, %v1748
  %v1791 = vadd.f32 %v1341, %v1753
  %v1792 = vadd.f32 %v1342, %v1756
  %v1793 = vadd.f32 %v1343, %v1761
  %v1794 = vadd.f32 %v1344, %v1764
  %v1795 = vadd.f32 %v1345, %v1769
  %v1796 = vadd.f32 %v1346, %v1772
  %v1797 = vadd.f32 %v1347, %v1777
  %v1798 = vadd.f32 %v1348, %v1780
  %s1799 = scalar_lea.vmem %s0, 8
  %v1800 = vld [vmem:[%s1799] sm:$0xf]
  %v1801 = vld [vmem:[%s1799 + $0x8] sm:$0xf]
  %v1802 = vld [vmem:[%s1799 + $0x10] sm:$0xf]
  %v1803 = vld [vmem:[%s1799 + $0x18] sm:$0xf]
  %v1804 = vld [vmem:[%s1799 + $0x20] sm:$0xf]
  %v1805 = vld [vmem:[%s1799 + $0x28] sm:$0xf]
  %v1806 = vld [vmem:[%s1799 + $0x30] sm:$0xf]
  %v1807 = vld [vmem:[%s1799 + $0x38] sm:$0xf]
  %v1808 = vld [vmem:[%s1799 + $0x48] sm:$0xf]
  %v1809 = vld [vmem:[%s1799 + $0x50] sm:$0xf]
  %v1810 = vld [vmem:[%s1799 + $0x58] sm:$0xf]
  %v1811 = vld [vmem:[%s1799 + $0x60] sm:$0xf]
  %v1812 = vld [vmem:[%s1799 + $0x68] sm:$0xf]
  %v1813 = vld [vmem:[%s1799 + $0x70] sm:$0xf]
  %v1814 = vld [vmem:[%s1799 + $0x78] sm:$0xf]
  %v1815 = vld [vmem:[%s1799 + $0x80] sm:$0xf]
  %s1816 = scalar_lea.vmem %s4, 192
  %v1817 = vld [vmem:[%s1816] sm:$0xf]
  %v1818 = vld [vmem:[%s1816 + $0x4] sm:$0xf]
  %v1819 = vld [vmem:[%s1816 + $0x8] sm:$0xf]
  %v1820 = vld [vmem:[%s1816 + $0xc] sm:$0xf]
  %v1821 = vld [vmem:[%s1816 + $0x10] sm:$0xf]
  %v1822 = vld [vmem:[%s1816 + $0x14] sm:$0xf]
  %v1823 = vld [vmem:[%s1816 + $0x18] sm:$0xf]
  %v1824 = vld [vmem:[%s1816 + $0x1c] sm:$0xf]
  %v1841 = vunpack.c.l.b16 %v1800
  %v1842 = vunpack.c.l.b16 %v1801
  %v1843 = vunpack.c.l.b16 %v1802
  %v1844 = vunpack.c.l.b16 %v1803
  %v1845 = vunpack.c.l.b16 %v1804
  %v1846 = vunpack.c.l.b16 %v1805
  %v1847 = vunpack.c.l.b16 %v1806
  %v1848 = vunpack.c.l.b16 %v1807
  %v1849 = vunpack.c.l.b16 %v1808
  %v1850 = vunpack.c.l.b16 %v1809
  %v1851 = vunpack.c.l.b16 %v1810
  %v1852 = vunpack.c.l.b16 %v1811
  %v1853 = vunpack.c.l.b16 %v1812
  %v1854 = vunpack.c.l.b16 %v1813
  %v1855 = vunpack.c.l.b16 %v1814
  %v1856 = vunpack.c.l.b16 %v1815
  %v1857 = vpack.c.b16 %v1842, %v1841
  %v1858 = vpack.c.b16 %v1844, %v1843
  %v1859 = vpack.c.b16 %v1846, %v1845
  %v1860 = vpack.c.b16 %v1848, %v1847
  %v1861 = vpack.c.b16 %v1850, %v1849
  %v1862 = vpack.c.b16 %v1852, %v1851
  %v1863 = vpack.c.b16 %v1854, %v1853
  %v1864 = vpack.c.b16 %v1856, %v1855
  %v1873 = vunpack.c.l.b16 %v1817
  %v1874 = vunpack.c.l.b16 %v1818
  %v1875 = vunpack.c.l.b16 %v1819
  %v1876 = vunpack.c.l.b16 %v1820
  %v1877 = vunpack.c.l.b16 %v1821
  %v1878 = vunpack.c.l.b16 %v1822
  %v1879 = vunpack.c.l.b16 %v1823
  %v1880 = vunpack.c.l.b16 %v1824
  %v1881 = vpack.c.b16 %v1874, %v1873
  %v1882 = vpack.c.b16 %v1876, %v1875
  %v1883 = vpack.c.b16 %v1878, %v1877
  %v1884 = vpack.c.b16 %v1880, %v1879
  %v1890 = vsel %vm137, %v1857, 0
  %v1893 = vsel %vm137, %v1858, 0
  %v1896 = vsel %vm137, %v1859, 0
  %v1899 = vsel %vm137, %v1860, 0
  %v1902 = vsel %vm137, %v1861, 0
  %v1905 = vsel %vm137, %v1862, 0
  %v1908 = vsel %vm137, %v1863, 0
  %v1911 = vsel %vm137, %v1864, 0
  %1913 = vmatprep.subr.bf16.mxu0 0
  %1914 = vmatpush1.bf16.msra.mxu0 0
  %1915 = vmatprep.subr.bf16.mxu0 0
  %1916 = vmatpush1.bf16.msra.mxu0 0
  %1917 = vmatprep.subr.bf16.mxu0 0
  %1918 = vmatpush1.bf16.msra.mxu0 0
  %1919 = vmatprep.subr.bf16.mxu0 0
  %1920 = vmatpush1.bf16.msra.mxu0 0
  %1921 = vmatprep.subr.bf16.mxu0 0
  %1922 = vmatpush1.bf16.msra.mxu0 %v1884
  %1923 = vmatprep.subr.bf16.mxu0 0
  %1924 = vmatpush1.bf16.msra.mxu0 %v1883
  %1925 = vmatprep.subr.bf16.mxu0 0
  %1926 = vmatpush1.bf16.msra.mxu0 %v1882
  %1927 = vmatprep.subr.bf16.mxu0 0
  %1928 = vmatpush1.bf16.msra.mxu0 %v1881
  %1929 = vmatprep.subr.bf16.mxu0 0
  %1930 = vmatpush2.bf16.msra.mxu0 0
  %1931 = vmatprep.subr.bf16.mxu0 0
  %1932 = vmatpush2.bf16.msra.mxu0 0
  %1933 = vmatprep.subr.bf16.mxu0 0
  %1934 = vmatpush2.bf16.msra.mxu0 0
  %1935 = vmatprep.subr.bf16.mxu0 0
  %1936 = vmatpush2.bf16.msra.mxu0 0
  %1937 = vmatprep.subr.bf16.mxu0 0
  %1938 = vmatpush2.bf16.msra.mxu0 0
  %1939 = vmatprep.subr.bf16.mxu0 0
  %1940 = vmatpush2.bf16.msra.mxu0 0
  %1941 = vmatprep.subr.bf16.mxu0 0
  %1942 = vmatpush2.bf16.msra.mxu0 0
  %1943 = vmatprep.subr.bf16.mxu0 0
  %1944 = vmatpush2.bf16.msra.mxu0 0
  %1945 = vmatprep.mubr.bf16.mxu0 0
  %1946 = vmatmul.mubr.bf16.gmra.mxu0 %v1890
  %v1947 = vpop.f32.mrf.mxu0
  %v1948 = vadd.f32 0.0, %v1947
  %v1949 = vpop.f32.mrf.mxu0
  %v1950 = vpop.f32.mrf.mxu0
  %v1951 = vadd.f32 0.0, %v1950
  %v1952 = vpop.f32.mrf.mxu0
  %1953 = vmatprep.mubr.bf16.mxu0 0
  %1954 = vmatmul.mubr.bf16.gmra.mxu0 %v1893
  %v1955 = vpop.f32.mrf.mxu0
  %v1956 = vadd.f32 0.0, %v1955
  %v1957 = vpop.f32.mrf.mxu0
  %v1958 = vpop.f32.mrf.mxu0
  %v1959 = vadd.f32 0.0, %v1958
  %v1960 = vpop.f32.mrf.mxu0
  %1961 = vmatprep.mubr.bf16.mxu0 0
  %1962 = vmatmul.mubr.bf16.gmra.mxu0 %v1896
  %v1963 = vpop.f32.mrf.mxu0
  %v1964 = vadd.f32 0.0, %v1963
  %v1965 = vpop.f32.mrf.mxu0
  %v1966 = vpop.f32.mrf.mxu0
  %v1967 = vadd.f32 0.0, %v1966
  %v1968 = vpop.f32.mrf.mxu0
  %1969 = vmatprep.mubr.bf16.mxu0 0
  %1970 = vmatmul.mubr.bf16.gmra.mxu0 %v1899
  %v1971 = vpop.f32.mrf.mxu0
  %v1972 = vadd.f32 0.0, %v1971
  %v1973 = vpop.f32.mrf.mxu0
  %v1974 = vpop.f32.mrf.mxu0
  %v1975 = vadd.f32 0.0, %v1974
  %v1976 = vpop.f32.mrf.mxu0
  %1977 = vmatprep.mubr.bf16.mxu0 0
  %1978 = vmatmul.mubr.bf16.gmra.mxu0 %v1902
  %v1979 = vpop.f32.mrf.mxu0
  %v1980 = vadd.f32 0.0, %v1979
  %v1981 = vpop.f32.mrf.mxu0
  %v1982 = vpop.f32.mrf.mxu0
  %v1983 = vadd.f32 0.0, %v1982
  %v1984 = vpop.f32.mrf.mxu0
  %1985 = vmatprep.mubr.bf16.mxu0 0
  %1986 = vmatmul.mubr.bf16.gmra.mxu0 %v1905
  %v1987 = vpop.f32.mrf.mxu0
  %v1988 = vadd.f32 0.0, %v1987
  %v1989 = vpop.f32.mrf.mxu0
  %v1990 = vpop.f32.mrf.mxu0
  %v1991 = vadd.f32 0.0, %v1990
  %v1992 = vpop.f32.mrf.mxu0
  %1993 = vmatprep.mubr.bf16.mxu0 0
  %1994 = vmatmul.mubr.bf16.gmra.mxu0 %v1908
  %v1995 = vpop.f32.mrf.mxu0
  %v1996 = vadd.f32 0.0, %v1995
  %v1997 = vpop.f32.mrf.mxu0
  %v1998 = vpop.f32.mrf.mxu0
  %v1999 = vadd.f32 0.0, %v1998
  %v2000 = vpop.f32.mrf.mxu0
  %2001 = vmatprep.mubr.bf16.mxu0 0
  %2002 = vmatmul.mubr.bf16.gmra.mxu0 %v1911
  %v2003 = vpop.f32.mrf.mxu0
  %v2004 = vadd.f32 0.0, %v2003
  %v2005 = vpop.f32.mrf.mxu0
  %v2006 = vpop.f32.mrf.mxu0
  %v2007 = vadd.f32 0.0, %v2006
  %v2008 = vpop.f32.mrf.mxu0
  %2009 = vdwg.mxu0
  %v2010 = vadd.f32 %v1783, %v1948
  %v2011 = vadd.f32 %v1784, %v1951
  %v2012 = vadd.f32 %v1785, %v1956
  %v2013 = vadd.f32 %v1786, %v1959
  %v2014 = vadd.f32 %v1787, %v1964
  %v2015 = vadd.f32 %v1788, %v1967
  %v2016 = vadd.f32 %v1789, %v1972
  %v2017 = vadd.f32 %v1790, %v1975
  %v2018 = vadd.f32 %v1791, %v1980
  %v2019 = vadd.f32 %v1792, %v1983
  %v2020 = vadd.f32 %v1793, %v1988
  %v2021 = vadd.f32 %v1794, %v1991
  %v2022 = vadd.f32 %v1795, %v1996
  %v2023 = vadd.f32 %v1796, %v1999
  %v2024 = vadd.f32 %v1797, %v2004
  %v2025 = vadd.f32 %v1798, %v2007
  %s2026 = scalar_lea.vmem %s1, 8
  %v2027 = vld [vmem:[%s2026] sm:$0xf]
  %v2028 = vld [vmem:[%s2026 + $0x8] sm:$0xf]
  %v2029 = vld [vmem:[%s2026 + $0x10] sm:$0xf]
  %v2030 = vld [vmem:[%s2026 + $0x18] sm:$0xf]
  %v2031 = vld [vmem:[%s2026 + $0x20] sm:$0xf]
  %v2032 = vld [vmem:[%s2026 + $0x28] sm:$0xf]
  %v2033 = vld [vmem:[%s2026 + $0x30] sm:$0xf]
  %v2034 = vld [vmem:[%s2026 + $0x38] sm:$0xf]
  %v2035 = vld [vmem:[%s2026 + $0x48] sm:$0xf]
  %v2036 = vld [vmem:[%s2026 + $0x50] sm:$0xf]
  %v2037 = vld [vmem:[%s2026 + $0x58] sm:$0xf]
  %v2038 = vld [vmem:[%s2026 + $0x60] sm:$0xf]
  %v2039 = vld [vmem:[%s2026 + $0x68] sm:$0xf]
  %v2040 = vld [vmem:[%s2026 + $0x70] sm:$0xf]
  %v2041 = vld [vmem:[%s2026 + $0x78] sm:$0xf]
  %v2042 = vld [vmem:[%s2026 + $0x80] sm:$0xf]
  %s2043 = scalar_lea.vmem %s4, 224
  %v2044 = vld [vmem:[%s2043] sm:$0xf]
  %v2045 = vld [vmem:[%s2043 + $0x4] sm:$0xf]
  %v2046 = vld [vmem:[%s2043 + $0x8] sm:$0xf]
  %v2047 = vld [vmem:[%s2043 + $0xc] sm:$0xf]
  %v2048 = vld [vmem:[%s2043 + $0x10] sm:$0xf]
  %v2049 = vld [vmem:[%s2043 + $0x14] sm:$0xf]
  %v2050 = vld [vmem:[%s2043 + $0x18] sm:$0xf]
  %v2051 = vld [vmem:[%s2043 + $0x1c] sm:$0xf]
  %v2068 = vunpack.c.l.b16 %v2027
  %v2069 = vunpack.c.l.b16 %v2028
  %v2070 = vunpack.c.l.b16 %v2029
  %v2071 = vunpack.c.l.b16 %v2030
  %v2072 = vunpack.c.l.b16 %v2031
  %v2073 = vunpack.c.l.b16 %v2032
  %v2074 = vunpack.c.l.b16 %v2033
  %v2075 = vunpack.c.l.b16 %v2034
  %v2076 = vunpack.c.l.b16 %v2035
  %v2077 = vunpack.c.l.b16 %v2036
  %v2078 = vunpack.c.l.b16 %v2037
  %v2079 = vunpack.c.l.b16 %v2038
  %v2080 = vunpack.c.l.b16 %v2039
  %v2081 = vunpack.c.l.b16 %v2040
  %v2082 = vunpack.c.l.b16 %v2041
  %v2083 = vunpack.c.l.b16 %v2042
  %v2084 = vpack.c.b16 %v2069, %v2068
  %v2085 = vpack.c.b16 %v2071, %v2070
  %v2086 = vpack.c.b16 %v2073, %v2072
  %v2087 = vpack.c.b16 %v2075, %v2074
  %v2088 = vpack.c.b16 %v2077, %v2076
  %v2089 = vpack.c.b16 %v2079, %v2078
  %v2090 = vpack.c.b16 %v2081, %v2080
  %v2091 = vpack.c.b16 %v2083, %v2082
  %v2100 = vunpack.c.l.b16 %v2044
  %v2101 = vunpack.c.l.b16 %v2045
  %v2102 = vunpack.c.l.b16 %v2046
  %v2103 = vunpack.c.l.b16 %v2047
  %v2104 = vunpack.c.l.b16 %v2048
  %v2105 = vunpack.c.l.b16 %v2049
  %v2106 = vunpack.c.l.b16 %v2050
  %v2107 = vunpack.c.l.b16 %v2051
  %v2108 = vpack.c.b16 %v2101, %v2100
  %v2109 = vpack.c.b16 %v2103, %v2102
  %v2110 = vpack.c.b16 %v2105, %v2104
  %v2111 = vpack.c.b16 %v2107, %v2106
  %v2117 = vsel %vm137, %v2084, 0
  %v2120 = vsel %vm137, %v2085, 0
  %v2123 = vsel %vm137, %v2086, 0
  %v2126 = vsel %vm137, %v2087, 0
  %v2129 = vsel %vm137, %v2088, 0
  %v2132 = vsel %vm137, %v2089, 0
  %v2135 = vsel %vm137, %v2090, 0
  %v2138 = vsel %vm137, %v2091, 0
  %2140 = vmatprep.subr.bf16.mxu0 0
  %2141 = vmatpush1.bf16.msra.mxu0 0
  %2142 = vmatprep.subr.bf16.mxu0 0
  %2143 = vmatpush1.bf16.msra.mxu0 0
  %2144 = vmatprep.subr.bf16.mxu0 0
  %2145 = vmatpush1.bf16.msra.mxu0 0
  %2146 = vmatprep.subr.bf16.mxu0 0
  %2147 = vmatpush1.bf16.msra.mxu0 0
  %2148 = vmatprep.subr.bf16.mxu0 0
  %2149 = vmatpush1.bf16.msra.mxu0 %v2111
  %2150 = vmatprep.subr.bf16.mxu0 0
  %2151 = vmatpush1.bf16.msra.mxu0 %v2110
  %2152 = vmatprep.subr.bf16.mxu0 0
  %2153 = vmatpush1.bf16.msra.mxu0 %v2109
  %2154 = vmatprep.subr.bf16.mxu0 0
  %2155 = vmatpush1.bf16.msra.mxu0 %v2108
  %2156 = vmatprep.subr.bf16.mxu0 0
  %2157 = vmatpush2.bf16.msra.mxu0 0
  %2158 = vmatprep.subr.bf16.mxu0 0
  %2159 = vmatpush2.bf16.msra.mxu0 0
  %2160 = vmatprep.subr.bf16.mxu0 0
  %2161 = vmatpush2.bf16.msra.mxu0 0
  %2162 = vmatprep.subr.bf16.mxu0 0
  %2163 = vmatpush2.bf16.msra.mxu0 0
  %2164 = vmatprep.subr.bf16.mxu0 0
  %2165 = vmatpush2.bf16.msra.mxu0 0
  %2166 = vmatprep.subr.bf16.mxu0 0
  %2167 = vmatpush2.bf16.msra.mxu0 0
  %2168 = vmatprep.subr.bf16.mxu0 0
  %2169 = vmatpush2.bf16.msra.mxu0 0
  %2170 = vmatprep.subr.bf16.mxu0 0
  %2171 = vmatpush2.bf16.msra.mxu0 0
  %2172 = vmatprep.mubr.bf16.mxu0 0
  %2173 = vmatmul.mubr.bf16.gmra.mxu0 %v2117
  %v2174 = vpop.f32.mrf.mxu0
  %v2175 = vadd.f32 0.0, %v2174
  %v2176 = vpop.f32.mrf.mxu0
  %v2177 = vpop.f32.mrf.mxu0
  %v2178 = vadd.f32 0.0, %v2177
  %v2179 = vpop.f32.mrf.mxu0
  %2180 = vmatprep.mubr.bf16.mxu0 0
  %2181 = vmatmul.mubr.bf16.gmra.mxu0 %v2120
  %v2182 = vpop.f32.mrf.mxu0
  %v2183 = vadd.f32 0.0, %v2182
  %v2184 = vpop.f32.mrf.mxu0
  %v2185 = vpop.f32.mrf.mxu0
  %v2186 = vadd.f32 0.0, %v2185
  %v2187 = vpop.f32.mrf.mxu0
  %2188 = vmatprep.mubr.bf16.mxu0 0
  %2189 = vmatmul.mubr.bf16.gmra.mxu0 %v2123
  %v2190 = vpop.f32.mrf.mxu0
  %v2191 = vadd.f32 0.0, %v2190
  %v2192 = vpop.f32.mrf.mxu0
  %v2193 = vpop.f32.mrf.mxu0
  %v2194 = vadd.f32 0.0, %v2193
  %v2195 = vpop.f32.mrf.mxu0
  %2196 = vmatprep.mubr.bf16.mxu0 0
  %2197 = vmatmul.mubr.bf16.gmra.mxu0 %v2126
  %v2198 = vpop.f32.mrf.mxu0
  %v2199 = vadd.f32 0.0, %v2198
  %v2200 = vpop.f32.mrf.mxu0
  %v2201 = vpop.f32.mrf.mxu0
  %v2202 = vadd.f32 0.0, %v2201
  %v2203 = vpop.f32.mrf.mxu0
  %2204 = vmatprep.mubr.bf16.mxu0 0
  %2205 = vmatmul.mubr.bf16.gmra.mxu0 %v2129
  %v2206 = vpop.f32.mrf.mxu0
  %v2207 = vadd.f32 0.0, %v2206
  %v2208 = vpop.f32.mrf.mxu0
  %v2209 = vpop.f32.mrf.mxu0
  %v2210 = vadd.f32 0.0, %v2209
  %v2211 = vpop.f32.mrf.mxu0
  %2212 = vmatprep.mubr.bf16.mxu0 0
  %2213 = vmatmul.mubr.bf16.gmra.mxu0 %v2132
  %v2214 = vpop.f32.mrf.mxu0
  %v2215 = vadd.f32 0.0, %v2214
  %v2216 = vpop.f32.mrf.mxu0
  %v2217 = vpop.f32.mrf.mxu0
  %v2218 = vadd.f32 0.0, %v2217
  %v2219 = vpop.f32.mrf.mxu0
  %2220 = vmatprep.mubr.bf16.mxu0 0
  %2221 = vmatmul.mubr.bf16.gmra.mxu0 %v2135
  %v2222 = vpop.f32.mrf.mxu0
  %v2223 = vadd.f32 0.0, %v2222
  %v2224 = vpop.f32.mrf.mxu0
  %v2225 = vpop.f32.mrf.mxu0
  %v2226 = vadd.f32 0.0, %v2225
  %v2227 = vpop.f32.mrf.mxu0
  %2228 = vmatprep.mubr.bf16.mxu0 0
  %2229 = vmatmul.mubr.bf16.gmra.mxu0 %v2138
  %v2230 = vpop.f32.mrf.mxu0
  %v2231 = vadd.f32 0.0, %v2230
  %v2232 = vpop.f32.mrf.mxu0
  %v2233 = vpop.f32.mrf.mxu0
  %v2234 = vadd.f32 0.0, %v2233
  %v2235 = vpop.f32.mrf.mxu0
  %2236 = vdwg.mxu0
  %v2237 = vadd.f32 %v2010, %v2175
  %v2238 = vadd.f32 %v2011, %v2178
  %v2239 = vadd.f32 %v2012, %v2183
  %v2240 = vadd.f32 %v2013, %v2186
  %v2241 = vadd.f32 %v2014, %v2191
  %v2242 = vadd.f32 %v2015, %v2194
  %v2243 = vadd.f32 %v2016, %v2199
  %v2244 = vadd.f32 %v2017, %v2202
  %v2245 = vadd.f32 %v2018, %v2207
  %v2246 = vadd.f32 %v2019, %v2210
  %v2247 = vadd.f32 %v2020, %v2215
  %v2248 = vadd.f32 %v2021, %v2218
  %v2249 = vadd.f32 %v2022, %v2223
  %v2250 = vadd.f32 %v2023, %v2226
  %v2251 = vadd.f32 %v2024, %v2231
  %v2252 = vadd.f32 %v2025, %v2234
  %v2253 = vld [vmem:[%s1799] sm:$0xf]
  %v2254 = vld [vmem:[%s1799 + $0x4] sm:$0x1]
  %v2255 = vld [vmem:[%s1799 + $0x8] sm:$0xf]
  %v2256 = vld [vmem:[%s1799 + $0xc] sm:$0x1]
  %v2257 = vld [vmem:[%s1799 + $0x10] sm:$0xf]
  %v2258 = vld [vmem:[%s1799 + $0x14] sm:$0x1]
  %v2259 = vld [vmem:[%s1799 + $0x18] sm:$0xf]
  %v2260 = vld [vmem:[%s1799 + $0x1c] sm:$0x1]
  %v2261 = vld [vmem:[%s1799 + $0x20] sm:$0xf]
  %v2262 = vld [vmem:[%s1799 + $0x24] sm:$0x1]
  %v2263 = vld [vmem:[%s1799 + $0x28] sm:$0xf]
  %v2264 = vld [vmem:[%s1799 + $0x2c] sm:$0x1]
  %v2265 = vld [vmem:[%s1799 + $0x30] sm:$0xf]
  %v2266 = vld [vmem:[%s1799 + $0x34] sm:$0x1]
  %v2267 = vld [vmem:[%s1799 + $0x38] sm:$0xf]
  %v2268 = vld [vmem:[%s1799 + $0x3c] sm:$0x1]
  %v2269 = vld [vmem:[%s1799 + $0x48] sm:$0xf]
  %v2270 = vld [vmem:[%s1799 + $0x4c] sm:$0x1]
  %v2271 = vld [vmem:[%s1799 + $0x50] sm:$0xf]
  %v2272 = vld [vmem:[%s1799 + $0x54] sm:$0x1]
  %v2273 = vld [vmem:[%s1799 + $0x58] sm:$0xf]
  %v2274 = vld [vmem:[%s1799 + $0x5c] sm:$0x1]
  %v2275 = vld [vmem:[%s1799 + $0x60] sm:$0xf]
  %v2276 = vld [vmem:[%s1799 + $0x64] sm:$0x1]
  %v2277 = vld [vmem:[%s1799 + $0x68] sm:$0xf]
  %v2278 = vld [vmem:[%s1799 + $0x6c] sm:$0x1]
  %v2279 = vld [vmem:[%s1799 + $0x70] sm:$0xf]
  %v2280 = vld [vmem:[%s1799 + $0x74] sm:$0x1]
  %v2281 = vld [vmem:[%s1799 + $0x78] sm:$0xf]
  %v2282 = vld [vmem:[%s1799 + $0x7c] sm:$0x1]
  %v2283 = vld [vmem:[%s1799 + $0x80] sm:$0xf]
  %v2284 = vld [vmem:[%s1799 + $0x84] sm:$0x1]
  %v2286 = vshrl.u32 %v2253, 16
  %v2288 = vrot.slane %v2286, 4
  %v2289 = vshll.u32 %v2253, 16
  %v2291 = vrot.slane %v2289, 5
  %v2292 = vor.u32 %v2288, %v2291
  %v2293 = vrot.slane %v2292, 4
  %v2295 = vshll.u32 %v2254, 16
  %v2297 = vrot.slane %v2295, 5
  %v2298 = vsel %vm478, %v2293, %v2297
  %v2300 = vshrl.u32 %v2255, 16
  %v2302 = vrot.slane %v2300, 4
  %v2303 = vshll.u32 %v2255, 16
  %v2305 = vrot.slane %v2303, 5
  %v2306 = vor.u32 %v2302, %v2305
  %v2307 = vrot.slane %v2306, 4
  %v2309 = vshll.u32 %v2256, 16
  %v2311 = vrot.slane %v2309, 5
  %v2312 = vsel %vm478, %v2307, %v2311
  %v2314 = vshrl.u32 %v2257, 16
  %v2316 = vrot.slane %v2314, 4
  %v2317 = vshll.u32 %v2257, 16
  %v2319 = vrot.slane %v2317, 5
  %v2320 = vor.u32 %v2316, %v2319
  %v2321 = vrot.slane %v2320, 4
  %v2323 = vshll.u32 %v2258, 16
  %v2325 = vrot.slane %v2323, 5
  %v2326 = vsel %vm478, %v2321, %v2325
  %v2328 = vshrl.u32 %v2259, 16
  %v2330 = vrot.slane %v2328, 4
  %v2331 = vshll.u32 %v2259, 16
  %v2333 = vrot.slane %v2331, 5
  %v2334 = vor.u32 %v2330, %v2333
  %v2335 = vrot.slane %v2334, 4
  %v2337 = vshll.u32 %v2260, 16
  %v2339 = vrot.slane %v2337, 5
  %v2340 = vsel %vm478, %v2335, %v2339
  %v2342 = vshrl.u32 %v2261, 16
  %v2344 = vrot.slane %v2342, 4
  %v2345 = vshll.u32 %v2261, 16
  %v2347 = vrot.slane %v2345, 5
  %v2348 = vor.u32 %v2344, %v2347
  %v2349 = vrot.slane %v2348, 4
  %v2351 = vshll.u32 %v2262, 16
  %v2353 = vrot.slane %v2351, 5
  %v2354 = vsel %vm478, %v2349, %v2353
  %v2356 = vshrl.u32 %v2263, 16
  %v2358 = vrot.slane %v2356, 4
  %v2359 = vshll.u32 %v2263, 16
  %v2361 = vrot.slane %v2359, 5
  %v2362 = vor.u32 %v2358, %v2361
  %v2363 = vrot.slane %v2362, 4
  %v2365 = vshll.u32 %v2264, 16
  %v2367 = vrot.slane %v2365, 5
  %v2368 = vsel %vm478, %v2363, %v2367
  %v2370 = vshrl.u32 %v2265, 16
  %v2372 = vrot.slane %v2370, 4
  %v2373 = vshll.u32 %v2265, 16
  %v2375 = vrot.slane %v2373, 5
  %v2376 = vor.u32 %v2372, %v2375
  %v2377 = vrot.slane %v2376, 4
  %v2379 = vshll.u32 %v2266, 16
  %v2381 = vrot.slane %v2379, 5
  %v2382 = vsel %vm478, %v2377, %v2381
  %v2384 = vshrl.u32 %v2267, 16
  %v2386 = vrot.slane %v2384, 4
  %v2387 = vshll.u32 %v2267, 16
  %v2389 = vrot.slane %v2387, 5
  %v2390 = vor.u32 %v2386, %v2389
  %v2391 = vrot.slane %v2390, 4
  %v2393 = vshll.u32 %v2268, 16
  %v2395 = vrot.slane %v2393, 5
  %v2396 = vsel %vm478, %v2391, %v2395
  %v2398 = vshrl.u32 %v2269, 16
  %v2400 = vrot.slane %v2398, 4
  %v2401 = vshll.u32 %v2269, 16
  %v2403 = vrot.slane %v2401, 5
  %v2404 = vor.u32 %v2400, %v2403
  %v2405 = vrot.slane %v2404, 4
  %v2407 = vshll.u32 %v2270, 16
  %v2409 = vrot.slane %v2407, 5
  %v2410 = vsel %vm478, %v2405, %v2409
  %v2412 = vshrl.u32 %v2271, 16
  %v2414 = vrot.slane %v2412, 4
  %v2415 = vshll.u32 %v2271, 16
  %v2417 = vrot.slane %v2415, 5
  %v2418 = vor.u32 %v2414, %v2417
  %v2419 = vrot.slane %v2418, 4
  %v2421 = vshll.u32 %v2272, 16
  %v2423 = vrot.slane %v2421, 5
  %v2424 = vsel %vm478, %v2419, %v2423
  %v2426 = vshrl.u32 %v2273, 16
  %v2428 = vrot.slane %v2426, 4
  %v2429 = vshll.u32 %v2273, 16
  %v2431 = vrot.slane %v2429, 5
  %v2432 = vor.u32 %v2428, %v2431
  %v2433 = vrot.slane %v2432, 4
  %v2435 = vshll.u32 %v2274, 16
  %v2437 = vrot.slane %v2435, 5
  %v2438 = vsel %vm478, %v2433, %v2437
  %v2440 = vshrl.u32 %v2275, 16
  %v2442 = vrot.slane %v2440, 4
  %v2443 = vshll.u32 %v2275, 16
  %v2445 = vrot.slane %v2443, 5
  %v2446 = vor.u32 %v2442, %v2445
  %v2447 = vrot.slane %v2446, 4
  %v2449 = vshll.u32 %v2276, 16
  %v2451 = vrot.slane %v2449, 5
  %v2452 = vsel %vm478, %v2447, %v2451
  %v2454 = vshrl.u32 %v2277, 16
  %v2456 = vrot.slane %v2454, 4
  %v2457 = vshll.u32 %v2277, 16
  %v2459 = vrot.slane %v2457, 5
  %v2460 = vor.u32 %v2456, %v2459
  %v2461 = vrot.slane %v2460, 4
  %v2463 = vshll.u32 %v2278, 16
  %v2465 = vrot.slane %v2463, 5
  %v2466 = vsel %vm478, %v2461, %v2465
  %v2468 = vshrl.u32 %v2279, 16
  %v2470 = vrot.slane %v2468, 4
  %v2471 = vshll.u32 %v2279, 16
  %v2473 = vrot.slane %v2471, 5
  %v2474 = vor.u32 %v2470, %v2473
  %v2475 = vrot.slane %v2474, 4
  %v2477 = vshll.u32 %v2280, 16
  %v2479 = vrot.slane %v2477, 5
  %v2480 = vsel %vm478, %v2475, %v2479
  %v2482 = vshrl.u32 %v2281, 16
  %v2484 = vrot.slane %v2482, 4
  %v2485 = vshll.u32 %v2281, 16
  %v2487 = vrot.slane %v2485, 5
  %v2488 = vor.u32 %v2484, %v2487
  %v2489 = vrot.slane %v2488, 4
  %v2491 = vshll.u32 %v2282, 16
  %v2493 = vrot.slane %v2491, 5
  %v2494 = vsel %vm478, %v2489, %v2493
  %v2496 = vshrl.u32 %v2283, 16
  %v2498 = vrot.slane %v2496, 4
  %v2499 = vshll.u32 %v2283, 16
  %v2501 = vrot.slane %v2499, 5
  %v2502 = vor.u32 %v2498, %v2501
  %v2503 = vrot.slane %v2502, 4
  %v2505 = vshll.u32 %v2284, 16
  %v2507 = vrot.slane %v2505, 5
  %v2508 = vsel %vm478, %v2503, %v2507
  %s2509 = scalar_lea.vmem %s4, 256
  %v2510 = vld [vmem:[%s2509] sm:$0xf]
  %v2511 = vld [vmem:[%s2509 + $0x4] sm:$0xf]
  %v2512 = vld [vmem:[%s2509 + $0x8] sm:$0xf]
  %v2513 = vld [vmem:[%s2509 + $0xc] sm:$0xf]
  %v2514 = vld [vmem:[%s2509 + $0x10] sm:$0xf]
  %v2515 = vld [vmem:[%s2509 + $0x14] sm:$0xf]
  %v2516 = vld [vmem:[%s2509 + $0x18] sm:$0xf]
  %v2517 = vld [vmem:[%s2509 + $0x1c] sm:$0xf]
  %v2518 = vunpack.c.l.b16 %v2298
  %v2519 = vunpack.c.l.b16 %v2312
  %v2520 = vunpack.c.l.b16 %v2326
  %v2521 = vunpack.c.l.b16 %v2340
  %v2522 = vunpack.c.l.b16 %v2354
  %v2523 = vunpack.c.l.b16 %v2368
  %v2524 = vunpack.c.l.b16 %v2382
  %v2525 = vunpack.c.l.b16 %v2396
  %v2526 = vunpack.c.l.b16 %v2410
  %v2527 = vunpack.c.l.b16 %v2424
  %v2528 = vunpack.c.l.b16 %v2438
  %v2529 = vunpack.c.l.b16 %v2452
  %v2530 = vunpack.c.l.b16 %v2466
  %v2531 = vunpack.c.l.b16 %v2480
  %v2532 = vunpack.c.l.b16 %v2494
  %v2533 = vunpack.c.l.b16 %v2508
  %v2534 = vpack.c.b16 %v2519, %v2518
  %v2535 = vpack.c.b16 %v2521, %v2520
  %v2536 = vpack.c.b16 %v2523, %v2522
  %v2537 = vpack.c.b16 %v2525, %v2524
  %v2538 = vpack.c.b16 %v2527, %v2526
  %v2539 = vpack.c.b16 %v2529, %v2528
  %v2540 = vpack.c.b16 %v2531, %v2530
  %v2541 = vpack.c.b16 %v2533, %v2532
  %v2550 = vunpack.c.l.b16 %v2510
  %v2551 = vunpack.c.l.b16 %v2511
  %v2552 = vunpack.c.l.b16 %v2512
  %v2553 = vunpack.c.l.b16 %v2513
  %v2554 = vunpack.c.l.b16 %v2514
  %v2555 = vunpack.c.l.b16 %v2515
  %v2556 = vunpack.c.l.b16 %v2516
  %v2557 = vunpack.c.l.b16 %v2517
  %v2558 = vpack.c.b16 %v2551, %v2550
  %v2559 = vpack.c.b16 %v2553, %v2552
  %v2560 = vpack.c.b16 %v2555, %v2554
  %v2561 = vpack.c.b16 %v2557, %v2556
  %v2567 = vsel %vm137, %v2534, 0
  %v2570 = vsel %vm137, %v2535, 0
  %v2573 = vsel %vm137, %v2536, 0
  %v2576 = vsel %vm137, %v2537, 0
  %v2579 = vsel %vm137, %v2538, 0
  %v2582 = vsel %vm137, %v2539, 0
  %v2585 = vsel %vm137, %v2540, 0
  %v2588 = vsel %vm137, %v2541, 0
  %2590 = vmatprep.subr.bf16.mxu0 0
  %2591 = vmatpush1.bf16.msra.mxu0 0
  %2592 = vmatprep.subr.bf16.mxu0 0
  %2593 = vmatpush1.bf16.msra.mxu0 0
  %2594 = vmatprep.subr.bf16.mxu0 0
  %2595 = vmatpush1.bf16.msra.mxu0 0
  %2596 = vmatprep.subr.bf16.mxu0 0
  %2597 = vmatpush1.bf16.msra.mxu0 0
  %2598 = vmatprep.subr.bf16.mxu0 0
  %2599 = vmatpush1.bf16.msra.mxu0 %v2561
  %2600 = vmatprep.subr.bf16.mxu0 0
  %2601 = vmatpush1.bf16.msra.mxu0 %v2560
  %2602 = vmatprep.subr.bf16.mxu0 0
  %2603 = vmatpush1.bf16.msra.mxu0 %v2559
  %2604 = vmatprep.subr.bf16.mxu0 0
  %2605 = vmatpush1.bf16.msra.mxu0 %v2558
  %2606 = vmatprep.subr.bf16.mxu0 0
  %2607 = vmatpush2.bf16.msra.mxu0 0
  %2608 = vmatprep.subr.bf16.mxu0 0
  %2609 = vmatpush2.bf16.msra.mxu0 0
  %2610 = vmatprep.subr.bf16.mxu0 0
  %2611 = vmatpush2.bf16.msra.mxu0 0
  %2612 = vmatprep.subr.bf16.mxu0 0
  %2613 = vmatpush2.bf16.msra.mxu0 0
  %2614 = vmatprep.subr.bf16.mxu0 0
  %2615 = vmatpush2.bf16.msra.mxu0 0
  %2616 = vmatprep.subr.bf16.mxu0 0
  %2617 = vmatpush2.bf16.msra.mxu0 0
  %2618 = vmatprep.subr.bf16.mxu0 0
  %2619 = vmatpush2.bf16.msra.mxu0 0
  %2620 = vmatprep.subr.bf16.mxu0 0
  %2621 = vmatpush2.bf16.msra.mxu0 0
  %2622 = vmatprep.mubr.bf16.mxu0 0
  %2623 = vmatmul.mubr.bf16.gmra.mxu0 %v2567
  %v2624 = vpop.f32.mrf.mxu0
  %v2625 = vadd.f32 0.0, %v2624
  %v2626 = vpop.f32.mrf.mxu0
  %v2627 = vpop.f32.mrf.mxu0
  %v2628 = vadd.f32 0.0, %v2627
  %v2629 = vpop.f32.mrf.mxu0
  %2630 = vmatprep.mubr.bf16.mxu0 0
  %2631 = vmatmul.mubr.bf16.gmra.mxu0 %v2570
  %v2632 = vpop.f32.mrf.mxu0
  %v2633 = vadd.f32 0.0, %v2632
  %v2634 = vpop.f32.mrf.mxu0
  %v2635 = vpop.f32.mrf.mxu0
  %v2636 = vadd.f32 0.0, %v2635
  %v2637 = vpop.f32.mrf.mxu0
  %2638 = vmatprep.mubr.bf16.mxu0 0
  %2639 = vmatmul.mubr.bf16.gmra.mxu0 %v2573
  %v2640 = vpop.f32.mrf.mxu0
  %v2641 = vadd.f32 0.0, %v2640
  %v2642 = vpop.f32.mrf.mxu0
  %v2643 = vpop.f32.mrf.mxu0
  %v2644 = vadd.f32 0.0, %v2643
  %v2645 = vpop.f32.mrf.mxu0
  %2646 = vmatprep.mubr.bf16.mxu0 0
  %2647 = vmatmul.mubr.bf16.gmra.mxu0 %v2576
  %v2648 = vpop.f32.mrf.mxu0
  %v2649 = vadd.f32 0.0, %v2648
  %v2650 = vpop.f32.mrf.mxu0
  %v2651 = vpop.f32.mrf.mxu0
  %v2652 = vadd.f32 0.0, %v2651
  %v2653 = vpop.f32.mrf.mxu0
  %2654 = vmatprep.mubr.bf16.mxu0 0
  %2655 = vmatmul.mubr.bf16.gmra.mxu0 %v2579
  %v2656 = vpop.f32.mrf.mxu0
  %v2657 = vadd.f32 0.0, %v2656
  %v2658 = vpop.f32.mrf.mxu0
  %v2659 = vpop.f32.mrf.mxu0
  %v2660 = vadd.f32 0.0, %v2659
  %v2661 = vpop.f32.mrf.mxu0
  %2662 = vmatprep.mubr.bf16.mxu0 0
  %2663 = vmatmul.mubr.bf16.gmra.mxu0 %v2582
  %v2664 = vpop.f32.mrf.mxu0
  %v2665 = vadd.f32 0.0, %v2664
  %v2666 = vpop.f32.mrf.mxu0
  %v2667 = vpop.f32.mrf.mxu0
  %v2668 = vadd.f32 0.0, %v2667
  %v2669 = vpop.f32.mrf.mxu0
  %2670 = vmatprep.mubr.bf16.mxu0 0
  %2671 = vmatmul.mubr.bf16.gmra.mxu0 %v2585
  %v2672 = vpop.f32.mrf.mxu0
  %v2673 = vadd.f32 0.0, %v2672
  %v2674 = vpop.f32.mrf.mxu0
  %v2675 = vpop.f32.mrf.mxu0
  %v2676 = vadd.f32 0.0, %v2675
  %v2677 = vpop.f32.mrf.mxu0
  %2678 = vmatprep.mubr.bf16.mxu0 0
  %2679 = vmatmul.mubr.bf16.gmra.mxu0 %v2588
  %v2680 = vpop.f32.mrf.mxu0
  %v2681 = vadd.f32 0.0, %v2680
  %v2682 = vpop.f32.mrf.mxu0
  %v2683 = vpop.f32.mrf.mxu0
  %v2684 = vadd.f32 0.0, %v2683
  %v2685 = vpop.f32.mrf.mxu0
  %2686 = vdwg.mxu0
  %v2687 = vadd.f32 %v2237, %v2625
  %v2688 = vadd.f32 %v2238, %v2628
  %v2689 = vadd.f32 %v2239, %v2633
  %v2690 = vadd.f32 %v2240, %v2636
  %v2691 = vadd.f32 %v2241, %v2641
  %v2692 = vadd.f32 %v2242, %v2644
  %v2693 = vadd.f32 %v2243, %v2649
  %v2694 = vadd.f32 %v2244, %v2652
  %v2695 = vadd.f32 %v2245, %v2657
  %v2696 = vadd.f32 %v2246, %v2660
  %v2697 = vadd.f32 %v2247, %v2665
  %v2698 = vadd.f32 %v2248, %v2668
  %v2699 = vadd.f32 %v2249, %v2673
  %v2700 = vadd.f32 %v2250, %v2676
  %v2701 = vadd.f32 %v2251, %v2681
  %v2702 = vadd.f32 %v2252, %v2684
  %v2703 = vld [vmem:[%s5] sm:$0x1]
  %v2704 = vld [vmem:[%s5 + $0x1] sm:$0x1]
  %v2705 = vlaneseq
  %v2706 = vshrl.u32 %v2705, 7
  %v2707 = vsub.s32 0, %v2706
  %v2708 = vrot.slane %v2703, %v2707
  %v2709 = vmul.f32 %v2687, %v2708
  %v2710 = vmul.f32 %v2688, %v2708
  %v2711 = vmul.f32 %v2689, %v2708
  %v2712 = vmul.f32 %v2690, %v2708
  %v2713 = vmul.f32 %v2691, %v2708
  %v2714 = vmul.f32 %v2692, %v2708
  %v2715 = vmul.f32 %v2693, %v2708
  %v2716 = vmul.f32 %v2694, %v2708
  %v2717 = vmul.f32 %v2695, %v2708
  %v2718 = vmul.f32 %v2696, %v2708
  %v2719 = vmul.f32 %v2697, %v2708
  %v2720 = vmul.f32 %v2698, %v2708
  %v2721 = vmul.f32 %v2699, %v2708
  %v2722 = vmul.f32 %v2700, %v2708
  %v2723 = vmul.f32 %v2701, %v2708
  %v2724 = vmul.f32 %v2702, %v2708
  %v2725 = vlaneseq
  %v2726 = vshrl.u32 %v2725, 7
  %v2727 = vsub.s32 0, %v2726
  %v2728 = vrot.slane %v2704, %v2727
  %v2729 = vadd.f32 %v2709, %v2728
  %v2730 = vadd.f32 %v2710, %v2728
  %v2731 = vadd.f32 %v2711, %v2728
  %v2732 = vadd.f32 %v2712, %v2728
  %v2733 = vadd.f32 %v2713, %v2728
  %v2734 = vadd.f32 %v2714, %v2728
  %v2735 = vadd.f32 %v2715, %v2728
  %v2736 = vadd.f32 %v2716, %v2728
  %v2737 = vadd.f32 %v2717, %v2728
  %v2738 = vadd.f32 %v2718, %v2728
  %v2739 = vadd.f32 %v2719, %v2728
  %v2740 = vadd.f32 %v2720, %v2728
  %v2741 = vadd.f32 %v2721, %v2728
  %v2742 = vadd.f32 %v2722, %v2728
  %v2743 = vadd.f32 %v2723, %v2728
  %v2744 = vadd.f32 %v2724, %v2728
  %v2745 = vmax.f32 %v2729, 0.0
  %v2746 = vmax.f32 %v2730, 0.0
  %v2747 = vmax.f32 %v2731, 0.0
  %v2748 = vmax.f32 %v2732, 0.0
  %v2749 = vmax.f32 %v2733, 0.0
  %v2750 = vmax.f32 %v2734, 0.0
  %v2751 = vmax.f32 %v2735, 0.0
  %v2752 = vmax.f32 %v2736, 0.0
  %v2753 = vmax.f32 %v2737, 0.0
  %v2754 = vmax.f32 %v2738, 0.0
  %v2755 = vmax.f32 %v2739, 0.0
  %v2756 = vmax.f32 %v2740, 0.0
  %v2757 = vmax.f32 %v2741, 0.0
  %v2758 = vmax.f32 %v2742, 0.0
  %v2759 = vmax.f32 %v2743, 0.0
  %v2760 = vmax.f32 %v2744, 0.0
  %v2761 = vpack.c.bf16 %v2745, %v2745
  %v2762 = vpack.c.bf16 %v2746, %v2746
  %v2763 = vpack.c.bf16 %v2747, %v2747
  %v2764 = vpack.c.bf16 %v2748, %v2748
  %v2765 = vpack.c.bf16 %v2749, %v2749
  %v2766 = vpack.c.bf16 %v2750, %v2750
  %v2767 = vpack.c.bf16 %v2751, %v2751
  %v2768 = vpack.c.bf16 %v2752, %v2752
  %v2769 = vpack.c.bf16 %v2753, %v2753
  %v2770 = vpack.c.bf16 %v2754, %v2754
  %v2771 = vpack.c.bf16 %v2755, %v2755
  %v2772 = vpack.c.bf16 %v2756, %v2756
  %v2773 = vpack.c.bf16 %v2757, %v2757
  %v2774 = vpack.c.bf16 %v2758, %v2758
  %v2775 = vpack.c.bf16 %v2759, %v2759
  %v2776 = vpack.c.bf16 %v2760, %v2760
  %2777 = vst [vmem:[%s6] sm:$0xf] %v2761
  %2778 = vst [vmem:[%s6 + $0x4] sm:$0xf] %v2762
  %2779 = vst [vmem:[%s6 + $0x8] sm:$0xf] %v2763
  %2780 = vst [vmem:[%s6 + $0xc] sm:$0xf] %v2764
  %2781 = vst [vmem:[%s6 + $0x10] sm:$0xf] %v2765
  %2782 = vst [vmem:[%s6 + $0x14] sm:$0xf] %v2766
  %2783 = vst [vmem:[%s6 + $0x18] sm:$0xf] %v2767
  %2784 = vst [vmem:[%s6 + $0x1c] sm:$0xf] %v2768
  %2785 = vst [vmem:[%s6 + $0x20] sm:$0xf] %v2769
  %2786 = vst [vmem:[%s6 + $0x24] sm:$0xf] %v2770
  %2787 = vst [vmem:[%s6 + $0x28] sm:$0xf] %v2771
  %2788 = vst [vmem:[%s6 + $0x2c] sm:$0xf] %v2772
  %2789 = vst [vmem:[%s6 + $0x30] sm:$0xf] %v2773
  %2790 = vst [vmem:[%s6 + $0x34] sm:$0xf] %v2774
  %2791 = vst [vmem:[%s6 + $0x38] sm:$0xf] %v2775
  %2792 = vst [vmem:[%s6 + $0x3c] sm:$0xf] %v2776
  // Predicated region
  $region26: #{fwd.4} parent=0 // pred_check
    _
  $region27: #{fwd.4} parent=0 // pred_check_branch
    %2794 = sbr.rel (0) target = $region29
  $region28: #{fwd.4} parent=0 // pred_region
    _
  $region29: #{fwd.4} parent=0 // pred_fallthru
    _
  // Predicated region
  $region30: #{fwd.4} parent=0 // pred_check
    _
  $region31: #{fwd.4} parent=0 // pred_check_branch
    %2796 = sbr.rel (0) target = $region33
  $region32: #{fwd.4} parent=0 // pred_region
    _
  $region33: #{fwd.4} parent=0 // pred_fallthru
    _

// kernel: fwd.6
$region0: #{fwd.6}
  #allocation0 [shape = 'u32[]', space=smem, size = 0x4, offset = 0x4, fixed_abs, tag = 'smem constant byte address 0x4 - core index']
  #allocation1 [shape = 'u32[144,128]{1,0:T(1,128)}', space=vmem, size = 0x12000, scoped, tag = 'internal scratch']
  %s0 = inlined_call_operand.vmem [shape: bf16[2,10,10,128], index: 0, kind: input, shape index: {}]
  %s1 = inlined_call_operand.vmem [shape: bf16[9,128,128], index: 1, kind: input, shape index: {}]
  %s2 = inlined_call_operand.vmem [shape: f32[2,128], index: 2, kind: input, shape index: {}]
  %s3 = inlined_call_operand.vmem [shape: bf16[2,8,8,128], index: 3, kind: output, shape index: {}]
  %s4 = sld [smem:[#allocation0]]
  $region22: #{fwd.6} parent=0
    _
  %s6 = ssub.s32 1, %s4
  %s7 = scalar_select 0, %s6, %s4
  // Predicated region
  $region2: #{fwd.6} parent=0 // pred_check
    _
  $region3: #{fwd.6} parent=0 // pred_check_branch
    %9 = sbr.rel (0) target = $region5
  $region4: #{fwd.6} parent=0 // pred_region
    _
  $region5: #{fwd.6} parent=0 // pred_fallthru
    _
  // Predicated region
  $region6: #{fwd.6} parent=0 // pred_check
    _
  $region7: #{fwd.6} parent=0 // pred_check_branch
    %11 = sbr.rel (0) target = $region9
  $region8: #{fwd.6} parent=0 // pred_region
    _
  $region9: #{fwd.6} parent=0 // pred_fallthru
    _
  // Predicated region
  $region10: #{fwd.6} parent=0 // pred_check
    _
  $region11: #{fwd.6} parent=0 // pred_check_branch
    %13 = sbr.rel (0) target = $region13
  $region12: #{fwd.6} parent=0 // pred_region
    _
  $region13: #{fwd.6} parent=0 // pred_fallthru
    _
  %v15 = vld [vmem:[%s0] sm:$0xf]
  %v16 = vld [vmem:[%s0 + $0x8] sm:$0xf]
  %v17 = vld [vmem:[%s0 + $0x10] sm:$0xf]
  %v18 = vld [vmem:[%s0 + $0x18] sm:$0xf]
  %v19 = vld [vmem:[%s0 + $0x20] sm:$0xf]
  %v20 = vld [vmem:[%s0 + $0x28] sm:$0xf]
  %v21 = vld [vmem:[%s0 + $0x30] sm:$0xf]
  %v22 = vld [vmem:[%s0 + $0x38] sm:$0xf]
  %v23 = vld [vmem:[%s0 + $0x50] sm:$0xf]
  %v24 = vld [vmem:[%s0 + $0x58] sm:$0xf]
  %v25 = vld [vmem:[%s0 + $0x60] sm:$0xf]
  %v26 = vld [vmem:[%s0 + $0x68] sm:$0xf]
  %v27 = vld [vmem:[%s0 + $0x70] sm:$0xf]
  %v28 = vld [vmem:[%s0 + $0x78] sm:$0xf]
  %v29 = vld [vmem:[%s0 + $0x80] sm:$0xf]
  %v30 = vld [vmem:[%s0 + $0x88] sm:$0xf]
  %v31 = vld [vmem:[%s1] sm:$0xf]
  %v32 = vld [vmem:[%s1 + $0x4] sm:$0xf]
  %v33 = vld [vmem:[%s1 + $0x8] sm:$0xf]
  %v34 = vld [vmem:[%s1 + $0xc] sm:$0xf]
  %v35 = vld [vmem:[%s1 + $0x10] sm:$0xf]
  %v36 = vld [vmem:[%s1 + $0x14] sm:$0xf]
  %v37 = vld [vmem:[%s1 + $0x18] sm:$0xf]
  %v38 = vld [vmem:[%s1 + $0x1c] sm:$0xf]
  %v39 = vld [vmem:[%s1 + $0x20] sm:$0xf]
  %v40 = vld [vmem:[%s1 + $0x24] sm:$0xf]
  %v41 = vld [vmem:[%s1 + $0x28] sm:$0xf]
  %v42 = vld [vmem:[%s1 + $0x2c] sm:$0xf]
  %v43 = vld [vmem:[%s1 + $0x30] sm:$0xf]
  %v44 = vld [vmem:[%s1 + $0x34] sm:$0xf]
  %v45 = vld [vmem:[%s1 + $0x38] sm:$0xf]
  %v46 = vld [vmem:[%s1 + $0x3c] sm:$0xf]
  %v47 = vld [vmem:[%s0 + $0x4] sm:$0x1]
  %v48 = vld [vmem:[%s0 + $0xc] sm:$0x1]
  %v49 = vld [vmem:[%s0 + $0x14] sm:$0x1]
  %v50 = vld [vmem:[%s0 + $0x1c] sm:$0x1]
  %v51 = vld [vmem:[%s0 + $0x24] sm:$0x1]
  %v52 = vld [vmem:[%s0 + $0x2c] sm:$0x1]
  %v53 = vld [vmem:[%s0 + $0x34] sm:$0x1]
  %v54 = vld [vmem:[%s0 + $0x3c] sm:$0x1]
  %v55 = vld [vmem:[%s0 + $0x54] sm:$0x1]
  %v56 = vld [vmem:[%s0 + $0x5c] sm:$0x1]
  %v57 = vld [vmem:[%s0 + $0x64] sm:$0x1]
  %v58 = vld [vmem:[%s0 + $0x6c] sm:$0x1]
  %v59 = vld [vmem:[%s0 + $0x74] sm:$0x1]
  %v60 = vld [vmem:[%s0 + $0x7c] sm:$0x1]
  %v61 = vld [vmem:[%s0 + $0x84] sm:$0x1]
  %v62 = vld [vmem:[%s0 + $0x8c] sm:$0x1]
  %vm63 = vsmask.f32 3328
  %vm64 = vsmask.f32 7440
  %vm65 = vmor %vm63, %vm64
  %v67 = vshrl.u32 %v15, 16
  %v69 = vrot.slane %v67, 4
  %v70 = vshll.u32 %v15, 16
  %v72 = vrot.slane %v70, 5
  %v73 = vor.u32 %v69, %v72
  %v74 = vrot.slane %v73, 4
  %v76 = vshll.u32 %v47, 16
  %v78 = vrot.slane %v76, 5
  %v79 = vsel %vm65, %v74, %v78
  %v81 = vshrl.u32 %v16, 16
  %v83 = vrot.slane %v81, 4
  %v84 = vshll.u32 %v16, 16
  %v86 = vrot.slane %v84, 5
  %v87 = vor.u32 %v83, %v86
  %v88 = vrot.slane %v87, 4
  %v90 = vshll.u32 %v48, 16
  %v92 = vrot.slane %v90, 5
  %v93 = vsel %vm65, %v88, %v92
  %v95 = vshrl.u32 %v17, 16
  %v97 = vrot.slane %v95, 4
  %v98 = vshll.u32 %v17, 16
  %v100 = vrot.slane %v98, 5
  %v101 = vor.u32 %v97, %v100
  %v102 = vrot.slane %v101, 4
  %v104 = vshll.u32 %v49, 16
  %v106 = vrot.slane %v104, 5
  %v107 = vsel %vm65, %v102, %v106
  %v109 = vshrl.u32 %v18, 16
  %v111 = vrot.slane %v109, 4
  %v112 = vshll.u32 %v18, 16
  %v114 = vrot.slane %v112, 5
  %v115 = vor.u32 %v111, %v114
  %v116 = vrot.slane %v115, 4
  %v118 = vshll.u32 %v50, 16
  %v120 = vrot.slane %v118, 5
  %v121 = vsel %vm65, %v116, %v120
  %v123 = vshrl.u32 %v19, 16
  %v125 = vrot.slane %v123, 4
  %v126 = vshll.u32 %v19, 16
  %v128 = vrot.slane %v126, 5
  %v129 = vor.u32 %v125, %v128
  %v130 = vrot.slane %v129, 4
  %v132 = vshll.u32 %v51, 16
  %v134 = vrot.slane %v132, 5
  %v135 = vsel %vm65, %v130, %v134
  %v137 = vshrl.u32 %v20, 16
  %v139 = vrot.slane %v137, 4
  %v140 = vshll.u32 %v20, 16
  %v142 = vrot.slane %v140, 5
  %v143 = vor.u32 %v139, %v142
  %v144 = vrot.slane %v143, 4
  %v146 = vshll.u32 %v52, 16
  %v148 = vrot.slane %v146, 5
  %v149 = vsel %vm65, %v144, %v148
  %v151 = vshrl.u32 %v21, 16
  %v153 = vrot.slane %v151, 4
  %v154 = vshll.u32 %v21, 16
  %v156 = vrot.slane %v154, 5
  %v157 = vor.u32 %v153, %v156
  %v158 = vrot.slane %v157, 4
  %v160 = vshll.u32 %v53, 16
  %v162 = vrot.slane %v160, 5
  %v163 = vsel %vm65, %v158, %v162
  %v165 = vshrl.u32 %v22, 16
  %v167 = vrot.slane %v165, 4
  %v168 = vshll.u32 %v22, 16
  %v170 = vrot.slane %v168, 5
  %v171 = vor.u32 %v167, %v170
  %v172 = vrot.slane %v171, 4
  %v174 = vshll.u32 %v54, 16
  %v176 = vrot.slane %v174, 5
  %v177 = vsel %vm65, %v172, %v176
  %v179 = vshrl.u32 %v23, 16
  %v181 = vrot.slane %v179, 4
  %v182 = vshll.u32 %v23, 16
  %v184 = vrot.slane %v182, 5
  %v185 = vor.u32 %v181, %v184
  %v186 = vrot.slane %v185, 4
  %v188 = vshll.u32 %v55, 16
  %v190 = vrot.slane %v188, 5
  %v191 = vsel %vm65, %v186, %v190
  %v193 = vshrl.u32 %v24, 16
  %v195 = vrot.slane %v193, 4
  %v196 = vshll.u32 %v24, 16
  %v198 = vrot.slane %v196, 5
  %v199 = vor.u32 %v195, %v198
  %v200 = vrot.slane %v199, 4
  %v202 = vshll.u32 %v56, 16
  %v204 = vrot.slane %v202, 5
  %v205 = vsel %vm65, %v200, %v204
  %v207 = vshrl.u32 %v25, 16
  %v209 = vrot.slane %v207, 4
  %v210 = vshll.u32 %v25, 16
  %v212 = vrot.slane %v210, 5
  %v213 = vor.u32 %v209, %v212
  %v214 = vrot.slane %v213, 4
  %v216 = vshll.u32 %v57, 16
  %v218 = vrot.slane %v216, 5
  %v219 = vsel %vm65, %v214, %v218
  %v221 = vshrl.u32 %v26, 16
  %v223 = vrot.slane %v221, 4
  %v224 = vshll.u32 %v26, 16
  %v226 = vrot.slane %v224, 5
  %v227 = vor.u32 %v223, %v226
  %v228 = vrot.slane %v227, 4
  %v230 = vshll.u32 %v58, 16
  %v232 = vrot.slane %v230, 5
  %v233 = vsel %vm65, %v228, %v232
  %v235 = vshrl.u32 %v27, 16
  %v237 = vrot.slane %v235, 4
  %v238 = vshll.u32 %v27, 16
  %v240 = vrot.slane %v238, 5
  %v241 = vor.u32 %v237, %v240
  %v242 = vrot.slane %v241, 4
  %v244 = vshll.u32 %v59, 16
  %v246 = vrot.slane %v244, 5
  %v247 = vsel %vm65, %v242, %v246
  %v249 = vshrl.u32 %v28, 16
  %v251 = vrot.slane %v249, 4
  %v252 = vshll.u32 %v28, 16
  %v254 = vrot.slane %v252, 5
  %v255 = vor.u32 %v251, %v254
  %v256 = vrot.slane %v255, 4
  %v258 = vshll.u32 %v60, 16
  %v260 = vrot.slane %v258, 5
  %v261 = vsel %vm65, %v256, %v260
  %v263 = vshrl.u32 %v29, 16
  %v265 = vrot.slane %v263, 4
  %v266 = vshll.u32 %v29, 16
  %v268 = vrot.slane %v266, 5
  %v269 = vor.u32 %v265, %v268
  %v270 = vrot.slane %v269, 4
  %v272 = vshll.u32 %v61, 16
  %v274 = vrot.slane %v272, 5
  %v275 = vsel %vm65, %v270, %v274
  %v277 = vshrl.u32 %v30, 16
  %v279 = vrot.slane %v277, 4
  %v280 = vshll.u32 %v30, 16
  %v282 = vrot.slane %v280, 5
  %v283 = vor.u32 %v279, %v282
  %v284 = vrot.slane %v283, 4
  %v286 = vshll.u32 %v62, 16
  %v288 = vrot.slane %v286, 5
  %v289 = vsel %vm65, %v284, %v288
  %s290 = scalar_lea.vmem %s1, 64
  %v291 = vld [vmem:[%s290] sm:$0xf]
  %v292 = vld [vmem:[%s290 + $0x4] sm:$0xf]
  %v293 = vld [vmem:[%s290 + $0x8] sm:$0xf]
  %v294 = vld [vmem:[%s290 + $0xc] sm:$0xf]
  %v295 = vld [vmem:[%s290 + $0x10] sm:$0xf]
  %v296 = vld [vmem:[%s290 + $0x14] sm:$0xf]
  %v297 = vld [vmem:[%s290 + $0x18] sm:$0xf]
  %v298 = vld [vmem:[%s290 + $0x1c] sm:$0xf]
  %v299 = vld [vmem:[%s290 + $0x20] sm:$0xf]
  %v300 = vld [vmem:[%s290 + $0x24] sm:$0xf]
  %v301 = vld [vmem:[%s290 + $0x28] sm:$0xf]
  %v302 = vld [vmem:[%s290 + $0x2c] sm:$0xf]
  %v303 = vld [vmem:[%s290 + $0x30] sm:$0xf]
  %v304 = vld [vmem:[%s290 + $0x34] sm:$0xf]
  %v305 = vld [vmem:[%s290 + $0x38] sm:$0xf]
  %v306 = vld [vmem:[%s290 + $0x3c] sm:$0xf]
  %v307 = vunpack.c.l.b16 %v79
  %v308 = vunpack.c.l.b16 %v93
  %v309 = vunpack.c.l.b16 %v107
  %v310 = vunpack.c.l.b16 %v121
  %v311 = vunpack.c.l.b16 %v135
  %v312 = vunpack.c.l.b16 %v149
  %v313 = vunpack.c.l.b16 %v163
  %v314 = vunpack.c.l.b16 %v177
  %v315 = vunpack.c.l.b16 %v191
  %v316 = vunpack.c.l.b16 %v205
  %v317 = vunpack.c.l.b16 %v219
  %v318 = vunpack.c.l.b16 %v233
  %v319 = vunpack.c.l.b16 %v247
  %v320 = vunpack.c.l.b16 %v261
  %v321 = vunpack.c.l.b16 %v275
  %v322 = vunpack.c.l.b16 %v289
  %v323 = vpack.c.b16 %v308, %v307
  %v324 = vpack.c.b16 %v310, %v309
  %v325 = vpack.c.b16 %v312, %v311
  %v326 = vpack.c.b16 %v314, %v313
  %v327 = vpack.c.b16 %v316, %v315
  %v328 = vpack.c.b16 %v318, %v317
  %v329 = vpack.c.b16 %v320, %v319
  %v330 = vpack.c.b16 %v322, %v321
  %v355 = vunpack.c.l.b16 %v291
  %v356 = vunpack.c.l.b16 %v292
  %v357 = vunpack.c.l.b16 %v293
  %v358 = vunpack.c.l.b16 %v294
  %v359 = vunpack.c.l.b16 %v295
  %v360 = vunpack.c.l.b16 %v296
  %v361 = vunpack.c.l.b16 %v297
  %v362 = vunpack.c.l.b16 %v298
  %v363 = vunpack.c.l.b16 %v299
  %v364 = vunpack.c.l.b16 %v300
  %v365 = vunpack.c.l.b16 %v301
  %v366 = vunpack.c.l.b16 %v302
  %v367 = vunpack.c.l.b16 %v303
  %v368 = vunpack.c.l.b16 %v304
  %v369 = vunpack.c.l.b16 %v305
  %v370 = vunpack.c.l.b16 %v306
  %v371 = vpack.c.b16 %v356, %v355
  %v372 = vpack.c.b16 %v358, %v357
  %v373 = vpack.c.b16 %v360, %v359
  %v374 = vpack.c.b16 %v362, %v361
  %v375 = vpack.c.b16 %v364, %v363
  %v376 = vpack.c.b16 %v366, %v365
  %v377 = vpack.c.b16 %v368, %v367
  %v378 = vpack.c.b16 %v370, %v369
  %387 = vmatprep.subr.bf16.mxu0 0
  %388 = vmatpush1.bf16.msra.mxu0 %v378
  %389 = vmatprep.subr.bf16.mxu0 0
  %390 = vmatpush1.bf16.msra.mxu0 %v377
  %391 = vmatprep.subr.bf16.mxu0 0
  %392 = vmatpush1.bf16.msra.mxu0 %v376
  %393 = vmatprep.subr.bf16.mxu0 0
  %394 = vmatpush1.bf16.msra.mxu0 %v375
  %395 = vmatprep.subr.bf16.mxu0 0
  %396 = vmatpush1.bf16.msra.mxu0 %v374
  %397 = vmatprep.subr.bf16.mxu0 0
  %398 = vmatpush1.bf16.msra.mxu0 %v373
  %399 = vmatprep.subr.bf16.mxu0 0
  %400 = vmatpush1.bf16.msra.mxu0 %v372
  %401 = vmatprep.subr.bf16.mxu0 0
  %402 = vmatpush1.bf16.msra.mxu0 %v371
  %403 = vmatprep.subr.bf16.mxu0 0
  %404 = vmatpush2.bf16.msra.mxu0 0
  %405 = vmatprep.subr.bf16.mxu0 0
  %406 = vmatpush2.bf16.msra.mxu0 0
  %407 = vmatprep.subr.bf16.mxu0 0
  %408 = vmatpush2.bf16.msra.mxu0 0
  %409 = vmatprep.subr.bf16.mxu0 0
  %410 = vmatpush2.bf16.msra.mxu0 0
  %411 = vmatprep.subr.bf16.mxu0 0
  %412 = vmatpush2.bf16.msra.mxu0 0
  %413 = vmatprep.subr.bf16.mxu0 0
  %414 = vmatpush2.bf16.msra.mxu0 0
  %415 = vmatprep.subr.bf16.mxu0 0
  %416 = vmatpush2.bf16.msra.mxu0 0
  %417 = vmatprep.subr.bf16.mxu0 0
  %418 = vmatpush2.bf16.msra.mxu0 0
  %419 = vmatprep.mubr.bf16.mxu0 0
  %420 = vmatmul.mubr.bf16.gmra.mxu0 %v323
  %v421 = vpop.f32.mrf.mxu0
  %v422 = vadd.f32 0.0, %v421
  %v423 = vpop.f32.mrf.mxu0
  %v424 = vpop.f32.mrf.mxu0
  %v425 = vadd.f32 0.0, %v424
  %v426 = vpop.f32.mrf.mxu0
  %427 = vmatprep.mubr.bf16.mxu0 0
  %428 = vmatmul.mubr.bf16.gmra.mxu0 %v324
  %v429 = vpop.f32.mrf.mxu0
  %v430 = vadd.f32 0.0, %v429
  %v431 = vpop.f32.mrf.mxu0
  %v432 = vpop.f32.mrf.mxu0
  %v433 = vadd.f32 0.0, %v432
  %v434 = vpop.f32.mrf.mxu0
  %435 = vmatprep.mubr.bf16.mxu0 0
  %436 = vmatmul.mubr.bf16.gmra.mxu0 %v325
  %v437 = vpop.f32.mrf.mxu0
  %v438 = vadd.f32 0.0, %v437
  %v439 = vpop.f32.mrf.mxu0
  %v440 = vpop.f32.mrf.mxu0
  %v441 = vadd.f32 0.0, %v440
  %v442 = vpop.f32.mrf.mxu0
  %443 = vmatprep.mubr.bf16.mxu0 0
  %444 = vmatmul.mubr.bf16.gmra.mxu0 %v326
  %v445 = vpop.f32.mrf.mxu0
  %v446 = vadd.f32 0.0, %v445
  %v447 = vpop.f32.mrf.mxu0
  %v448 = vpop.f32.mrf.mxu0
  %v449 = vadd.f32 0.0, %v448
  %v450 = vpop.f32.mrf.mxu0
  %451 = vmatprep.mubr.bf16.mxu0 0
  %452 = vmatmul.mubr.bf16.gmra.mxu0 %v327
  %v453 = vpop.f32.mrf.mxu0
  %v454 = vadd.f32 0.0, %v453
  %v455 = vpop.f32.mrf.mxu0
  %v456 = vpop.f32.mrf.mxu0
  %v457 = vadd.f32 0.0, %v456
  %v458 = vpop.f32.mrf.mxu0
  %459 = vmatprep.mubr.bf16.mxu0 0
  %460 = vmatmul.mubr.bf16.gmra.mxu0 %v328
  %v461 = vpop.f32.mrf.mxu0
  %v462 = vadd.f32 0.0, %v461
  %v463 = vpop.f32.mrf.mxu0
  %v464 = vpop.f32.mrf.mxu0
  %v465 = vadd.f32 0.0, %v464
  %v466 = vpop.f32.mrf.mxu0
  %467 = vmatprep.mubr.bf16.mxu0 0
  %468 = vmatmul.mubr.bf16.gmra.mxu0 %v329
  %v469 = vpop.f32.mrf.mxu0
  %v470 = vadd.f32 0.0, %v469
  %v471 = vpop.f32.mrf.mxu0
  %v472 = vpop.f32.mrf.mxu0
  %v473 = vadd.f32 0.0, %v472
  %v474 = vpop.f32.mrf.mxu0
  %475 = vmatprep.mubr.bf16.mxu0 0
  %476 = vmatmul.mubr.bf16.gmra.mxu0 %v330
  %v477 = vpop.f32.mrf.mxu0
  %v478 = vadd.f32 0.0, %v477
  %v479 = vpop.f32.mrf.mxu0
  %v480 = vpop.f32.mrf.mxu0
  %v481 = vadd.f32 0.0, %v480
  %v482 = vpop.f32.mrf.mxu0
  %483 = vdwg.mxu0
  %v500 = vunpack.c.l.b16 %v15
  %v501 = vunpack.c.l.b16 %v16
  %v502 = vunpack.c.l.b16 %v17
  %v503 = vunpack.c.l.b16 %v18
  %v504 = vunpack.c.l.b16 %v19
  %v505 = vunpack.c.l.b16 %v20
  %v506 = vunpack.c.l.b16 %v21
  %v507 = vunpack.c.l.b16 %v22
  %v508 = vunpack.c.l.b16 %v23
  %v509 = vunpack.c.l.b16 %v24
  %v510 = vunpack.c.l.b16 %v25
  %v511 = vunpack.c.l.b16 %v26
  %v512 = vunpack.c.l.b16 %v27
  %v513 = vunpack.c.l.b16 %v28
  %v514 = vunpack.c.l.b16 %v29
  %v515 = vunpack.c.l.b16 %v30
  %v516 = vpack.c.b16 %v501, %v500
  %v517 = vpack.c.b16 %v503, %v502
  %v518 = vpack.c.b16 %v505, %v504
  %v519 = vpack.c.b16 %v507, %v506
  %v520 = vpack.c.b16 %v509, %v508
  %v521 = vpack.c.b16 %v511, %v510
  %v522 = vpack.c.b16 %v513, %v512
  %v523 = vpack.c.b16 %v515, %v514
  %v548 = vunpack.c.l.b16 %v31
  %v549 = vunpack.c.l.b16 %v32
  %v550 = vunpack.c.l.b16 %v33
  %v551 = vunpack.c.l.b16 %v34
  %v552 = vunpack.c.l.b16 %v35
  %v553 = vunpack.c.l.b16 %v36
  %v554 = vunpack.c.l.b16 %v37
  %v555 = vunpack.c.l.b16 %v38
  %v556 = vunpack.c.l.b16 %v39
  %v557 = vunpack.c.l.b16 %v40
  %v558 = vunpack.c.l.b16 %v41
  %v559 = vunpack.c.l.b16 %v42
  %v560 = vunpack.c.l.b16 %v43
  %v561 = vunpack.c.l.b16 %v44
  %v562 = vunpack.c.l.b16 %v45
  %v563 = vunpack.c.l.b16 %v46
  %v564 = vpack.c.b16 %v549, %v548
  %v565 = vpack.c.b16 %v551, %v550
  %v566 = vpack.c.b16 %v553, %v552
  %v567 = vpack.c.b16 %v555, %v554
  %v568 = vpack.c.b16 %v557, %v556
  %v569 = vpack.c.b16 %v559, %v558
  %v570 = vpack.c.b16 %v561, %v560
  %v571 = vpack.c.b16 %v563, %v562
  %580 = vmatprep.subr.bf16.mxu0 0
  %581 = vmatpush1.bf16.msra.mxu0 %v571
  %582 = vmatprep.subr.bf16.mxu0 0
  %583 = vmatpush1.bf16.msra.mxu0 %v570
  %584 = vmatprep.subr.bf16.mxu0 0
  %585 = vmatpush1.bf16.msra.mxu0 %v569
  %586 = vmatprep.subr.bf16.mxu0 0
  %587 = vmatpush1.bf16.msra.mxu0 %v568
  %588 = vmatprep.subr.bf16.mxu0 0
  %589 = vmatpush1.bf16.msra.mxu0 %v567
  %590 = vmatprep.subr.bf16.mxu0 0
  %591 = vmatpush1.bf16.msra.mxu0 %v566
  %592 = vmatprep.subr.bf16.mxu0 0
  %593 = vmatpush1.bf16.msra.mxu0 %v565
  %594 = vmatprep.subr.bf16.mxu0 0
  %595 = vmatpush1.bf16.msra.mxu0 %v564
  %596 = vmatprep.subr.bf16.mxu0 0
  %597 = vmatpush2.bf16.msra.mxu0 0
  %598 = vmatprep.subr.bf16.mxu0 0
  %599 = vmatpush2.bf16.msra.mxu0 0
  %600 = vmatprep.subr.bf16.mxu0 0
  %601 = vmatpush2.bf16.msra.mxu0 0
  %602 = vmatprep.subr.bf16.mxu0 0
  %603 = vmatpush2.bf16.msra.mxu0 0
  %604 = vmatprep.subr.bf16.mxu0 0
  %605 = vmatpush2.bf16.msra.mxu0 0
  %606 = vmatprep.subr.bf16.mxu0 0
  %607 = vmatpush2.bf16.msra.mxu0 0
  %608 = vmatprep.subr.bf16.mxu0 0
  %609 = vmatpush2.bf16.msra.mxu0 0
  %610 = vmatprep.subr.bf16.mxu0 0
  %611 = vmatpush2.bf16.msra.mxu0 0
  %612 = vmatprep.mubr.bf16.mxu0 0
  %613 = vmatmul.mubr.bf16.gmra.mxu0 %v516
  %v614 = vpop.f32.mrf.mxu0
  %v615 = vadd.f32 %v422, %v614
  %v616 = vpop.f32.mrf.mxu0
  %v617 = vpop.f32.mrf.mxu0
  %v618 = vadd.f32 %v425, %v617
  %v619 = vpop.f32.mrf.mxu0
  %620 = vmatprep.mubr.bf16.mxu0 0
  %621 = vmatmul.mubr.bf16.gmra.mxu0 %v517
  %v622 = vpop.f32.mrf.mxu0
  %v623 = vadd.f32 %v430, %v622
  %v624 = vpop.f32.mrf.mxu0
  %v625 = vpop.f32.mrf.mxu0
  %v626 = vadd.f32 %v433, %v625
  %v627 = vpop.f32.mrf.mxu0
  %628 = vmatprep.mubr.bf16.mxu0 0
  %629 = vmatmul.mubr.bf16.gmra.mxu0 %v518
  %v630 = vpop.f32.mrf.mxu0
  %v631 = vadd.f32 %v438, %v630
  %v632 = vpop.f32.mrf.mxu0
  %v633 = vpop.f32.mrf.mxu0
  %v634 = vadd.f32 %v441, %v633
  %v635 = vpop.f32.mrf.mxu0
  %636 = vmatprep.mubr.bf16.mxu0 0
  %637 = vmatmul.mubr.bf16.gmra.mxu0 %v519
  %v638 = vpop.f32.mrf.mxu0
  %v639 = vadd.f32 %v446, %v638
  %v640 = vpop.f32.mrf.mxu0
  %v641 = vpop.f32.mrf.mxu0
  %v642 = vadd.f32 %v449, %v641
  %v643 = vpop.f32.mrf.mxu0
  %644 = vmatprep.mubr.bf16.mxu0 0
  %645 = vmatmul.mubr.bf16.gmra.mxu0 %v520
  %v646 = vpop.f32.mrf.mxu0
  %v647 = vadd.f32 %v454, %v646
  %v648 = vpop.f32.mrf.mxu0
  %v649 = vpop.f32.mrf.mxu0
  %v650 = vadd.f32 %v457, %v649
  %v651 = vpop.f32.mrf.mxu0
  %652 = vmatprep.mubr.bf16.mxu0 0
  %653 = vmatmul.mubr.bf16.gmra.mxu0 %v521
  %v654 = vpop.f32.mrf.mxu0
  %v655 = vadd.f32 %v462, %v654
  %v656 = vpop.f32.mrf.mxu0
  %v657 = vpop.f32.mrf.mxu0
  %v658 = vadd.f32 %v465, %v657
  %v659 = vpop.f32.mrf.mxu0
  %660 = vmatprep.mubr.bf16.mxu0 0
  %661 = vmatmul.mubr.bf16.gmra.mxu0 %v522
  %v662 = vpop.f32.mrf.mxu0
  %v663 = vadd.f32 %v470, %v662
  %v664 = vpop.f32.mrf.mxu0
  %v665 = vpop.f32.mrf.mxu0
  %v666 = vadd.f32 %v473, %v665
  %v667 = vpop.f32.mrf.mxu0
  %668 = vmatprep.mubr.bf16.mxu0 0
  %669 = vmatmul.mubr.bf16.gmra.mxu0 %v523
  %v670 = vpop.f32.mrf.mxu0
  %v671 = vadd.f32 %v478, %v670
  %v672 = vpop.f32.mrf.mxu0
  %v673 = vpop.f32.mrf.mxu0
  %v674 = vadd.f32 %v481, %v673
  %v675 = vpop.f32.mrf.mxu0
  %676 = vdwg.mxu0
  %v677 = vld [vmem:[%s0] sm:$0xe]
  %v678 = vld [vmem:[%s0 + $0x8] sm:$0xe]
  %v679 = vld [vmem:[%s0 + $0x10] sm:$0xe]
  %v680 = vld [vmem:[%s0 + $0x18] sm:$0xe]
  %v681 = vld [vmem:[%s0 + $0x20] sm:$0xe]
  %v682 = vld [vmem:[%s0 + $0x28] sm:$0xe]
  %v683 = vld [vmem:[%s0 + $0x30] sm:$0xe]
  %v684 = vld [vmem:[%s0 + $0x38] sm:$0xe]
  %v685 = vld [vmem:[%s0 + $0x50] sm:$0xe]
  %v686 = vld [vmem:[%s0 + $0x58] sm:$0xe]
  %v687 = vld [vmem:[%s0 + $0x60] sm:$0xe]
  %v688 = vld [vmem:[%s0 + $0x68] sm:$0xe]
  %v689 = vld [vmem:[%s0 + $0x70] sm:$0xe]
  %v690 = vld [vmem:[%s0 + $0x78] sm:$0xe]
  %v691 = vld [vmem:[%s0 + $0x80] sm:$0xe]
  %v692 = vld [vmem:[%s0 + $0x88] sm:$0xe]
  %vm725 = vcmask 1042432
  %vm726 = vcmask 1046532
  %vm727 = vmor %vm725, %vm726
  %v728 = vrot.slane %v677, 5
  %v729 = vrot.slane %v728, 4
  %v730 = vrot.slane %v47, 5
  %v731 = vsel %vm727, %v729, %v730
  %v732 = vrot.slane %v678, 5
  %v733 = vrot.slane %v732, 4
  %v734 = vrot.slane %v48, 5
  %v735 = vsel %vm727, %v733, %v734
  %v736 = vrot.slane %v679, 5
  %v737 = vrot.slane %v736, 4
  %v738 = vrot.slane %v49, 5
  %v739 = vsel %vm727, %v737, %v738
  %v740 = vrot.slane %v680, 5
  %v741 = vrot.slane %v740, 4
  %v742 = vrot.slane %v50, 5
  %v743 = vsel %vm727, %v741, %v742
  %v744 = vrot.slane %v681, 5
  %v745 = vrot.slane %v744, 4
  %v746 = vrot.slane %v51, 5
  %v747 = vsel %vm727, %v745, %v746
  %v748 = vrot.slane %v682, 5
  %v749 = vrot.slane %v748, 4
  %v750 = vrot.slane %v52, 5
  %v751 = vsel %vm727, %v749, %v750
  %v752 = vrot.slane %v683, 5
  %v753 = vrot.slane %v752, 4
  %v754 = vrot.slane %v53, 5
  %v755 = vsel %vm727, %v753, %v754
  %v756 = vrot.slane %v684, 5
  %v757 = vrot.slane %v756, 4
  %v758 = vrot.slane %v54, 5
  %v759 = vsel %vm727, %v757, %v758
  %v760 = vrot.slane %v685, 5
  %v761 = vrot.slane %v760, 4
  %v762 = vrot.slane %v55, 5
  %v763 = vsel %vm727, %v761, %v762
  %v764 = vrot.slane %v686, 5
  %v765 = vrot.slane %v764, 4
  %v766 = vrot.slane %v56, 5
  %v767 = vsel %vm727, %v765, %v766
  %v768 = vrot.slane %v687, 5
  %v769 = vrot.slane %v768, 4
  %v770 = vrot.slane %v57, 5
  %v771 = vsel %vm727, %v769, %v770
  %v772 = vrot.slane %v688, 5
  %v773 = vrot.slane %v772, 4
  %v774 = vrot.slane %v58, 5
  %v775 = vsel %vm727, %v773, %v774
  %v776 = vrot.slane %v689, 5
  %v777 = vrot.slane %v776, 4
  %v778 = vrot.slane %v59, 5
  %v779 = vsel %vm727, %v777, %v778
  %v780 = vrot.slane %v690, 5
  %v781 = vrot.slane %v780, 4
  %v782 = vrot.slane %v60, 5
  %v783 = vsel %vm727, %v781, %v782
  %v784 = vrot.slane %v691, 5
  %v785 = vrot.slane %v784, 4
  %v786 = vrot.slane %v61, 5
  %v787 = vsel %vm727, %v785, %v786
  %v788 = vrot.slane %v692, 5
  %v789 = vrot.slane %v788, 4
  %v790 = vrot.slane %v62, 5
  %v791 = vsel %vm727, %v789, %v790
  %s792 = scalar_lea.vmem %s1, 128
  %v793 = vld [vmem:[%s792] sm:$0xf]
  %v794 = vld [vmem:[%s792 + $0x4] sm:$0xf]
  %v795 = vld [vmem:[%s792 + $0x8] sm:$0xf]
  %v796 = vld [vmem:[%s792 + $0xc] sm:$0xf]
  %v797 = vld [vmem:[%s792 + $0x10] sm:$0xf]
  %v798 = vld [vmem:[%s792 + $0x14] sm:$0xf]
  %v799 = vld [vmem:[%s792 + $0x18] sm:$0xf]
  %v800 = vld [vmem:[%s792 + $0x1c] sm:$0xf]
  %v801 = vld [vmem:[%s792 + $0x20] sm:$0xf]
  %v802 = vld [vmem:[%s792 + $0x24] sm:$0xf]
  %v803 = vld [vmem:[%s792 + $0x28] sm:$0xf]
  %v804 = vld [vmem:[%s792 + $0x2c] sm:$0xf]
  %v805 = vld [vmem:[%s792 + $0x30] sm:$0xf]
  %v806 = vld [vmem:[%s792 + $0x34] sm:$0xf]
  %v807 = vld [vmem:[%s792 + $0x38] sm:$0xf]
  %v808 = vld [vmem:[%s792 + $0x3c] sm:$0xf]
  %v809 = vunpack.c.l.b16 %v731
  %v810 = vunpack.c.l.b16 %v735
  %v811 = vunpack.c.l.b16 %v739
  %v812 = vunpack.c.l.b16 %v743
  %v813 = vunpack.c.l.b16 %v747
  %v814 = vunpack.c.l.b16 %v751
  %v815 = vunpack.c.l.b16 %v755
  %v816 = vunpack.c.l.b16 %v759
  %v817 = vunpack.c.l.b16 %v763
  %v818 = vunpack.c.l.b16 %v767
  %v819 = vunpack.c.l.b16 %v771
  %v820 = vunpack.c.l.b16 %v775
  %v821 = vunpack.c.l.b16 %v779
  %v822 = vunpack.c.l.b16 %v783
  %v823 = vunpack.c.l.b16 %v787
  %v824 = vunpack.c.l.b16 %v791
  %v825 = vpack.c.b16 %v810, %v809
  %v826 = vpack.c.b16 %v812, %v811
  %v827 = vpack.c.b16 %v814, %v813
  %v828 = vpack.c.b16 %v816, %v815
  %v829 = vpack.c.b16 %v818, %v817
  %v830 = vpack.c.b16 %v820, %v819
  %v831 = vpack.c.b16 %v822, %v821
  %v832 = vpack.c.b16 %v824, %v823
  %v857 = vunpack.c.l.b16 %v793
  %v858 = vunpack.c.l.b16 %v794
  %v859 = vunpack.c.l.b16 %v795
  %v860 = vunpack.c.l.b16 %v796
  %v861 = vunpack.c.l.b16 %v797
  %v862 = vunpack.c.l.b16 %v798
  %v863 = vunpack.c.l.b16 %v799
  %v864 = vunpack.c.l.b16 %v800
  %v865 = vunpack.c.l.b16 %v801
  %v866 = vunpack.c.l.b16 %v802
  %v867 = vunpack.c.l.b16 %v803
  %v868 = vunpack.c.l.b16 %v804
  %v869 = vunpack.c.l.b16 %v805
  %v870 = vunpack.c.l.b16 %v806
  %v871 = vunpack.c.l.b16 %v807
  %v872 = vunpack.c.l.b16 %v808
  %v873 = vpack.c.b16 %v858, %v857
  %v874 = vpack.c.b16 %v860, %v859
  %v875 = vpack.c.b16 %v862, %v861
  %v876 = vpack.c.b16 %v864, %v863
  %v877 = vpack.c.b16 %v866, %v865
  %v878 = vpack.c.b16 %v868, %v867
  %v879 = vpack.c.b16 %v870, %v869
  %v880 = vpack.c.b16 %v872, %v871
  %889 = vmatprep.subr.bf16.mxu0 0
  %890 = vmatpush1.bf16.msra.mxu0 %v880
  %891 = vmatprep.subr.bf16.mxu0 0
  %892 = vmatpush1.bf16.msra.mxu0 %v879
  %893 = vmatprep.subr.bf16.mxu0 0
  %894 = vmatpush1.bf16.msra.mxu0 %v878
  %895 = vmatprep.subr.bf16.mxu0 0
  %896 = vmatpush1.bf16.msra.mxu0 %v877
  %897 = vmatprep.subr.bf16.mxu0 0
  %898 = vmatpush1.bf16.msra.mxu0 %v876
  %899 = vmatprep.subr.bf16.mxu0 0
  %900 = vmatpush1.bf16.msra.mxu0 %v875
  %901 = vmatprep.subr.bf16.mxu0 0
  %902 = vmatpush1.bf16.msra.mxu0 %v874
  %903 = vmatprep.subr.bf16.mxu0 0
  %904 = vmatpush1.bf16.msra.mxu0 %v873
  %905 = vmatprep.subr.bf16.mxu0 0
  %906 = vmatpush2.bf16.msra.mxu0 0
  %907 = vmatprep.subr.bf16.mxu0 0
  %908 = vmatpush2.bf16.msra.mxu0 0
  %909 = vmatprep.subr.bf16.mxu0 0
  %910 = vmatpush2.bf16.msra.mxu0 0
  %911 = vmatprep.subr.bf16.mxu0 0
  %912 = vmatpush2.bf16.msra.mxu0 0
  %913 = vmatprep.subr.bf16.mxu0 0
  %914 = vmatpush2.bf16.msra.mxu0 0
  %915 = vmatprep.subr.bf16.mxu0 0
  %916 = vmatpush2.bf16.msra.mxu0 0
  %917 = vmatprep.subr.bf16.mxu0 0
  %918 = vmatpush2.bf16.msra.mxu0 0
  %919 = vmatprep.subr.bf16.mxu0 0
  %920 = vmatpush2.bf16.msra.mxu0 0
  %921 = vmatprep.mubr.bf16.mxu0 0
  %922 = vmatmul.mubr.bf16.gmra.mxu0 %v825
  %v923 = vpop.f32.mrf.mxu0
  %v924 = vadd.f32 0.0, %v923
  %v925 = vpop.f32.mrf.mxu0
  %v926 = vpop.f32.mrf.mxu0
  %v927 = vadd.f32 0.0, %v926
  %v928 = vpop.f32.mrf.mxu0
  %929 = vmatprep.mubr.bf16.mxu0 0
  %930 = vmatmul.mubr.bf16.gmra.mxu0 %v826
  %v931 = vpop.f32.mrf.mxu0
  %v932 = vadd.f32 0.0, %v931
  %v933 = vpop.f32.mrf.mxu0
  %v934 = vpop.f32.mrf.mxu0
  %v935 = vadd.f32 0.0, %v934
  %v936 = vpop.f32.mrf.mxu0
  %937 = vmatprep.mubr.bf16.mxu0 0
  %938 = vmatmul.mubr.bf16.gmra.mxu0 %v827
  %v939 = vpop.f32.mrf.mxu0
  %v940 = vadd.f32 0.0, %v939
  %v941 = vpop.f32.mrf.mxu0
  %v942 = vpop.f32.mrf.mxu0
  %v943 = vadd.f32 0.0, %v942
  %v944 = vpop.f32.mrf.mxu0
  %945 = vmatprep.mubr.bf16.mxu0 0
  %946 = vmatmul.mubr.bf16.gmra.mxu0 %v828
  %v947 = vpop.f32.mrf.mxu0
  %v948 = vadd.f32 0.0, %v947
  %v949 = vpop.f32.mrf.mxu0
  %v950 = vpop.f32.mrf.mxu0
  %v951 = vadd.f32 0.0, %v950
  %v952 = vpop.f32.mrf.mxu0
  %953 = vmatprep.mubr.bf16.mxu0 0
  %954 = vmatmul.mubr.bf16.gmra.mxu0 %v829
  %v955 = vpop.f32.mrf.mxu0
  %v956 = vadd.f32 0.0, %v955
  %v957 = vpop.f32.mrf.mxu0
  %v958 = vpop.f32.mrf.mxu0
  %v959 = vadd.f32 0.0, %v958
  %v960 = vpop.f32.mrf.mxu0
  %961 = vmatprep.mubr.bf16.mxu0 0
  %962 = vmatmul.mubr.bf16.gmra.mxu0 %v830
  %v963 = vpop.f32.mrf.mxu0
  %v964 = vadd.f32 0.0, %v963
  %v965 = vpop.f32.mrf.mxu0
  %v966 = vpop.f32.mrf.mxu0
  %v967 = vadd.f32 0.0, %v966
  %v968 = vpop.f32.mrf.mxu0
  %969 = vmatprep.mubr.bf16.mxu0 0
  %970 = vmatmul.mubr.bf16.gmra.mxu0 %v831
  %v971 = vpop.f32.mrf.mxu0
  %v972 = vadd.f32 0.0, %v971
  %v973 = vpop.f32.mrf.mxu0
  %v974 = vpop.f32.mrf.mxu0
  %v975 = vadd.f32 0.0, %v974
  %v976 = vpop.f32.mrf.mxu0
  %977 = vmatprep.mubr.bf16.mxu0 0
  %978 = vmatmul.mubr.bf16.gmra.mxu0 %v832
  %v979 = vpop.f32.mrf.mxu0
  %v980 = vadd.f32 0.0, %v979
  %v981 = vpop.f32.mrf.mxu0
  %v982 = vpop.f32.mrf.mxu0
  %v983 = vadd.f32 0.0, %v982
  %v984 = vpop.f32.mrf.mxu0
  %985 = vdwg.mxu0
  %v986 = vadd.f32 %v615, %v924
  %v987 = vadd.f32 %v618, %v927
  %v988 = vadd.f32 %v623, %v932
  %v989 = vadd.f32 %v626, %v935
  %v990 = vadd.f32 %v631, %v940
  %v991 = vadd.f32 %v634, %v943
  %v992 = vadd.f32 %v639, %v948
  %v993 = vadd.f32 %v642, %v951
  %v994 = vadd.f32 %v647, %v956
  %v995 = vadd.f32 %v650, %v959
  %v996 = vadd.f32 %v655, %v964
  %v997 = vadd.f32 %v658, %v967
  %v998 = vadd.f32 %v663, %v972
  %v999 = vadd.f32 %v666, %v975
  %v1000 = vadd.f32 %v671, %v980
  %v1001 = vadd.f32 %v674, %v983
  %s1002 = scalar_lea.vmem %s0, 8
  %v1003 = vld [vmem:[%s1002] sm:$0xf]
  %v1004 = vld [vmem:[%s1002 + $0x8] sm:$0xf]
  %v1005 = vld [vmem:[%s1002 + $0x10] sm:$0xf]
  %v1006 = vld [vmem:[%s1002 + $0x18] sm:$0xf]
  %v1007 = vld [vmem:[%s1002 + $0x20] sm:$0xf]
  %v1008 = vld [vmem:[%s1002 + $0x28] sm:$0xf]
  %v1009 = vld [vmem:[%s1002 + $0x30] sm:$0xf]
  %v1010 = vld [vmem:[%s1002 + $0x38] sm:$0xf]
  %v1011 = vld [vmem:[%s1002 + $0x50] sm:$0xf]
  %v1012 = vld [vmem:[%s1002 + $0x58] sm:$0xf]
  %v1013 = vld [vmem:[%s1002 + $0x60] sm:$0xf]
  %v1014 = vld [vmem:[%s1002 + $0x68] sm:$0xf]
  %v1015 = vld [vmem:[%s1002 + $0x70] sm:$0xf]
  %v1016 = vld [vmem:[%s1002 + $0x78] sm:$0xf]
  %v1017 = vld [vmem:[%s1002 + $0x80] sm:$0xf]
  %v1018 = vld [vmem:[%s1002 + $0x88] sm:$0xf]
  %s1019 = scalar_lea.vmem %s1, 192
  %v1020 = vld [vmem:[%s1019] sm:$0xf]
  %v1021 = vld [vmem:[%s1019 + $0x4] sm:$0xf]
  %v1022 = vld [vmem:[%s1019 + $0x8] sm:$0xf]
  %v1023 = vld [vmem:[%s1019 + $0xc] sm:$0xf]
  %v1024 = vld [vmem:[%s1019 + $0x10] sm:$0xf]
  %v1025 = vld [vmem:[%s1019 + $0x14] sm:$0xf]
  %v1026 = vld [vmem:[%s1019 + $0x18] sm:$0xf]
  %v1027 = vld [vmem:[%s1019 + $0x1c] sm:$0xf]
  %v1028 = vld [vmem:[%s1019 + $0x20] sm:$0xf]
  %v1029 = vld [vmem:[%s1019 + $0x24] sm:$0xf]
  %v1030 = vld [vmem:[%s1019 + $0x28] sm:$0xf]
  %v1031 = vld [vmem:[%s1019 + $0x2c] sm:$0xf]
  %v1032 = vld [vmem:[%s1019 + $0x30] sm:$0xf]
  %v1033 = vld [vmem:[%s1019 + $0x34] sm:$0xf]
  %v1034 = vld [vmem:[%s1019 + $0x38] sm:$0xf]
  %v1035 = vld [vmem:[%s1019 + $0x3c] sm:$0xf]
  %v1052 = vunpack.c.l.b16 %v1003
  %v1053 = vunpack.c.l.b16 %v1004
  %v1054 = vunpack.c.l.b16 %v1005
  %v1055 = vunpack.c.l.b16 %v1006
  %v1056 = vunpack.c.l.b16 %v1007
  %v1057 = vunpack.c.l.b16 %v1008
  %v1058 = vunpack.c.l.b16 %v1009
  %v1059 = vunpack.c.l.b16 %v1010
  %v1060 = vunpack.c.l.b16 %v1011
  %v1061 = vunpack.c.l.b16 %v1012
  %v1062 = vunpack.c.l.b16 %v1013
  %v1063 = vunpack.c.l.b16 %v1014
  %v1064 = vunpack.c.l.b16 %v1015
  %v1065 = vunpack.c.l.b16 %v1016
  %v1066 = vunpack.c.l.b16 %v1017
  %v1067 = vunpack.c.l.b16 %v1018
  %v1068 = vpack.c.b16 %v1053, %v1052
  %v1069 = vpack.c.b16 %v1055, %v1054
  %v1070 = vpack.c.b16 %v1057, %v1056
  %v1071 = vpack.c.b16 %v1059, %v1058
  %v1072 = vpack.c.b16 %v1061, %v1060
  %v1073 = vpack.c.b16 %v1063, %v1062
  %v1074 = vpack.c.b16 %v1065, %v1064
  %v1075 = vpack.c.b16 %v1067, %v1066
  %v1100 = vunpack.c.l.b16 %v1020
  %v1101 = vunpack.c.l.b16 %v1021
  %v1102 = vunpack.c.l.b16 %v1022
  %v1103 = vunpack.c.l.b16 %v1023
  %v1104 = vunpack.c.l.b16 %v1024
  %v1105 = vunpack.c.l.b16 %v1025
  %v1106 = vunpack.c.l.b16 %v1026
  %v1107 = vunpack.c.l.b16 %v1027
  %v1108 = vunpack.c.l.b16 %v1028
  %v1109 = vunpack.c.l.b16 %v1029
  %v1110 = vunpack.c.l.b16 %v1030
  %v1111 = vunpack.c.l.b16 %v1031
  %v1112 = vunpack.c.l.b16 %v1032
  %v1113 = vunpack.c.l.b16 %v1033
  %v1114 = vunpack.c.l.b16 %v1034
  %v1115 = vunpack.c.l.b16 %v1035
  %v1116 = vpack.c.b16 %v1101, %v1100
  %v1117 = vpack.c.b16 %v1103, %v1102
  %v1118 = vpack.c.b16 %v1105, %v1104
  %v1119 = vpack.c.b16 %v1107, %v1106
  %v1120 = vpack.c.b16 %v1109, %v1108
  %v1121 = vpack.c.b16 %v1111, %v1110
  %v1122 = vpack.c.b16 %v1113, %v1112
  %v1123 = vpack.c.b16 %v1115, %v1114
  %1132 = vmatprep.subr.bf16.mxu0 0
  %1133 = vmatpush1.bf16.msra.mxu0 %v1123
  %1134 = vmatprep.subr.bf16.mxu0 0
  %1135 = vmatpush1.bf16.msra.mxu0 %v1122
  %1136 = vmatprep.subr.bf16.mxu0 0
  %1137 = vmatpush1.bf16.msra.mxu0 %v1121
  %1138 = vmatprep.subr.bf16.mxu0 0
  %1139 = vmatpush1.bf16.msra.mxu0 %v1120
  %1140 = vmatprep.subr.bf16.mxu0 0
  %1141 = vmatpush1.bf16.msra.mxu0 %v1119
  %1142 = vmatprep.subr.bf16.mxu0 0
  %1143 = vmatpush1.bf16.msra.mxu0 %v1118
  %1144 = vmatprep.subr.bf16.mxu0 0
  %1145 = vmatpush1.bf16.msra.mxu0 %v1117
  %1146 = vmatprep.subr.bf16.mxu0 0
  %1147 = vmatpush1.bf16.msra.mxu0 %v1116
  %1148 = vmatprep.subr.bf16.mxu0 0
  %1149 = vmatpush2.bf16.msra.mxu0 0
  %1150 = vmatprep.subr.bf16.mxu0 0
  %1151 = vmatpush2.bf16.msra.mxu0 0
  %1152 = vmatprep.subr.bf16.mxu0 0
  %1153 = vmatpush2.bf16.msra.mxu0 0
  %1154 = vmatprep.subr.bf16.mxu0 0
  %1155 = vmatpush2.bf16.msra.mxu0 0
  %1156 = vmatprep.subr.bf16.mxu0 0
  %1157 = vmatpush2.bf16.msra.mxu0 0
  %1158 = vmatprep.subr.bf16.mxu0 0
  %1159 = vmatpush2.bf16.msra.mxu0 0
  %1160 = vmatprep.subr.bf16.mxu0 0
  %1161 = vmatpush2.bf16.msra.mxu0 0
  %1162 = vmatprep.subr.bf16.mxu0 0
  %1163 = vmatpush2.bf16.msra.mxu0 0
  %1164 = vmatprep.mubr.bf16.mxu0 0
  %1165 = vmatmul.mubr.bf16.gmra.mxu0 %v1068
  %v1166 = vpop.f32.mrf.mxu0
  %v1167 = vadd.f32 0.0, %v1166
  %v1168 = vpop.f32.mrf.mxu0
  %v1169 = vpop.f32.mrf.mxu0
  %v1170 = vadd.f32 0.0, %v1169
  %v1171 = vpop.f32.mrf.mxu0
  %1172 = vmatprep.mubr.bf16.mxu0 0
  %1173 = vmatmul.mubr.bf16.gmra.mxu0 %v1069
  %v1174 = vpop.f32.mrf.mxu0
  %v1175 = vadd.f32 0.0, %v1174
  %v1176 = vpop.f32.mrf.mxu0
  %v1177 = vpop.f32.mrf.mxu0
  %v1178 = vadd.f32 0.0, %v1177
  %v1179 = vpop.f32.mrf.mxu0
  %1180 = vmatprep.mubr.bf16.mxu0 0
  %1181 = vmatmul.mubr.bf16.gmra.mxu0 %v1070
  %v1182 = vpop.f32.mrf.mxu0
  %v1183 = vadd.f32 0.0, %v1182
  %v1184 = vpop.f32.mrf.mxu0
  %v1185 = vpop.f32.mrf.mxu0
  %v1186 = vadd.f32 0.0, %v1185
  %v1187 = vpop.f32.mrf.mxu0
  %1188 = vmatprep.mubr.bf16.mxu0 0
  %1189 = vmatmul.mubr.bf16.gmra.mxu0 %v1071
  %v1190 = vpop.f32.mrf.mxu0
  %v1191 = vadd.f32 0.0, %v1190
  %v1192 = vpop.f32.mrf.mxu0
  %v1193 = vpop.f32.mrf.mxu0
  %v1194 = vadd.f32 0.0, %v1193
  %v1195 = vpop.f32.mrf.mxu0
  %1196 = vmatprep.mubr.bf16.mxu0 0
  %1197 = vmatmul.mubr.bf16.gmra.mxu0 %v1072
  %v1198 = vpop.f32.mrf.mxu0
  %v1199 = vadd.f32 0.0, %v1198
  %v1200 = vpop.f32.mrf.mxu0
  %v1201 = vpop.f32.mrf.mxu0
  %v1202 = vadd.f32 0.0, %v1201
  %v1203 = vpop.f32.mrf.mxu0
  %1204 = vmatprep.mubr.bf16.mxu0 0
  %1205 = vmatmul.mubr.bf16.gmra.mxu0 %v1073
  %v1206 = vpop.f32.mrf.mxu0
  %v1207 = vadd.f32 0.0, %v1206
  %v1208 = vpop.f32.mrf.mxu0
  %v1209 = vpop.f32.mrf.mxu0
  %v1210 = vadd.f32 0.0, %v1209
  %v1211 = vpop.f32.mrf.mxu0
  %1212 = vmatprep.mubr.bf16.mxu0 0
  %1213 = vmatmul.mubr.bf16.gmra.mxu0 %v1074
  %v1214 = vpop.f32.mrf.mxu0
  %v1215 = vadd.f32 0.0, %v1214
  %v1216 = vpop.f32.mrf.mxu0
  %v1217 = vpop.f32.mrf.mxu0
  %v1218 = vadd.f32 0.0, %v1217
  %v1219 = vpop.f32.mrf.mxu0
  %1220 = vmatprep.mubr.bf16.mxu0 0
  %1221 = vmatmul.mubr.bf16.gmra.mxu0 %v1075
  %v1222 = vpop.f32.mrf.mxu0
  %v1223 = vadd.f32 0.0, %v1222
  %v1224 = vpop.f32.mrf.mxu0
  %v1225 = vpop.f32.mrf.mxu0
  %v1226 = vadd.f32 0.0, %v1225
  %v1227 = vpop.f32.mrf.mxu0
  %1228 = vdwg.mxu0
  %v1229 = vadd.f32 %v986, %v1167
  %v1230 = vadd.f32 %v987, %v1170
  %v1231 = vadd.f32 %v988, %v1175
  %v1232 = vadd.f32 %v989, %v1178
  %v1233 = vadd.f32 %v990, %v1183
  %v1234 = vadd.f32 %v991, %v1186
  %v1235 = vadd.f32 %v992, %v1191
  %v1236 = vadd.f32 %v993, %v1194
  %v1237 = vadd.f32 %v994, %v1199
  %v1238 = vadd.f32 %v995, %v1202
  %v1239 = vadd.f32 %v996, %v1207
  %v1240 = vadd.f32 %v997, %v1210
  %v1241 = vadd.f32 %v998, %v1215
  %v1242 = vadd.f32 %v999, %v1218
  %v1243 = vadd.f32 %v1000, %v1223
  %v1244 = vadd.f32 %v1001, %v1226
  %v1245 = vld [vmem:[%s1002] sm:$0xf]
  %v1246 = vld [vmem:[%s1002 + $0x4] sm:$0x1]
  %v1247 = vld [vmem:[%s1002 + $0x8] sm:$0xf]
  %v1248 = vld [vmem:[%s1002 + $0xc] sm:$0x1]
  %v1249 = vld [vmem:[%s1002 + $0x10] sm:$0xf]
  %v1250 = vld [vmem:[%s1002 + $0x14] sm:$0x1]
  %v1251 = vld [vmem:[%s1002 + $0x18] sm:$0xf]
  %v1252 = vld [vmem:[%s1002 + $0x1c] sm:$0x1]
  %v1253 = vld [vmem:[%s1002 + $0x20] sm:$0xf]
  %v1254 = vld [vmem:[%s1002 + $0x24] sm:$0x1]
  %v1255 = vld [vmem:[%s1002 + $0x28] sm:$0xf]
  %v1256 = vld [vmem:[%s1002 + $0x2c] sm:$0x1]
  %v1257 = vld [vmem:[%s1002 + $0x30] sm:$0xf]
  %v1258 = vld [vmem:[%s1002 + $0x34] sm:$0x1]
  %v1259 = vld [vmem:[%s1002 + $0x38] sm:$0xf]
  %v1260 = vld [vmem:[%s1002 + $0x3c] sm:$0x1]
  %v1261 = vld [vmem:[%s1002 + $0x50] sm:$0xf]
  %v1262 = vld [vmem:[%s1002 + $0x54] sm:$0x1]
  %v1263 = vld [vmem:[%s1002 + $0x58] sm:$0xf]
  %v1264 = vld [vmem:[%s1002 + $0x5c] sm:$0x1]
  %v1265 = vld [vmem:[%s1002 + $0x60] sm:$0xf]
  %v1266 = vld [vmem:[%s1002 + $0x64] sm:$0x1]
  %v1267 = vld [vmem:[%s1002 + $0x68] sm:$0xf]
  %v1268 = vld [vmem:[%s1002 + $0x6c] sm:$0x1]
  %v1269 = vld [vmem:[%s1002 + $0x70] sm:$0xf]
  %v1270 = vld [vmem:[%s1002 + $0x74] sm:$0x1]
  %v1271 = vld [vmem:[%s1002 + $0x78] sm:$0xf]
  %v1272 = vld [vmem:[%s1002 + $0x7c] sm:$0x1]
  %v1273 = vld [vmem:[%s1002 + $0x80] sm:$0xf]
  %v1274 = vld [vmem:[%s1002 + $0x84] sm:$0x1]
  %v1275 = vld [vmem:[%s1002 + $0x88] sm:$0xf]
  %v1276 = vld [vmem:[%s1002 + $0x8c] sm:$0x1]
  %v1278 = vshrl.u32 %v1245, 16
  %v1280 = vrot.slane %v1278, 4
  %v1281 = vshll.u32 %v1245, 16
  %v1283 = vrot.slane %v1281, 5
  %v1284 = vor.u32 %v1280, %v1283
  %v1285 = vrot.slane %v1284, 4
  %v1287 = vshll.u32 %v1246, 16
  %v1289 = vrot.slane %v1287, 5
  %v1290 = vsel %vm65, %v1285, %v1289
  %v1292 = vshrl.u32 %v1247, 16
  %v1294 = vrot.slane %v1292, 4
  %v1295 = vshll.u32 %v1247, 16
  %v1297 = vrot.slane %v1295, 5
  %v1298 = vor.u32 %v1294, %v1297
  %v1299 = vrot.slane %v1298, 4
  %v1301 = vshll.u32 %v1248, 16
  %v1303 = vrot.slane %v1301, 5
  %v1304 = vsel %vm65, %v1299, %v1303
  %v1306 = vshrl.u32 %v1249, 16
  %v1308 = vrot.slane %v1306, 4
  %v1309 = vshll.u32 %v1249, 16
  %v1311 = vrot.slane %v1309, 5
  %v1312 = vor.u32 %v1308, %v1311
  %v1313 = vrot.slane %v1312, 4
  %v1315 = vshll.u32 %v1250, 16
  %v1317 = vrot.slane %v1315, 5
  %v1318 = vsel %vm65, %v1313, %v1317
  %v1320 = vshrl.u32 %v1251, 16
  %v1322 = vrot.slane %v1320, 4
  %v1323 = vshll.u32 %v1251, 16
  %v1325 = vrot.slane %v1323, 5
  %v1326 = vor.u32 %v1322, %v1325
  %v1327 = vrot.slane %v1326, 4
  %v1329 = vshll.u32 %v1252, 16
  %v1331 = vrot.slane %v1329, 5
  %v1332 = vsel %vm65, %v1327, %v1331
  %v1334 = vshrl.u32 %v1253, 16
  %v1336 = vrot.slane %v1334, 4
  %v1337 = vshll.u32 %v1253, 16
  %v1339 = vrot.slane %v1337, 5
  %v1340 = vor.u32 %v1336, %v1339
  %v1341 = vrot.slane %v1340, 4
  %v1343 = vshll.u32 %v1254, 16
  %v1345 = vrot.slane %v1343, 5
  %v1346 = vsel %vm65, %v1341, %v1345
  %v1348 = vshrl.u32 %v1255, 16
  %v1350 = vrot.slane %v1348, 4
  %v1351 = vshll.u32 %v1255, 16
  %v1353 = vrot.slane %v1351, 5
  %v1354 = vor.u32 %v1350, %v1353
  %v1355 = vrot.slane %v1354, 4
  %v1357 = vshll.u32 %v1256, 16
  %v1359 = vrot.slane %v1357, 5
  %v1360 = vsel %vm65, %v1355, %v1359
  %v1362 = vshrl.u32 %v1257, 16
  %v1364 = vrot.slane %v1362, 4
  %v1365 = vshll.u32 %v1257, 16
  %v1367 = vrot.slane %v1365, 5
  %v1368 = vor.u32 %v1364, %v1367
  %v1369 = vrot.slane %v1368, 4
  %v1371 = vshll.u32 %v1258, 16
  %v1373 = vrot.slane %v1371, 5
  %v1374 = vsel %vm65, %v1369, %v1373
  %v1376 = vshrl.u32 %v1259, 16
  %v1378 = vrot.slane %v1376, 4
  %v1379 = vshll.u32 %v1259, 16
  %v1381 = vrot.slane %v1379, 5
  %v1382 = vor.u32 %v1378, %v1381
  %v1383 = vrot.slane %v1382, 4
  %v1385 = vshll.u32 %v1260, 16
  %v1387 = vrot.slane %v1385, 5
  %v1388 = vsel %vm65, %v1383, %v1387
  %v1390 = vshrl.u32 %v1261, 16
  %v1392 = vrot.slane %v1390, 4
  %v1393 = vshll.u32 %v1261, 16
  %v1395 = vrot.slane %v1393, 5
  %v1396 = vor.u32 %v1392, %v1395
  %v1397 = vrot.slane %v1396, 4
  %v1399 = vshll.u32 %v1262, 16
  %v1401 = vrot.slane %v1399, 5
  %v1402 = vsel %vm65, %v1397, %v1401
  %v1404 = vshrl.u32 %v1263, 16
  %v1406 = vrot.slane %v1404, 4
  %v1407 = vshll.u32 %v1263, 16
  %v1409 = vrot.slane %v1407, 5
  %v1410 = vor.u32 %v1406, %v1409
  %v1411 = vrot.slane %v1410, 4
  %v1413 = vshll.u32 %v1264, 16
  %v1415 = vrot.slane %v1413, 5
  %v1416 = vsel %vm65, %v1411, %v1415
  %v1418 = vshrl.u32 %v1265, 16
  %v1420 = vrot.slane %v1418, 4
  %v1421 = vshll.u32 %v1265, 16
  %v1423 = vrot.slane %v1421, 5
  %v1424 = vor.u32 %v1420, %v1423
  %v1425 = vrot.slane %v1424, 4
  %v1427 = vshll.u32 %v1266, 16
  %v1429 = vrot.slane %v1427, 5
  %v1430 = vsel %vm65, %v1425, %v1429
  %v1432 = vshrl.u32 %v1267, 16
  %v1434 = vrot.slane %v1432, 4
  %v1435 = vshll.u32 %v1267, 16
  %v1437 = vrot.slane %v1435, 5
  %v1438 = vor.u32 %v1434, %v1437
  %v1439 = vrot.slane %v1438, 4
  %v1441 = vshll.u32 %v1268, 16
  %v1443 = vrot.slane %v1441, 5
  %v1444 = vsel %vm65, %v1439, %v1443
  %v1446 = vshrl.u32 %v1269, 16
  %v1448 = vrot.slane %v1446, 4
  %v1449 = vshll.u32 %v1269, 16
  %v1451 = vrot.slane %v1449, 5
  %v1452 = vor.u32 %v1448, %v1451
  %v1453 = vrot.slane %v1452, 4
  %v1455 = vshll.u32 %v1270, 16
  %v1457 = vrot.slane %v1455, 5
  %v1458 = vsel %vm65, %v1453, %v1457
  %v1460 = vshrl.u32 %v1271, 16
  %v1462 = vrot.slane %v1460, 4
  %v1463 = vshll.u32 %v1271, 16
  %v1465 = vrot.slane %v1463, 5
  %v1466 = vor.u32 %v1462, %v1465
  %v1467 = vrot.slane %v1466, 4
  %v1469 = vshll.u32 %v1272, 16
  %v1471 = vrot.slane %v1469, 5
  %v1472 = vsel %vm65, %v1467, %v1471
  %v1474 = vshrl.u32 %v1273, 16
  %v1476 = vrot.slane %v1474, 4
  %v1477 = vshll.u32 %v1273, 16
  %v1479 = vrot.slane %v1477, 5
  %v1480 = vor.u32 %v1476, %v1479
  %v1481 = vrot.slane %v1480, 4
  %v1483 = vshll.u32 %v1274, 16
  %v1485 = vrot.slane %v1483, 5
  %v1486 = vsel %vm65, %v1481, %v1485
  %v1488 = vshrl.u32 %v1275, 16
  %v1490 = vrot.slane %v1488, 4
  %v1491 = vshll.u32 %v1275, 16
  %v1493 = vrot.slane %v1491, 5
  %v1494 = vor.u32 %v1490, %v1493
  %v1495 = vrot.slane %v1494, 4
  %v1497 = vshll.u32 %v1276, 16
  %v1499 = vrot.slane %v1497, 5
  %v1500 = vsel %vm65, %v1495, %v1499
  %s1501 = scalar_lea.vmem %s1, 256
  %v1502 = vld [vmem:[%s1501] sm:$0xf]
  %v1503 = vld [vmem:[%s1501 + $0x4] sm:$0xf]
  %v1504 = vld [vmem:[%s1501 + $0x8] sm:$0xf]
  %v1505 = vld [vmem:[%s1501 + $0xc] sm:$0xf]
  %v1506 = vld [vmem:[%s1501 + $0x10] sm:$0xf]
  %v1507 = vld [vmem:[%s1501 + $0x14] sm:$0xf]
  %v1508 = vld [vmem:[%s1501 + $0x18] sm:$0xf]
  %v1509 = vld [vmem:[%s1501 + $0x1c] sm:$0xf]
  %v1510 = vld [vmem:[%s1501 + $0x20] sm:$0xf]
  %v1511 = vld [vmem:[%s1501 + $0x24] sm:$0xf]
  %v1512 = vld [vmem:[%s1501 + $0x28] sm:$0xf]
  %v1513 = vld [vmem:[%s1501 + $0x2c] sm:$0xf]
  %v1514 = vld [vmem:[%s1501 + $0x30] sm:$0xf]
  %v1515 = vld [vmem:[%s1501 + $0x34] sm:$0xf]
  %v1516 = vld [vmem:[%s1501 + $0x38] sm:$0xf]
  %v1517 = vld [vmem:[%s1501 + $0x3c] sm:$0xf]
  %v1518 = vunpack.c.l.b16 %v1290
  %v1519 = vunpack.c.l.b16 %v1304
  %v1520 = vunpack.c.l.b16 %v1318
  %v1521 = vunpack.c.l.b16 %v1332
  %v1522 = vunpack.c.l.b16 %v1346
  %v1523 = vunpack.c.l.b16 %v1360
  %v1524 = vunpack.c.l.b16 %v1374
  %v1525 = vunpack.c.l.b16 %v1388
  %v1526 = vunpack.c.l.b16 %v1402
  %v1527 = vunpack.c.l.b16 %v1416
  %v1528 = vunpack.c.l.b16 %v1430
  %v1529 = vunpack.c.l.b16 %v1444
  %v1530 = vunpack.c.l.b16 %v1458
  %v1531 = vunpack.c.l.b16 %v1472
  %v1532 = vunpack.c.l.b16 %v1486
  %v1533 = vunpack.c.l.b16 %v1500
  %v1534 = vpack.c.b16 %v1519, %v1518
  %v1535 = vpack.c.b16 %v1521, %v1520
  %v1536 = vpack.c.b16 %v1523, %v1522
  %v1537 = vpack.c.b16 %v1525, %v1524
  %v1538 = vpack.c.b16 %v1527, %v1526
  %v1539 = vpack.c.b16 %v1529, %v1528
  %v1540 = vpack.c.b16 %v1531, %v1530
  %v1541 = vpack.c.b16 %v1533, %v1532
  %v1566 = vunpack.c.l.b16 %v1502
  %v1567 = vunpack.c.l.b16 %v1503
  %v1568 = vunpack.c.l.b16 %v1504
  %v1569 = vunpack.c.l.b16 %v1505
  %v1570 = vunpack.c.l.b16 %v1506
  %v1571 = vunpack.c.l.b16 %v1507
  %v1572 = vunpack.c.l.b16 %v1508
  %v1573 = vunpack.c.l.b16 %v1509
  %v1574 = vunpack.c.l.b16 %v1510
  %v1575 = vunpack.c.l.b16 %v1511
  %v1576 = vunpack.c.l.b16 %v1512
  %v1577 = vunpack.c.l.b16 %v1513
  %v1578 = vunpack.c.l.b16 %v1514
  %v1579 = vunpack.c.l.b16 %v1515
  %v1580 = vunpack.c.l.b16 %v1516
  %v1581 = vunpack.c.l.b16 %v1517
  %v1582 = vpack.c.b16 %v1567, %v1566
  %v1583 = vpack.c.b16 %v1569, %v1568
  %v1584 = vpack.c.b16 %v1571, %v1570
  %v1585 = vpack.c.b16 %v1573, %v1572
  %v1586 = vpack.c.b16 %v1575, %v1574
  %v1587 = vpack.c.b16 %v1577, %v1576
  %v1588 = vpack.c.b16 %v1579, %v1578
  %v1589 = vpack.c.b16 %v1581, %v1580
  %1598 = vmatprep.subr.bf16.mxu0 0
  %1599 = vmatpush1.bf16.msra.mxu0 %v1589
  %1600 = vmatprep.subr.bf16.mxu0 0
  %1601 = vmatpush1.bf16.msra.mxu0 %v1588
  %1602 = vmatprep.subr.bf16.mxu0 0
  %1603 = vmatpush1.bf16.msra.mxu0 %v1587
  %1604 = vmatprep.subr.bf16.mxu0 0
  %1605 = vmatpush1.bf16.msra.mxu0 %v1586
  %1606 = vmatprep.subr.bf16.mxu0 0
  %1607 = vmatpush1.bf16.msra.mxu0 %v1585
  %1608 = vmatprep.subr.bf16.mxu0 0
  %1609 = vmatpush1.bf16.msra.mxu0 %v1584
  %1610 = vmatprep.subr.bf16.mxu0 0
  %1611 = vmatpush1.bf16.msra.mxu0 %v1583
  %1612 = vmatprep.subr.bf16.mxu0 0
  %1613 = vmatpush1.bf16.msra.mxu0 %v1582
  %1614 = vmatprep.subr.bf16.mxu0 0
  %1615 = vmatpush2.bf16.msra.mxu0 0
  %1616 = vmatprep.subr.bf16.mxu0 0
  %1617 = vmatpush2.bf16.msra.mxu0 0
  %1618 = vmatprep.subr.bf16.mxu0 0
  %1619 = vmatpush2.bf16.msra.mxu0 0
  %1620 = vmatprep.subr.bf16.mxu0 0
  %1621 = vmatpush2.bf16.msra.mxu0 0
  %1622 = vmatprep.subr.bf16.mxu0 0
  %1623 = vmatpush2.bf16.msra.mxu0 0
  %1624 = vmatprep.subr.bf16.mxu0 0
  %1625 = vmatpush2.bf16.msra.mxu0 0
  %1626 = vmatprep.subr.bf16.mxu0 0
  %1627 = vmatpush2.bf16.msra.mxu0 0
  %1628 = vmatprep.subr.bf16.mxu0 0
  %1629 = vmatpush2.bf16.msra.mxu0 0
  %1630 = vmatprep.mubr.bf16.mxu0 0
  %1631 = vmatmul.mubr.bf16.gmra.mxu0 %v1534
  %v1632 = vpop.f32.mrf.mxu0
  %v1633 = vadd.f32 0.0, %v1632
  %v1634 = vpop.f32.mrf.mxu0
  %v1635 = vpop.f32.mrf.mxu0
  %v1636 = vadd.f32 0.0, %v1635
  %v1637 = vpop.f32.mrf.mxu0
  %1638 = vmatprep.mubr.bf16.mxu0 0
  %1639 = vmatmul.mubr.bf16.gmra.mxu0 %v1535
  %v1640 = vpop.f32.mrf.mxu0
  %v1641 = vadd.f32 0.0, %v1640
  %v1642 = vpop.f32.mrf.mxu0
  %v1643 = vpop.f32.mrf.mxu0
  %v1644 = vadd.f32 0.0, %v1643
  %v1645 = vpop.f32.mrf.mxu0
  %1646 = vmatprep.mubr.bf16.mxu0 0
  %1647 = vmatmul.mubr.bf16.gmra.mxu0 %v1536
  %v1648 = vpop.f32.mrf.mxu0
  %v1649 = vadd.f32 0.0, %v1648
  %v1650 = vpop.f32.mrf.mxu0
  %v1651 = vpop.f32.mrf.mxu0
  %v1652 = vadd.f32 0.0, %v1651
  %v1653 = vpop.f32.mrf.mxu0
  %1654 = vmatprep.mubr.bf16.mxu0 0
  %1655 = vmatmul.mubr.bf16.gmra.mxu0 %v1537
  %v1656 = vpop.f32.mrf.mxu0
  %v1657 = vadd.f32 0.0, %v1656
  %v1658 = vpop.f32.mrf.mxu0
  %v1659 = vpop.f32.mrf.mxu0
  %v1660 = vadd.f32 0.0, %v1659
  %v1661 = vpop.f32.mrf.mxu0
  %1662 = vmatprep.mubr.bf16.mxu0 0
  %1663 = vmatmul.mubr.bf16.gmra.mxu0 %v1538
  %v1664 = vpop.f32.mrf.mxu0
  %v1665 = vadd.f32 0.0, %v1664
  %v1666 = vpop.f32.mrf.mxu0
  %v1667 = vpop.f32.mrf.mxu0
  %v1668 = vadd.f32 0.0, %v1667
  %v1669 = vpop.f32.mrf.mxu0
  %1670 = vmatprep.mubr.bf16.mxu0 0
  %1671 = vmatmul.mubr.bf16.gmra.mxu0 %v1539
  %v1672 = vpop.f32.mrf.mxu0
  %v1673 = vadd.f32 0.0, %v1672
  %v1674 = vpop.f32.mrf.mxu0
  %v1675 = vpop.f32.mrf.mxu0
  %v1676 = vadd.f32 0.0, %v1675
  %v1677 = vpop.f32.mrf.mxu0
  %1678 = vmatprep.mubr.bf16.mxu0 0
  %1679 = vmatmul.mubr.bf16.gmra.mxu0 %v1540
  %v1680 = vpop.f32.mrf.mxu0
  %v1681 = vadd.f32 0.0, %v1680
  %v1682 = vpop.f32.mrf.mxu0
  %v1683 = vpop.f32.mrf.mxu0
  %v1684 = vadd.f32 0.0, %v1683
  %v1685 = vpop.f32.mrf.mxu0
  %1686 = vmatprep.mubr.bf16.mxu0 0
  %1687 = vmatmul.mubr.bf16.gmra.mxu0 %v1541
  %v1688 = vpop.f32.mrf.mxu0
  %v1689 = vadd.f32 0.0, %v1688
  %v1690 = vpop.f32.mrf.mxu0
  %v1691 = vpop.f32.mrf.mxu0
  %v1692 = vadd.f32 0.0, %v1691
  %v1693 = vpop.f32.mrf.mxu0
  %1694 = vdwg.mxu0
  %v1695 = vadd.f32 %v1229, %v1633
  %v1696 = vadd.f32 %v1230, %v1636
  %v1697 = vadd.f32 %v1231, %v1641
  %v1698 = vadd.f32 %v1232, %v1644
  %v1699 = vadd.f32 %v1233, %v1649
  %v1700 = vadd.f32 %v1234, %v1652
  %v1701 = vadd.f32 %v1235, %v1657
  %v1702 = vadd.f32 %v1236, %v1660
  %v1703 = vadd.f32 %v1237, %v1665
  %v1704 = vadd.f32 %v1238, %v1668
  %v1705 = vadd.f32 %v1239, %v1673
  %v1706 = vadd.f32 %v1240, %v1676
  %v1707 = vadd.f32 %v1241, %v1681
  %v1708 = vadd.f32 %v1242, %v1684
  %v1709 = vadd.f32 %v1243, %v1689
  %v1710 = vadd.f32 %v1244, %v1692
  %v1711 = vld [vmem:[%s1002] sm:$0xe]
  %v1712 = vld [vmem:[%s1002 + $0x8] sm:$0xe]
  %v1713 = vld [vmem:[%s1002 + $0x10] sm:$0xe]
  %v1714 = vld [vmem:[%s1002 + $0x18] sm:$0xe]
  %v1715 = vld [vmem:[%s1002 + $0x20] sm:$0xe]
  %v1716 = vld [vmem:[%s1002 + $0x28] sm:$0xe]
  %v1717 = vld [vmem:[%s1002 + $0x30] sm:$0xe]
  %v1718 = vld [vmem:[%s1002 + $0x38] sm:$0xe]
  %v1719 = vld [vmem:[%s1002 + $0x50] sm:$0xe]
  %v1720 = vld [vmem:[%s1002 + $0x58] sm:$0xe]
  %v1721 = vld [vmem:[%s1002 + $0x60] sm:$0xe]
  %v1722 = vld [vmem:[%s1002 + $0x68] sm:$0xe]
  %v1723 = vld [vmem:[%s1002 + $0x70] sm:$0xe]
  %v1724 = vld [vmem:[%s1002 + $0x78] sm:$0xe]
  %v1725 = vld [vmem:[%s1002 + $0x80] sm:$0xe]
  %v1726 = vld [vmem:[%s1002 + $0x88] sm:$0xe]
  %v1759 = vrot.slane %v1711, 5
  %v1760 = vrot.slane %v1759, 4
  %v1761 = vrot.slane %v1246, 5
  %v1762 = vsel %vm727, %v1760, %v1761
  %v1763 = vrot.slane %v1712, 5
  %v1764 = vrot.slane %v1763, 4
  %v1765 = vrot.slane %v1248, 5
  %v1766 = vsel %vm727, %v1764, %v1765
  %v1767 = vrot.slane %v1713, 5
  %v1768 = vrot.slane %v1767, 4
  %v1769 = vrot.slane %v1250, 5
  %v1770 = vsel %vm727, %v1768, %v1769
  %v1771 = vrot.slane %v1714, 5
  %v1772 = vrot.slane %v1771, 4
  %v1773 = vrot.slane %v1252, 5
  %v1774 = vsel %vm727, %v1772, %v1773
  %v1775 = vrot.slane %v1715, 5
  %v1776 = vrot.slane %v1775, 4
  %v1777 = vrot.slane %v1254, 5
  %v1778 = vsel %vm727, %v1776, %v1777
  %v1779 = vrot.slane %v1716, 5
  %v1780 = vrot.slane %v1779, 4
  %v1781 = vrot.slane %v1256, 5
  %v1782 = vsel %vm727, %v1780, %v1781
  %v1783 = vrot.slane %v1717, 5
  %v1784 = vrot.slane %v1783, 4
  %v1785 = vrot.slane %v1258, 5
  %v1786 = vsel %vm727, %v1784, %v1785
  %v1787 = vrot.slane %v1718, 5
  %v1788 = vrot.slane %v1787, 4
  %v1789 = vrot.slane %v1260, 5
  %v1790 = vsel %vm727, %v1788, %v1789
  %v1791 = vrot.slane %v1719, 5
  %v1792 = vrot.slane %v1791, 4
  %v1793 = vrot.slane %v1262, 5
  %v1794 = vsel %vm727, %v1792, %v1793
  %v1795 = vrot.slane %v1720, 5
  %v1796 = vrot.slane %v1795, 4
  %v1797 = vrot.slane %v1264, 5
  %v1798 = vsel %vm727, %v1796, %v1797
  %v1799 = vrot.slane %v1721, 5
  %v1800 = vrot.slane %v1799, 4
  %v1801 = vrot.slane %v1266, 5
  %v1802 = vsel %vm727, %v1800, %v1801
  %v1803 = vrot.slane %v1722, 5
  %v1804 = vrot.slane %v1803, 4
  %v1805 = vrot.slane %v1268, 5
  %v1806 = vsel %vm727, %v1804, %v1805
  %v1807 = vrot.slane %v1723, 5
  %v1808 = vrot.slane %v1807, 4
  %v1809 = vrot.slane %v1270, 5
  %v1810 = vsel %vm727, %v1808, %v1809
  %v1811 = vrot.slane %v1724, 5
  %v1812 = vrot.slane %v1811, 4
  %v1813 = vrot.slane %v1272, 5
  %v1814 = vsel %vm727, %v1812, %v1813
  %v1815 = vrot.slane %v1725, 5
  %v1816 = vrot.slane %v1815, 4
  %v1817 = vrot.slane %v1274, 5
  %v1818 = vsel %vm727, %v1816, %v1817
  %v1819 = vrot.slane %v1726, 5
  %v1820 = vrot.slane %v1819, 4
  %v1821 = vrot.slane %v1276, 5
  %v1822 = vsel %vm727, %v1820, %v1821
  %s1823 = scalar_lea.vmem %s1, 320
  %v1824 = vld [vmem:[%s1823] sm:$0xf]
  %v1825 = vld [vmem:[%s1823 + $0x4] sm:$0xf]
  %v1826 = vld [vmem:[%s1823 + $0x8] sm:$0xf]
  %v1827 = vld [vmem:[%s1823 + $0xc] sm:$0xf]
  %v1828 = vld [vmem:[%s1823 + $0x10] sm:$0xf]
  %v1829 = vld [vmem:[%s1823 + $0x14] sm:$0xf]
  %v1830 = vld [vmem:[%s1823 + $0x18] sm:$0xf]
  %v1831 = vld [vmem:[%s1823 + $0x1c] sm:$0xf]
  %v1832 = vld [vmem:[%s1823 + $0x20] sm:$0xf]
  %v1833 = vld [vmem:[%s1823 + $0x24] sm:$0xf]
  %v1834 = vld [vmem:[%s1823 + $0x28] sm:$0xf]
  %v1835 = vld [vmem:[%s1823 + $0x2c] sm:$0xf]
  %v1836 = vld [vmem:[%s1823 + $0x30] sm:$0xf]
  %v1837 = vld [vmem:[%s1823 + $0x34] sm:$0xf]
  %v1838 = vld [vmem:[%s1823 + $0x38] sm:$0xf]
  %v1839 = vld [vmem:[%s1823 + $0x3c] sm:$0xf]
  %v1840 = vunpack.c.l.b16 %v1762
  %v1841 = vunpack.c.l.b16 %v1766
  %v1842 = vunpack.c.l.b16 %v1770
  %v1843 = vunpack.c.l.b16 %v1774
  %v1844 = vunpack.c.l.b16 %v1778
  %v1845 = vunpack.c.l.b16 %v1782
  %v1846 = vunpack.c.l.b16 %v1786
  %v1847 = vunpack.c.l.b16 %v1790
  %v1848 = vunpack.c.l.b16 %v1794
  %v1849 = vunpack.c.l.b16 %v1798
  %v1850 = vunpack.c.l.b16 %v1802
  %v1851 = vunpack.c.l.b16 %v1806
  %v1852 = vunpack.c.l.b16 %v1810
  %v1853 = vunpack.c.l.b16 %v1814
  %v1854 = vunpack.c.l.b16 %v1818
  %v1855 = vunpack.c.l.b16 %v1822
  %v1856 = vpack.c.b16 %v1841, %v1840
  %v1857 = vpack.c.b16 %v1843, %v1842
  %v1858 = vpack.c.b16 %v1845, %v1844
  %v1859 = vpack.c.b16 %v1847, %v1846
  %v1860 = vpack.c.b16 %v1849, %v1848
  %v1861 = vpack.c.b16 %v1851, %v1850
  %v1862 = vpack.c.b16 %v1853, %v1852
  %v1863 = vpack.c.b16 %v1855, %v1854
  %v1888 = vunpack.c.l.b16 %v1824
  %v1889 = vunpack.c.l.b16 %v1825
  %v1890 = vunpack.c.l.b16 %v1826
  %v1891 = vunpack.c.l.b16 %v1827
  %v1892 = vunpack.c.l.b16 %v1828
  %v1893 = vunpack.c.l.b16 %v1829
  %v1894 = vunpack.c.l.b16 %v1830
  %v1895 = vunpack.c.l.b16 %v1831
  %v1896 = vunpack.c.l.b16 %v1832
  %v1897 = vunpack.c.l.b16 %v1833
  %v1898 = vunpack.c.l.b16 %v1834
  %v1899 = vunpack.c.l.b16 %v1835
  %v1900 = vunpack.c.l.b16 %v1836
  %v1901 = vunpack.c.l.b16 %v1837
  %v1902 = vunpack.c.l.b16 %v1838
  %v1903 = vunpack.c.l.b16 %v1839
  %v1904 = vpack.c.b16 %v1889, %v1888
  %v1905 = vpack.c.b16 %v1891, %v1890
  %v1906 = vpack.c.b16 %v1893, %v1892
  %v1907 = vpack.c.b16 %v1895, %v1894
  %v1908 = vpack.c.b16 %v1897, %v1896
  %v1909 = vpack.c.b16 %v1899, %v1898
  %v1910 = vpack.c.b16 %v1901, %v1900
  %v1911 = vpack.c.b16 %v1903, %v1902
  %1920 = vmatprep.subr.bf16.mxu0 0
  %1921 = vmatpush1.bf16.msra.mxu0 %v1911
  %1922 = vmatprep.subr.bf16.mxu0 0
  %1923 = vmatpush1.bf16.msra.mxu0 %v1910
  %1924 = vmatprep.subr.bf16.mxu0 0
  %1925 = vmatpush1.bf16.msra.mxu0 %v1909
  %1926 = vmatprep.subr.bf16.mxu0 0
  %1927 = vmatpush1.bf16.msra.mxu0 %v1908
  %1928 = vmatprep.subr.bf16.mxu0 0
  %1929 = vmatpush1.bf16.msra.mxu0 %v1907
  %1930 = vmatprep.subr.bf16.mxu0 0
  %1931 = vmatpush1.bf16.msra.mxu0 %v1906
  %1932 = vmatprep.subr.bf16.mxu0 0
  %1933 = vmatpush1.bf16.msra.mxu0 %v1905
  %1934 = vmatprep.subr.bf16.mxu0 0
  %1935 = vmatpush1.bf16.msra.mxu0 %v1904
  %1936 = vmatprep.subr.bf16.mxu0 0
  %1937 = vmatpush2.bf16.msra.mxu0 0
  %1938 = vmatprep.subr.bf16.mxu0 0
  %1939 = vmatpush2.bf16.msra.mxu0 0
  %1940 = vmatprep.subr.bf16.mxu0 0
  %1941 = vmatpush2.bf16.msra.mxu0 0
  %1942 = vmatprep.subr.bf16.mxu0 0
  %1943 = vmatpush2.bf16.msra.mxu0 0
  %1944 = vmatprep.subr.bf16.mxu0 0
  %1945 = vmatpush2.bf16.msra.mxu0 0
  %1946 = vmatprep.subr.bf16.mxu0 0
  %1947 = vmatpush2.bf16.msra.mxu0 0
  %1948 = vmatprep.subr.bf16.mxu0 0
  %1949 = vmatpush2.bf16.msra.mxu0 0
  %1950 = vmatprep.subr.bf16.mxu0 0
  %1951 = vmatpush2.bf16.msra.mxu0 0
  %1952 = vmatprep.mubr.bf16.mxu0 0
  %1953 = vmatmul.mubr.bf16.gmra.mxu0 %v1856
  %v1954 = vpop.f32.mrf.mxu0
  %v1955 = vadd.f32 0.0, %v1954
  %v1956 = vpop.f32.mrf.mxu0
  %v1957 = vpop.f32.mrf.mxu0
  %v1958 = vadd.f32 0.0, %v1957
  %v1959 = vpop.f32.mrf.mxu0
  %1960 = vmatprep.mubr.bf16.mxu0 0
  %1961 = vmatmul.mubr.bf16.gmra.mxu0 %v1857
  %v1962 = vpop.f32.mrf.mxu0
  %v1963 = vadd.f32 0.0, %v1962
  %v1964 = vpop.f32.mrf.mxu0
  %v1965 = vpop.f32.mrf.mxu0
  %v1966 = vadd.f32 0.0, %v1965
  %v1967 = vpop.f32.mrf.mxu0
  %1968 = vmatprep.mubr.bf16.mxu0 0
  %1969 = vmatmul.mubr.bf16.gmra.mxu0 %v1858
  %v1970 = vpop.f32.mrf.mxu0
  %v1971 = vadd.f32 0.0, %v1970
  %v1972 = vpop.f32.mrf.mxu0
  %v1973 = vpop.f32.mrf.mxu0
  %v1974 = vadd.f32 0.0, %v1973
  %v1975 = vpop.f32.mrf.mxu0
  %1976 = vmatprep.mubr.bf16.mxu0 0
  %1977 = vmatmul.mubr.bf16.gmra.mxu0 %v1859
  %v1978 = vpop.f32.mrf.mxu0
  %v1979 = vadd.f32 0.0, %v1978
  %v1980 = vpop.f32.mrf.mxu0
  %v1981 = vpop.f32.mrf.mxu0
  %v1982 = vadd.f32 0.0, %v1981
  %v1983 = vpop.f32.mrf.mxu0
  %1984 = vmatprep.mubr.bf16.mxu0 0
  %1985 = vmatmul.mubr.bf16.gmra.mxu0 %v1860
  %v1986 = vpop.f32.mrf.mxu0
  %v1987 = vadd.f32 0.0, %v1986
  %v1988 = vpop.f32.mrf.mxu0
  %v1989 = vpop.f32.mrf.mxu0
  %v1990 = vadd.f32 0.0, %v1989
  %v1991 = vpop.f32.mrf.mxu0
  %1992 = vmatprep.mubr.bf16.mxu0 0
  %1993 = vmatmul.mubr.bf16.gmra.mxu0 %v1861
  %v1994 = vpop.f32.mrf.mxu0
  %v1995 = vadd.f32 0.0, %v1994
  %v1996 = vpop.f32.mrf.mxu0
  %v1997 = vpop.f32.mrf.mxu0
  %v1998 = vadd.f32 0.0, %v1997
  %v1999 = vpop.f32.mrf.mxu0
  %2000 = vmatprep.mubr.bf16.mxu0 0
  %2001 = vmatmul.mubr.bf16.gmra.mxu0 %v1862
  %v2002 = vpop.f32.mrf.mxu0
  %v2003 = vadd.f32 0.0, %v2002
  %v2004 = vpop.f32.mrf.mxu0
  %v2005 = vpop.f32.mrf.mxu0
  %v2006 = vadd.f32 0.0, %v2005
  %v2007 = vpop.f32.mrf.mxu0
  %2008 = vmatprep.mubr.bf16.mxu0 0
  %2009 = vmatmul.mubr.bf16.gmra.mxu0 %v1863
  %v2010 = vpop.f32.mrf.mxu0
  %v2011 = vadd.f32 0.0, %v2010
  %v2012 = vpop.f32.mrf.mxu0
  %v2013 = vpop.f32.mrf.mxu0
  %v2014 = vadd.f32 0.0, %v2013
  %v2015 = vpop.f32.mrf.mxu0
  %2016 = vdwg.mxu0
  %v2017 = vadd.f32 %v1695, %v1955
  %v2018 = vadd.f32 %v1696, %v1958
  %v2019 = vadd.f32 %v1697, %v1963
  %v2020 = vadd.f32 %v1698, %v1966
  %v2021 = vadd.f32 %v1699, %v1971
  %v2022 = vadd.f32 %v1700, %v1974
  %v2023 = vadd.f32 %v1701, %v1979
  %v2024 = vadd.f32 %v1702, %v1982
  %v2025 = vadd.f32 %v1703, %v1987
  %v2026 = vadd.f32 %v1704, %v1990
  %v2027 = vadd.f32 %v1705, %v1995
  %v2028 = vadd.f32 %v1706, %v1998
  %v2029 = vadd.f32 %v1707, %v2003
  %v2030 = vadd.f32 %v1708, %v2006
  %v2031 = vadd.f32 %v1709, %v2011
  %v2032 = vadd.f32 %v1710, %v2014
  %s2033 = scalar_lea.vmem %s0, 16
  %v2034 = vld [vmem:[%s2033] sm:$0xf]
  %v2035 = vld [vmem:[%s2033 + $0x8] sm:$0xf]
  %v2036 = vld [vmem:[%s2033 + $0x10] sm:$0xf]
  %v2037 = vld [vmem:[%s2033 + $0x18] sm:$0xf]
  %v2038 = vld [vmem:[%s2033 + $0x20] sm:$0xf]
  %v2039 = vld [vmem:[%s2033 + $0x28] sm:$0xf]
  %v2040 = vld [vmem:[%s2033 + $0x30] sm:$0xf]
  %v2041 = vld [vmem:[%s2033 + $0x38] sm:$0xf]
  %v2042 = vld [vmem:[%s2033 + $0x50] sm:$0xf]
  %v2043 = vld [vmem:[%s2033 + $0x58] sm:$0xf]
  %v2044 = vld [vmem:[%s2033 + $0x60] sm:$0xf]
  %v2045 = vld [vmem:[%s2033 + $0x68] sm:$0xf]
  %v2046 = vld [vmem:[%s2033 + $0x70] sm:$0xf]
  %v2047 = vld [vmem:[%s2033 + $0x78] sm:$0xf]
  %v2048 = vld [vmem:[%s2033 + $0x80] sm:$0xf]
  %v2049 = vld [vmem:[%s2033 + $0x88] sm:$0xf]
  %s2050 = scalar_lea.vmem %s1, 384
  %v2051 = vld [vmem:[%s2050] sm:$0xf]
  %v2052 = vld [vmem:[%s2050 + $0x4] sm:$0xf]
  %v2053 = vld [vmem:[%s2050 + $0x8] sm:$0xf]
  %v2054 = vld [vmem:[%s2050 + $0xc] sm:$0xf]
  %v2055 = vld [vmem:[%s2050 + $0x10] sm:$0xf]
  %v2056 = vld [vmem:[%s2050 + $0x14] sm:$0xf]
  %v2057 = vld [vmem:[%s2050 + $0x18] sm:$0xf]
  %v2058 = vld [vmem:[%s2050 + $0x1c] sm:$0xf]
  %v2059 = vld [vmem:[%s2050 + $0x20] sm:$0xf]
  %v2060 = vld [vmem:[%s2050 + $0x24] sm:$0xf]
  %v2061 = vld [vmem:[%s2050 + $0x28] sm:$0xf]
  %v2062 = vld [vmem:[%s2050 + $0x2c] sm:$0xf]
  %v2063 = vld [vmem:[%s2050 + $0x30] sm:$0xf]
  %v2064 = vld [vmem:[%s2050 + $0x34] sm:$0xf]
  %v2065 = vld [vmem:[%s2050 + $0x38] sm:$0xf]
  %v2066 = vld [vmem:[%s2050 + $0x3c] sm:$0xf]
  %v2083 = vunpack.c.l.b16 %v2034
  %v2084 = vunpack.c.l.b16 %v2035
  %v2085 = vunpack.c.l.b16 %v2036
  %v2086 = vunpack.c.l.b16 %v2037
  %v2087 = vunpack.c.l.b16 %v2038
  %v2088 = vunpack.c.l.b16 %v2039
  %v2089 = vunpack.c.l.b16 %v2040
  %v2090 = vunpack.c.l.b16 %v2041
  %v2091 = vunpack.c.l.b16 %v2042
  %v2092 = vunpack.c.l.b16 %v2043
  %v2093 = vunpack.c.l.b16 %v2044
  %v2094 = vunpack.c.l.b16 %v2045
  %v2095 = vunpack.c.l.b16 %v2046
  %v2096 = vunpack.c.l.b16 %v2047
  %v2097 = vunpack.c.l.b16 %v2048
  %v2098 = vunpack.c.l.b16 %v2049
  %v2099 = vpack.c.b16 %v2084, %v2083
  %v2100 = vpack.c.b16 %v2086, %v2085
  %v2101 = vpack.c.b16 %v2088, %v2087
  %v2102 = vpack.c.b16 %v2090, %v2089
  %v2103 = vpack.c.b16 %v2092, %v2091
  %v2104 = vpack.c.b16 %v2094, %v2093
  %v2105 = vpack.c.b16 %v2096, %v2095
  %v2106 = vpack.c.b16 %v2098, %v2097
  %v2131 = vunpack.c.l.b16 %v2051
  %v2132 = vunpack.c.l.b16 %v2052
  %v2133 = vunpack.c.l.b16 %v2053
  %v2134 = vunpack.c.l.b16 %v2054
  %v2135 = vunpack.c.l.b16 %v2055
  %v2136 = vunpack.c.l.b16 %v2056
  %v2137 = vunpack.c.l.b16 %v2057
  %v2138 = vunpack.c.l.b16 %v2058
  %v2139 = vunpack.c.l.b16 %v2059
  %v2140 = vunpack.c.l.b16 %v2060
  %v2141 = vunpack.c.l.b16 %v2061
  %v2142 = vunpack.c.l.b16 %v2062
  %v2143 = vunpack.c.l.b16 %v2063
  %v2144 = vunpack.c.l.b16 %v2064
  %v2145 = vunpack.c.l.b16 %v2065
  %v2146 = vunpack.c.l.b16 %v2066
  %v2147 = vpack.c.b16 %v2132, %v2131
  %v2148 = vpack.c.b16 %v2134, %v2133
  %v2149 = vpack.c.b16 %v2136, %v2135
  %v2150 = vpack.c.b16 %v2138, %v2137
  %v2151 = vpack.c.b16 %v2140, %v2139
  %v2152 = vpack.c.b16 %v2142, %v2141
  %v2153 = vpack.c.b16 %v2144, %v2143
  %v2154 = vpack.c.b16 %v2146, %v2145
  %2163 = vmatprep.subr.bf16.mxu0 0
  %2164 = vmatpush1.bf16.msra.mxu0 %v2154
  %2165 = vmatprep.subr.bf16.mxu0 0
  %2166 = vmatpush1.bf16.msra.mxu0 %v2153
  %2167 = vmatprep.subr.bf16.mxu0 0
  %2168 = vmatpush1.bf16.msra.mxu0 %v2152
  %2169 = vmatprep.subr.bf16.mxu0 0
  %2170 = vmatpush1.bf16.msra.mxu0 %v2151
  %2171 = vmatprep.subr.bf16.mxu0 0
  %2172 = vmatpush1.bf16.msra.mxu0 %v2150
  %2173 = vmatprep.subr.bf16.mxu0 0
  %2174 = vmatpush1.bf16.msra.mxu0 %v2149
  %2175 = vmatprep.subr.bf16.mxu0 0
  %2176 = vmatpush1.bf16.msra.mxu0 %v2148
  %2177 = vmatprep.subr.bf16.mxu0 0
  %2178 = vmatpush1.bf16.msra.mxu0 %v2147
  %2179 = vmatprep.subr.bf16.mxu0 0
  %2180 = vmatpush2.bf16.msra.mxu0 0
  %2181 = vmatprep.subr.bf16.mxu0 0
  %2182 = vmatpush2.bf16.msra.mxu0 0
  %2183 = vmatprep.subr.bf16.mxu0 0
  %2184 = vmatpush2.bf16.msra.mxu0 0
  %2185 = vmatprep.subr.bf16.mxu0 0
  %2186 = vmatpush2.bf16.msra.mxu0 0
  %2187 = vmatprep.subr.bf16.mxu0 0
  %2188 = vmatpush2.bf16.msra.mxu0 0
  %2189 = vmatprep.subr.bf16.mxu0 0
  %2190 = vmatpush2.bf16.msra.mxu0 0
  %2191 = vmatprep.subr.bf16.mxu0 0
  %2192 = vmatpush2.bf16.msra.mxu0 0
  %2193 = vmatprep.subr.bf16.mxu0 0
  %2194 = vmatpush2.bf16.msra.mxu0 0
  %2195 = vmatprep.mubr.bf16.mxu0 0
  %2196 = vmatmul.mubr.bf16.gmra.mxu0 %v2099
  %v2197 = vpop.f32.mrf.mxu0
  %v2198 = vadd.f32 0.0, %v2197
  %v2199 = vpop.f32.mrf.mxu0
  %v2200 = vpop.f32.mrf.mxu0
  %v2201 = vadd.f32 0.0, %v2200
  %v2202 = vpop.f32.mrf.mxu0
  %2203 = vmatprep.mubr.bf16.mxu0 0
  %2204 = vmatmul.mubr.bf16.gmra.mxu0 %v2100
  %v2205 = vpop.f32.mrf.mxu0
  %v2206 = vadd.f32 0.0, %v2205
  %v2207 = vpop.f32.mrf.mxu0
  %v2208 = vpop.f32.mrf.mxu0
  %v2209 = vadd.f32 0.0, %v2208
  %v2210 = vpop.f32.mrf.mxu0
  %2211 = vmatprep.mubr.bf16.mxu0 0
  %2212 = vmatmul.mubr.bf16.gmra.mxu0 %v2101
  %v2213 = vpop.f32.mrf.mxu0
  %v2214 = vadd.f32 0.0, %v2213
  %v2215 = vpop.f32.mrf.mxu0
  %v2216 = vpop.f32.mrf.mxu0
  %v2217 = vadd.f32 0.0, %v2216
  %v2218 = vpop.f32.mrf.mxu0
  %2219 = vmatprep.mubr.bf16.mxu0 0
  %2220 = vmatmul.mubr.bf16.gmra.mxu0 %v2102
  %v2221 = vpop.f32.mrf.mxu0
  %v2222 = vadd.f32 0.0, %v2221
  %v2223 = vpop.f32.mrf.mxu0
  %v2224 = vpop.f32.mrf.mxu0
  %v2225 = vadd.f32 0.0, %v2224
  %v2226 = vpop.f32.mrf.mxu0
  %2227 = vmatprep.mubr.bf16.mxu0 0
  %2228 = vmatmul.mubr.bf16.gmra.mxu0 %v2103
  %v2229 = vpop.f32.mrf.mxu0
  %v2230 = vadd.f32 0.0, %v2229
  %v2231 = vpop.f32.mrf.mxu0
  %v2232 = vpop.f32.mrf.mxu0
  %v2233 = vadd.f32 0.0, %v2232
  %v2234 = vpop.f32.mrf.mxu0
  %2235 = vmatprep.mubr.bf16.mxu0 0
  %2236 = vmatmul.mubr.bf16.gmra.mxu0 %v2104
  %v2237 = vpop.f32.mrf.mxu0
  %v2238 = vadd.f32 0.0, %v2237
  %v2239 = vpop.f32.mrf.mxu0
  %v2240 = vpop.f32.mrf.mxu0
  %v2241 = vadd.f32 0.0, %v2240
  %v2242 = vpop.f32.mrf.mxu0
  %2243 = vmatprep.mubr.bf16.mxu0 0
  %2244 = vmatmul.mubr.bf16.gmra.mxu0 %v2105
  %v2245 = vpop.f32.mrf.mxu0
  %v2246 = vadd.f32 0.0, %v2245
  %v2247 = vpop.f32.mrf.mxu0
  %v2248 = vpop.f32.mrf.mxu0
  %v2249 = vadd.f32 0.0, %v2248
  %v2250 = vpop.f32.mrf.mxu0
  %2251 = vmatprep.mubr.bf16.mxu0 0
  %2252 = vmatmul.mubr.bf16.gmra.mxu0 %v2106
  %v2253 = vpop.f32.mrf.mxu0
  %v2254 = vadd.f32 0.0, %v2253
  %v2255 = vpop.f32.mrf.mxu0
  %v2256 = vpop.f32.mrf.mxu0
  %v2257 = vadd.f32 0.0, %v2256
  %v2258 = vpop.f32.mrf.mxu0
  %2259 = vdwg.mxu0
  %v2260 = vadd.f32 %v2017, %v2198
  %v2261 = vadd.f32 %v2018, %v2201
  %v2262 = vadd.f32 %v2019, %v2206
  %v2263 = vadd.f32 %v2020, %v2209
  %v2264 = vadd.f32 %v2021, %v2214
  %v2265 = vadd.f32 %v2022, %v2217
  %v2266 = vadd.f32 %v2023, %v2222
  %v2267 = vadd.f32 %v2024, %v2225
  %v2268 = vadd.f32 %v2025, %v2230
  %v2269 = vadd.f32 %v2026, %v2233
  %v2270 = vadd.f32 %v2027, %v2238
  %v2271 = vadd.f32 %v2028, %v2241
  %v2272 = vadd.f32 %v2029, %v2246
  %v2273 = vadd.f32 %v2030, %v2249
  %v2274 = vadd.f32 %v2031, %v2254
  %v2275 = vadd.f32 %v2032, %v2257
  %v2276 = vld [vmem:[%s2033] sm:$0xf]
  %v2277 = vld [vmem:[%s2033 + $0x4] sm:$0x1]
  %v2278 = vld [vmem:[%s2033 + $0x8] sm:$0xf]
  %v2279 = vld [vmem:[%s2033 + $0xc] sm:$0x1]
  %v2280 = vld [vmem:[%s2033 + $0x10] sm:$0xf]
  %v2281 = vld [vmem:[%s2033 + $0x14] sm:$0x1]
  %v2282 = vld [vmem:[%s2033 + $0x18] sm:$0xf]
  %v2283 = vld [vmem:[%s2033 + $0x1c] sm:$0x1]
  %v2284 = vld [vmem:[%s2033 + $0x20] sm:$0xf]
  %v2285 = vld [vmem:[%s2033 + $0x24] sm:$0x1]
  %v2286 = vld [vmem:[%s2033 + $0x28] sm:$0xf]
  %v2287 = vld [vmem:[%s2033 + $0x2c] sm:$0x1]
  %v2288 = vld [vmem:[%s2033 + $0x30] sm:$0xf]
  %v2289 = vld [vmem:[%s2033 + $0x34] sm:$0x1]
  %v2290 = vld [vmem:[%s2033 + $0x38] sm:$0xf]
  %v2291 = vld [vmem:[%s2033 + $0x3c] sm:$0x1]
  %v2292 = vld [vmem:[%s2033 + $0x50] sm:$0xf]
  %v2293 = vld [vmem:[%s2033 + $0x54] sm:$0x1]
  %v2294 = vld [vmem:[%s2033 + $0x58] sm:$0xf]
  %v2295 = vld [vmem:[%s2033 + $0x5c] sm:$0x1]
  %v2296 = vld [vmem:[%s2033 + $0x60] sm:$0xf]
  %v2297 = vld [vmem:[%s2033 + $0x64] sm:$0x1]
  %v2298 = vld [vmem:[%s2033 + $0x68] sm:$0xf]
  %v2299 = vld [vmem:[%s2033 + $0x6c] sm:$0x1]
  %v2300 = vld [vmem:[%s2033 + $0x70] sm:$0xf]
  %v2301 = vld [vmem:[%s2033 + $0x74] sm:$0x1]
  %v2302 = vld [vmem:[%s2033 + $0x78] sm:$0xf]
  %v2303 = vld [vmem:[%s2033 + $0x7c] sm:$0x1]
  %v2304 = vld [vmem:[%s2033 + $0x80] sm:$0xf]
  %v2305 = vld [vmem:[%s2033 + $0x84] sm:$0x1]
  %v2306 = vld [vmem:[%s2033 + $0x88] sm:$0xf]
  %v2307 = vld [vmem:[%s2033 + $0x8c] sm:$0x1]
  %v2309 = vshrl.u32 %v2276, 16
  %v2311 = vrot.slane %v2309, 4
  %v2312 = vshll.u32 %v2276, 16
  %v2314 = vrot.slane %v2312, 5
  %v2315 = vor.u32 %v2311, %v2314
  %v2316 = vrot.slane %v2315, 4
  %v2318 = vshll.u32 %v2277, 16
  %v2320 = vrot.slane %v2318, 5
  %v2321 = vsel %vm65, %v2316, %v2320
  %v2323 = vshrl.u32 %v2278, 16
  %v2325 = vrot.slane %v2323, 4
  %v2326 = vshll.u32 %v2278, 16
  %v2328 = vrot.slane %v2326, 5
  %v2329 = vor.u32 %v2325, %v2328
  %v2330 = vrot.slane %v2329, 4
  %v2332 = vshll.u32 %v2279, 16
  %v2334 = vrot.slane %v2332, 5
  %v2335 = vsel %vm65, %v2330, %v2334
  %v2337 = vshrl.u32 %v2280, 16
  %v2339 = vrot.slane %v2337, 4
  %v2340 = vshll.u32 %v2280, 16
  %v2342 = vrot.slane %v2340, 5
  %v2343 = vor.u32 %v2339, %v2342
  %v2344 = vrot.slane %v2343, 4
  %v2346 = vshll.u32 %v2281, 16
  %v2348 = vrot.slane %v2346, 5
  %v2349 = vsel %vm65, %v2344, %v2348
  %v2351 = vshrl.u32 %v2282, 16
  %v2353 = vrot.slane %v2351, 4
  %v2354 = vshll.u32 %v2282, 16
  %v2356 = vrot.slane %v2354, 5
  %v2357 = vor.u32 %v2353, %v2356
  %v2358 = vrot.slane %v2357, 4
  %v2360 = vshll.u32 %v2283, 16
  %v2362 = vrot.slane %v2360, 5
  %v2363 = vsel %vm65, %v2358, %v2362
  %v2365 = vshrl.u32 %v2284, 16
  %v2367 = vrot.slane %v2365, 4
  %v2368 = vshll.u32 %v2284, 16
  %v2370 = vrot.slane %v2368, 5
  %v2371 = vor.u32 %v2367, %v2370
  %v2372 = vrot.slane %v2371, 4
  %v2374 = vshll.u32 %v2285, 16
  %v2376 = vrot.slane %v2374, 5
  %v2377 = vsel %vm65, %v2372, %v2376
  %v2379 = vshrl.u32 %v2286, 16
  %v2381 = vrot.slane %v2379, 4
  %v2382 = vshll.u32 %v2286, 16
  %v2384 = vrot.slane %v2382, 5
  %v2385 = vor.u32 %v2381, %v2384
  %v2386 = vrot.slane %v2385, 4
  %v2388 = vshll.u32 %v2287, 16
  %v2390 = vrot.slane %v2388, 5
  %v2391 = vsel %vm65, %v2386, %v2390
  %v2393 = vshrl.u32 %v2288, 16
  %v2395 = vrot.slane %v2393, 4
  %v2396 = vshll.u32 %v2288, 16
  %v2398 = vrot.slane %v2396, 5
  %v2399 = vor.u32 %v2395, %v2398
  %v2400 = vrot.slane %v2399, 4
  %v2402 = vshll.u32 %v2289, 16
  %v2404 = vrot.slane %v2402, 5
  %v2405 = vsel %vm65, %v2400, %v2404
  %v2407 = vshrl.u32 %v2290, 16
  %v2409 = vrot.slane %v2407, 4
  %v2410 = vshll.u32 %v2290, 16
  %v2412 = vrot.slane %v2410, 5
  %v2413 = vor.u32 %v2409, %v2412
  %v2414 = vrot.slane %v2413, 4
  %v2416 = vshll.u32 %v2291, 16
  %v2418 = vrot.slane %v2416, 5
  %v2419 = vsel %vm65, %v2414, %v2418
  %v2421 = vshrl.u32 %v2292, 16
  %v2423 = vrot.slane %v2421, 4
  %v2424 = vshll.u32 %v2292, 16
  %v2426 = vrot.slane %v2424, 5
  %v2427 = vor.u32 %v2423, %v2426
  %v2428 = vrot.slane %v2427, 4
  %v2430 = vshll.u32 %v2293, 16
  %v2432 = vrot.slane %v2430, 5
  %v2433 = vsel %vm65, %v2428, %v2432
  %v2435 = vshrl.u32 %v2294, 16
  %v2437 = vrot.slane %v2435, 4
  %v2438 = vshll.u32 %v2294, 16
  %v2440 = vrot.slane %v2438, 5
  %v2441 = vor.u32 %v2437, %v2440
  %v2442 = vrot.slane %v2441, 4
  %v2444 = vshll.u32 %v2295, 16
  %v2446 = vrot.slane %v2444, 5
  %v2447 = vsel %vm65, %v2442, %v2446
  %v2449 = vshrl.u32 %v2296, 16
  %v2451 = vrot.slane %v2449, 4
  %v2452 = vshll.u32 %v2296, 16
  %v2454 = vrot.slane %v2452, 5
  %v2455 = vor.u32 %v2451, %v2454
  %v2456 = vrot.slane %v2455, 4
  %v2458 = vshll.u32 %v2297, 16
  %v2460 = vrot.slane %v2458, 5
  %v2461 = vsel %vm65, %v2456, %v2460
  %v2463 = vshrl.u32 %v2298, 16
  %v2465 = vrot.slane %v2463, 4
  %v2466 = vshll.u32 %v2298, 16
  %v2468 = vrot.slane %v2466, 5
  %v2469 = vor.u32 %v2465, %v2468
  %v2470 = vrot.slane %v2469, 4
  %v2472 = vshll.u32 %v2299, 16
  %v2474 = vrot.slane %v2472, 5
  %v2475 = vsel %vm65, %v2470, %v2474
  %v2477 = vshrl.u32 %v2300, 16
  %v2479 = vrot.slane %v2477, 4
  %v2480 = vshll.u32 %v2300, 16
  %v2482 = vrot.slane %v2480, 5
  %v2483 = vor.u32 %v2479, %v2482
  %v2484 = vrot.slane %v2483, 4
  %v2486 = vshll.u32 %v2301, 16
  %v2488 = vrot.slane %v2486, 5
  %v2489 = vsel %vm65, %v2484, %v2488
  %v2491 = vshrl.u32 %v2302, 16
  %v2493 = vrot.slane %v2491, 4
  %v2494 = vshll.u32 %v2302, 16
  %v2496 = vrot.slane %v2494, 5
  %v2497 = vor.u32 %v2493, %v2496
  %v2498 = vrot.slane %v2497, 4
  %v2500 = vshll.u32 %v2303, 16
  %v2502 = vrot.slane %v2500, 5
  %v2503 = vsel %vm65, %v2498, %v2502
  %v2505 = vshrl.u32 %v2304, 16
  %v2507 = vrot.slane %v2505, 4
  %v2508 = vshll.u32 %v2304, 16
  %v2510 = vrot.slane %v2508, 5
  %v2511 = vor.u32 %v2507, %v2510
  %v2512 = vrot.slane %v2511, 4
  %v2514 = vshll.u32 %v2305, 16
  %v2516 = vrot.slane %v2514, 5
  %v2517 = vsel %vm65, %v2512, %v2516
  %v2519 = vshrl.u32 %v2306, 16
  %v2521 = vrot.slane %v2519, 4
  %v2522 = vshll.u32 %v2306, 16
  %v2524 = vrot.slane %v2522, 5
  %v2525 = vor.u32 %v2521, %v2524
  %v2526 = vrot.slane %v2525, 4
  %v2528 = vshll.u32 %v2307, 16
  %v2530 = vrot.slane %v2528, 5
  %v2531 = vsel %vm65, %v2526, %v2530
  %s2532 = scalar_lea.vmem %s1, 448
  %v2533 = vld [vmem:[%s2532] sm:$0xf]
  %v2534 = vld [vmem:[%s2532 + $0x4] sm:$0xf]
  %v2535 = vld [vmem:[%s2532 + $0x8] sm:$0xf]
  %v2536 = vld [vmem:[%s2532 + $0xc] sm:$0xf]
  %v2537 = vld [vmem:[%s2532 + $0x10] sm:$0xf]
  %v2538 = vld [vmem:[%s2532 + $0x14] sm:$0xf]
  %v2539 = vld [vmem:[%s2532 + $0x18] sm:$0xf]
  %v2540 = vld [vmem:[%s2532 + $0x1c] sm:$0xf]
  %v2541 = vld [vmem:[%s2532 + $0x20] sm:$0xf]
  %v2542 = vld [vmem:[%s2532 + $0x24] sm:$0xf]
  %v2543 = vld [vmem:[%s2532 + $0x28] sm:$0xf]
  %v2544 = vld [vmem:[%s2532 + $0x2c] sm:$0xf]
  %v2545 = vld [vmem:[%s2532 + $0x30] sm:$0xf]
  %v2546 = vld [vmem:[%s2532 + $0x34] sm:$0xf]
  %v2547 = vld [vmem:[%s2532 + $0x38] sm:$0xf]
  %v2548 = vld [vmem:[%s2532 + $0x3c] sm:$0xf]
  %v2549 = vunpack.c.l.b16 %v2321
  %v2550 = vunpack.c.l.b16 %v2335
  %v2551 = vunpack.c.l.b16 %v2349
  %v2552 = vunpack.c.l.b16 %v2363
  %v2553 = vunpack.c.l.b16 %v2377
  %v2554 = vunpack.c.l.b16 %v2391
  %v2555 = vunpack.c.l.b16 %v2405
  %v2556 = vunpack.c.l.b16 %v2419
  %v2557 = vunpack.c.l.b16 %v2433
  %v2558 = vunpack.c.l.b16 %v2447
  %v2559 = vunpack.c.l.b16 %v2461
  %v2560 = vunpack.c.l.b16 %v2475
  %v2561 = vunpack.c.l.b16 %v2489
  %v2562 = vunpack.c.l.b16 %v2503
  %v2563 = vunpack.c.l.b16 %v2517
  %v2564 = vunpack.c.l.b16 %v2531
  %v2565 = vpack.c.b16 %v2550, %v2549
  %v2566 = vpack.c.b16 %v2552, %v2551
  %v2567 = vpack.c.b16 %v2554, %v2553
  %v2568 = vpack.c.b16 %v2556, %v2555
  %v2569 = vpack.c.b16 %v2558, %v2557
  %v2570 = vpack.c.b16 %v2560, %v2559
  %v2571 = vpack.c.b16 %v2562, %v2561
  %v2572 = vpack.c.b16 %v2564, %v2563
  %v2597 = vunpack.c.l.b16 %v2533
  %v2598 = vunpack.c.l.b16 %v2534
  %v2599 = vunpack.c.l.b16 %v2535
  %v2600 = vunpack.c.l.b16 %v2536
  %v2601 = vunpack.c.l.b16 %v2537
  %v2602 = vunpack.c.l.b16 %v2538
  %v2603 = vunpack.c.l.b16 %v2539
  %v2604 = vunpack.c.l.b16 %v2540
  %v2605 = vunpack.c.l.b16 %v2541
  %v2606 = vunpack.c.l.b16 %v2542
  %v2607 = vunpack.c.l.b16 %v2543
  %v2608 = vunpack.c.l.b16 %v2544
  %v2609 = vunpack.c.l.b16 %v2545
  %v2610 = vunpack.c.l.b16 %v2546
  %v2611 = vunpack.c.l.b16 %v2547
  %v2612 = vunpack.c.l.b16 %v2548
  %v2613 = vpack.c.b16 %v2598, %v2597
  %v2614 = vpack.c.b16 %v2600, %v2599
  %v2615 = vpack.c.b16 %v2602, %v2601
  %v2616 = vpack.c.b16 %v2604, %v2603
  %v2617 = vpack.c.b16 %v2606, %v2605
  %v2618 = vpack.c.b16 %v2608, %v2607
  %v2619 = vpack.c.b16 %v2610, %v2609
  %v2620 = vpack.c.b16 %v2612, %v2611
  %2629 = vmatprep.subr.bf16.mxu0 0
  %2630 = vmatpush1.bf16.msra.mxu0 %v2620
  %2631 = vmatprep.subr.bf16.mxu0 0
  %2632 = vmatpush1.bf16.msra.mxu0 %v2619
  %2633 = vmatprep.subr.bf16.mxu0 0
  %2634 = vmatpush1.bf16.msra.mxu0 %v2618
  %2635 = vmatprep.subr.bf16.mxu0 0
  %2636 = vmatpush1.bf16.msra.mxu0 %v2617
  %2637 = vmatprep.subr.bf16.mxu0 0
  %2638 = vmatpush1.bf16.msra.mxu0 %v2616
  %2639 = vmatprep.subr.bf16.mxu0 0
  %2640 = vmatpush1.bf16.msra.mxu0 %v2615
  %2641 = vmatprep.subr.bf16.mxu0 0
  %2642 = vmatpush1.bf16.msra.mxu0 %v2614
  %2643 = vmatprep.subr.bf16.mxu0 0
  %2644 = vmatpush1.bf16.msra.mxu0 %v2613
  %2645 = vmatprep.subr.bf16.mxu0 0
  %2646 = vmatpush2.bf16.msra.mxu0 0
  %2647 = vmatprep.subr.bf16.mxu0 0
  %2648 = vmatpush2.bf16.msra.mxu0 0
  %2649 = vmatprep.subr.bf16.mxu0 0
  %2650 = vmatpush2.bf16.msra.mxu0 0
  %2651 = vmatprep.subr.bf16.mxu0 0
  %2652 = vmatpush2.bf16.msra.mxu0 0
  %2653 = vmatprep.subr.bf16.mxu0 0
  %2654 = vmatpush2.bf16.msra.mxu0 0
  %2655 = vmatprep.subr.bf16.mxu0 0
  %2656 = vmatpush2.bf16.msra.mxu0 0
  %2657 = vmatprep.subr.bf16.mxu0 0
  %2658 = vmatpush2.bf16.msra.mxu0 0
  %2659 = vmatprep.subr.bf16.mxu0 0
  %2660 = vmatpush2.bf16.msra.mxu0 0
  %2661 = vmatprep.mubr.bf16.mxu0 0
  %2662 = vmatmul.mubr.bf16.gmra.mxu0 %v2565
  %v2663 = vpop.f32.mrf.mxu0
  %v2664 = vadd.f32 0.0, %v2663
  %v2665 = vpop.f32.mrf.mxu0
  %v2666 = vpop.f32.mrf.mxu0
  %v2667 = vadd.f32 0.0, %v2666
  %v2668 = vpop.f32.mrf.mxu0
  %2669 = vmatprep.mubr.bf16.mxu0 0
  %2670 = vmatmul.mubr.bf16.gmra.mxu0 %v2566
  %v2671 = vpop.f32.mrf.mxu0
  %v2672 = vadd.f32 0.0, %v2671
  %v2673 = vpop.f32.mrf.mxu0
  %v2674 = vpop.f32.mrf.mxu0
  %v2675 = vadd.f32 0.0, %v2674
  %v2676 = vpop.f32.mrf.mxu0
  %2677 = vmatprep.mubr.bf16.mxu0 0
  %2678 = vmatmul.mubr.bf16.gmra.mxu0 %v2567
  %v2679 = vpop.f32.mrf.mxu0
  %v2680 = vadd.f32 0.0, %v2679
  %v2681 = vpop.f32.mrf.mxu0
  %v2682 = vpop.f32.mrf.mxu0
  %v2683 = vadd.f32 0.0, %v2682
  %v2684 = vpop.f32.mrf.mxu0
  %2685 = vmatprep.mubr.bf16.mxu0 0
  %2686 = vmatmul.mubr.bf16.gmra.mxu0 %v2568
  %v2687 = vpop.f32.mrf.mxu0
  %v2688 = vadd.f32 0.0, %v2687
  %v2689 = vpop.f32.mrf.mxu0
  %v2690 = vpop.f32.mrf.mxu0
  %v2691 = vadd.f32 0.0, %v2690
  %v2692 = vpop.f32.mrf.mxu0
  %2693 = vmatprep.mubr.bf16.mxu0 0
  %2694 = vmatmul.mubr.bf16.gmra.mxu0 %v2569
  %v2695 = vpop.f32.mrf.mxu0
  %v2696 = vadd.f32 0.0, %v2695
  %v2697 = vpop.f32.mrf.mxu0
  %v2698 = vpop.f32.mrf.mxu0
  %v2699 = vadd.f32 0.0, %v2698
  %v2700 = vpop.f32.mrf.mxu0
  %2701 = vmatprep.mubr.bf16.mxu0 0
  %2702 = vmatmul.mubr.bf16.gmra.mxu0 %v2570
  %v2703 = vpop.f32.mrf.mxu0
  %v2704 = vadd.f32 0.0, %v2703
  %v2705 = vpop.f32.mrf.mxu0
  %v2706 = vpop.f32.mrf.mxu0
  %v2707 = vadd.f32 0.0, %v2706
  %v2708 = vpop.f32.mrf.mxu0
  %2709 = vmatprep.mubr.bf16.mxu0 0
  %2710 = vmatmul.mubr.bf16.gmra.mxu0 %v2571
  %v2711 = vpop.f32.mrf.mxu0
  %v2712 = vadd.f32 0.0, %v2711
  %v2713 = vpop.f32.mrf.mxu0
  %v2714 = vpop.f32.mrf.mxu0
  %v2715 = vadd.f32 0.0, %v2714
  %v2716 = vpop.f32.mrf.mxu0
  %2717 = vmatprep.mubr.bf16.mxu0 0
  %2718 = vmatmul.mubr.bf16.gmra.mxu0 %v2572
  %v2719 = vpop.f32.mrf.mxu0
  %v2720 = vadd.f32 0.0, %v2719
  %v2721 = vpop.f32.mrf.mxu0
  %v2722 = vpop.f32.mrf.mxu0
  %v2723 = vadd.f32 0.0, %v2722
  %v2724 = vpop.f32.mrf.mxu0
  %2725 = vdwg.mxu0
  %v2726 = vadd.f32 %v2260, %v2664
  %v2727 = vadd.f32 %v2261, %v2667
  %v2728 = vadd.f32 %v2262, %v2672
  %v2729 = vadd.f32 %v2263, %v2675
  %v2730 = vadd.f32 %v2264, %v2680
  %v2731 = vadd.f32 %v2265, %v2683
  %v2732 = vadd.f32 %v2266, %v2688
  %v2733 = vadd.f32 %v2267, %v2691
  %v2734 = vadd.f32 %v2268, %v2696
  %v2735 = vadd.f32 %v2269, %v2699
  %v2736 = vadd.f32 %v2270, %v2704
  %v2737 = vadd.f32 %v2271, %v2707
  %v2738 = vadd.f32 %v2272, %v2712
  %v2739 = vadd.f32 %v2273, %v2715
  %v2740 = vadd.f32 %v2274, %v2720
  %v2741 = vadd.f32 %v2275, %v2723
  %v2742 = vld [vmem:[%s2033] sm:$0xe]
  %v2743 = vld [vmem:[%s2033 + $0x8] sm:$0xe]
  %v2744 = vld [vmem:[%s2033 + $0x10] sm:$0xe]
  %v2745 = vld [vmem:[%s2033 + $0x18] sm:$0xe]
  %v2746 = vld [vmem:[%s2033 + $0x20] sm:$0xe]
  %v2747 = vld [vmem:[%s2033 + $0x28] sm:$0xe]
  %v2748 = vld [vmem:[%s2033 + $0x30] sm:$0xe]
  %v2749 = vld [vmem:[%s2033 + $0x38] sm:$0xe]
  %v2750 = vld [vmem:[%s2033 + $0x50] sm:$0xe]
  %v2751 = vld [vmem:[%s2033 + $0x58] sm:$0xe]
  %v2752 = vld [vmem:[%s2033 + $0x60] sm:$0xe]
  %v2753 = vld [vmem:[%s2033 + $0x68] sm:$0xe]
  %v2754 = vld [vmem:[%s2033 + $0x70] sm:$0xe]
  %v2755 = vld [vmem:[%s2033 + $0x78] sm:$0xe]
  %v2756 = vld [vmem:[%s2033 + $0x80] sm:$0xe]
  %v2757 = vld [vmem:[%s2033 + $0x88] sm:$0xe]
  %v2790 = vrot.slane %v2742, 5
  %v2791 = vrot.slane %v2790, 4
  %v2792 = vrot.slane %v2277, 5
  %v2793 = vsel %vm727, %v2791, %v2792
  %v2794 = vrot.slane %v2743, 5
  %v2795 = vrot.slane %v2794, 4
  %v2796 = vrot.slane %v2279, 5
  %v2797 = vsel %vm727, %v2795, %v2796
  %v2798 = vrot.slane %v2744, 5
  %v2799 = vrot.slane %v2798, 4
  %v2800 = vrot.slane %v2281, 5
  %v2801 = vsel %vm727, %v2799, %v2800
  %v2802 = vrot.slane %v2745, 5
  %v2803 = vrot.slane %v2802, 4
  %v2804 = vrot.slane %v2283, 5
  %v2805 = vsel %vm727, %v2803, %v2804
  %v2806 = vrot.slane %v2746, 5
  %v2807 = vrot.slane %v2806, 4
  %v2808 = vrot.slane %v2285, 5
  %v2809 = vsel %vm727, %v2807, %v2808
  %v2810 = vrot.slane %v2747, 5
  %v2811 = vrot.slane %v2810, 4
  %v2812 = vrot.slane %v2287, 5
  %v2813 = vsel %vm727, %v2811, %v2812
  %v2814 = vrot.slane %v2748, 5
  %v2815 = vrot.slane %v2814, 4
  %v2816 = vrot.slane %v2289, 5
  %v2817 = vsel %vm727, %v2815, %v2816
  %v2818 = vrot.slane %v2749, 5
  %v2819 = vrot.slane %v2818, 4
  %v2820 = vrot.slane %v2291, 5
  %v2821 = vsel %vm727, %v2819, %v2820
  %v2822 = vrot.slane %v2750, 5
  %v2823 = vrot.slane %v2822, 4
  %v2824 = vrot.slane %v2293, 5
  %v2825 = vsel %vm727, %v2823, %v2824
  %v2826 = vrot.slane %v2751, 5
  %v2827 = vrot.slane %v2826, 4
  %v2828 = vrot.slane %v2295, 5
  %v2829 = vsel %vm727, %v2827, %v2828
  %v2830 = vrot.slane %v2752, 5
  %v2831 = vrot.slane %v2830, 4
  %v2832 = vrot.slane %v2297, 5
  %v2833 = vsel %vm727, %v2831, %v2832
  %v2834 = vrot.slane %v2753, 5
  %v2835 = vrot.slane %v2834, 4
  %v2836 = vrot.slane %v2299, 5
  %v2837 = vsel %vm727, %v2835, %v2836
  %v2838 = vrot.slane %v2754, 5
  %v2839 = vrot.slane %v2838, 4
  %v2840 = vrot.slane %v2301, 5
  %v2841 = vsel %vm727, %v2839, %v2840
  %v2842 = vrot.slane %v2755, 5
  %v2843 = vrot.slane %v2842, 4
  %v2844 = vrot.slane %v2303, 5
  %v2845 = vsel %vm727, %v2843, %v2844
  %v2846 = vrot.slane %v2756, 5
  %v2847 = vrot.slane %v2846, 4
  %v2848 = vrot.slane %v2305, 5
  %v2849 = vsel %vm727, %v2847, %v2848
  %v2850 = vrot.slane %v2757, 5
  %v2851 = vrot.slane %v2850, 4
  %v2852 = vrot.slane %v2307, 5
  %v2853 = vsel %vm727, %v2851, %v2852
  %s2854 = scalar_lea.vmem %s1, 512
  %v2855 = vld [vmem:[%s2854] sm:$0xf]
  %v2856 = vld [vmem:[%s2854 + $0x4] sm:$0xf]
  %v2857 = vld [vmem:[%s2854 + $0x8] sm:$0xf]
  %v2858 = vld [vmem:[%s2854 + $0xc] sm:$0xf]
  %v2859 = vld [vmem:[%s2854 + $0x10] sm:$0xf]
  %v2860 = vld [vmem:[%s2854 + $0x14] sm:$0xf]
  %v2861 = vld [vmem:[%s2854 + $0x18] sm:$0xf]
  %v2862 = vld [vmem:[%s2854 + $0x1c] sm:$0xf]
  %v2863 = vld [vmem:[%s2854 + $0x20] sm:$0xf]
  %v2864 = vld [vmem:[%s2854 + $0x24] sm:$0xf]
  %v2865 = vld [vmem:[%s2854 + $0x28] sm:$0xf]
  %v2866 = vld [vmem:[%s2854 + $0x2c] sm:$0xf]
  %v2867 = vld [vmem:[%s2854 + $0x30] sm:$0xf]
  %v2868 = vld [vmem:[%s2854 + $0x34] sm:$0xf]
  %v2869 = vld [vmem:[%s2854 + $0x38] sm:$0xf]
  %v2870 = vld [vmem:[%s2854 + $0x3c] sm:$0xf]
  %v2871 = vunpack.c.l.b16 %v2793
  %v2872 = vunpack.c.l.b16 %v2797
  %v2873 = vunpack.c.l.b16 %v2801
  %v2874 = vunpack.c.l.b16 %v2805
  %v2875 = vunpack.c.l.b16 %v2809
  %v2876 = vunpack.c.l.b16 %v2813
  %v2877 = vunpack.c.l.b16 %v2817
  %v2878 = vunpack.c.l.b16 %v2821
  %v2879 = vunpack.c.l.b16 %v2825
  %v2880 = vunpack.c.l.b16 %v2829
  %v2881 = vunpack.c.l.b16 %v2833
  %v2882 = vunpack.c.l.b16 %v2837
  %v2883 = vunpack.c.l.b16 %v2841
  %v2884 = vunpack.c.l.b16 %v2845
  %v2885 = vunpack.c.l.b16 %v2849
  %v2886 = vunpack.c.l.b16 %v2853
  %v2887 = vpack.c.b16 %v2872, %v2871
  %v2888 = vpack.c.b16 %v2874, %v2873
  %v2889 = vpack.c.b16 %v2876, %v2875
  %v2890 = vpack.c.b16 %v2878, %v2877
  %v2891 = vpack.c.b16 %v2880, %v2879
  %v2892 = vpack.c.b16 %v2882, %v2881
  %v2893 = vpack.c.b16 %v2884, %v2883
  %v2894 = vpack.c.b16 %v2886, %v2885
  %v2919 = vunpack.c.l.b16 %v2855
  %v2920 = vunpack.c.l.b16 %v2856
  %v2921 = vunpack.c.l.b16 %v2857
  %v2922 = vunpack.c.l.b16 %v2858
  %v2923 = vunpack.c.l.b16 %v2859
  %v2924 = vunpack.c.l.b16 %v2860
  %v2925 = vunpack.c.l.b16 %v2861
  %v2926 = vunpack.c.l.b16 %v2862
  %v2927 = vunpack.c.l.b16 %v2863
  %v2928 = vunpack.c.l.b16 %v2864
  %v2929 = vunpack.c.l.b16 %v2865
  %v2930 = vunpack.c.l.b16 %v2866
  %v2931 = vunpack.c.l.b16 %v2867
  %v2932 = vunpack.c.l.b16 %v2868
  %v2933 = vunpack.c.l.b16 %v2869
  %v2934 = vunpack.c.l.b16 %v2870
  %v2935 = vpack.c.b16 %v2920, %v2919
  %v2936 = vpack.c.b16 %v2922, %v2921
  %v2937 = vpack.c.b16 %v2924, %v2923
  %v2938 = vpack.c.b16 %v2926, %v2925
  %v2939 = vpack.c.b16 %v2928, %v2927
  %v2940 = vpack.c.b16 %v2930, %v2929
  %v2941 = vpack.c.b16 %v2932, %v2931
  %v2942 = vpack.c.b16 %v2934, %v2933
  %2951 = vmatprep.subr.bf16.mxu0 0
  %2952 = vmatpush1.bf16.msra.mxu0 %v2942
  %2953 = vmatprep.subr.bf16.mxu0 0
  %2954 = vmatpush1.bf16.msra.mxu0 %v2941
  %2955 = vmatprep.subr.bf16.mxu0 0
  %2956 = vmatpush1.bf16.msra.mxu0 %v2940
  %2957 = vmatprep.subr.bf16.mxu0 0
  %2958 = vmatpush1.bf16.msra.mxu0 %v2939
  %2959 = vmatprep.subr.bf16.mxu0 0
  %2960 = vmatpush1.bf16.msra.mxu0 %v2938
  %2961 = vmatprep.subr.bf16.mxu0 0
  %2962 = vmatpush1.bf16.msra.mxu0 %v2937
  %2963 = vmatprep.subr.bf16.mxu0 0
  %2964 = vmatpush1.bf16.msra.mxu0 %v2936
  %2965 = vmatprep.subr.bf16.mxu0 0
  %2966 = vmatpush1.bf16.msra.mxu0 %v2935
  %2967 = vmatprep.subr.bf16.mxu0 0
  %2968 = vmatpush2.bf16.msra.mxu0 0
  %2969 = vmatprep.subr.bf16.mxu0 0
  %2970 = vmatpush2.bf16.msra.mxu0 0
  %2971 = vmatprep.subr.bf16.mxu0 0
  %2972 = vmatpush2.bf16.msra.mxu0 0
  %2973 = vmatprep.subr.bf16.mxu0 0
  %2974 = vmatpush2.bf16.msra.mxu0 0
  %2975 = vmatprep.subr.bf16.mxu0 0
  %2976 = vmatpush2.bf16.msra.mxu0 0
  %2977 = vmatprep.subr.bf16.mxu0 0
  %2978 = vmatpush2.bf16.msra.mxu0 0
  %2979 = vmatprep.subr.bf16.mxu0 0
  %2980 = vmatpush2.bf16.msra.mxu0 0
  %2981 = vmatprep.subr.bf16.mxu0 0
  %2982 = vmatpush2.bf16.msra.mxu0 0
  %2983 = vmatprep.mubr.bf16.mxu0 0
  %2984 = vmatmul.mubr.bf16.gmra.mxu0 %v2887
  %v2985 = vpop.f32.mrf.mxu0
  %v2986 = vadd.f32 0.0, %v2985
  %v2987 = vpop.f32.mrf.mxu0
  %v2988 = vpop.f32.mrf.mxu0
  %v2989 = vadd.f32 0.0, %v2988
  %v2990 = vpop.f32.mrf.mxu0
  %2991 = vmatprep.mubr.bf16.mxu0 0
  %2992 = vmatmul.mubr.bf16.gmra.mxu0 %v2888
  %v2993 = vpop.f32.mrf.mxu0
  %v2994 = vadd.f32 0.0, %v2993
  %v2995 = vpop.f32.mrf.mxu0
  %v2996 = vpop.f32.mrf.mxu0
  %v2997 = vadd.f32 0.0, %v2996
  %v2998 = vpop.f32.mrf.mxu0
  %2999 = vmatprep.mubr.bf16.mxu0 0
  %3000 = vmatmul.mubr.bf16.gmra.mxu0 %v2889
  %v3001 = vpop.f32.mrf.mxu0
  %v3002 = vadd.f32 0.0, %v3001
  %v3003 = vpop.f32.mrf.mxu0
  %v3004 = vpop.f32.mrf.mxu0
  %v3005 = vadd.f32 0.0, %v3004
  %v3006 = vpop.f32.mrf.mxu0
  %3007 = vmatprep.mubr.bf16.mxu0 0
  %3008 = vmatmul.mubr.bf16.gmra.mxu0 %v2890
  %v3009 = vpop.f32.mrf.mxu0
  %v3010 = vadd.f32 0.0, %v3009
  %v3011 = vpop.f32.mrf.mxu0
  %v3012 = vpop.f32.mrf.mxu0
  %v3013 = vadd.f32 0.0, %v3012
  %v3014 = vpop.f32.mrf.mxu0
  %3015 = vmatprep.mubr.bf16.mxu0 0
  %3016 = vmatmul.mubr.bf16.gmra.mxu0 %v2891
  %v3017 = vpop.f32.mrf.mxu0
  %v3018 = vadd.f32 0.0, %v3017
  %v3019 = vpop.f32.mrf.mxu0
  %v3020 = vpop.f32.mrf.mxu0
  %v3021 = vadd.f32 0.0, %v3020
  %v3022 = vpop.f32.mrf.mxu0
  %3023 = vmatprep.mubr.bf16.mxu0 0
  %3024 = vmatmul.mubr.bf16.gmra.mxu0 %v2892
  %v3025 = vpop.f32.mrf.mxu0
  %v3026 = vadd.f32 0.0, %v3025
  %v3027 = vpop.f32.mrf.mxu0
  %v3028 = vpop.f32.mrf.mxu0
  %v3029 = vadd.f32 0.0, %v3028
  %v3030 = vpop.f32.mrf.mxu0
  %3031 = vmatprep.mubr.bf16.mxu0 0
  %3032 = vmatmul.mubr.bf16.gmra.mxu0 %v2893
  %v3033 = vpop.f32.mrf.mxu0
  %v3034 = vadd.f32 0.0, %v3033
  %v3035 = vpop.f32.mrf.mxu0
  %v3036 = vpop.f32.mrf.mxu0
  %v3037 = vadd.f32 0.0, %v3036
  %v3038 = vpop.f32.mrf.mxu0
  %3039 = vmatprep.mubr.bf16.mxu0 0
  %3040 = vmatmul.mubr.bf16.gmra.mxu0 %v2894
  %v3041 = vpop.f32.mrf.mxu0
  %v3042 = vadd.f32 0.0, %v3041
  %v3043 = vpop.f32.mrf.mxu0
  %v3044 = vpop.f32.mrf.mxu0
  %v3045 = vadd.f32 0.0, %v3044
  %v3046 = vpop.f32.mrf.mxu0
  %3047 = vdwg.mxu0
  %v3048 = vadd.f32 %v2726, %v2986
  %v3049 = vadd.f32 %v2727, %v2989
  %v3050 = vadd.f32 %v2728, %v2994
  %v3051 = vadd.f32 %v2729, %v2997
  %v3052 = vadd.f32 %v2730, %v3002
  %v3053 = vadd.f32 %v2731, %v3005
  %v3054 = vadd.f32 %v2732, %v3010
  %v3055 = vadd.f32 %v2733, %v3013
  %v3056 = vadd.f32 %v2734, %v3018
  %v3057 = vadd.f32 %v2735, %v3021
  %v3058 = vadd.f32 %v2736, %v3026
  %v3059 = vadd.f32 %v2737, %v3029
  %v3060 = vadd.f32 %v2738, %v3034
  %v3061 = vadd.f32 %v2739, %v3037
  %v3062 = vadd.f32 %v2740, %v3042
  %v3063 = vadd.f32 %v2741, %v3045
  %v3064 = vld [vmem:[%s2] sm:$0x1]
  %v3065 = vld [vmem:[%s2 + $0x1] sm:$0x1]
  %v3066 = vlaneseq
  %v3067 = vshrl.u32 %v3066, 7
  %v3068 = vsub.s32 0, %v3067
  %v3069 = vrot.slane %v3064, %v3068
  %v3070 = vmul.f32 %v3048, %v3069
  %v3071 = vmul.f32 %v3049, %v3069
  %v3072 = vmul.f32 %v3050, %v3069
  %v3073 = vmul.f32 %v3051, %v3069
  %v3074 = vmul.f32 %v3052, %v3069
  %v3075 = vmul.f32 %v3053, %v3069
  %v3076 = vmul.f32 %v3054, %v3069
  %v3077 = vmul.f32 %v3055, %v3069
  %v3078 = vmul.f32 %v3056, %v3069
  %v3079 = vmul.f32 %v3057, %v3069
  %v3080 = vmul.f32 %v3058, %v3069
  %v3081 = vmul.f32 %v3059, %v3069
  %v3082 = vmul.f32 %v3060, %v3069
  %v3083 = vmul.f32 %v3061, %v3069
  %v3084 = vmul.f32 %v3062, %v3069
  %v3085 = vmul.f32 %v3063, %v3069
  %v3086 = vlaneseq
  %v3087 = vshrl.u32 %v3086, 7
  %v3088 = vsub.s32 0, %v3087
  %v3089 = vrot.slane %v3065, %v3088
  %v3090 = vadd.f32 %v3070, %v3089
  %v3091 = vadd.f32 %v3071, %v3089
  %v3092 = vadd.f32 %v3072, %v3089
  %v3093 = vadd.f32 %v3073, %v3089
  %v3094 = vadd.f32 %v3074, %v3089
  %v3095 = vadd.f32 %v3075, %v3089
  %v3096 = vadd.f32 %v3076, %v3089
  %v3097 = vadd.f32 %v3077, %v3089
  %v3098 = vadd.f32 %v3078, %v3089
  %v3099 = vadd.f32 %v3079, %v3089
  %v3100 = vadd.f32 %v3080, %v3089
  %v3101 = vadd.f32 %v3081, %v3089
  %v3102 = vadd.f32 %v3082, %v3089
  %v3103 = vadd.f32 %v3083, %v3089
  %v3104 = vadd.f32 %v3084, %v3089
  %v3105 = vadd.f32 %v3085, %v3089
  %v3106 = vmax.f32 %v3090, 0.0
  %v3107 = vmax.f32 %v3091, 0.0
  %v3108 = vmax.f32 %v3092, 0.0
  %v3109 = vmax.f32 %v3093, 0.0
  %v3110 = vmax.f32 %v3094, 0.0
  %v3111 = vmax.f32 %v3095, 0.0
  %v3112 = vmax.f32 %v3096, 0.0
  %v3113 = vmax.f32 %v3097, 0.0
  %v3114 = vmax.f32 %v3098, 0.0
  %v3115 = vmax.f32 %v3099, 0.0
  %v3116 = vmax.f32 %v3100, 0.0
  %v3117 = vmax.f32 %v3101, 0.0
  %v3118 = vmax.f32 %v3102, 0.0
  %v3119 = vmax.f32 %v3103, 0.0
  %v3120 = vmax.f32 %v3104, 0.0
  %v3121 = vmax.f32 %v3105, 0.0
  %v3122 = vpack.c.bf16 %v3106, %v3106
  %v3123 = vpack.c.bf16 %v3107, %v3107
  %v3124 = vpack.c.bf16 %v3108, %v3108
  %v3125 = vpack.c.bf16 %v3109, %v3109
  %v3126 = vpack.c.bf16 %v3110, %v3110
  %v3127 = vpack.c.bf16 %v3111, %v3111
  %v3128 = vpack.c.bf16 %v3112, %v3112
  %v3129 = vpack.c.bf16 %v3113, %v3113
  %v3130 = vpack.c.bf16 %v3114, %v3114
  %v3131 = vpack.c.bf16 %v3115, %v3115
  %v3132 = vpack.c.bf16 %v3116, %v3116
  %v3133 = vpack.c.bf16 %v3117, %v3117
  %v3134 = vpack.c.bf16 %v3118, %v3118
  %v3135 = vpack.c.bf16 %v3119, %v3119
  %v3136 = vpack.c.bf16 %v3120, %v3120
  %v3137 = vpack.c.bf16 %v3121, %v3121
  %3138 = vst [vmem:[%s3] sm:$0xf] %v3122
  %3139 = vst [vmem:[%s3 + $0x4] sm:$0xf] %v3123
  %3140 = vst [vmem:[%s3 + $0x8] sm:$0xf] %v3124
  %3141 = vst [vmem:[%s3 + $0xc] sm:$0xf] %v3125
  %3142 = vst [vmem:[%s3 + $0x10] sm:$0xf] %v3126
  %3143 = vst [vmem:[%s3 + $0x14] sm:$0xf] %v3127
  %3144 = vst [vmem:[%s3 + $0x18] sm:$0xf] %v3128
  %3145 = vst [vmem:[%s3 + $0x1c] sm:$0xf] %v3129
  %3146 = vst [vmem:[%s3 + $0x20] sm:$0xf] %v3130
  %3147 = vst [vmem:[%s3 + $0x24] sm:$0xf] %v3131
  %3148 = vst [vmem:[%s3 + $0x28] sm:$0xf] %v3132
  %3149 = vst [vmem:[%s3 + $0x2c] sm:$0xf] %v3133
  %3150 = vst [vmem:[%s3 + $0x30] sm:$0xf] %v3134
  %3151 = vst [vmem:[%s3 + $0x34] sm:$0xf] %v3135
  %3152 = vst [vmem:[%s3 + $0x38] sm:$0xf] %v3136
  %3153 = vst [vmem:[%s3 + $0x3c] sm:$0xf] %v3137
  // Predicated region
  $region14: #{fwd.6} parent=0 // pred_check
    _
  $region15: #{fwd.6} parent=0 // pred_check_branch
    %3155 = sbr.rel (0) target = $region17
  $region16: #{fwd.6} parent=0 // pred_region
    _
  $region17: #{fwd.6} parent=0 // pred_fallthru
    _
  // Predicated region
  $region18: #{fwd.6} parent=0 // pred_check
    _
  $region19: #{fwd.6} parent=0 // pred_check_branch
    %3157 = sbr.rel (0) target = $region21
  $region20: #{fwd.6} parent=0 // pred_region
    _
  $region21: #{fwd.6} parent=0 // pred_fallthru
    _

// kernel: fwd.7
$region0: #{fwd.7}
  #allocation0 [shape = 'u32[]', space=smem, size = 0x4, offset = 0x4, fixed_abs, tag = 'smem constant byte address 0x4 - core index']
  #allocation1 [shape = 'u32[144,128]{1,0:T(1,128)}', space=vmem, size = 0x12000, scoped, tag = 'internal scratch']
  %s0 = inlined_call_operand.vmem [shape: bf16[2,10,10,128], index: 0, kind: input, shape index: {}]
  %s1 = inlined_call_operand.vmem [shape: bf16[9,128,128], index: 1, kind: input, shape index: {}]
  %s2 = inlined_call_operand.vmem [shape: bf16[2,8,8,128], index: 2, kind: input, shape index: {}]
  %s3 = inlined_call_operand.hbm [shape: f32[2,8,8,128], index: 3, kind: output, shape index: {}]
  %s4 = sld [smem:[#allocation0]]
  $region22: #{fwd.7} parent=0
    _
  %s6 = ssub.s32 1, %s4
  %s7 = scalar_select 0, %s6, %s4
  $region1: #{fwd.7} parent=0
    #allocation2 [shape = 'u8[65536]{0}', space=vmem, size = 0x10000, scoped, tag = 'output window, operand 0, single buffered']
    #allocation3 [shape = 's32[1]{0}', space=sflag, size = 0x4, scoped, tag = 'scoped memory for fwd.7']
    %8 = vsyncpa [#allocation3], 0
    // Predicated region
    $region2: #{fwd.7} parent=1 // pred_check
      _
    $region3: #{fwd.7} parent=1 // pred_check_branch
      %10 = sbr.rel (0) target = $region5
    $region4: #{fwd.7} parent=1 // pred_region
      _
    $region5: #{fwd.7} parent=1 // pred_fallthru
      _
    // Predicated region
    $region6: #{fwd.7} parent=1 // pred_check
      _
    $region7: #{fwd.7} parent=1 // pred_check_branch
      %12 = sbr.rel (0) target = $region9
    $region8: #{fwd.7} parent=1 // pred_region
      _
    $region9: #{fwd.7} parent=1 // pred_fallthru
      _
    // Predicated region
    $region10: #{fwd.7} parent=1 // pred_check
      _
    $region11: #{fwd.7} parent=1 // pred_check_branch
      %14 = sbr.rel (0) target = $region13
    $region12: #{fwd.7} parent=1 // pred_region
      _
    $region13: #{fwd.7} parent=1 // pred_fallthru
      _
    %v16 = vld [vmem:[%s0] sm:$0xf]
    %v17 = vld [vmem:[%s0 + $0x8] sm:$0xf]
    %v18 = vld [vmem:[%s0 + $0x10] sm:$0xf]
    %v19 = vld [vmem:[%s0 + $0x18] sm:$0xf]
    %v20 = vld [vmem:[%s0 + $0x20] sm:$0xf]
    %v21 = vld [vmem:[%s0 + $0x28] sm:$0xf]
    %v22 = vld [vmem:[%s0 + $0x30] sm:$0xf]
    %v23 = vld [vmem:[%s0 + $0x38] sm:$0xf]
    %v24 = vld [vmem:[%s0 + $0x50] sm:$0xf]
    %v25 = vld [vmem:[%s0 + $0x58] sm:$0xf]
    %v26 = vld [vmem:[%s0 + $0x60] sm:$0xf]
    %v27 = vld [vmem:[%s0 + $0x68] sm:$0xf]
    %v28 = vld [vmem:[%s0 + $0x70] sm:$0xf]
    %v29 = vld [vmem:[%s0 + $0x78] sm:$0xf]
    %v30 = vld [vmem:[%s0 + $0x80] sm:$0xf]
    %v31 = vld [vmem:[%s0 + $0x88] sm:$0xf]
    %v32 = vld [vmem:[%s1] sm:$0xf]
    %v33 = vld [vmem:[%s1 + $0x4] sm:$0xf]
    %v34 = vld [vmem:[%s1 + $0x8] sm:$0xf]
    %v35 = vld [vmem:[%s1 + $0xc] sm:$0xf]
    %v36 = vld [vmem:[%s1 + $0x10] sm:$0xf]
    %v37 = vld [vmem:[%s1 + $0x14] sm:$0xf]
    %v38 = vld [vmem:[%s1 + $0x18] sm:$0xf]
    %v39 = vld [vmem:[%s1 + $0x1c] sm:$0xf]
    %v40 = vld [vmem:[%s1 + $0x20] sm:$0xf]
    %v41 = vld [vmem:[%s1 + $0x24] sm:$0xf]
    %v42 = vld [vmem:[%s1 + $0x28] sm:$0xf]
    %v43 = vld [vmem:[%s1 + $0x2c] sm:$0xf]
    %v44 = vld [vmem:[%s1 + $0x30] sm:$0xf]
    %v45 = vld [vmem:[%s1 + $0x34] sm:$0xf]
    %v46 = vld [vmem:[%s1 + $0x38] sm:$0xf]
    %v47 = vld [vmem:[%s1 + $0x3c] sm:$0xf]
    %v48 = vld [vmem:[%s0 + $0x4] sm:$0x1]
    %v49 = vld [vmem:[%s0 + $0xc] sm:$0x1]
    %v50 = vld [vmem:[%s0 + $0x14] sm:$0x1]
    %v51 = vld [vmem:[%s0 + $0x1c] sm:$0x1]
    %v52 = vld [vmem:[%s0 + $0x24] sm:$0x1]
    %v53 = vld [vmem:[%s0 + $0x2c] sm:$0x1]
    %v54 = vld [vmem:[%s0 + $0x34] sm:$0x1]
    %v55 = vld [vmem:[%s0 + $0x3c] sm:$0x1]
    %v56 = vld [vmem:[%s0 + $0x54] sm:$0x1]
    %v57 = vld [vmem:[%s0 + $0x5c] sm:$0x1]
    %v58 = vld [vmem:[%s0 + $0x64] sm:$0x1]
    %v59 = vld [vmem:[%s0 + $0x6c] sm:$0x1]
    %v60 = vld [vmem:[%s0 + $0x74] sm:$0x1]
    %v61 = vld [vmem:[%s0 + $0x7c] sm:$0x1]
    %v62 = vld [vmem:[%s0 + $0x84] sm:$0x1]
    %v63 = vld [vmem:[%s0 + $0x8c] sm:$0x1]
    %vm64 = vsmask.f32 3328
    %vm65 = vsmask.f32 7440
    %vm66 = vmor %vm64, %vm65
    %v68 = vshrl.u32 %v16, 16
    %v70 = vrot.slane %v68, 4
    %v71 = vshll.u32 %v16, 16
    %v73 = vrot.slane %v71, 5
    %v74 = vor.u32 %v70, %v73
    %v75 = vrot.slane %v74, 4
    %v77 = vshll.u32 %v48, 16
    %v79 = vrot.slane %v77, 5
    %v80 = vsel %vm66, %v75, %v79
    %v82 = vshrl.u32 %v17, 16
    %v84 = vrot.slane %v82, 4
    %v85 = vshll.u32 %v17, 16
    %v87 = vrot.slane %v85, 5
    %v88 = vor.u32 %v84, %v87
    %v89 = vrot.slane %v88, 4
    %v91 = vshll.u32 %v49, 16
    %v93 = vrot.slane %v91, 5
    %v94 = vsel %vm66, %v89, %v93
    %v96 = vshrl.u32 %v18, 16
    %v98 = vrot.slane %v96, 4
    %v99 = vshll.u32 %v18, 16
    %v101 = vrot.slane %v99, 5
    %v102 = vor.u32 %v98, %v101
    %v103 = vrot.slane %v102, 4
    %v105 = vshll.u32 %v50, 16
    %v107 = vrot.slane %v105, 5
    %v108 = vsel %vm66, %v103, %v107
    %v110 = vshrl.u32 %v19, 16
    %v112 = vrot.slane %v110, 4
    %v113 = vshll.u32 %v19, 16
    %v115 = vrot.slane %v113, 5
    %v116 = vor.u32 %v112, %v115
    %v117 = vrot.slane %v116, 4
    %v119 = vshll.u32 %v51, 16
    %v121 = vrot.slane %v119, 5
    %v122 = vsel %vm66, %v117, %v121
    %v124 = vshrl.u32 %v20, 16
    %v126 = vrot.slane %v124, 4
    %v127 = vshll.u32 %v20, 16
    %v129 = vrot.slane %v127, 5
    %v130 = vor.u32 %v126, %v129
    %v131 = vrot.slane %v130, 4
    %v133 = vshll.u32 %v52, 16
    %v135 = vrot.slane %v133, 5
    %v136 = vsel %vm66, %v131, %v135
    %v138 = vshrl.u32 %v21, 16
    %v140 = vrot.slane %v138, 4
    %v141 = vshll.u32 %v21, 16
    %v143 = vrot.slane %v141, 5
    %v144 = vor.u32 %v140, %v143
    %v145 = vrot.slane %v144, 4
    %v147 = vshll.u32 %v53, 16
    %v149 = vrot.slane %v147, 5
    %v150 = vsel %vm66, %v145, %v149
    %v152 = vshrl.u32 %v22, 16
    %v154 = vrot.slane %v152, 4
    %v155 = vshll.u32 %v22, 16
    %v157 = vrot.slane %v155, 5
    %v158 = vor.u32 %v154, %v157
    %v159 = vrot.slane %v158, 4
    %v161 = vshll.u32 %v54, 16
    %v163 = vrot.slane %v161, 5
    %v164 = vsel %vm66, %v159, %v163
    %v166 = vshrl.u32 %v23, 16
    %v168 = vrot.slane %v166, 4
    %v169 = vshll.u32 %v23, 16
    %v171 = vrot.slane %v169, 5
    %v172 = vor.u32 %v168, %v171
    %v173 = vrot.slane %v172, 4
    %v175 = vshll.u32 %v55, 16
    %v177 = vrot.slane %v175, 5
    %v178 = vsel %vm66, %v173, %v177
    %v180 = vshrl.u32 %v24, 16
    %v182 = vrot.slane %v180, 4
    %v183 = vshll.u32 %v24, 16
    %v185 = vrot.slane %v183, 5
    %v186 = vor.u32 %v182, %v185
    %v187 = vrot.slane %v186, 4
    %v189 = vshll.u32 %v56, 16
    %v191 = vrot.slane %v189, 5
    %v192 = vsel %vm66, %v187, %v191
    %v194 = vshrl.u32 %v25, 16
    %v196 = vrot.slane %v194, 4
    %v197 = vshll.u32 %v25, 16
    %v199 = vrot.slane %v197, 5
    %v200 = vor.u32 %v196, %v199
    %v201 = vrot.slane %v200, 4
    %v203 = vshll.u32 %v57, 16
    %v205 = vrot.slane %v203, 5
    %v206 = vsel %vm66, %v201, %v205
    %v208 = vshrl.u32 %v26, 16
    %v210 = vrot.slane %v208, 4
    %v211 = vshll.u32 %v26, 16
    %v213 = vrot.slane %v211, 5
    %v214 = vor.u32 %v210, %v213
    %v215 = vrot.slane %v214, 4
    %v217 = vshll.u32 %v58, 16
    %v219 = vrot.slane %v217, 5
    %v220 = vsel %vm66, %v215, %v219
    %v222 = vshrl.u32 %v27, 16
    %v224 = vrot.slane %v222, 4
    %v225 = vshll.u32 %v27, 16
    %v227 = vrot.slane %v225, 5
    %v228 = vor.u32 %v224, %v227
    %v229 = vrot.slane %v228, 4
    %v231 = vshll.u32 %v59, 16
    %v233 = vrot.slane %v231, 5
    %v234 = vsel %vm66, %v229, %v233
    %v236 = vshrl.u32 %v28, 16
    %v238 = vrot.slane %v236, 4
    %v239 = vshll.u32 %v28, 16
    %v241 = vrot.slane %v239, 5
    %v242 = vor.u32 %v238, %v241
    %v243 = vrot.slane %v242, 4
    %v245 = vshll.u32 %v60, 16
    %v247 = vrot.slane %v245, 5
    %v248 = vsel %vm66, %v243, %v247
    %v250 = vshrl.u32 %v29, 16
    %v252 = vrot.slane %v250, 4
    %v253 = vshll.u32 %v29, 16
    %v255 = vrot.slane %v253, 5
    %v256 = vor.u32 %v252, %v255
    %v257 = vrot.slane %v256, 4
    %v259 = vshll.u32 %v61, 16
    %v261 = vrot.slane %v259, 5
    %v262 = vsel %vm66, %v257, %v261
    %v264 = vshrl.u32 %v30, 16
    %v266 = vrot.slane %v264, 4
    %v267 = vshll.u32 %v30, 16
    %v269 = vrot.slane %v267, 5
    %v270 = vor.u32 %v266, %v269
    %v271 = vrot.slane %v270, 4
    %v273 = vshll.u32 %v62, 16
    %v275 = vrot.slane %v273, 5
    %v276 = vsel %vm66, %v271, %v275
    %v278 = vshrl.u32 %v31, 16
    %v280 = vrot.slane %v278, 4
    %v281 = vshll.u32 %v31, 16
    %v283 = vrot.slane %v281, 5
    %v284 = vor.u32 %v280, %v283
    %v285 = vrot.slane %v284, 4
    %v287 = vshll.u32 %v63, 16
    %v289 = vrot.slane %v287, 5
    %v290 = vsel %vm66, %v285, %v289
    %s291 = scalar_lea.vmem %s1, 64
    %v292 = vld [vmem:[%s291] sm:$0xf]
    %v293 = vld [vmem:[%s291 + $0x4] sm:$0xf]
    %v294 = vld [vmem:[%s291 + $0x8] sm:$0xf]
    %v295 = vld [vmem:[%s291 + $0xc] sm:$0xf]
    %v296 = vld [vmem:[%s291 + $0x10] sm:$0xf]
    %v297 = vld [vmem:[%s291 + $0x14] sm:$0xf]
    %v298 = vld [vmem:[%s291 + $0x18] sm:$0xf]
    %v299 = vld [vmem:[%s291 + $0x1c] sm:$0xf]
    %v300 = vld [vmem:[%s291 + $0x20] sm:$0xf]
    %v301 = vld [vmem:[%s291 + $0x24] sm:$0xf]
    %v302 = vld [vmem:[%s291 + $0x28] sm:$0xf]
    %v303 = vld [vmem:[%s291 + $0x2c] sm:$0xf]
    %v304 = vld [vmem:[%s291 + $0x30] sm:$0xf]
    %v305 = vld [vmem:[%s291 + $0x34] sm:$0xf]
    %v306 = vld [vmem:[%s291 + $0x38] sm:$0xf]
    %v307 = vld [vmem:[%s291 + $0x3c] sm:$0xf]
    %v308 = vunpack.c.l.b16 %v80
    %v309 = vunpack.c.l.b16 %v94
    %v310 = vunpack.c.l.b16 %v108
    %v311 = vunpack.c.l.b16 %v122
    %v312 = vunpack.c.l.b16 %v136
    %v313 = vunpack.c.l.b16 %v150
    %v314 = vunpack.c.l.b16 %v164
    %v315 = vunpack.c.l.b16 %v178
    %v316 = vunpack.c.l.b16 %v192
    %v317 = vunpack.c.l.b16 %v206
    %v318 = vunpack.c.l.b16 %v220
    %v319 = vunpack.c.l.b16 %v234
    %v320 = vunpack.c.l.b16 %v248
    %v321 = vunpack.c.l.b16 %v262
    %v322 = vunpack.c.l.b16 %v276
    %v323 = vunpack.c.l.b16 %v290
    %v324 = vpack.c.b16 %v309, %v308
    %v325 = vpack.c.b16 %v311, %v310
    %v326 = vpack.c.b16 %v313, %v312
    %v327 = vpack.c.b16 %v315, %v314
    %v328 = vpack.c.b16 %v317, %v316
    %v329 = vpack.c.b16 %v319, %v318
    %v330 = vpack.c.b16 %v321, %v320
    %v331 = vpack.c.b16 %v323, %v322
    %v356 = vunpack.c.l.b16 %v292
    %v357 = vunpack.c.l.b16 %v293
    %v358 = vunpack.c.l.b16 %v294
    %v359 = vunpack.c.l.b16 %v295
    %v360 = vunpack.c.l.b16 %v296
    %v361 = vunpack.c.l.b16 %v297
    %v362 = vunpack.c.l.b16 %v298
    %v363 = vunpack.c.l.b16 %v299
    %v364 = vunpack.c.l.b16 %v300
    %v365 = vunpack.c.l.b16 %v301
    %v366 = vunpack.c.l.b16 %v302
    %v367 = vunpack.c.l.b16 %v303
    %v368 = vunpack.c.l.b16 %v304
    %v369 = vunpack.c.l.b16 %v305
    %v370 = vunpack.c.l.b16 %v306
    %v371 = vunpack.c.l.b16 %v307
    %v372 = vpack.c.b16 %v357, %v356
    %v373 = vpack.c.b16 %v359, %v358
    %v374 = vpack.c.b16 %v361, %v360
    %v375 = vpack.c.b16 %v363, %v362
    %v376 = vpack.c.b16 %v365, %v364
    %v377 = vpack.c.b16 %v367, %v366
    %v378 = vpack.c.b16 %v369, %v368
    %v379 = vpack.c.b16 %v371, %v370
    %388 = vmatprep.subr.bf16.mxu0 0
    %389 = vmatpush1.bf16.msra.mxu0 %v379
    %390 = vmatprep.subr.bf16.mxu0 0
    %391 = vmatpush1.bf16.msra.mxu0 %v378
    %392 = vmatprep.subr.bf16.mxu0 0
    %393 = vmatpush1.bf16.msra.mxu0 %v377
    %394 = vmatprep.subr.bf16.mxu0 0
    %395 = vmatpush1.bf16.msra.mxu0 %v376
    %396 = vmatprep.subr.bf16.mxu0 0
    %397 = vmatpush1.bf16.msra.mxu0 %v375
    %398 = vmatprep.subr.bf16.mxu0 0
    %399 = vmatpush1.bf16.msra.mxu0 %v374
    %400 = vmatprep.subr.bf16.mxu0 0
    %401 = vmatpush1.bf16.msra.mxu0 %v373
    %402 = vmatprep.subr.bf16.mxu0 0
    %403 = vmatpush1.bf16.msra.mxu0 %v372
    %404 = vmatprep.subr.bf16.mxu0 0
    %405 = vmatpush2.bf16.msra.mxu0 0
    %406 = vmatprep.subr.bf16.mxu0 0
    %407 = vmatpush2.bf16.msra.mxu0 0
    %408 = vmatprep.subr.bf16.mxu0 0
    %409 = vmatpush2.bf16.msra.mxu0 0
    %410 = vmatprep.subr.bf16.mxu0 0
    %411 = vmatpush2.bf16.msra.mxu0 0
    %412 = vmatprep.subr.bf16.mxu0 0
    %413 = vmatpush2.bf16.msra.mxu0 0
    %414 = vmatprep.subr.bf16.mxu0 0
    %415 = vmatpush2.bf16.msra.mxu0 0
    %416 = vmatprep.subr.bf16.mxu0 0
    %417 = vmatpush2.bf16.msra.mxu0 0
    %418 = vmatprep.subr.bf16.mxu0 0
    %419 = vmatpush2.bf16.msra.mxu0 0
    %420 = vmatprep.mubr.bf16.mxu0 0
    %421 = vmatmul.mubr.bf16.gmra.mxu0 %v324
    %v422 = vpop.f32.mrf.mxu0
    %v423 = vadd.f32 0.0, %v422
    %v424 = vpop.f32.mrf.mxu0
    %v425 = vpop.f32.mrf.mxu0
    %v426 = vadd.f32 0.0, %v425
    %v427 = vpop.f32.mrf.mxu0
    %428 = vmatprep.mubr.bf16.mxu0 0
    %429 = vmatmul.mubr.bf16.gmra.mxu0 %v325
    %v430 = vpop.f32.mrf.mxu0
    %v431 = vadd.f32 0.0, %v430
    %v432 = vpop.f32.mrf.mxu0
    %v433 = vpop.f32.mrf.mxu0
    %v434 = vadd.f32 0.0, %v433
    %v435 = vpop.f32.mrf.mxu0
    %436 = vmatprep.mubr.bf16.mxu0 0
    %437 = vmatmul.mubr.bf16.gmra.mxu0 %v326
    %v438 = vpop.f32.mrf.mxu0
    %v439 = vadd.f32 0.0, %v438
    %v440 = vpop.f32.mrf.mxu0
    %v441 = vpop.f32.mrf.mxu0
    %v442 = vadd.f32 0.0, %v441
    %v443 = vpop.f32.mrf.mxu0
    %444 = vmatprep.mubr.bf16.mxu0 0
    %445 = vmatmul.mubr.bf16.gmra.mxu0 %v327
    %v446 = vpop.f32.mrf.mxu0
    %v447 = vadd.f32 0.0, %v446
    %v448 = vpop.f32.mrf.mxu0
    %v449 = vpop.f32.mrf.mxu0
    %v450 = vadd.f32 0.0, %v449
    %v451 = vpop.f32.mrf.mxu0
    %452 = vmatprep.mubr.bf16.mxu0 0
    %453 = vmatmul.mubr.bf16.gmra.mxu0 %v328
    %v454 = vpop.f32.mrf.mxu0
    %v455 = vadd.f32 0.0, %v454
    %v456 = vpop.f32.mrf.mxu0
    %v457 = vpop.f32.mrf.mxu0
    %v458 = vadd.f32 0.0, %v457
    %v459 = vpop.f32.mrf.mxu0
    %460 = vmatprep.mubr.bf16.mxu0 0
    %461 = vmatmul.mubr.bf16.gmra.mxu0 %v329
    %v462 = vpop.f32.mrf.mxu0
    %v463 = vadd.f32 0.0, %v462
    %v464 = vpop.f32.mrf.mxu0
    %v465 = vpop.f32.mrf.mxu0
    %v466 = vadd.f32 0.0, %v465
    %v467 = vpop.f32.mrf.mxu0
    %468 = vmatprep.mubr.bf16.mxu0 0
    %469 = vmatmul.mubr.bf16.gmra.mxu0 %v330
    %v470 = vpop.f32.mrf.mxu0
    %v471 = vadd.f32 0.0, %v470
    %v472 = vpop.f32.mrf.mxu0
    %v473 = vpop.f32.mrf.mxu0
    %v474 = vadd.f32 0.0, %v473
    %v475 = vpop.f32.mrf.mxu0
    %476 = vmatprep.mubr.bf16.mxu0 0
    %477 = vmatmul.mubr.bf16.gmra.mxu0 %v331
    %v478 = vpop.f32.mrf.mxu0
    %v479 = vadd.f32 0.0, %v478
    %v480 = vpop.f32.mrf.mxu0
    %v481 = vpop.f32.mrf.mxu0
    %v482 = vadd.f32 0.0, %v481
    %v483 = vpop.f32.mrf.mxu0
    %484 = vdwg.mxu0
    %v501 = vunpack.c.l.b16 %v16
    %v502 = vunpack.c.l.b16 %v17
    %v503 = vunpack.c.l.b16 %v18
    %v504 = vunpack.c.l.b16 %v19
    %v505 = vunpack.c.l.b16 %v20
    %v506 = vunpack.c.l.b16 %v21
    %v507 = vunpack.c.l.b16 %v22
    %v508 = vunpack.c.l.b16 %v23
    %v509 = vunpack.c.l.b16 %v24
    %v510 = vunpack.c.l.b16 %v25
    %v511 = vunpack.c.l.b16 %v26
    %v512 = vunpack.c.l.b16 %v27
    %v513 = vunpack.c.l.b16 %v28
    %v514 = vunpack.c.l.b16 %v29
    %v515 = vunpack.c.l.b16 %v30
    %v516 = vunpack.c.l.b16 %v31
    %v517 = vpack.c.b16 %v502, %v501
    %v518 = vpack.c.b16 %v504, %v503
    %v519 = vpack.c.b16 %v506, %v505
    %v520 = vpack.c.b16 %v508, %v507
    %v521 = vpack.c.b16 %v510, %v509
    %v522 = vpack.c.b16 %v512, %v511
    %v523 = vpack.c.b16 %v514, %v513
    %v524 = vpack.c.b16 %v516, %v515
    %v549 = vunpack.c.l.b16 %v32
    %v550 = vunpack.c.l.b16 %v33
    %v551 = vunpack.c.l.b16 %v34
    %v552 = vunpack.c.l.b16 %v35
    %v553 = vunpack.c.l.b16 %v36
    %v554 = vunpack.c.l.b16 %v37
    %v555 = vunpack.c.l.b16 %v38
    %v556 = vunpack.c.l.b16 %v39
    %v557 = vunpack.c.l.b16 %v40
    %v558 = vunpack.c.l.b16 %v41
    %v559 = vunpack.c.l.b16 %v42
    %v560 = vunpack.c.l.b16 %v43
    %v561 = vunpack.c.l.b16 %v44
    %v562 = vunpack.c.l.b16 %v45
    %v563 = vunpack.c.l.b16 %v46
    %v564 = vunpack.c.l.b16 %v47
    %v565 = vpack.c.b16 %v550, %v549
    %v566 = vpack.c.b16 %v552, %v551
    %v567 = vpack.c.b16 %v554, %v553
    %v568 = vpack.c.b16 %v556, %v555
    %v569 = vpack.c.b16 %v558, %v557
    %v570 = vpack.c.b16 %v560, %v559
    %v571 = vpack.c.b16 %v562, %v561
    %v572 = vpack.c.b16 %v564, %v563
    %581 = vmatprep.subr.bf16.mxu0 0
    %582 = vmatpush1.bf16.msra.mxu0 %v572
    %583 = vmatprep.subr.bf16.mxu0 0
    %584 = vmatpush1.bf16.msra.mxu0 %v571
    %585 = vmatprep.subr.bf16.mxu0 0
    %586 = vmatpush1.bf16.msra.mxu0 %v570
    %587 = vmatprep.subr.bf16.mxu0 0
    %588 = vmatpush1.bf16.msra.mxu0 %v569
    %589 = vmatprep.subr.bf16.mxu0 0
    %590 = vmatpush1.bf16.msra.mxu0 %v568
    %591 = vmatprep.subr.bf16.mxu0 0
    %592 = vmatpush1.bf16.msra.mxu0 %v567
    %593 = vmatprep.subr.bf16.mxu0 0
    %594 = vmatpush1.bf16.msra.mxu0 %v566
    %595 = vmatprep.subr.bf16.mxu0 0
    %596 = vmatpush1.bf16.msra.mxu0 %v565
    %597 = vmatprep.subr.bf16.mxu0 0
    %598 = vmatpush2.bf16.msra.mxu0 0
    %599 = vmatprep.subr.bf16.mxu0 0
    %600 = vmatpush2.bf16.msra.mxu0 0
    %601 = vmatprep.subr.bf16.mxu0 0
    %602 = vmatpush2.bf16.msra.mxu0 0
    %603 = vmatprep.subr.bf16.mxu0 0
    %604 = vmatpush2.bf16.msra.mxu0 0
    %605 = vmatprep.subr.bf16.mxu0 0
    %606 = vmatpush2.bf16.msra.mxu0 0
    %607 = vmatprep.subr.bf16.mxu0 0
    %608 = vmatpush2.bf16.msra.mxu0 0
    %609 = vmatprep.subr.bf16.mxu0 0
    %610 = vmatpush2.bf16.msra.mxu0 0
    %611 = vmatprep.subr.bf16.mxu0 0
    %612 = vmatpush2.bf16.msra.mxu0 0
    %613 = vmatprep.mubr.bf16.mxu0 0
    %614 = vmatmul.mubr.bf16.gmra.mxu0 %v517
    %v615 = vpop.f32.mrf.mxu0
    %v616 = vadd.f32 %v423, %v615
    %v617 = vpop.f32.mrf.mxu0
    %v618 = vpop.f32.mrf.mxu0
    %v619 = vadd.f32 %v426, %v618
    %v620 = vpop.f32.mrf.mxu0
    %621 = vmatprep.mubr.bf16.mxu0 0
    %622 = vmatmul.mubr.bf16.gmra.mxu0 %v518
    %v623 = vpop.f32.mrf.mxu0
    %v624 = vadd.f32 %v431, %v623
    %v625 = vpop.f32.mrf.mxu0
    %v626 = vpop.f32.mrf.mxu0
    %v627 = vadd.f32 %v434, %v626
    %v628 = vpop.f32.mrf.mxu0
    %629 = vmatprep.mubr.bf16.mxu0 0
    %630 = vmatmul.mubr.bf16.gmra.mxu0 %v519
    %v631 = vpop.f32.mrf.mxu0
    %v632 = vadd.f32 %v439, %v631
    %v633 = vpop.f32.mrf.mxu0
    %v634 = vpop.f32.mrf.mxu0
    %v635 = vadd.f32 %v442, %v634
    %v636 = vpop.f32.mrf.mxu0
    %637 = vmatprep.mubr.bf16.mxu0 0
    %638 = vmatmul.mubr.bf16.gmra.mxu0 %v520
    %v639 = vpop.f32.mrf.mxu0
    %v640 = vadd.f32 %v447, %v639
    %v641 = vpop.f32.mrf.mxu0
    %v642 = vpop.f32.mrf.mxu0
    %v643 = vadd.f32 %v450, %v642
    %v644 = vpop.f32.mrf.mxu0
    %645 = vmatprep.mubr.bf16.mxu0 0
    %646 = vmatmul.mubr.bf16.gmra.mxu0 %v521
    %v647 = vpop.f32.mrf.mxu0
    %v648 = vadd.f32 %v455, %v647
    %v649 = vpop.f32.mrf.mxu0
    %v650 = vpop.f32.mrf.mxu0
    %v651 = vadd.f32 %v458, %v650
    %v652 = vpop.f32.mrf.mxu0
    %653 = vmatprep.mubr.bf16.mxu0 0
    %654 = vmatmul.mubr.bf16.gmra.mxu0 %v522
    %v655 = vpop.f32.mrf.mxu0
    %v656 = vadd.f32 %v463, %v655
    %v657 = vpop.f32.mrf.mxu0
    %v658 = vpop.f32.mrf.mxu0
    %v659 = vadd.f32 %v466, %v658
    %v660 = vpop.f32.mrf.mxu0
    %661 = vmatprep.mubr.bf16.mxu0 0
    %662 = vmatmul.mubr.bf16.gmra.mxu0 %v523
    %v663 = vpop.f32.mrf.mxu0
    %v664 = vadd.f32 %v471, %v663
    %v665 = vpop.f32.mrf.mxu0
    %v666 = vpop.f32.mrf.mxu0
    %v667 = vadd.f32 %v474, %v666
    %v668 = vpop.f32.mrf.mxu0
    %669 = vmatprep.mubr.bf16.mxu0 0
    %670 = vmatmul.mubr.bf16.gmra.mxu0 %v524
    %v671 = vpop.f32.mrf.mxu0
    %v672 = vadd.f32 %v479, %v671
    %v673 = vpop.f32.mrf.mxu0
    %v674 = vpop.f32.mrf.mxu0
    %v675 = vadd.f32 %v482, %v674
    %v676 = vpop.f32.mrf.mxu0
    %677 = vdwg.mxu0
    %v678 = vld [vmem:[%s0] sm:$0xe]
    %v679 = vld [vmem:[%s0 + $0x8] sm:$0xe]
    %v680 = vld [vmem:[%s0 + $0x10] sm:$0xe]
    %v681 = vld [vmem:[%s0 + $0x18] sm:$0xe]
    %v682 = vld [vmem:[%s0 + $0x20] sm:$0xe]
    %v683 = vld [vmem:[%s0 + $0x28] sm:$0xe]
    %v684 = vld [vmem:[%s0 + $0x30] sm:$0xe]
    %v685 = vld [vmem:[%s0 + $0x38] sm:$0xe]
    %v686 = vld [vmem:[%s0 + $0x50] sm:$0xe]
    %v687 = vld [vmem:[%s0 + $0x58] sm:$0xe]
    %v688 = vld [vmem:[%s0 + $0x60] sm:$0xe]
    %v689 = vld [vmem:[%s0 + $0x68] sm:$0xe]
    %v690 = vld [vmem:[%s0 + $0x70] sm:$0xe]
    %v691 = vld [vmem:[%s0 + $0x78] sm:$0xe]
    %v692 = vld [vmem:[%s0 + $0x80] sm:$0xe]
    %v693 = vld [vmem:[%s0 + $0x88] sm:$0xe]
    %vm726 = vcmask 1042432
    %vm727 = vcmask 1046532
    %vm728 = vmor %vm726, %vm727
    %v729 = vrot.slane %v678, 5
    %v730 = vrot.slane %v729, 4
    %v731 = vrot.slane %v48, 5
    %v732 = vsel %vm728, %v730, %v731
    %v733 = vrot.slane %v679, 5
    %v734 = vrot.slane %v733, 4
    %v735 = vrot.slane %v49, 5
    %v736 = vsel %vm728, %v734, %v735
    %v737 = vrot.slane %v680, 5
    %v738 = vrot.slane %v737, 4
    %v739 = vrot.slane %v50, 5
    %v740 = vsel %vm728, %v738, %v739
    %v741 = vrot.slane %v681, 5
    %v742 = vrot.slane %v741, 4
    %v743 = vrot.slane %v51, 5
    %v744 = vsel %vm728, %v742, %v743
    %v745 = vrot.slane %v682, 5
    %v746 = vrot.slane %v745, 4
    %v747 = vrot.slane %v52, 5
    %v748 = vsel %vm728, %v746, %v747
    %v749 = vrot.slane %v683, 5
    %v750 = vrot.slane %v749, 4
    %v751 = vrot.slane %v53, 5
    %v752 = vsel %vm728, %v750, %v751
    %v753 = vrot.slane %v684, 5
    %v754 = vrot.slane %v753, 4
    %v755 = vrot.slane %v54, 5
    %v756 = vsel %vm728, %v754, %v755
    %v757 = vrot.slane %v685, 5
    %v758 = vrot.slane %v757, 4
    %v759 = vrot.slane %v55, 5
    %v760 = vsel %vm728, %v758, %v759
    %v761 = vrot.slane %v686, 5
    %v762 = vrot.slane %v761, 4
    %v763 = vrot.slane %v56, 5
    %v764 = vsel %vm728, %v762, %v763
    %v765 = vrot.slane %v687, 5
    %v766 = vrot.slane %v765, 4
    %v767 = vrot.slane %v57, 5
    %v768 = vsel %vm728, %v766, %v767
    %v769 = vrot.slane %v688, 5
    %v770 = vrot.slane %v769, 4
    %v771 = vrot.slane %v58, 5
    %v772 = vsel %vm728, %v770, %v771
    %v773 = vrot.slane %v689, 5
    %v774 = vrot.slane %v773, 4
    %v775 = vrot.slane %v59, 5
    %v776 = vsel %vm728, %v774, %v775
    %v777 = vrot.slane %v690, 5
    %v778 = vrot.slane %v777, 4
    %v779 = vrot.slane %v60, 5
    %v780 = vsel %vm728, %v778, %v779
    %v781 = vrot.slane %v691, 5
    %v782 = vrot.slane %v781, 4
    %v783 = vrot.slane %v61, 5
    %v784 = vsel %vm728, %v782, %v783
    %v785 = vrot.slane %v692, 5
    %v786 = vrot.slane %v785, 4
    %v787 = vrot.slane %v62, 5
    %v788 = vsel %vm728, %v786, %v787
    %v789 = vrot.slane %v693, 5
    %v790 = vrot.slane %v789, 4
    %v791 = vrot.slane %v63, 5
    %v792 = vsel %vm728, %v790, %v791
    %s793 = scalar_lea.vmem %s1, 128
    %v794 = vld [vmem:[%s793] sm:$0xf]
    %v795 = vld [vmem:[%s793 + $0x4] sm:$0xf]
    %v796 = vld [vmem:[%s793 + $0x8] sm:$0xf]
    %v797 = vld [vmem:[%s793 + $0xc] sm:$0xf]
    %v798 = vld [vmem:[%s793 + $0x10] sm:$0xf]
    %v799 = vld [vmem:[%s793 + $0x14] sm:$0xf]
    %v800 = vld [vmem:[%s793 + $0x18] sm:$0xf]
    %v801 = vld [vmem:[%s793 + $0x1c] sm:$0xf]
    %v802 = vld [vmem:[%s793 + $0x20] sm:$0xf]
    %v803 = vld [vmem:[%s793 + $0x24] sm:$0xf]
    %v804 = vld [vmem:[%s793 + $0x28] sm:$0xf]
    %v805 = vld [vmem:[%s793 + $0x2c] sm:$0xf]
    %v806 = vld [vmem:[%s793 + $0x30] sm:$0xf]
    %v807 = vld [vmem:[%s793 + $0x34] sm:$0xf]
    %v808 = vld [vmem:[%s793 + $0x38] sm:$0xf]
    %v809 = vld [vmem:[%s793 + $0x3c] sm:$0xf]
    %v810 = vunpack.c.l.b16 %v732
    %v811 = vunpack.c.l.b16 %v736
    %v812 = vunpack.c.l.b16 %v740
    %v813 = vunpack.c.l.b16 %v744
    %v814 = vunpack.c.l.b16 %v748
    %v815 = vunpack.c.l.b16 %v752
    %v816 = vunpack.c.l.b16 %v756
    %v817 = vunpack.c.l.b16 %v760
    %v818 = vunpack.c.l.b16 %v764
    %v819 = vunpack.c.l.b16 %v768
    %v820 = vunpack.c.l.b16 %v772
    %v821 = vunpack.c.l.b16 %v776
    %v822 = vunpack.c.l.b16 %v780
    %v823 = vunpack.c.l.b16 %v784
    %v824 = vunpack.c.l.b16 %v788
    %v825 = vunpack.c.l.b16 %v792
    %v826 = vpack.c.b16 %v811, %v810
    %v827 = vpack.c.b16 %v813, %v812
    %v828 = vpack.c.b16 %v815, %v814
    %v829 = vpack.c.b16 %v817, %v816
    %v830 = vpack.c.b16 %v819, %v818
    %v831 = vpack.c.b16 %v821, %v820
    %v832 = vpack.c.b16 %v823, %v822
    %v833 = vpack.c.b16 %v825, %v824
    %v858 = vunpack.c.l.b16 %v794
    %v859 = vunpack.c.l.b16 %v795
    %v860 = vunpack.c.l.b16 %v796
    %v861 = vunpack.c.l.b16 %v797
    %v862 = vunpack.c.l.b16 %v798
    %v863 = vunpack.c.l.b16 %v799
    %v864 = vunpack.c.l.b16 %v800
    %v865 = vunpack.c.l.b16 %v801
    %v866 = vunpack.c.l.b16 %v802
    %v867 = vunpack.c.l.b16 %v803
    %v868 = vunpack.c.l.b16 %v804
    %v869 = vunpack.c.l.b16 %v805
    %v870 = vunpack.c.l.b16 %v806
    %v871 = vunpack.c.l.b16 %v807
    %v872 = vunpack.c.l.b16 %v808
    %v873 = vunpack.c.l.b16 %v809
    %v874 = vpack.c.b16 %v859, %v858
    %v875 = vpack.c.b16 %v861, %v860
    %v876 = vpack.c.b16 %v863, %v862
    %v877 = vpack.c.b16 %v865, %v864
    %v878 = vpack.c.b16 %v867, %v866
    %v879 = vpack.c.b16 %v869, %v868
    %v880 = vpack.c.b16 %v871, %v870
    %v881 = vpack.c.b16 %v873, %v872
    %890 = vmatprep.subr.bf16.mxu0 0
    %891 = vmatpush1.bf16.msra.mxu0 %v881
    %892 = vmatprep.subr.bf16.mxu0 0
    %893 = vmatpush1.bf16.msra.mxu0 %v880
    %894 = vmatprep.subr.bf16.mxu0 0
    %895 = vmatpush1.bf16.msra.mxu0 %v879
    %896 = vmatprep.subr.bf16.mxu0 0
    %897 = vmatpush1.bf16.msra.mxu0 %v878
    %898 = vmatprep.subr.bf16.mxu0 0
    %899 = vmatpush1.bf16.msra.mxu0 %v877
    %900 = vmatprep.subr.bf16.mxu0 0
    %901 = vmatpush1.bf16.msra.mxu0 %v876
    %902 = vmatprep.subr.bf16.mxu0 0
    %903 = vmatpush1.bf16.msra.mxu0 %v875
    %904 = vmatprep.subr.bf16.mxu0 0
    %905 = vmatpush1.bf16.msra.mxu0 %v874
    %906 = vmatprep.subr.bf16.mxu0 0
    %907 = vmatpush2.bf16.msra.mxu0 0
    %908 = vmatprep.subr.bf16.mxu0 0
    %909 = vmatpush2.bf16.msra.mxu0 0
    %910 = vmatprep.subr.bf16.mxu0 0
    %911 = vmatpush2.bf16.msra.mxu0 0
    %912 = vmatprep.subr.bf16.mxu0 0
    %913 = vmatpush2.bf16.msra.mxu0 0
    %914 = vmatprep.subr.bf16.mxu0 0
    %915 = vmatpush2.bf16.msra.mxu0 0
    %916 = vmatprep.subr.bf16.mxu0 0
    %917 = vmatpush2.bf16.msra.mxu0 0
    %918 = vmatprep.subr.bf16.mxu0 0
    %919 = vmatpush2.bf16.msra.mxu0 0
    %920 = vmatprep.subr.bf16.mxu0 0
    %921 = vmatpush2.bf16.msra.mxu0 0
    %922 = vmatprep.mubr.bf16.mxu0 0
    %923 = vmatmul.mubr.bf16.gmra.mxu0 %v826
    %v924 = vpop.f32.mrf.mxu0
    %v925 = vadd.f32 0.0, %v924
    %v926 = vpop.f32.mrf.mxu0
    %v927 = vpop.f32.mrf.mxu0
    %v928 = vadd.f32 0.0, %v927
    %v929 = vpop.f32.mrf.mxu0
    %930 = vmatprep.mubr.bf16.mxu0 0
    %931 = vmatmul.mubr.bf16.gmra.mxu0 %v827
    %v932 = vpop.f32.mrf.mxu0
    %v933 = vadd.f32 0.0, %v932
    %v934 = vpop.f32.mrf.mxu0
    %v935 = vpop.f32.mrf.mxu0
    %v936 = vadd.f32 0.0, %v935
    %v937 = vpop.f32.mrf.mxu0
    %938 = vmatprep.mubr.bf16.mxu0 0
    %939 = vmatmul.mubr.bf16.gmra.mxu0 %v828
    %v940 = vpop.f32.mrf.mxu0
    %v941 = vadd.f32 0.0, %v940
    %v942 = vpop.f32.mrf.mxu0
    %v943 = vpop.f32.mrf.mxu0
    %v944 = vadd.f32 0.0, %v943
    %v945 = vpop.f32.mrf.mxu0
    %946 = vmatprep.mubr.bf16.mxu0 0
    %947 = vmatmul.mubr.bf16.gmra.mxu0 %v829
    %v948 = vpop.f32.mrf.mxu0
    %v949 = vadd.f32 0.0, %v948
    %v950 = vpop.f32.mrf.mxu0
    %v951 = vpop.f32.mrf.mxu0
    %v952 = vadd.f32 0.0, %v951
    %v953 = vpop.f32.mrf.mxu0
    %954 = vmatprep.mubr.bf16.mxu0 0
    %955 = vmatmul.mubr.bf16.gmra.mxu0 %v830
    %v956 = vpop.f32.mrf.mxu0
    %v957 = vadd.f32 0.0, %v956
    %v958 = vpop.f32.mrf.mxu0
    %v959 = vpop.f32.mrf.mxu0
    %v960 = vadd.f32 0.0, %v959
    %v961 = vpop.f32.mrf.mxu0
    %962 = vmatprep.mubr.bf16.mxu0 0
    %963 = vmatmul.mubr.bf16.gmra.mxu0 %v831
    %v964 = vpop.f32.mrf.mxu0
    %v965 = vadd.f32 0.0, %v964
    %v966 = vpop.f32.mrf.mxu0
    %v967 = vpop.f32.mrf.mxu0
    %v968 = vadd.f32 0.0, %v967
    %v969 = vpop.f32.mrf.mxu0
    %970 = vmatprep.mubr.bf16.mxu0 0
    %971 = vmatmul.mubr.bf16.gmra.mxu0 %v832
    %v972 = vpop.f32.mrf.mxu0
    %v973 = vadd.f32 0.0, %v972
    %v974 = vpop.f32.mrf.mxu0
    %v975 = vpop.f32.mrf.mxu0
    %v976 = vadd.f32 0.0, %v975
    %v977 = vpop.f32.mrf.mxu0
    %978 = vmatprep.mubr.bf16.mxu0 0
    %979 = vmatmul.mubr.bf16.gmra.mxu0 %v833
    %v980 = vpop.f32.mrf.mxu0
    %v981 = vadd.f32 0.0, %v980
    %v982 = vpop.f32.mrf.mxu0
    %v983 = vpop.f32.mrf.mxu0
    %v984 = vadd.f32 0.0, %v983
    %v985 = vpop.f32.mrf.mxu0
    %986 = vdwg.mxu0
    %v987 = vadd.f32 %v616, %v925
    %v988 = vadd.f32 %v619, %v928
    %v989 = vadd.f32 %v624, %v933
    %v990 = vadd.f32 %v627, %v936
    %v991 = vadd.f32 %v632, %v941
    %v992 = vadd.f32 %v635, %v944
    %v993 = vadd.f32 %v640, %v949
    %v994 = vadd.f32 %v643, %v952
    %v995 = vadd.f32 %v648, %v957
    %v996 = vadd.f32 %v651, %v960
    %v997 = vadd.f32 %v656, %v965
    %v998 = vadd.f32 %v659, %v968
    %v999 = vadd.f32 %v664, %v973
    %v1000 = vadd.f32 %v667, %v976
    %v1001 = vadd.f32 %v672, %v981
    %v1002 = vadd.f32 %v675, %v984
    %s1003 = scalar_lea.vmem %s0, 8
    %v1004 = vld [vmem:[%s1003] sm:$0xf]
    %v1005 = vld [vmem:[%s1003 + $0x8] sm:$0xf]
    %v1006 = vld [vmem:[%s1003 + $0x10] sm:$0xf]
    %v1007 = vld [vmem:[%s1003 + $0x18] sm:$0xf]
    %v1008 = vld [vmem:[%s1003 + $0x20] sm:$0xf]
    %v1009 = vld [vmem:[%s1003 + $0x28] sm:$0xf]
    %v1010 = vld [vmem:[%s1003 + $0x30] sm:$0xf]
    %v1011 = vld [vmem:[%s1003 + $0x38] sm:$0xf]
    %v1012 = vld [vmem:[%s1003 + $0x50] sm:$0xf]
    %v1013 = vld [vmem:[%s1003 + $0x58] sm:$0xf]
    %v1014 = vld [vmem:[%s1003 + $0x60] sm:$0xf]
    %v1015 = vld [vmem:[%s1003 + $0x68] sm:$0xf]
    %v1016 = vld [vmem:[%s1003 + $0x70] sm:$0xf]
    %v1017 = vld [vmem:[%s1003 + $0x78] sm:$0xf]
    %v1018 = vld [vmem:[%s1003 + $0x80] sm:$0xf]
    %v1019 = vld [vmem:[%s1003 + $0x88] sm:$0xf]
    %s1020 = scalar_lea.vmem %s1, 192
    %v1021 = vld [vmem:[%s1020] sm:$0xf]
    %v1022 = vld [vmem:[%s1020 + $0x4] sm:$0xf]
    %v1023 = vld [vmem:[%s1020 + $0x8] sm:$0xf]
    %v1024 = vld [vmem:[%s1020 + $0xc] sm:$0xf]
    %v1025 = vld [vmem:[%s1020 + $0x10] sm:$0xf]
    %v1026 = vld [vmem:[%s1020 + $0x14] sm:$0xf]
    %v1027 = vld [vmem:[%s1020 + $0x18] sm:$0xf]
    %v1028 = vld [vmem:[%s1020 + $0x1c] sm:$0xf]
    %v1029 = vld [vmem:[%s1020 + $0x20] sm:$0xf]
    %v1030 = vld [vmem:[%s1020 + $0x24] sm:$0xf]
    %v1031 = vld [vmem:[%s1020 + $0x28] sm:$0xf]
    %v1032 = vld [vmem:[%s1020 + $0x2c] sm:$0xf]
    %v1033 = vld [vmem:[%s1020 + $0x30] sm:$0xf]
    %v1034 = vld [vmem:[%s1020 + $0x34] sm:$0xf]
    %v1035 = vld [vmem:[%s1020 + $0x38] sm:$0xf]
    %v1036 = vld [vmem:[%s1020 + $0x3c] sm:$0xf]
    %v1053 = vunpack.c.l.b16 %v1004
    %v1054 = vunpack.c.l.b16 %v1005
    %v1055 = vunpack.c.l.b16 %v1006
    %v1056 = vunpack.c.l.b16 %v1007
    %v1057 = vunpack.c.l.b16 %v1008
    %v1058 = vunpack.c.l.b16 %v1009
    %v1059 = vunpack.c.l.b16 %v1010
    %v1060 = vunpack.c.l.b16 %v1011
    %v1061 = vunpack.c.l.b16 %v1012
    %v1062 = vunpack.c.l.b16 %v1013
    %v1063 = vunpack.c.l.b16 %v1014
    %v1064 = vunpack.c.l.b16 %v1015
    %v1065 = vunpack.c.l.b16 %v1016
    %v1066 = vunpack.c.l.b16 %v1017
    %v1067 = vunpack.c.l.b16 %v1018
    %v1068 = vunpack.c.l.b16 %v1019
    %v1069 = vpack.c.b16 %v1054, %v1053
    %v1070 = vpack.c.b16 %v1056, %v1055
    %v1071 = vpack.c.b16 %v1058, %v1057
    %v1072 = vpack.c.b16 %v1060, %v1059
    %v1073 = vpack.c.b16 %v1062, %v1061
    %v1074 = vpack.c.b16 %v1064, %v1063
    %v1075 = vpack.c.b16 %v1066, %v1065
    %v1076 = vpack.c.b16 %v1068, %v1067
    %v1101 = vunpack.c.l.b16 %v1021
    %v1102 = vunpack.c.l.b16 %v1022
    %v1103 = vunpack.c.l.b16 %v1023
    %v1104 = vunpack.c.l.b16 %v1024
    %v1105 = vunpack.c.l.b16 %v1025
    %v1106 = vunpack.c.l.b16 %v1026
    %v1107 = vunpack.c.l.b16 %v1027
    %v1108 = vunpack.c.l.b16 %v1028
    %v1109 = vunpack.c.l.b16 %v1029
    %v1110 = vunpack.c.l.b16 %v1030
    %v1111 = vunpack.c.l.b16 %v1031
    %v1112 = vunpack.c.l.b16 %v1032
    %v1113 = vunpack.c.l.b16 %v1033
    %v1114 = vunpack.c.l.b16 %v1034
    %v1115 = vunpack.c.l.b16 %v1035
    %v1116 = vunpack.c.l.b16 %v1036
    %v1117 = vpack.c.b16 %v1102, %v1101
    %v1118 = vpack.c.b16 %v1104, %v1103
    %v1119 = vpack.c.b16 %v1106, %v1105
    %v1120 = vpack.c.b16 %v1108, %v1107
    %v1121 = vpack.c.b16 %v1110, %v1109
    %v1122 = vpack.c.b16 %v1112, %v1111
    %v1123 = vpack.c.b16 %v1114, %v1113
    %v1124 = vpack.c.b16 %v1116, %v1115
    %1133 = vmatprep.subr.bf16.mxu0 0
    %1134 = vmatpush1.bf16.msra.mxu0 %v1124
    %1135 = vmatprep.subr.bf16.mxu0 0
    %1136 = vmatpush1.bf16.msra.mxu0 %v1123
    %1137 = vmatprep.subr.bf16.mxu0 0
    %1138 = vmatpush1.bf16.msra.mxu0 %v1122
    %1139 = vmatprep.subr.bf16.mxu0 0
    %1140 = vmatpush1.bf16.msra.mxu0 %v1121
    %1141 = vmatprep.subr.bf16.mxu0 0
    %1142 = vmatpush1.bf16.msra.mxu0 %v1120
    %1143 = vmatprep.subr.bf16.mxu0 0
    %1144 = vmatpush1.bf16.msra.mxu0 %v1119
    %1145 = vmatprep.subr.bf16.mxu0 0
    %1146 = vmatpush1.bf16.msra.mxu0 %v1118
    %1147 = vmatprep.subr.bf16.mxu0 0
    %1148 = vmatpush1.bf16.msra.mxu0 %v1117
    %1149 = vmatprep.subr.bf16.mxu0 0
    %1150 = vmatpush2.bf16.msra.mxu0 0
    %1151 = vmatprep.subr.bf16.mxu0 0
    %1152 = vmatpush2.bf16.msra.mxu0 0
    %1153 = vmatprep.subr.bf16.mxu0 0
    %1154 = vmatpush2.bf16.msra.mxu0 0
    %1155 = vmatprep.subr.bf16.mxu0 0
    %1156 = vmatpush2.bf16.msra.mxu0 0
    %1157 = vmatprep.subr.bf16.mxu0 0
    %1158 = vmatpush2.bf16.msra.mxu0 0
    %1159 = vmatprep.subr.bf16.mxu0 0
    %1160 = vmatpush2.bf16.msra.mxu0 0
    %1161 = vmatprep.subr.bf16.mxu0 0
    %1162 = vmatpush2.bf16.msra.mxu0 0
    %1163 = vmatprep.subr.bf16.mxu0 0
    %1164 = vmatpush2.bf16.msra.mxu0 0
    %1165 = vmatprep.mubr.bf16.mxu0 0
    %1166 = vmatmul.mubr.bf16.gmra.mxu0 %v1069
    %v1167 = vpop.f32.mrf.mxu0
    %v1168 = vadd.f32 0.0, %v1167
    %v1169 = vpop.f32.mrf.mxu0
    %v1170 = vpop.f32.mrf.mxu0
    %v1171 = vadd.f32 0.0, %v1170
    %v1172 = vpop.f32.mrf.mxu0
    %1173 = vmatprep.mubr.bf16.mxu0 0
    %1174 = vmatmul.mubr.bf16.gmra.mxu0 %v1070
    %v1175 = vpop.f32.mrf.mxu0
    %v1176 = vadd.f32 0.0, %v1175
    %v1177 = vpop.f32.mrf.mxu0
    %v1178 = vpop.f32.mrf.mxu0
    %v1179 = vadd.f32 0.0, %v1178
    %v1180 = vpop.f32.mrf.mxu0
    %1181 = vmatprep.mubr.bf16.mxu0 0
    %1182 = vmatmul.mubr.bf16.gmra.mxu0 %v1071
    %v1183 = vpop.f32.mrf.mxu0
    %v1184 = vadd.f32 0.0, %v1183
    %v1185 = vpop.f32.mrf.mxu0
    %v1186 = vpop.f32.mrf.mxu0
    %v1187 = vadd.f32 0.0, %v1186
    %v1188 = vpop.f32.mrf.mxu0
    %1189 = vmatprep.mubr.bf16.mxu0 0
    %1190 = vmatmul.mubr.bf16.gmra.mxu0 %v1072
    %v1191 = vpop.f32.mrf.mxu0
    %v1192 = vadd.f32 0.0, %v1191
    %v1193 = vpop.f32.mrf.mxu0
    %v1194 = vpop.f32.mrf.mxu0
    %v1195 = vadd.f32 0.0, %v1194
    %v1196 = vpop.f32.mrf.mxu0
    %1197 = vmatprep.mubr.bf16.mxu0 0
    %1198 = vmatmul.mubr.bf16.gmra.mxu0 %v1073
    %v1199 = vpop.f32.mrf.mxu0
    %v1200 = vadd.f32 0.0, %v1199
    %v1201 = vpop.f32.mrf.mxu0
    %v1202 = vpop.f32.mrf.mxu0
    %v1203 = vadd.f32 0.0, %v1202
    %v1204 = vpop.f32.mrf.mxu0
    %1205 = vmatprep.mubr.bf16.mxu0 0
    %1206 = vmatmul.mubr.bf16.gmra.mxu0 %v1074
    %v1207 = vpop.f32.mrf.mxu0
    %v1208 = vadd.f32 0.0, %v1207
    %v1209 = vpop.f32.mrf.mxu0
    %v1210 = vpop.f32.mrf.mxu0
    %v1211 = vadd.f32 0.0, %v1210
    %v1212 = vpop.f32.mrf.mxu0
    %1213 = vmatprep.mubr.bf16.mxu0 0
    %1214 = vmatmul.mubr.bf16.gmra.mxu0 %v1075
    %v1215 = vpop.f32.mrf.mxu0
    %v1216 = vadd.f32 0.0, %v1215
    %v1217 = vpop.f32.mrf.mxu0
    %v1218 = vpop.f32.mrf.mxu0
    %v1219 = vadd.f32 0.0, %v1218
    %v1220 = vpop.f32.mrf.mxu0
    %1221 = vmatprep.mubr.bf16.mxu0 0
    %1222 = vmatmul.mubr.bf16.gmra.mxu0 %v1076
    %v1223 = vpop.f32.mrf.mxu0
    %v1224 = vadd.f32 0.0, %v1223
    %v1225 = vpop.f32.mrf.mxu0
    %v1226 = vpop.f32.mrf.mxu0
    %v1227 = vadd.f32 0.0, %v1226
    %v1228 = vpop.f32.mrf.mxu0
    %1229 = vdwg.mxu0
    %v1230 = vadd.f32 %v987, %v1168
    %v1231 = vadd.f32 %v988, %v1171
    %v1232 = vadd.f32 %v989, %v1176
    %v1233 = vadd.f32 %v990, %v1179
    %v1234 = vadd.f32 %v991, %v1184
    %v1235 = vadd.f32 %v992, %v1187
    %v1236 = vadd.f32 %v993, %v1192
    %v1237 = vadd.f32 %v994, %v1195
    %v1238 = vadd.f32 %v995, %v1200
    %v1239 = vadd.f32 %v996, %v1203
    %v1240 = vadd.f32 %v997, %v1208
    %v1241 = vadd.f32 %v998, %v1211
    %v1242 = vadd.f32 %v999, %v1216
    %v1243 = vadd.f32 %v1000, %v1219
    %v1244 = vadd.f32 %v1001, %v1224
    %v1245 = vadd.f32 %v1002, %v1227
    %v1246 = vld [vmem:[%s1003] sm:$0xf]
    %v1247 = vld [vmem:[%s1003 + $0x4] sm:$0x1]
    %v1248 = vld [vmem:[%s1003 + $0x8] sm:$0xf]
    %v1249 = vld [vmem:[%s1003 + $0xc] sm:$0x1]
    %v1250 = vld [vmem:[%s1003 + $0x10] sm:$0xf]
    %v1251 = vld [vmem:[%s1003 + $0x14] sm:$0x1]
    %v1252 = vld [vmem:[%s1003 + $0x18] sm:$0xf]
    %v1253 = vld [vmem:[%s1003 + $0x1c] sm:$0x1]
    %v1254 = vld [vmem:[%s1003 + $0x20] sm:$0xf]
    %v1255 = vld [vmem:[%s1003 + $0x24] sm:$0x1]
    %v1256 = vld [vmem:[%s1003 + $0x28] sm:$0xf]
    %v1257 = vld [vmem:[%s1003 + $0x2c] sm:$0x1]
    %v1258 = vld [vmem:[%s1003 + $0x30] sm:$0xf]
    %v1259 = vld [vmem:[%s1003 + $0x34] sm:$0x1]
    %v1260 = vld [vmem:[%s1003 + $0x38] sm:$0xf]
    %v1261 = vld [vmem:[%s1003 + $0x3c] sm:$0x1]
    %v1262 = vld [vmem:[%s1003 + $0x50] sm:$0xf]
    %v1263 = vld [vmem:[%s1003 + $0x54] sm:$0x1]
    %v1264 = vld [vmem:[%s1003 + $0x58] sm:$0xf]
    %v1265 = vld [vmem:[%s1003 + $0x5c] sm:$0x1]
    %v1266 = vld [vmem:[%s1003 + $0x60] sm:$0xf]
    %v1267 = vld [vmem:[%s1003 + $0x64] sm:$0x1]
    %v1268 = vld [vmem:[%s1003 + $0x68] sm:$0xf]
    %v1269 = vld [vmem:[%s1003 + $0x6c] sm:$0x1]
    %v1270 = vld [vmem:[%s1003 + $0x70] sm:$0xf]
    %v1271 = vld [vmem:[%s1003 + $0x74] sm:$0x1]
    %v1272 = vld [vmem:[%s1003 + $0x78] sm:$0xf]
    %v1273 = vld [vmem:[%s1003 + $0x7c] sm:$0x1]
    %v1274 = vld [vmem:[%s1003 + $0x80] sm:$0xf]
    %v1275 = vld [vmem:[%s1003 + $0x84] sm:$0x1]
    %v1276 = vld [vmem:[%s1003 + $0x88] sm:$0xf]
    %v1277 = vld [vmem:[%s1003 + $0x8c] sm:$0x1]
    %v1279 = vshrl.u32 %v1246, 16
    %v1281 = vrot.slane %v1279, 4
    %v1282 = vshll.u32 %v1246, 16
    %v1284 = vrot.slane %v1282, 5
    %v1285 = vor.u32 %v1281, %v1284
    %v1286 = vrot.slane %v1285, 4
    %v1288 = vshll.u32 %v1247, 16
    %v1290 = vrot.slane %v1288, 5
    %v1291 = vsel %vm66, %v1286, %v1290
    %v1293 = vshrl.u32 %v1248, 16
    %v1295 = vrot.slane %v1293, 4
    %v1296 = vshll.u32 %v1248, 16
    %v1298 = vrot.slane %v1296, 5
    %v1299 = vor.u32 %v1295, %v1298
    %v1300 = vrot.slane %v1299, 4
    %v1302 = vshll.u32 %v1249, 16
    %v1304 = vrot.slane %v1302, 5
    %v1305 = vsel %vm66, %v1300, %v1304
    %v1307 = vshrl.u32 %v1250, 16
    %v1309 = vrot.slane %v1307, 4
    %v1310 = vshll.u32 %v1250, 16
    %v1312 = vrot.slane %v1310, 5
    %v1313 = vor.u32 %v1309, %v1312
    %v1314 = vrot.slane %v1313, 4
    %v1316 = vshll.u32 %v1251, 16
    %v1318 = vrot.slane %v1316, 5
    %v1319 = vsel %vm66, %v1314, %v1318
    %v1321 = vshrl.u32 %v1252, 16
    %v1323 = vrot.slane %v1321, 4
    %v1324 = vshll.u32 %v1252, 16
    %v1326 = vrot.slane %v1324, 5
    %v1327 = vor.u32 %v1323, %v1326
    %v1328 = vrot.slane %v1327, 4
    %v1330 = vshll.u32 %v1253, 16
    %v1332 = vrot.slane %v1330, 5
    %v1333 = vsel %vm66, %v1328, %v1332
    %v1335 = vshrl.u32 %v1254, 16
    %v1337 = vrot.slane %v1335, 4
    %v1338 = vshll.u32 %v1254, 16
    %v1340 = vrot.slane %v1338, 5
    %v1341 = vor.u32 %v1337, %v1340
    %v1342 = vrot.slane %v1341, 4
    %v1344 = vshll.u32 %v1255, 16
    %v1346 = vrot.slane %v1344, 5
    %v1347 = vsel %vm66, %v1342, %v1346
    %v1349 = vshrl.u32 %v1256, 16
    %v1351 = vrot.slane %v1349, 4
    %v1352 = vshll.u32 %v1256, 16
    %v1354 = vrot.slane %v1352, 5
    %v1355 = vor.u32 %v1351, %v1354
    %v1356 = vrot.slane %v1355, 4
    %v1358 = vshll.u32 %v1257, 16
    %v1360 = vrot.slane %v1358, 5
    %v1361 = vsel %vm66, %v1356, %v1360
    %v1363 = vshrl.u32 %v1258, 16
    %v1365 = vrot.slane %v1363, 4
    %v1366 = vshll.u32 %v1258, 16
    %v1368 = vrot.slane %v1366, 5
    %v1369 = vor.u32 %v1365, %v1368
    %v1370 = vrot.slane %v1369, 4
    %v1372 = vshll.u32 %v1259, 16
    %v1374 = vrot.slane %v1372, 5
    %v1375 = vsel %vm66, %v1370, %v1374
    %v1377 = vshrl.u32 %v1260, 16
    %v1379 = vrot.slane %v1377, 4
    %v1380 = vshll.u32 %v1260, 16
    %v1382 = vrot.slane %v1380, 5
    %v1383 = vor.u32 %v1379, %v1382
    %v1384 = vrot.slane %v1383, 4
    %v1386 = vshll.u32 %v1261, 16
    %v1388 = vrot.slane %v1386, 5
    %v1389 = vsel %vm66, %v1384, %v1388
    %v1391 = vshrl.u32 %v1262, 16
    %v1393 = vrot.slane %v1391, 4
    %v1394 = vshll.u32 %v1262, 16
    %v1396 = vrot.slane %v1394, 5
    %v1397 = vor.u32 %v1393, %v1396
    %v1398 = vrot.slane %v1397, 4
    %v1400 = vshll.u32 %v1263, 16
    %v1402 = vrot.slane %v1400, 5
    %v1403 = vsel %vm66, %v1398, %v1402
    %v1405 = vshrl.u32 %v1264, 16
    %v1407 = vrot.slane %v1405, 4
    %v1408 = vshll.u32 %v1264, 16
    %v1410 = vrot.slane %v1408, 5
    %v1411 = vor.u32 %v1407, %v1410
    %v1412 = vrot.slane %v1411, 4
    %v1414 = vshll.u32 %v1265, 16
    %v1416 = vrot.slane %v1414, 5
    %v1417 = vsel %vm66, %v1412, %v1416
    %v1419 = vshrl.u32 %v1266, 16
    %v1421 = vrot.slane %v1419, 4
    %v1422 = vshll.u32 %v1266, 16
    %v1424 = vrot.slane %v1422, 5
    %v1425 = vor.u32 %v1421, %v1424
    %v1426 = vrot.slane %v1425, 4
    %v1428 = vshll.u32 %v1267, 16
    %v1430 = vrot.slane %v1428, 5
    %v1431 = vsel %vm66, %v1426, %v1430
    %v1433 = vshrl.u32 %v1268, 16
    %v1435 = vrot.slane %v1433, 4
    %v1436 = vshll.u32 %v1268, 16
    %v1438 = vrot.slane %v1436, 5
    %v1439 = vor.u32 %v1435, %v1438
    %v1440 = vrot.slane %v1439, 4
    %v1442 = vshll.u32 %v1269, 16
    %v1444 = vrot.slane %v1442, 5
    %v1445 = vsel %vm66, %v1440, %v1444
    %v1447 = vshrl.u32 %v1270, 16
    %v1449 = vrot.slane %v1447, 4
    %v1450 = vshll.u32 %v1270, 16
    %v1452 = vrot.slane %v1450, 5
    %v1453 = vor.u32 %v1449, %v1452
    %v1454 = vrot.slane %v1453, 4
    %v1456 = vshll.u32 %v1271, 16
    %v1458 = vrot.slane %v1456, 5
    %v1459 = vsel %vm66, %v1454, %v1458
    %v1461 = vshrl.u32 %v1272, 16
    %v1463 = vrot.slane %v1461, 4
    %v1464 = vshll.u32 %v1272, 16
    %v1466 = vrot.slane %v1464, 5
    %v1467 = vor.u32 %v1463, %v1466
    %v1468 = vrot.slane %v1467, 4
    %v1470 = vshll.u32 %v1273, 16
    %v1472 = vrot.slane %v1470, 5
    %v1473 = vsel %vm66, %v1468, %v1472
    %v1475 = vshrl.u32 %v1274, 16
    %v1477 = vrot.slane %v1475, 4
    %v1478 = vshll.u32 %v1274, 16
    %v1480 = vrot.slane %v1478, 5
    %v1481 = vor.u32 %v1477, %v1480
    %v1482 = vrot.slane %v1481, 4
    %v1484 = vshll.u32 %v1275, 16
    %v1486 = vrot.slane %v1484, 5
    %v1487 = vsel %vm66, %v1482, %v1486
    %v1489 = vshrl.u32 %v1276, 16
    %v1491 = vrot.slane %v1489, 4
    %v1492 = vshll.u32 %v1276, 16
    %v1494 = vrot.slane %v1492, 5
    %v1495 = vor.u32 %v1491, %v1494
    %v1496 = vrot.slane %v1495, 4
    %v1498 = vshll.u32 %v1277, 16
    %v1500 = vrot.slane %v1498, 5
    %v1501 = vsel %vm66, %v1496, %v1500
    %s1502 = scalar_lea.vmem %s1, 256
    %v1503 = vld [vmem:[%s1502] sm:$0xf]
    %v1504 = vld [vmem:[%s1502 + $0x4] sm:$0xf]
    %v1505 = vld [vmem:[%s1502 + $0x8] sm:$0xf]
    %v1506 = vld [vmem:[%s1502 + $0xc] sm:$0xf]
    %v1507 = vld [vmem:[%s1502 + $0x10] sm:$0xf]
    %v1508 = vld [vmem:[%s1502 + $0x14] sm:$0xf]
    %v1509 = vld [vmem:[%s1502 + $0x18] sm:$0xf]
    %v1510 = vld [vmem:[%s1502 + $0x1c] sm:$0xf]
    %v1511 = vld [vmem:[%s1502 + $0x20] sm:$0xf]
    %v1512 = vld [vmem:[%s1502 + $0x24] sm:$0xf]
    %v1513 = vld [vmem:[%s1502 + $0x28] sm:$0xf]
    %v1514 = vld [vmem:[%s1502 + $0x2c] sm:$0xf]
    %v1515 = vld [vmem:[%s1502 + $0x30] sm:$0xf]
    %v1516 = vld [vmem:[%s1502 + $0x34] sm:$0xf]
    %v1517 = vld [vmem:[%s1502 + $0x38] sm:$0xf]
    %v1518 = vld [vmem:[%s1502 + $0x3c] sm:$0xf]
    %v1519 = vunpack.c.l.b16 %v1291
    %v1520 = vunpack.c.l.b16 %v1305
    %v1521 = vunpack.c.l.b16 %v1319
    %v1522 = vunpack.c.l.b16 %v1333
    %v1523 = vunpack.c.l.b16 %v1347
    %v1524 = vunpack.c.l.b16 %v1361
    %v1525 = vunpack.c.l.b16 %v1375
    %v1526 = vunpack.c.l.b16 %v1389
    %v1527 = vunpack.c.l.b16 %v1403
    %v1528 = vunpack.c.l.b16 %v1417
    %v1529 = vunpack.c.l.b16 %v1431
    %v1530 = vunpack.c.l.b16 %v1445
    %v1531 = vunpack.c.l.b16 %v1459
    %v1532 = vunpack.c.l.b16 %v1473
    %v1533 = vunpack.c.l.b16 %v1487
    %v1534 = vunpack.c.l.b16 %v1501
    %v1535 = vpack.c.b16 %v1520, %v1519
    %v1536 = vpack.c.b16 %v1522, %v1521
    %v1537 = vpack.c.b16 %v1524, %v1523
    %v1538 = vpack.c.b16 %v1526, %v1525
    %v1539 = vpack.c.b16 %v1528, %v1527
    %v1540 = vpack.c.b16 %v1530, %v1529
    %v1541 = vpack.c.b16 %v1532, %v1531
    %v1542 = vpack.c.b16 %v1534, %v1533
    %v1567 = vunpack.c.l.b16 %v1503
    %v1568 = vunpack.c.l.b16 %v1504
    %v1569 = vunpack.c.l.b16 %v1505
    %v1570 = vunpack.c.l.b16 %v1506
    %v1571 = vunpack.c.l.b16 %v1507
    %v1572 = vunpack.c.l.b16 %v1508
    %v1573 = vunpack.c.l.b16 %v1509
    %v1574 = vunpack.c.l.b16 %v1510
    %v1575 = vunpack.c.l.b16 %v1511
    %v1576 = vunpack.c.l.b16 %v1512
    %v1577 = vunpack.c.l.b16 %v1513
    %v1578 = vunpack.c.l.b16 %v1514
    %v1579 = vunpack.c.l.b16 %v1515
    %v1580 = vunpack.c.l.b16 %v1516
    %v1581 = vunpack.c.l.b16 %v1517
    %v1582 = vunpack.c.l.b16 %v1518
    %v1583 = vpack.c.b16 %v1568, %v1567
    %v1584 = vpack.c.b16 %v1570, %v1569
    %v1585 = vpack.c.b16 %v1572, %v1571
    %v1586 = vpack.c.b16 %v1574, %v1573
    %v1587 = vpack.c.b16 %v1576, %v1575
    %v1588 = vpack.c.b16 %v1578, %v1577
    %v1589 = vpack.c.b16 %v1580, %v1579
    %v1590 = vpack.c.b16 %v1582, %v1581
    %1599 = vmatprep.subr.bf16.mxu0 0
    %1600 = vmatpush1.bf16.msra.mxu0 %v1590
    %1601 = vmatprep.subr.bf16.mxu0 0
    %1602 = vmatpush1.bf16.msra.mxu0 %v1589
    %1603 = vmatprep.subr.bf16.mxu0 0
    %1604 = vmatpush1.bf16.msra.mxu0 %v1588
    %1605 = vmatprep.subr.bf16.mxu0 0
    %1606 = vmatpush1.bf16.msra.mxu0 %v1587
    %1607 = vmatprep.subr.bf16.mxu0 0
    %1608 = vmatpush1.bf16.msra.mxu0 %v1586
    %1609 = vmatprep.subr.bf16.mxu0 0
    %1610 = vmatpush1.bf16.msra.mxu0 %v1585
    %1611 = vmatprep.subr.bf16.mxu0 0
    %1612 = vmatpush1.bf16.msra.mxu0 %v1584
    %1613 = vmatprep.subr.bf16.mxu0 0
    %1614 = vmatpush1.bf16.msra.mxu0 %v1583
    %1615 = vmatprep.subr.bf16.mxu0 0
    %1616 = vmatpush2.bf16.msra.mxu0 0
    %1617 = vmatprep.subr.bf16.mxu0 0
    %1618 = vmatpush2.bf16.msra.mxu0 0
    %1619 = vmatprep.subr.bf16.mxu0 0
    %1620 = vmatpush2.bf16.msra.mxu0 0
    %1621 = vmatprep.subr.bf16.mxu0 0
    %1622 = vmatpush2.bf16.msra.mxu0 0
    %1623 = vmatprep.subr.bf16.mxu0 0
    %1624 = vmatpush2.bf16.msra.mxu0 0
    %1625 = vmatprep.subr.bf16.mxu0 0
    %1626 = vmatpush2.bf16.msra.mxu0 0
    %1627 = vmatprep.subr.bf16.mxu0 0
    %1628 = vmatpush2.bf16.msra.mxu0 0
    %1629 = vmatprep.subr.bf16.mxu0 0
    %1630 = vmatpush2.bf16.msra.mxu0 0
    %1631 = vmatprep.mubr.bf16.mxu0 0
    %1632 = vmatmul.mubr.bf16.gmra.mxu0 %v1535
    %v1633 = vpop.f32.mrf.mxu0
    %v1634 = vadd.f32 0.0, %v1633
    %v1635 = vpop.f32.mrf.mxu0
    %v1636 = vpop.f32.mrf.mxu0
    %v1637 = vadd.f32 0.0, %v1636
    %v1638 = vpop.f32.mrf.mxu0
    %1639 = vmatprep.mubr.bf16.mxu0 0
    %1640 = vmatmul.mubr.bf16.gmra.mxu0 %v1536
    %v1641 = vpop.f32.mrf.mxu0
    %v1642 = vadd.f32 0.0, %v1641
    %v1643 = vpop.f32.mrf.mxu0
    %v1644 = vpop.f32.mrf.mxu0
    %v1645 = vadd.f32 0.0, %v1644
    %v1646 = vpop.f32.mrf.mxu0
    %1647 = vmatprep.mubr.bf16.mxu0 0
    %1648 = vmatmul.mubr.bf16.gmra.mxu0 %v1537
    %v1649 = vpop.f32.mrf.mxu0
    %v1650 = vadd.f32 0.0, %v1649
    %v1651 = vpop.f32.mrf.mxu0
    %v1652 = vpop.f32.mrf.mxu0
    %v1653 = vadd.f32 0.0, %v1652
    %v1654 = vpop.f32.mrf.mxu0
    %1655 = vmatprep.mubr.bf16.mxu0 0
    %1656 = vmatmul.mubr.bf16.gmra.mxu0 %v1538
    %v1657 = vpop.f32.mrf.mxu0
    %v1658 = vadd.f32 0.0, %v1657
    %v1659 = vpop.f32.mrf.mxu0
    %v1660 = vpop.f32.mrf.mxu0
    %v1661 = vadd.f32 0.0, %v1660
    %v1662 = vpop.f32.mrf.mxu0
    %1663 = vmatprep.mubr.bf16.mxu0 0
    %1664 = vmatmul.mubr.bf16.gmra.mxu0 %v1539
    %v1665 = vpop.f32.mrf.mxu0
    %v1666 = vadd.f32 0.0, %v1665
    %v1667 = vpop.f32.mrf.mxu0
    %v1668 = vpop.f32.mrf.mxu0
    %v1669 = vadd.f32 0.0, %v1668
    %v1670 = vpop.f32.mrf.mxu0
    %1671 = vmatprep.mubr.bf16.mxu0 0
    %1672 = vmatmul.mubr.bf16.gmra.mxu0 %v1540
    %v1673 = vpop.f32.mrf.mxu0
    %v1674 = vadd.f32 0.0, %v1673
    %v1675 = vpop.f32.mrf.mxu0
    %v1676 = vpop.f32.mrf.mxu0
    %v1677 = vadd.f32 0.0, %v1676
    %v1678 = vpop.f32.mrf.mxu0
    %1679 = vmatprep.mubr.bf16.mxu0 0
    %1680 = vmatmul.mubr.bf16.gmra.mxu0 %v1541
    %v1681 = vpop.f32.mrf.mxu0
    %v1682 = vadd.f32 0.0, %v1681
    %v1683 = vpop.f32.mrf.mxu0
    %v1684 = vpop.f32.mrf.mxu0
    %v1685 = vadd.f32 0.0, %v1684
    %v1686 = vpop.f32.mrf.mxu0
    %1687 = vmatprep.mubr.bf16.mxu0 0
    %1688 = vmatmul.mubr.bf16.gmra.mxu0 %v1542
    %v1689 = vpop.f32.mrf.mxu0
    %v1690 = vadd.f32 0.0, %v1689
    %v1691 = vpop.f32.mrf.mxu0
    %v1692 = vpop.f32.mrf.mxu0
    %v1693 = vadd.f32 0.0, %v1692
    %v1694 = vpop.f32.mrf.mxu0
    %1695 = vdwg.mxu0
    %v1696 = vadd.f32 %v1230, %v1634
    %v1697 = vadd.f32 %v1231, %v1637
    %v1698 = vadd.f32 %v1232, %v1642
    %v1699 = vadd.f32 %v1233, %v1645
    %v1700 = vadd.f32 %v1234, %v1650
    %v1701 = vadd.f32 %v1235, %v1653
    %v1702 = vadd.f32 %v1236, %v1658
    %v1703 = vadd.f32 %v1237, %v1661
    %v1704 = vadd.f32 %v1238, %v1666
    %v1705 = vadd.f32 %v1239, %v1669
    %v1706 = vadd.f32 %v1240, %v1674
    %v1707 = vadd.f32 %v1241, %v1677
    %v1708 = vadd.f32 %v1242, %v1682
    %v1709 = vadd.f32 %v1243, %v1685
    %v1710 = vadd.f32 %v1244, %v1690
    %v1711 = vadd.f32 %v1245, %v1693
    %v1712 = vld [vmem:[%s1003] sm:$0xe]
    %v1713 = vld [vmem:[%s1003 + $0x8] sm:$0xe]
    %v1714 = vld [vmem:[%s1003 + $0x10] sm:$0xe]
    %v1715 = vld [vmem:[%s1003 + $0x18] sm:$0xe]
    %v1716 = vld [vmem:[%s1003 + $0x20] sm:$0xe]
    %v1717 = vld [vmem:[%s1003 + $0x28] sm:$0xe]
    %v1718 = vld [vmem:[%s1003 + $0x30] sm:$0xe]
    %v1719 = vld [vmem:[%s1003 + $0x38] sm:$0xe]
    %v1720 = vld [vmem:[%s1003 + $0x50] sm:$0xe]
    %v1721 = vld [vmem:[%s1003 + $0x58] sm:$0xe]
    %v1722 = vld [vmem:[%s1003 + $0x60] sm:$0xe]
    %v1723 = vld [vmem:[%s1003 + $0x68] sm:$0xe]
    %v1724 = vld [vmem:[%s1003 + $0x70] sm:$0xe]
    %v1725 = vld [vmem:[%s1003 + $0x78] sm:$0xe]
    %v1726 = vld [vmem:[%s1003 + $0x80] sm:$0xe]
    %v1727 = vld [vmem:[%s1003 + $0x88] sm:$0xe]
    %v1760 = vrot.slane %v1712, 5
    %v1761 = vrot.slane %v1760, 4
    %v1762 = vrot.slane %v1247, 5
    %v1763 = vsel %vm728, %v1761, %v1762
    %v1764 = vrot.slane %v1713, 5
    %v1765 = vrot.slane %v1764, 4
    %v1766 = vrot.slane %v1249, 5
    %v1767 = vsel %vm728, %v1765, %v1766
    %v1768 = vrot.slane %v1714, 5
    %v1769 = vrot.slane %v1768, 4
    %v1770 = vrot.slane %v1251, 5
    %v1771 = vsel %vm728, %v1769, %v1770
    %v1772 = vrot.slane %v1715, 5
    %v1773 = vrot.slane %v1772, 4
    %v1774 = vrot.slane %v1253, 5
    %v1775 = vsel %vm728, %v1773, %v1774
    %v1776 = vrot.slane %v1716, 5
    %v1777 = vrot.slane %v1776, 4
    %v1778 = vrot.slane %v1255, 5
    %v1779 = vsel %vm728, %v1777, %v1778
    %v1780 = vrot.slane %v1717, 5
    %v1781 = vrot.slane %v1780, 4
    %v1782 = vrot.slane %v1257, 5
    %v1783 = vsel %vm728, %v1781, %v1782
    %v1784 = vrot.slane %v1718, 5
    %v1785 = vrot.slane %v1784, 4
    %v1786 = vrot.slane %v1259, 5
    %v1787 = vsel %vm728, %v1785, %v1786
    %v1788 = vrot.slane %v1719, 5
    %v1789 = vrot.slane %v1788, 4
    %v1790 = vrot.slane %v1261, 5
    %v1791 = vsel %vm728, %v1789, %v1790
    %v1792 = vrot.slane %v1720, 5
    %v1793 = vrot.slane %v1792, 4
    %v1794 = vrot.slane %v1263, 5
    %v1795 = vsel %vm728, %v1793, %v1794
    %v1796 = vrot.slane %v1721, 5
    %v1797 = vrot.slane %v1796, 4
    %v1798 = vrot.slane %v1265, 5
    %v1799 = vsel %vm728, %v1797, %v1798
    %v1800 = vrot.slane %v1722, 5
    %v1801 = vrot.slane %v1800, 4
    %v1802 = vrot.slane %v1267, 5
    %v1803 = vsel %vm728, %v1801, %v1802
    %v1804 = vrot.slane %v1723, 5
    %v1805 = vrot.slane %v1804, 4
    %v1806 = vrot.slane %v1269, 5
    %v1807 = vsel %vm728, %v1805, %v1806
    %v1808 = vrot.slane %v1724, 5
    %v1809 = vrot.slane %v1808, 4
    %v1810 = vrot.slane %v1271, 5
    %v1811 = vsel %vm728, %v1809, %v1810
    %v1812 = vrot.slane %v1725, 5
    %v1813 = vrot.slane %v1812, 4
    %v1814 = vrot.slane %v1273, 5
    %v1815 = vsel %vm728, %v1813, %v1814
    %v1816 = vrot.slane %v1726, 5
    %v1817 = vrot.slane %v1816, 4
    %v1818 = vrot.slane %v1275, 5
    %v1819 = vsel %vm728, %v1817, %v1818
    %v1820 = vrot.slane %v1727, 5
    %v1821 = vrot.slane %v1820, 4
    %v1822 = vrot.slane %v1277, 5
    %v1823 = vsel %vm728, %v1821, %v1822
    %s1824 = scalar_lea.vmem %s1, 320
    %v1825 = vld [vmem:[%s1824] sm:$0xf]
    %v1826 = vld [vmem:[%s1824 + $0x4] sm:$0xf]
    %v1827 = vld [vmem:[%s1824 + $0x8] sm:$0xf]
    %v1828 = vld [vmem:[%s1824 + $0xc] sm:$0xf]
    %v1829 = vld [vmem:[%s1824 + $0x10] sm:$0xf]
    %v1830 = vld [vmem:[%s1824 + $0x14] sm:$0xf]
    %v1831 = vld [vmem:[%s1824 + $0x18] sm:$0xf]
    %v1832 = vld [vmem:[%s1824 + $0x1c] sm:$0xf]
    %v1833 = vld [vmem:[%s1824 + $0x20] sm:$0xf]
    %v1834 = vld [vmem:[%s1824 + $0x24] sm:$0xf]
    %v1835 = vld [vmem:[%s1824 + $0x28] sm:$0xf]
    %v1836 = vld [vmem:[%s1824 + $0x2c] sm:$0xf]
    %v1837 = vld [vmem:[%s1824 + $0x30] sm:$0xf]
    %v1838 = vld [vmem:[%s1824 + $0x34] sm:$0xf]
    %v1839 = vld [vmem:[%s1824 + $0x38] sm:$0xf]
    %v1840 = vld [vmem:[%s1824 + $0x3c] sm:$0xf]
    %v1841 = vunpack.c.l.b16 %v1763
    %v1842 = vunpack.c.l.b16 %v1767
    %v1843 = vunpack.c.l.b16 %v1771
    %v1844 = vunpack.c.l.b16 %v1775
    %v1845 = vunpack.c.l.b16 %v1779
    %v1846 = vunpack.c.l.b16 %v1783
    %v1847 = vunpack.c.l.b16 %v1787
    %v1848 = vunpack.c.l.b16 %v1791
    %v1849 = vunpack.c.l.b16 %v1795
    %v1850 = vunpack.c.l.b16 %v1799
    %v1851 = vunpack.c.l.b16 %v1803
    %v1852 = vunpack.c.l.b16 %v1807
    %v1853 = vunpack.c.l.b16 %v1811
    %v1854 = vunpack.c.l.b16 %v1815
    %v1855 = vunpack.c.l.b16 %v1819
    %v1856 = vunpack.c.l.b16 %v1823
    %v1857 = vpack.c.b16 %v1842, %v1841
    %v1858 = vpack.c.b16 %v1844, %v1843
    %v1859 = vpack.c.b16 %v1846, %v1845
    %v1860 = vpack.c.b16 %v1848, %v1847
    %v1861 = vpack.c.b16 %v1850, %v1849
    %v1862 = vpack.c.b16 %v1852, %v1851
    %v1863 = vpack.c.b16 %v1854, %v1853
    %v1864 = vpack.c.b16 %v1856, %v1855
    %v1889 = vunpack.c.l.b16 %v1825
    %v1890 = vunpack.c.l.b16 %v1826
    %v1891 = vunpack.c.l.b16 %v1827
    %v1892 = vunpack.c.l.b16 %v1828
    %v1893 = vunpack.c.l.b16 %v1829
    %v1894 = vunpack.c.l.b16 %v1830
    %v1895 = vunpack.c.l.b16 %v1831
    %v1896 = vunpack.c.l.b16 %v1832
    %v1897 = vunpack.c.l.b16 %v1833
    %v1898 = vunpack.c.l.b16 %v1834
    %v1899 = vunpack.c.l.b16 %v1835
    %v1900 = vunpack.c.l.b16 %v1836
    %v1901 = vunpack.c.l.b16 %v1837
    %v1902 = vunpack.c.l.b16 %v1838
    %v1903 = vunpack.c.l.b16 %v1839
    %v1904 = vunpack.c.l.b16 %v1840
    %v1905 = vpack.c.b16 %v1890, %v1889
    %v1906 = vpack.c.b16 %v1892, %v1891
    %v1907 = vpack.c.b16 %v1894, %v1893
    %v1908 = vpack.c.b16 %v1896, %v1895
    %v1909 = vpack.c.b16 %v1898, %v1897
    %v1910 = vpack.c.b16 %v1900, %v1899
    %v1911 = vpack.c.b16 %v1902, %v1901
    %v1912 = vpack.c.b16 %v1904, %v1903
    %1921 = vmatprep.subr.bf16.mxu0 0
    %1922 = vmatpush1.bf16.msra.mxu0 %v1912
    %1923 = vmatprep.subr.bf16.mxu0 0
    %1924 = vmatpush1.bf16.msra.mxu0 %v1911
    %1925 = vmatprep.subr.bf16.mxu0 0
    %1926 = vmatpush1.bf16.msra.mxu0 %v1910
    %1927 = vmatprep.subr.bf16.mxu0 0
    %1928 = vmatpush1.bf16.msra.mxu0 %v1909
    %1929 = vmatprep.subr.bf16.mxu0 0
    %1930 = vmatpush1.bf16.msra.mxu0 %v1908
    %1931 = vmatprep.subr.bf16.mxu0 0
    %1932 = vmatpush1.bf16.msra.mxu0 %v1907
    %1933 = vmatprep.subr.bf16.mxu0 0
    %1934 = vmatpush1.bf16.msra.mxu0 %v1906
    %1935 = vmatprep.subr.bf16.mxu0 0
    %1936 = vmatpush1.bf16.msra.mxu0 %v1905
    %1937 = vmatprep.subr.bf16.mxu0 0
    %1938 = vmatpush2.bf16.msra.mxu0 0
    %1939 = vmatprep.subr.bf16.mxu0 0
    %1940 = vmatpush2.bf16.msra.mxu0 0
    %1941 = vmatprep.subr.bf16.mxu0 0
    %1942 = vmatpush2.bf16.msra.mxu0 0
    %1943 = vmatprep.subr.bf16.mxu0 0
    %1944 = vmatpush2.bf16.msra.mxu0 0
    %1945 = vmatprep.subr.bf16.mxu0 0
    %1946 = vmatpush2.bf16.msra.mxu0 0
    %1947 = vmatprep.subr.bf16.mxu0 0
    %1948 = vmatpush2.bf16.msra.mxu0 0
    %1949 = vmatprep.subr.bf16.mxu0 0
    %1950 = vmatpush2.bf16.msra.mxu0 0
    %1951 = vmatprep.subr.bf16.mxu0 0
    %1952 = vmatpush2.bf16.msra.mxu0 0
    %1953 = vmatprep.mubr.bf16.mxu0 0
    %1954 = vmatmul.mubr.bf16.gmra.mxu0 %v1857
    %v1955 = vpop.f32.mrf.mxu0
    %v1956 = vadd.f32 0.0, %v1955
    %v1957 = vpop.f32.mrf.mxu0
    %v1958 = vpop.f32.mrf.mxu0
    %v1959 = vadd.f32 0.0, %v1958
    %v1960 = vpop.f32.mrf.mxu0
    %1961 = vmatprep.mubr.bf16.mxu0 0
    %1962 = vmatmul.mubr.bf16.gmra.mxu0 %v1858
    %v1963 = vpop.f32.mrf.mxu0
    %v1964 = vadd.f32 0.0, %v1963
    %v1965 = vpop.f32.mrf.mxu0
    %v1966 = vpop.f32.mrf.mxu0
    %v1967 = vadd.f32 0.0, %v1966
    %v1968 = vpop.f32.mrf.mxu0
    %1969 = vmatprep.mubr.bf16.mxu0 0
    %1970 = vmatmul.mubr.bf16.gmra.mxu0 %v1859
    %v1971 = vpop.f32.mrf.mxu0
    %v1972 = vadd.f32 0.0, %v1971
    %v1973 = vpop.f32.mrf.mxu0
    %v1974 = vpop.f32.mrf.mxu0
    %v1975 = vadd.f32 0.0, %v1974
    %v1976 = vpop.f32.mrf.mxu0
    %1977 = vmatprep.mubr.bf16.mxu0 0
    %1978 = vmatmul.mubr.bf16.gmra.mxu0 %v1860
    %v1979 = vpop.f32.mrf.mxu0
    %v1980 = vadd.f32 0.0, %v1979
    %v1981 = vpop.f32.mrf.mxu0
    %v1982 = vpop.f32.mrf.mxu0
    %v1983 = vadd.f32 0.0, %v1982
    %v1984 = vpop.f32.mrf.mxu0
    %1985 = vmatprep.mubr.bf16.mxu0 0
    %1986 = vmatmul.mubr.bf16.gmra.mxu0 %v1861
    %v1987 = vpop.f32.mrf.mxu0
    %v1988 = vadd.f32 0.0, %v1987
    %v1989 = vpop.f32.mrf.mxu0
    %v1990 = vpop.f32.mrf.mxu0
    %v1991 = vadd.f32 0.0, %v1990
    %v1992 = vpop.f32.mrf.mxu0
    %1993 = vmatprep.mubr.bf16.mxu0 0
    %1994 = vmatmul.mubr.bf16.gmra.mxu0 %v1862
    %v1995 = vpop.f32.mrf.mxu0
    %v1996 = vadd.f32 0.0, %v1995
    %v1997 = vpop.f32.mrf.mxu0
    %v1998 = vpop.f32.mrf.mxu0
    %v1999 = vadd.f32 0.0, %v1998
    %v2000 = vpop.f32.mrf.mxu0
    %2001 = vmatprep.mubr.bf16.mxu0 0
    %2002 = vmatmul.mubr.bf16.gmra.mxu0 %v1863
    %v2003 = vpop.f32.mrf.mxu0
    %v2004 = vadd.f32 0.0, %v2003
    %v2005 = vpop.f32.mrf.mxu0
    %v2006 = vpop.f32.mrf.mxu0
    %v2007 = vadd.f32 0.0, %v2006
    %v2008 = vpop.f32.mrf.mxu0
    %2009 = vmatprep.mubr.bf16.mxu0 0
    %2010 = vmatmul.mubr.bf16.gmra.mxu0 %v1864
    %v2011 = vpop.f32.mrf.mxu0
    %v2012 = vadd.f32 0.0, %v2011
    %v2013 = vpop.f32.mrf.mxu0
    %v2014 = vpop.f32.mrf.mxu0
    %v2015 = vadd.f32 0.0, %v2014
    %v2016 = vpop.f32.mrf.mxu0
    %2017 = vdwg.mxu0
    %v2018 = vadd.f32 %v1696, %v1956
    %v2019 = vadd.f32 %v1697, %v1959
    %v2020 = vadd.f32 %v1698, %v1964
    %v2021 = vadd.f32 %v1699, %v1967
    %v2022 = vadd.f32 %v1700, %v1972
    %v2023 = vadd.f32 %v1701, %v1975
    %v2024 = vadd.f32 %v1702, %v1980
    %v2025 = vadd.f32 %v1703, %v1983
    %v2026 = vadd.f32 %v1704, %v1988
    %v2027 = vadd.f32 %v1705, %v1991
    %v2028 = vadd.f32 %v1706, %v1996
    %v2029 = vadd.f32 %v1707, %v1999
    %v2030 = vadd.f32 %v1708, %v2004
    %v2031 = vadd.f32 %v1709, %v2007
    %v2032 = vadd.f32 %v1710, %v2012
    %v2033 = vadd.f32 %v1711, %v2015
    %s2034 = scalar_lea.vmem %s0, 16
    %v2035 = vld [vmem:[%s2034] sm:$0xf]
    %v2036 = vld [vmem:[%s2034 + $0x8] sm:$0xf]
    %v2037 = vld [vmem:[%s2034 + $0x10] sm:$0xf]
    %v2038 = vld [vmem:[%s2034 + $0x18] sm:$0xf]
    %v2039 = vld [vmem:[%s2034 + $0x20] sm:$0xf]
    %v2040 = vld [vmem:[%s2034 + $0x28] sm:$0xf]
    %v2041 = vld [vmem:[%s2034 + $0x30] sm:$0xf]
    %v2042 = vld [vmem:[%s2034 + $0x38] sm:$0xf]
    %v2043 = vld [vmem:[%s2034 + $0x50] sm:$0xf]
    %v2044 = vld [vmem:[%s2034 + $0x58] sm:$0xf]
    %v2045 = vld [vmem:[%s2034 + $0x60] sm:$0xf]
    %v2046 = vld [vmem:[%s2034 + $0x68] sm:$0xf]
    %v2047 = vld [vmem:[%s2034 + $0x70] sm:$0xf]
    %v2048 = vld [vmem:[%s2034 + $0x78] sm:$0xf]
    %v2049 = vld [vmem:[%s2034 + $0x80] sm:$0xf]
    %v2050 = vld [vmem:[%s2034 + $0x88] sm:$0xf]
    %s2051 = scalar_lea.vmem %s1, 384
    %v2052 = vld [vmem:[%s2051] sm:$0xf]
    %v2053 = vld [vmem:[%s2051 + $0x4] sm:$0xf]
    %v2054 = vld [vmem:[%s2051 + $0x8] sm:$0xf]
    %v2055 = vld [vmem:[%s2051 + $0xc] sm:$0xf]
    %v2056 = vld [vmem:[%s2051 + $0x10] sm:$0xf]
    %v2057 = vld [vmem:[%s2051 + $0x14] sm:$0xf]
    %v2058 = vld [vmem:[%s2051 + $0x18] sm:$0xf]
    %v2059 = vld [vmem:[%s2051 + $0x1c] sm:$0xf]
    %v2060 = vld [vmem:[%s2051 + $0x20] sm:$0xf]
    %v2061 = vld [vmem:[%s2051 + $0x24] sm:$0xf]
    %v2062 = vld [vmem:[%s2051 + $0x28] sm:$0xf]
    %v2063 = vld [vmem:[%s2051 + $0x2c] sm:$0xf]
    %v2064 = vld [vmem:[%s2051 + $0x30] sm:$0xf]
    %v2065 = vld [vmem:[%s2051 + $0x34] sm:$0xf]
    %v2066 = vld [vmem:[%s2051 + $0x38] sm:$0xf]
    %v2067 = vld [vmem:[%s2051 + $0x3c] sm:$0xf]
    %v2084 = vunpack.c.l.b16 %v2035
    %v2085 = vunpack.c.l.b16 %v2036
    %v2086 = vunpack.c.l.b16 %v2037
    %v2087 = vunpack.c.l.b16 %v2038
    %v2088 = vunpack.c.l.b16 %v2039
    %v2089 = vunpack.c.l.b16 %v2040
    %v2090 = vunpack.c.l.b16 %v2041
    %v2091 = vunpack.c.l.b16 %v2042
    %v2092 = vunpack.c.l.b16 %v2043
    %v2093 = vunpack.c.l.b16 %v2044
    %v2094 = vunpack.c.l.b16 %v2045
    %v2095 = vunpack.c.l.b16 %v2046
    %v2096 = vunpack.c.l.b16 %v2047
    %v2097 = vunpack.c.l.b16 %v2048
    %v2098 = vunpack.c.l.b16 %v2049
    %v2099 = vunpack.c.l.b16 %v2050
    %v2100 = vpack.c.b16 %v2085, %v2084
    %v2101 = vpack.c.b16 %v2087, %v2086
    %v2102 = vpack.c.b16 %v2089, %v2088
    %v2103 = vpack.c.b16 %v2091, %v2090
    %v2104 = vpack.c.b16 %v2093, %v2092
    %v2105 = vpack.c.b16 %v2095, %v2094
    %v2106 = vpack.c.b16 %v2097, %v2096
    %v2107 = vpack.c.b16 %v2099, %v2098
    %v2132 = vunpack.c.l.b16 %v2052
    %v2133 = vunpack.c.l.b16 %v2053
    %v2134 = vunpack.c.l.b16 %v2054
    %v2135 = vunpack.c.l.b16 %v2055
    %v2136 = vunpack.c.l.b16 %v2056
    %v2137 = vunpack.c.l.b16 %v2057
    %v2138 = vunpack.c.l.b16 %v2058
    %v2139 = vunpack.c.l.b16 %v2059
    %v2140 = vunpack.c.l.b16 %v2060
    %v2141 = vunpack.c.l.b16 %v2061
    %v2142 = vunpack.c.l.b16 %v2062
    %v2143 = vunpack.c.l.b16 %v2063
    %v2144 = vunpack.c.l.b16 %v2064
    %v2145 = vunpack.c.l.b16 %v2065
    %v2146 = vunpack.c.l.b16 %v2066
    %v2147 = vunpack.c.l.b16 %v2067
    %v2148 = vpack.c.b16 %v2133, %v2132
    %v2149 = vpack.c.b16 %v2135, %v2134
    %v2150 = vpack.c.b16 %v2137, %v2136
    %v2151 = vpack.c.b16 %v2139, %v2138
    %v2152 = vpack.c.b16 %v2141, %v2140
    %v2153 = vpack.c.b16 %v2143, %v2142
    %v2154 = vpack.c.b16 %v2145, %v2144
    %v2155 = vpack.c.b16 %v2147, %v2146
    %2164 = vmatprep.subr.bf16.mxu0 0
    %2165 = vmatpush1.bf16.msra.mxu0 %v2155
    %2166 = vmatprep.subr.bf16.mxu0 0
    %2167 = vmatpush1.bf16.msra.mxu0 %v2154
    %2168 = vmatprep.subr.bf16.mxu0 0
    %2169 = vmatpush1.bf16.msra.mxu0 %v2153
    %2170 = vmatprep.subr.bf16.mxu0 0
    %2171 = vmatpush1.bf16.msra.mxu0 %v2152
    %2172 = vmatprep.subr.bf16.mxu0 0
    %2173 = vmatpush1.bf16.msra.mxu0 %v2151
    %2174 = vmatprep.subr.bf16.mxu0 0
    %2175 = vmatpush1.bf16.msra.mxu0 %v2150
    %2176 = vmatprep.subr.bf16.mxu0 0
    %2177 = vmatpush1.bf16.msra.mxu0 %v2149
    %2178 = vmatprep.subr.bf16.mxu0 0
    %2179 = vmatpush1.bf16.msra.mxu0 %v2148
    %2180 = vmatprep.subr.bf16.mxu0 0
    %2181 = vmatpush2.bf16.msra.mxu0 0
    %2182 = vmatprep.subr.bf16.mxu0 0
    %2183 = vmatpush2.bf16.msra.mxu0 0
    %2184 = vmatprep.subr.bf16.mxu0 0
    %2185 = vmatpush2.bf16.msra.mxu0 0
    %2186 = vmatprep.subr.bf16.mxu0 0
    %2187 = vmatpush2.bf16.msra.mxu0 0
    %2188 = vmatprep.subr.bf16.mxu0 0
    %2189 = vmatpush2.bf16.msra.mxu0 0
    %2190 = vmatprep.subr.bf16.mxu0 0
    %2191 = vmatpush2.bf16.msra.mxu0 0
    %2192 = vmatprep.subr.bf16.mxu0 0
    %2193 = vmatpush2.bf16.msra.mxu0 0
    %2194 = vmatprep.subr.bf16.mxu0 0
    %2195 = vmatpush2.bf16.msra.mxu0 0
    %2196 = vmatprep.mubr.bf16.mxu0 0
    %2197 = vmatmul.mubr.bf16.gmra.mxu0 %v2100
    %v2198 = vpop.f32.mrf.mxu0
    %v2199 = vadd.f32 0.0, %v2198
    %v2200 = vpop.f32.mrf.mxu0
    %v2201 = vpop.f32.mrf.mxu0
    %v2202 = vadd.f32 0.0, %v2201
    %v2203 = vpop.f32.mrf.mxu0
    %2204 = vmatprep.mubr.bf16.mxu0 0
    %2205 = vmatmul.mubr.bf16.gmra.mxu0 %v2101
    %v2206 = vpop.f32.mrf.mxu0
    %v2207 = vadd.f32 0.0, %v2206
    %v2208 = vpop.f32.mrf.mxu0
    %v2209 = vpop.f32.mrf.mxu0
    %v2210 = vadd.f32 0.0, %v2209
    %v2211 = vpop.f32.mrf.mxu0
    %2212 = vmatprep.mubr.bf16.mxu0 0
    %2213 = vmatmul.mubr.bf16.gmra.mxu0 %v2102
    %v2214 = vpop.f32.mrf.mxu0
    %v2215 = vadd.f32 0.0, %v2214
    %v2216 = vpop.f32.mrf.mxu0
    %v2217 = vpop.f32.mrf.mxu0
    %v2218 = vadd.f32 0.0, %v2217
    %v2219 = vpop.f32.mrf.mxu0
    %2220 = vmatprep.mubr.bf16.mxu0 0
    %2221 = vmatmul.mubr.bf16.gmra.mxu0 %v2103
    %v2222 = vpop.f32.mrf.mxu0
    %v2223 = vadd.f32 0.0, %v2222
    %v2224 = vpop.f32.mrf.mxu0
    %v2225 = vpop.f32.mrf.mxu0
    %v2226 = vadd.f32 0.0, %v2225
    %v2227 = vpop.f32.mrf.mxu0
    %2228 = vmatprep.mubr.bf16.mxu0 0
    %2229 = vmatmul.mubr.bf16.gmra.mxu0 %v2104
    %v2230 = vpop.f32.mrf.mxu0
    %v2231 = vadd.f32 0.0, %v2230
    %v2232 = vpop.f32.mrf.mxu0
    %v2233 = vpop.f32.mrf.mxu0
    %v2234 = vadd.f32 0.0, %v2233
    %v2235 = vpop.f32.mrf.mxu0
    %2236 = vmatprep.mubr.bf16.mxu0 0
    %2237 = vmatmul.mubr.bf16.gmra.mxu0 %v2105
    %v2238 = vpop.f32.mrf.mxu0
    %v2239 = vadd.f32 0.0, %v2238
    %v2240 = vpop.f32.mrf.mxu0
    %v2241 = vpop.f32.mrf.mxu0
    %v2242 = vadd.f32 0.0, %v2241
    %v2243 = vpop.f32.mrf.mxu0
    %2244 = vmatprep.mubr.bf16.mxu0 0
    %2245 = vmatmul.mubr.bf16.gmra.mxu0 %v2106
    %v2246 = vpop.f32.mrf.mxu0
    %v2247 = vadd.f32 0.0, %v2246
    %v2248 = vpop.f32.mrf.mxu0
    %v2249 = vpop.f32.mrf.mxu0
    %v2250 = vadd.f32 0.0, %v2249
    %v2251 = vpop.f32.mrf.mxu0
    %2252 = vmatprep.mubr.bf16.mxu0 0
    %2253 = vmatmul.mubr.bf16.gmra.mxu0 %v2107
    %v2254 = vpop.f32.mrf.mxu0
    %v2255 = vadd.f32 0.0, %v2254
    %v2256 = vpop.f32.mrf.mxu0
    %v2257 = vpop.f32.mrf.mxu0
    %v2258 = vadd.f32 0.0, %v2257
    %v2259 = vpop.f32.mrf.mxu0
    %2260 = vdwg.mxu0
    %v2261 = vadd.f32 %v2018, %v2199
    %v2262 = vadd.f32 %v2019, %v2202
    %v2263 = vadd.f32 %v2020, %v2207
    %v2264 = vadd.f32 %v2021, %v2210
    %v2265 = vadd.f32 %v2022, %v2215
    %v2266 = vadd.f32 %v2023, %v2218
    %v2267 = vadd.f32 %v2024, %v2223
    %v2268 = vadd.f32 %v2025, %v2226
    %v2269 = vadd.f32 %v2026, %v2231
    %v2270 = vadd.f32 %v2027, %v2234
    %v2271 = vadd.f32 %v2028, %v2239
    %v2272 = vadd.f32 %v2029, %v2242
    %v2273 = vadd.f32 %v2030, %v2247
    %v2274 = vadd.f32 %v2031, %v2250
    %v2275 = vadd.f32 %v2032, %v2255
    %v2276 = vadd.f32 %v2033, %v2258
    %v2277 = vld [vmem:[%s2034] sm:$0xf]
    %v2278 = vld [vmem:[%s2034 + $0x4] sm:$0x1]
    %v2279 = vld [vmem:[%s2034 + $0x8] sm:$0xf]
    %v2280 = vld [vmem:[%s2034 + $0xc] sm:$0x1]
    %v2281 = vld [vmem:[%s2034 + $0x10] sm:$0xf]
    %v2282 = vld [vmem:[%s2034 + $0x14] sm:$0x1]
    %v2283 = vld [vmem:[%s2034 + $0x18] sm:$0xf]
    %v2284 = vld [vmem:[%s2034 + $0x1c] sm:$0x1]
    %v2285 = vld [vmem:[%s2034 + $0x20] sm:$0xf]
    %v2286 = vld [vmem:[%s2034 + $0x24] sm:$0x1]
    %v2287 = vld [vmem:[%s2034 + $0x28] sm:$0xf]
    %v2288 = vld [vmem:[%s2034 + $0x2c] sm:$0x1]
    %v2289 = vld [vmem:[%s2034 + $0x30] sm:$0xf]
    %v2290 = vld [vmem:[%s2034 + $0x34] sm:$0x1]
    %v2291 = vld [vmem:[%s2034 + $0x38] sm:$0xf]
    %v2292 = vld [vmem:[%s2034 + $0x3c] sm:$0x1]
    %v2293 = vld [vmem:[%s2034 + $0x50] sm:$0xf]
    %v2294 = vld [vmem:[%s2034 + $0x54] sm:$0x1]
    %v2295 = vld [vmem:[%s2034 + $0x58] sm:$0xf]
    %v2296 = vld [vmem:[%s2034 + $0x5c] sm:$0x1]
    %v2297 = vld [vmem:[%s2034 + $0x60] sm:$0xf]
    %v2298 = vld [vmem:[%s2034 + $0x64] sm:$0x1]
    %v2299 = vld [vmem:[%s2034 + $0x68] sm:$0xf]
    %v2300 = vld [vmem:[%s2034 + $0x6c] sm:$0x1]
    %v2301 = vld [vmem:[%s2034 + $0x70] sm:$0xf]
    %v2302 = vld [vmem:[%s2034 + $0x74] sm:$0x1]
    %v2303 = vld [vmem:[%s2034 + $0x78] sm:$0xf]
    %v2304 = vld [vmem:[%s2034 + $0x7c] sm:$0x1]
    %v2305 = vld [vmem:[%s2034 + $0x80] sm:$0xf]
    %v2306 = vld [vmem:[%s2034 + $0x84] sm:$0x1]
    %v2307 = vld [vmem:[%s2034 + $0x88] sm:$0xf]
    %v2308 = vld [vmem:[%s2034 + $0x8c] sm:$0x1]
    %v2310 = vshrl.u32 %v2277, 16
    %v2312 = vrot.slane %v2310, 4
    %v2313 = vshll.u32 %v2277, 16
    %v2315 = vrot.slane %v2313, 5
    %v2316 = vor.u32 %v2312, %v2315
    %v2317 = vrot.slane %v2316, 4
    %v2319 = vshll.u32 %v2278, 16
    %v2321 = vrot.slane %v2319, 5
    %v2322 = vsel %vm66, %v2317, %v2321
    %v2324 = vshrl.u32 %v2279, 16
    %v2326 = vrot.slane %v2324, 4
    %v2327 = vshll.u32 %v2279, 16
    %v2329 = vrot.slane %v2327, 5
    %v2330 = vor.u32 %v2326, %v2329
    %v2331 = vrot.slane %v2330, 4
    %v2333 = vshll.u32 %v2280, 16
    %v2335 = vrot.slane %v2333, 5
    %v2336 = vsel %vm66, %v2331, %v2335
    %v2338 = vshrl.u32 %v2281, 16
    %v2340 = vrot.slane %v2338, 4
    %v2341 = vshll.u32 %v2281, 16
    %v2343 = vrot.slane %v2341, 5
    %v2344 = vor.u32 %v2340, %v2343
    %v2345 = vrot.slane %v2344, 4
    %v2347 = vshll.u32 %v2282, 16
    %v2349 = vrot.slane %v2347, 5
    %v2350 = vsel %vm66, %v2345, %v2349
    %v2352 = vshrl.u32 %v2283, 16
    %v2354 = vrot.slane %v2352, 4
    %v2355 = vshll.u32 %v2283, 16
    %v2357 = vrot.slane %v2355, 5
    %v2358 = vor.u32 %v2354, %v2357
    %v2359 = vrot.slane %v2358, 4
    %v2361 = vshll.u32 %v2284, 16
    %v2363 = vrot.slane %v2361, 5
    %v2364 = vsel %vm66, %v2359, %v2363
    %v2366 = vshrl.u32 %v2285, 16
    %v2368 = vrot.slane %v2366, 4
    %v2369 = vshll.u32 %v2285, 16
    %v2371 = vrot.slane %v2369, 5
    %v2372 = vor.u32 %v2368, %v2371
    %v2373 = vrot.slane %v2372, 4
    %v2375 = vshll.u32 %v2286, 16
    %v2377 = vrot.slane %v2375, 5
    %v2378 = vsel %vm66, %v2373, %v2377
    %v2380 = vshrl.u32 %v2287, 16
    %v2382 = vrot.slane %v2380, 4
    %v2383 = vshll.u32 %v2287, 16
    %v2385 = vrot.slane %v2383, 5
    %v2386 = vor.u32 %v2382, %v2385
    %v2387 = vrot.slane %v2386, 4
    %v2389 = vshll.u32 %v2288, 16
    %v2391 = vrot.slane %v2389, 5
    %v2392 = vsel %vm66, %v2387, %v2391
    %v2394 = vshrl.u32 %v2289, 16
    %v2396 = vrot.slane %v2394, 4
    %v2397 = vshll.u32 %v2289, 16
    %v2399 = vrot.slane %v2397, 5
    %v2400 = vor.u32 %v2396, %v2399
    %v2401 = vrot.slane %v2400, 4
    %v2403 = vshll.u32 %v2290, 16
    %v2405 = vrot.slane %v2403, 5
    %v2406 = vsel %vm66, %v2401, %v2405
    %v2408 = vshrl.u32 %v2291, 16
    %v2410 = vrot.slane %v2408, 4
    %v2411 = vshll.u32 %v2291, 16
    %v2413 = vrot.slane %v2411, 5
    %v2414 = vor.u32 %v2410, %v2413
    %v2415 = vrot.slane %v2414, 4
    %v2417 = vshll.u32 %v2292, 16
    %v2419 = vrot.slane %v2417, 5
    %v2420 = vsel %vm66, %v2415, %v2419
    %v2422 = vshrl.u32 %v2293, 16
    %v2424 = vrot.slane %v2422, 4
    %v2425 = vshll.u32 %v2293, 16
    %v2427 = vrot.slane %v2425, 5
    %v2428 = vor.u32 %v2424, %v2427
    %v2429 = vrot.slane %v2428, 4
    %v2431 = vshll.u32 %v2294, 16
    %v2433 = vrot.slane %v2431, 5
    %v2434 = vsel %vm66, %v2429, %v2433
    %v2436 = vshrl.u32 %v2295, 16
    %v2438 = vrot.slane %v2436, 4
    %v2439 = vshll.u32 %v2295, 16
    %v2441 = vrot.slane %v2439, 5
    %v2442 = vor.u32 %v2438, %v2441
    %v2443 = vrot.slane %v2442, 4
    %v2445 = vshll.u32 %v2296, 16
    %v2447 = vrot.slane %v2445, 5
    %v2448 = vsel %vm66, %v2443, %v2447
    %v2450 = vshrl.u32 %v2297, 16
    %v2452 = vrot.slane %v2450, 4
    %v2453 = vshll.u32 %v2297, 16
    %v2455 = vrot.slane %v2453, 5
    %v2456 = vor.u32 %v2452, %v2455
    %v2457 = vrot.slane %v2456, 4
    %v2459 = vshll.u32 %v2298, 16
    %v2461 = vrot.slane %v2459, 5
    %v2462 = vsel %vm66, %v2457, %v2461
    %v2464 = vshrl.u32 %v2299, 16
    %v2466 = vrot.slane %v2464, 4
    %v2467 = vshll.u32 %v2299, 16
    %v2469 = vrot.slane %v2467, 5
    %v2470 = vor.u32 %v2466, %v2469
    %v2471 = vrot.slane %v2470, 4
    %v2473 = vshll.u32 %v2300, 16
    %v2475 = vrot.slane %v2473, 5
    %v2476 = vsel %vm66, %v2471, %v2475
    %v2478 = vshrl.u32 %v2301, 16
    %v2480 = vrot.slane %v2478, 4
    %v2481 = vshll.u32 %v2301, 16
    %v2483 = vrot.slane %v2481, 5
    %v2484 = vor.u32 %v2480, %v2483
    %v2485 = vrot.slane %v2484, 4
    %v2487 = vshll.u32 %v2302, 16
    %v2489 = vrot.slane %v2487, 5
    %v2490 = vsel %vm66, %v2485, %v2489
    %v2492 = vshrl.u32 %v2303, 16
    %v2494 = vrot.slane %v2492, 4
    %v2495 = vshll.u32 %v2303, 16
    %v2497 = vrot.slane %v2495, 5
    %v2498 = vor.u32 %v2494, %v2497
    %v2499 = vrot.slane %v2498, 4
    %v2501 = vshll.u32 %v2304, 16
    %v2503 = vrot.slane %v2501, 5
    %v2504 = vsel %vm66, %v2499, %v2503
    %v2506 = vshrl.u32 %v2305, 16
    %v2508 = vrot.slane %v2506, 4
    %v2509 = vshll.u32 %v2305, 16
    %v2511 = vrot.slane %v2509, 5
    %v2512 = vor.u32 %v2508, %v2511
    %v2513 = vrot.slane %v2512, 4
    %v2515 = vshll.u32 %v2306, 16
    %v2517 = vrot.slane %v2515, 5
    %v2518 = vsel %vm66, %v2513, %v2517
    %v2520 = vshrl.u32 %v2307, 16
    %v2522 = vrot.slane %v2520, 4
    %v2523 = vshll.u32 %v2307, 16
    %v2525 = vrot.slane %v2523, 5
    %v2526 = vor.u32 %v2522, %v2525
    %v2527 = vrot.slane %v2526, 4
    %v2529 = vshll.u32 %v2308, 16
    %v2531 = vrot.slane %v2529, 5
    %v2532 = vsel %vm66, %v2527, %v2531
    %s2533 = scalar_lea.vmem %s1, 448
    %v2534 = vld [vmem:[%s2533] sm:$0xf]
    %v2535 = vld [vmem:[%s2533 + $0x4] sm:$0xf]
    %v2536 = vld [vmem:[%s2533 + $0x8] sm:$0xf]
    %v2537 = vld [vmem:[%s2533 + $0xc] sm:$0xf]
    %v2538 = vld [vmem:[%s2533 + $0x10] sm:$0xf]
    %v2539 = vld [vmem:[%s2533 + $0x14] sm:$0xf]
    %v2540 = vld [vmem:[%s2533 + $0x18] sm:$0xf]
    %v2541 = vld [vmem:[%s2533 + $0x1c] sm:$0xf]
    %v2542 = vld [vmem:[%s2533 + $0x20] sm:$0xf]
    %v2543 = vld [vmem:[%s2533 + $0x24] sm:$0xf]
    %v2544 = vld [vmem:[%s2533 + $0x28] sm:$0xf]
    %v2545 = vld [vmem:[%s2533 + $0x2c] sm:$0xf]
    %v2546 = vld [vmem:[%s2533 + $0x30] sm:$0xf]
    %v2547 = vld [vmem:[%s2533 + $0x34] sm:$0xf]
    %v2548 = vld [vmem:[%s2533 + $0x38] sm:$0xf]
    %v2549 = vld [vmem:[%s2533 + $0x3c] sm:$0xf]
    %v2550 = vunpack.c.l.b16 %v2322
    %v2551 = vunpack.c.l.b16 %v2336
    %v2552 = vunpack.c.l.b16 %v2350
    %v2553 = vunpack.c.l.b16 %v2364
    %v2554 = vunpack.c.l.b16 %v2378
    %v2555 = vunpack.c.l.b16 %v2392
    %v2556 = vunpack.c.l.b16 %v2406
    %v2557 = vunpack.c.l.b16 %v2420
    %v2558 = vunpack.c.l.b16 %v2434
    %v2559 = vunpack.c.l.b16 %v2448
    %v2560 = vunpack.c.l.b16 %v2462
    %v2561 = vunpack.c.l.b16 %v2476
    %v2562 = vunpack.c.l.b16 %v2490
    %v2563 = vunpack.c.l.b16 %v2504
    %v2564 = vunpack.c.l.b16 %v2518
    %v2565 = vunpack.c.l.b16 %v2532
    %v2566 = vpack.c.b16 %v2551, %v2550
    %v2567 = vpack.c.b16 %v2553, %v2552
    %v2568 = vpack.c.b16 %v2555, %v2554
    %v2569 = vpack.c.b16 %v2557, %v2556
    %v2570 = vpack.c.b16 %v2559, %v2558
    %v2571 = vpack.c.b16 %v2561, %v2560
    %v2572 = vpack.c.b16 %v2563, %v2562
    %v2573 = vpack.c.b16 %v2565, %v2564
    %v2598 = vunpack.c.l.b16 %v2534
    %v2599 = vunpack.c.l.b16 %v2535
    %v2600 = vunpack.c.l.b16 %v2536
    %v2601 = vunpack.c.l.b16 %v2537
    %v2602 = vunpack.c.l.b16 %v2538
    %v2603 = vunpack.c.l.b16 %v2539
    %v2604 = vunpack.c.l.b16 %v2540
    %v2605 = vunpack.c.l.b16 %v2541
    %v2606 = vunpack.c.l.b16 %v2542
    %v2607 = vunpack.c.l.b16 %v2543
    %v2608 = vunpack.c.l.b16 %v2544
    %v2609 = vunpack.c.l.b16 %v2545
    %v2610 = vunpack.c.l.b16 %v2546
    %v2611 = vunpack.c.l.b16 %v2547
    %v2612 = vunpack.c.l.b16 %v2548
    %v2613 = vunpack.c.l.b16 %v2549
    %v2614 = vpack.c.b16 %v2599, %v2598
    %v2615 = vpack.c.b16 %v2601, %v2600
    %v2616 = vpack.c.b16 %v2603, %v2602
    %v2617 = vpack.c.b16 %v2605, %v2604
    %v2618 = vpack.c.b16 %v2607, %v2606
    %v2619 = vpack.c.b16 %v2609, %v2608
    %v2620 = vpack.c.b16 %v2611, %v2610
    %v2621 = vpack.c.b16 %v2613, %v2612
    %2630 = vmatprep.subr.bf16.mxu0 0
    %2631 = vmatpush1.bf16.msra.mxu0 %v2621
    %2632 = vmatprep.subr.bf16.mxu0 0
    %2633 = vmatpush1.bf16.msra.mxu0 %v2620
    %2634 = vmatprep.subr.bf16.mxu0 0
    %2635 = vmatpush1.bf16.msra.mxu0 %v2619
    %2636 = vmatprep.subr.bf16.mxu0 0
    %2637 = vmatpush1.bf16.msra.mxu0 %v2618
    %2638 = vmatprep.subr.bf16.mxu0 0
    %2639 = vmatpush1.bf16.msra.mxu0 %v2617
    %2640 = vmatprep.subr.bf16.mxu0 0
    %2641 = vmatpush1.bf16.msra.mxu0 %v2616
    %2642 = vmatprep.subr.bf16.mxu0 0
    %2643 = vmatpush1.bf16.msra.mxu0 %v2615
    %2644 = vmatprep.subr.bf16.mxu0 0
    %2645 = vmatpush1.bf16.msra.mxu0 %v2614
    %2646 = vmatprep.subr.bf16.mxu0 0
    %2647 = vmatpush2.bf16.msra.mxu0 0
    %2648 = vmatprep.subr.bf16.mxu0 0
    %2649 = vmatpush2.bf16.msra.mxu0 0
    %2650 = vmatprep.subr.bf16.mxu0 0
    %2651 = vmatpush2.bf16.msra.mxu0 0
    %2652 = vmatprep.subr.bf16.mxu0 0
    %2653 = vmatpush2.bf16.msra.mxu0 0
    %2654 = vmatprep.subr.bf16.mxu0 0
    %2655 = vmatpush2.bf16.msra.mxu0 0
    %2656 = vmatprep.subr.bf16.mxu0 0
    %2657 = vmatpush2.bf16.msra.mxu0 0
    %2658 = vmatprep.subr.bf16.mxu0 0
    %2659 = vmatpush2.bf16.msra.mxu0 0
    %2660 = vmatprep.subr.bf16.mxu0 0
    %2661 = vmatpush2.bf16.msra.mxu0 0
    %2662 = vmatprep.mubr.bf16.mxu0 0
    %2663 = vmatmul.mubr.bf16.gmra.mxu0 %v2566
    %v2664 = vpop.f32.mrf.mxu0
    %v2665 = vadd.f32 0.0, %v2664
    %v2666 = vpop.f32.mrf.mxu0
    %v2667 = vpop.f32.mrf.mxu0
    %v2668 = vadd.f32 0.0, %v2667
    %v2669 = vpop.f32.mrf.mxu0
    %2670 = vmatprep.mubr.bf16.mxu0 0
    %2671 = vmatmul.mubr.bf16.gmra.mxu0 %v2567
    %v2672 = vpop.f32.mrf.mxu0
    %v2673 = vadd.f32 0.0, %v2672
    %v2674 = vpop.f32.mrf.mxu0
    %v2675 = vpop.f32.mrf.mxu0
    %v2676 = vadd.f32 0.0, %v2675
    %v2677 = vpop.f32.mrf.mxu0
    %2678 = vmatprep.mubr.bf16.mxu0 0
    %2679 = vmatmul.mubr.bf16.gmra.mxu0 %v2568
    %v2680 = vpop.f32.mrf.mxu0
    %v2681 = vadd.f32 0.0, %v2680
    %v2682 = vpop.f32.mrf.mxu0
    %v2683 = vpop.f32.mrf.mxu0
    %v2684 = vadd.f32 0.0, %v2683
    %v2685 = vpop.f32.mrf.mxu0
    %2686 = vmatprep.mubr.bf16.mxu0 0
    %2687 = vmatmul.mubr.bf16.gmra.mxu0 %v2569
    %v2688 = vpop.f32.mrf.mxu0
    %v2689 = vadd.f32 0.0, %v2688
    %v2690 = vpop.f32.mrf.mxu0
    %v2691 = vpop.f32.mrf.mxu0
    %v2692 = vadd.f32 0.0, %v2691
    %v2693 = vpop.f32.mrf.mxu0
    %2694 = vmatprep.mubr.bf16.mxu0 0
    %2695 = vmatmul.mubr.bf16.gmra.mxu0 %v2570
    %v2696 = vpop.f32.mrf.mxu0
    %v2697 = vadd.f32 0.0, %v2696
    %v2698 = vpop.f32.mrf.mxu0
    %v2699 = vpop.f32.mrf.mxu0
    %v2700 = vadd.f32 0.0, %v2699
    %v2701 = vpop.f32.mrf.mxu0
    %2702 = vmatprep.mubr.bf16.mxu0 0
    %2703 = vmatmul.mubr.bf16.gmra.mxu0 %v2571
    %v2704 = vpop.f32.mrf.mxu0
    %v2705 = vadd.f32 0.0, %v2704
    %v2706 = vpop.f32.mrf.mxu0
    %v2707 = vpop.f32.mrf.mxu0
    %v2708 = vadd.f32 0.0, %v2707
    %v2709 = vpop.f32.mrf.mxu0
    %2710 = vmatprep.mubr.bf16.mxu0 0
    %2711 = vmatmul.mubr.bf16.gmra.mxu0 %v2572
    %v2712 = vpop.f32.mrf.mxu0
    %v2713 = vadd.f32 0.0, %v2712
    %v2714 = vpop.f32.mrf.mxu0
    %v2715 = vpop.f32.mrf.mxu0
    %v2716 = vadd.f32 0.0, %v2715
    %v2717 = vpop.f32.mrf.mxu0
    %2718 = vmatprep.mubr.bf16.mxu0 0
    %2719 = vmatmul.mubr.bf16.gmra.mxu0 %v2573
    %v2720 = vpop.f32.mrf.mxu0
    %v2721 = vadd.f32 0.0, %v2720
    %v2722 = vpop.f32.mrf.mxu0
    %v2723 = vpop.f32.mrf.mxu0
    %v2724 = vadd.f32 0.0, %v2723
    %v2725 = vpop.f32.mrf.mxu0
    %2726 = vdwg.mxu0
    %v2727 = vadd.f32 %v2261, %v2665
    %v2728 = vadd.f32 %v2262, %v2668
    %v2729 = vadd.f32 %v2263, %v2673
    %v2730 = vadd.f32 %v2264, %v2676
    %v2731 = vadd.f32 %v2265, %v2681
    %v2732 = vadd.f32 %v2266, %v2684
    %v2733 = vadd.f32 %v2267, %v2689
    %v2734 = vadd.f32 %v2268, %v2692
    %v2735 = vadd.f32 %v2269, %v2697
    %v2736 = vadd.f32 %v2270, %v2700
    %v2737 = vadd.f32 %v2271, %v2705
    %v2738 = vadd.f32 %v2272, %v2708
    %v2739 = vadd.f32 %v2273, %v2713
    %v2740 = vadd.f32 %v2274, %v2716
    %v2741 = vadd.f32 %v2275, %v2721
    %v2742 = vadd.f32 %v2276, %v2724
    %v2743 = vld [vmem:[%s2034] sm:$0xe]
    %v2744 = vld [vmem:[%s2034 + $0x8] sm:$0xe]
    %v2745 = vld [vmem:[%s2034 + $0x10] sm:$0xe]
    %v2746 = vld [vmem:[%s2034 + $0x18] sm:$0xe]
    %v2747 = vld [vmem:[%s2034 + $0x20] sm:$0xe]
    %v2748 = vld [vmem:[%s2034 + $0x28] sm:$0xe]
    %v2749 = vld [vmem:[%s2034 + $0x30] sm:$0xe]
    %v2750 = vld [vmem:[%s2034 + $0x38] sm:$0xe]
    %v2751 = vld [vmem:[%s2034 + $0x50] sm:$0xe]
    %v2752 = vld [vmem:[%s2034 + $0x58] sm:$0xe]
    %v2753 = vld [vmem:[%s2034 + $0x60] sm:$0xe]
    %v2754 = vld [vmem:[%s2034 + $0x68] sm:$0xe]
    %v2755 = vld [vmem:[%s2034 + $0x70] sm:$0xe]
    %v2756 = vld [vmem:[%s2034 + $0x78] sm:$0xe]
    %v2757 = vld [vmem:[%s2034 + $0x80] sm:$0xe]
    %v2758 = vld [vmem:[%s2034 + $0x88] sm:$0xe]
    %v2791 = vrot.slane %v2743, 5
    %v2792 = vrot.slane %v2791, 4
    %v2793 = vrot.slane %v2278, 5
    %v2794 = vsel %vm728, %v2792, %v2793
    %v2795 = vrot.slane %v2744, 5
    %v2796 = vrot.slane %v2795, 4
    %v2797 = vrot.slane %v2280, 5
    %v2798 = vsel %vm728, %v2796, %v2797
    %v2799 = vrot.slane %v2745, 5
    %v2800 = vrot.slane %v2799, 4
    %v2801 = vrot.slane %v2282, 5
    %v2802 = vsel %vm728, %v2800, %v2801
    %v2803 = vrot.slane %v2746, 5
    %v2804 = vrot.slane %v2803, 4
    %v2805 = vrot.slane %v2284, 5
    %v2806 = vsel %vm728, %v2804, %v2805
    %v2807 = vrot.slane %v2747, 5
    %v2808 = vrot.slane %v2807, 4
    %v2809 = vrot.slane %v2286, 5
    %v2810 = vsel %vm728, %v2808, %v2809
    %v2811 = vrot.slane %v2748, 5
    %v2812 = vrot.slane %v2811, 4
    %v2813 = vrot.slane %v2288, 5
    %v2814 = vsel %vm728, %v2812, %v2813
    %v2815 = vrot.slane %v2749, 5
    %v2816 = vrot.slane %v2815, 4
    %v2817 = vrot.slane %v2290, 5
    %v2818 = vsel %vm728, %v2816, %v2817
    %v2819 = vrot.slane %v2750, 5
    %v2820 = vrot.slane %v2819, 4
    %v2821 = vrot.slane %v2292, 5
    %v2822 = vsel %vm728, %v2820, %v2821
    %v2823 = vrot.slane %v2751, 5
    %v2824 = vrot.slane %v2823, 4
    %v2825 = vrot.slane %v2294, 5
    %v2826 = vsel %vm728, %v2824, %v2825
    %v2827 = vrot.slane %v2752, 5
    %v2828 = vrot.slane %v2827, 4
    %v2829 = vrot.slane %v2296, 5
    %v2830 = vsel %vm728, %v2828, %v2829
    %v2831 = vrot.slane %v2753, 5
    %v2832 = vrot.slane %v2831, 4
    %v2833 = vrot.slane %v2298, 5
    %v2834 = vsel %vm728, %v2832, %v2833
    %v2835 = vrot.slane %v2754, 5
    %v2836 = vrot.slane %v2835, 4
    %v2837 = vrot.slane %v2300, 5
    %v2838 = vsel %vm728, %v2836, %v2837
    %v2839 = vrot.slane %v2755, 5
    %v2840 = vrot.slane %v2839, 4
    %v2841 = vrot.slane %v2302, 5
    %v2842 = vsel %vm728, %v2840, %v2841
    %v2843 = vrot.slane %v2756, 5
    %v2844 = vrot.slane %v2843, 4
    %v2845 = vrot.slane %v2304, 5
    %v2846 = vsel %vm728, %v2844, %v2845
    %v2847 = vrot.slane %v2757, 5
    %v2848 = vrot.slane %v2847, 4
    %v2849 = vrot.slane %v2306, 5
    %v2850 = vsel %vm728, %v2848, %v2849
    %v2851 = vrot.slane %v2758, 5
    %v2852 = vrot.slane %v2851, 4
    %v2853 = vrot.slane %v2308, 5
    %v2854 = vsel %vm728, %v2852, %v2853
    %s2855 = scalar_lea.vmem %s1, 512
    %v2856 = vld [vmem:[%s2855] sm:$0xf]
    %v2857 = vld [vmem:[%s2855 + $0x4] sm:$0xf]
    %v2858 = vld [vmem:[%s2855 + $0x8] sm:$0xf]
    %v2859 = vld [vmem:[%s2855 + $0xc] sm:$0xf]
    %v2860 = vld [vmem:[%s2855 + $0x10] sm:$0xf]
    %v2861 = vld [vmem:[%s2855 + $0x14] sm:$0xf]
    %v2862 = vld [vmem:[%s2855 + $0x18] sm:$0xf]
    %v2863 = vld [vmem:[%s2855 + $0x1c] sm:$0xf]
    %v2864 = vld [vmem:[%s2855 + $0x20] sm:$0xf]
    %v2865 = vld [vmem:[%s2855 + $0x24] sm:$0xf]
    %v2866 = vld [vmem:[%s2855 + $0x28] sm:$0xf]
    %v2867 = vld [vmem:[%s2855 + $0x2c] sm:$0xf]
    %v2868 = vld [vmem:[%s2855 + $0x30] sm:$0xf]
    %v2869 = vld [vmem:[%s2855 + $0x34] sm:$0xf]
    %v2870 = vld [vmem:[%s2855 + $0x38] sm:$0xf]
    %v2871 = vld [vmem:[%s2855 + $0x3c] sm:$0xf]
    %v2872 = vunpack.c.l.b16 %v2794
    %v2873 = vunpack.c.l.b16 %v2798
    %v2874 = vunpack.c.l.b16 %v2802
    %v2875 = vunpack.c.l.b16 %v2806
    %v2876 = vunpack.c.l.b16 %v2810
    %v2877 = vunpack.c.l.b16 %v2814
    %v2878 = vunpack.c.l.b16 %v2818
    %v2879 = vunpack.c.l.b16 %v2822
    %v2880 = vunpack.c.l.b16 %v2826
    %v2881 = vunpack.c.l.b16 %v2830
    %v2882 = vunpack.c.l.b16 %v2834
    %v2883 = vunpack.c.l.b16 %v2838
    %v2884 = vunpack.c.l.b16 %v2842
    %v2885 = vunpack.c.l.b16 %v2846
    %v2886 = vunpack.c.l.b16 %v2850
    %v2887 = vunpack.c.l.b16 %v2854
    %v2888 = vpack.c.b16 %v2873, %v2872
    %v2889 = vpack.c.b16 %v2875, %v2874
    %v2890 = vpack.c.b16 %v2877, %v2876
    %v2891 = vpack.c.b16 %v2879, %v2878
    %v2892 = vpack.c.b16 %v2881, %v2880
    %v2893 = vpack.c.b16 %v2883, %v2882
    %v2894 = vpack.c.b16 %v2885, %v2884
    %v2895 = vpack.c.b16 %v2887, %v2886
    %v2920 = vunpack.c.l.b16 %v2856
    %v2921 = vunpack.c.l.b16 %v2857
    %v2922 = vunpack.c.l.b16 %v2858
    %v2923 = vunpack.c.l.b16 %v2859
    %v2924 = vunpack.c.l.b16 %v2860
    %v2925 = vunpack.c.l.b16 %v2861
    %v2926 = vunpack.c.l.b16 %v2862
    %v2927 = vunpack.c.l.b16 %v2863
    %v2928 = vunpack.c.l.b16 %v2864
    %v2929 = vunpack.c.l.b16 %v2865
    %v2930 = vunpack.c.l.b16 %v2866
    %v2931 = vunpack.c.l.b16 %v2867
    %v2932 = vunpack.c.l.b16 %v2868
    %v2933 = vunpack.c.l.b16 %v2869
    %v2934 = vunpack.c.l.b16 %v2870
    %v2935 = vunpack.c.l.b16 %v2871
    %v2936 = vpack.c.b16 %v2921, %v2920
    %v2937 = vpack.c.b16 %v2923, %v2922
    %v2938 = vpack.c.b16 %v2925, %v2924
    %v2939 = vpack.c.b16 %v2927, %v2926
    %v2940 = vpack.c.b16 %v2929, %v2928
    %v2941 = vpack.c.b16 %v2931, %v2930
    %v2942 = vpack.c.b16 %v2933, %v2932
    %v2943 = vpack.c.b16 %v2935, %v2934
    %2952 = vmatprep.subr.bf16.mxu0 0
    %2953 = vmatpush1.bf16.msra.mxu0 %v2943
    %2954 = vmatprep.subr.bf16.mxu0 0
    %2955 = vmatpush1.bf16.msra.mxu0 %v2942
    %2956 = vmatprep.subr.bf16.mxu0 0
    %2957 = vmatpush1.bf16.msra.mxu0 %v2941
    %2958 = vmatprep.subr.bf16.mxu0 0
    %2959 = vmatpush1.bf16.msra.mxu0 %v2940
    %2960 = vmatprep.subr.bf16.mxu0 0
    %2961 = vmatpush1.bf16.msra.mxu0 %v2939
    %2962 = vmatprep.subr.bf16.mxu0 0
    %2963 = vmatpush1.bf16.msra.mxu0 %v2938
    %2964 = vmatprep.subr.bf16.mxu0 0
    %2965 = vmatpush1.bf16.msra.mxu0 %v2937
    %2966 = vmatprep.subr.bf16.mxu0 0
    %2967 = vmatpush1.bf16.msra.mxu0 %v2936
    %2968 = vmatprep.subr.bf16.mxu0 0
    %2969 = vmatpush2.bf16.msra.mxu0 0
    %2970 = vmatprep.subr.bf16.mxu0 0
    %2971 = vmatpush2.bf16.msra.mxu0 0
    %2972 = vmatprep.subr.bf16.mxu0 0
    %2973 = vmatpush2.bf16.msra.mxu0 0
    %2974 = vmatprep.subr.bf16.mxu0 0
    %2975 = vmatpush2.bf16.msra.mxu0 0
    %2976 = vmatprep.subr.bf16.mxu0 0
    %2977 = vmatpush2.bf16.msra.mxu0 0
    %2978 = vmatprep.subr.bf16.mxu0 0
    %2979 = vmatpush2.bf16.msra.mxu0 0
    %2980 = vmatprep.subr.bf16.mxu0 0
    %2981 = vmatpush2.bf16.msra.mxu0 0
    %2982 = vmatprep.subr.bf16.mxu0 0
    %2983 = vmatpush2.bf16.msra.mxu0 0
    %2984 = vmatprep.mubr.bf16.mxu0 0
    %2985 = vmatmul.mubr.bf16.gmra.mxu0 %v2888
    %v2986 = vpop.f32.mrf.mxu0
    %v2987 = vadd.f32 0.0, %v2986
    %v2988 = vpop.f32.mrf.mxu0
    %v2989 = vpop.f32.mrf.mxu0
    %v2990 = vadd.f32 0.0, %v2989
    %v2991 = vpop.f32.mrf.mxu0
    %2992 = vmatprep.mubr.bf16.mxu0 0
    %2993 = vmatmul.mubr.bf16.gmra.mxu0 %v2889
    %v2994 = vpop.f32.mrf.mxu0
    %v2995 = vadd.f32 0.0, %v2994
    %v2996 = vpop.f32.mrf.mxu0
    %v2997 = vpop.f32.mrf.mxu0
    %v2998 = vadd.f32 0.0, %v2997
    %v2999 = vpop.f32.mrf.mxu0
    %3000 = vmatprep.mubr.bf16.mxu0 0
    %3001 = vmatmul.mubr.bf16.gmra.mxu0 %v2890
    %v3002 = vpop.f32.mrf.mxu0
    %v3003 = vadd.f32 0.0, %v3002
    %v3004 = vpop.f32.mrf.mxu0
    %v3005 = vpop.f32.mrf.mxu0
    %v3006 = vadd.f32 0.0, %v3005
    %v3007 = vpop.f32.mrf.mxu0
    %3008 = vmatprep.mubr.bf16.mxu0 0
    %3009 = vmatmul.mubr.bf16.gmra.mxu0 %v2891
    %v3010 = vpop.f32.mrf.mxu0
    %v3011 = vadd.f32 0.0, %v3010
    %v3012 = vpop.f32.mrf.mxu0
    %v3013 = vpop.f32.mrf.mxu0
    %v3014 = vadd.f32 0.0, %v3013
    %v3015 = vpop.f32.mrf.mxu0
    %3016 = vmatprep.mubr.bf16.mxu0 0
    %3017 = vmatmul.mubr.bf16.gmra.mxu0 %v2892
    %v3018 = vpop.f32.mrf.mxu0
    %v3019 = vadd.f32 0.0, %v3018
    %v3020 = vpop.f32.mrf.mxu0
    %v3021 = vpop.f32.mrf.mxu0
    %v3022 = vadd.f32 0.0, %v3021
    %v3023 = vpop.f32.mrf.mxu0
    %3024 = vmatprep.mubr.bf16.mxu0 0
    %3025 = vmatmul.mubr.bf16.gmra.mxu0 %v2893
    %v3026 = vpop.f32.mrf.mxu0
    %v3027 = vadd.f32 0.0, %v3026
    %v3028 = vpop.f32.mrf.mxu0
    %v3029 = vpop.f32.mrf.mxu0
    %v3030 = vadd.f32 0.0, %v3029
    %v3031 = vpop.f32.mrf.mxu0
    %3032 = vmatprep.mubr.bf16.mxu0 0
    %3033 = vmatmul.mubr.bf16.gmra.mxu0 %v2894
    %v3034 = vpop.f32.mrf.mxu0
    %v3035 = vadd.f32 0.0, %v3034
    %v3036 = vpop.f32.mrf.mxu0
    %v3037 = vpop.f32.mrf.mxu0
    %v3038 = vadd.f32 0.0, %v3037
    %v3039 = vpop.f32.mrf.mxu0
    %3040 = vmatprep.mubr.bf16.mxu0 0
    %3041 = vmatmul.mubr.bf16.gmra.mxu0 %v2895
    %v3042 = vpop.f32.mrf.mxu0
    %v3043 = vadd.f32 0.0, %v3042
    %v3044 = vpop.f32.mrf.mxu0
    %v3045 = vpop.f32.mrf.mxu0
    %v3046 = vadd.f32 0.0, %v3045
    %v3047 = vpop.f32.mrf.mxu0
    %3048 = vdwg.mxu0
    %v3049 = vadd.f32 %v2727, %v2987
    %v3050 = vadd.f32 %v2728, %v2990
    %v3051 = vadd.f32 %v2729, %v2995
    %v3052 = vadd.f32 %v2730, %v2998
    %v3053 = vadd.f32 %v2731, %v3003
    %v3054 = vadd.f32 %v2732, %v3006
    %v3055 = vadd.f32 %v2733, %v3011
    %v3056 = vadd.f32 %v2734, %v3014
    %v3057 = vadd.f32 %v2735, %v3019
    %v3058 = vadd.f32 %v2736, %v3022
    %v3059 = vadd.f32 %v2737, %v3027
    %v3060 = vadd.f32 %v2738, %v3030
    %v3061 = vadd.f32 %v2739, %v3035
    %v3062 = vadd.f32 %v2740, %v3038
    %v3063 = vadd.f32 %v2741, %v3043
    %v3064 = vadd.f32 %v2742, %v3046
    %v3065 = vld [vmem:[%s2] sm:$0xf]
    %v3066 = vld [vmem:[%s2 + $0x4] sm:$0xf]
    %v3067 = vld [vmem:[%s2 + $0x8] sm:$0xf]
    %v3068 = vld [vmem:[%s2 + $0xc] sm:$0xf]
    %v3069 = vld [vmem:[%s2 + $0x10] sm:$0xf]
    %v3070 = vld [vmem:[%s2 + $0x14] sm:$0xf]
    %v3071 = vld [vmem:[%s2 + $0x18] sm:$0xf]
    %v3072 = vld [vmem:[%s2 + $0x1c] sm:$0xf]
    %v3073 = vld [vmem:[%s2 + $0x20] sm:$0xf]
    %v3074 = vld [vmem:[%s2 + $0x24] sm:$0xf]
    %v3075 = vld [vmem:[%s2 + $0x28] sm:$0xf]
    %v3076 = vld [vmem:[%s2 + $0x2c] sm:$0xf]
    %v3077 = vld [vmem:[%s2 + $0x30] sm:$0xf]
    %v3078 = vld [vmem:[%s2 + $0x34] sm:$0xf]
    %v3079 = vld [vmem:[%s2 + $0x38] sm:$0xf]
    %v3080 = vld [vmem:[%s2 + $0x3c] sm:$0xf]
    %v3081 = vunpack.c.l.bf16 %v3065
    %v3082 = vunpack.c.l.bf16 %v3066
    %v3083 = vunpack.c.l.bf16 %v3067
    %v3084 = vunpack.c.l.bf16 %v3068
    %v3085 = vunpack.c.l.bf16 %v3069
    %v3086 = vunpack.c.l.bf16 %v3070
    %v3087 = vunpack.c.l.bf16 %v3071
    %v3088 = vunpack.c.l.bf16 %v3072
    %v3089 = vunpack.c.l.bf16 %v3073
    %v3090 = vunpack.c.l.bf16 %v3074
    %v3091 = vunpack.c.l.bf16 %v3075
    %v3092 = vunpack.c.l.bf16 %v3076
    %v3093 = vunpack.c.l.bf16 %v3077
    %v3094 = vunpack.c.l.bf16 %v3078
    %v3095 = vunpack.c.l.bf16 %v3079
    %v3096 = vunpack.c.l.bf16 %v3080
    %v3097 = vadd.f32 %v3049, %v3081
    %v3098 = vadd.f32 %v3050, %v3082
    %v3099 = vadd.f32 %v3051, %v3083
    %v3100 = vadd.f32 %v3052, %v3084
    %v3101 = vadd.f32 %v3053, %v3085
    %v3102 = vadd.f32 %v3054, %v3086
    %v3103 = vadd.f32 %v3055, %v3087
    %v3104 = vadd.f32 %v3056, %v3088
    %v3105 = vadd.f32 %v3057, %v3089
    %v3106 = vadd.f32 %v3058, %v3090
    %v3107 = vadd.f32 %v3059, %v3091
    %v3108 = vadd.f32 %v3060, %v3092
    %v3109 = vadd.f32 %v3061, %v3093
    %v3110 = vadd.f32 %v3062, %v3094
    %v3111 = vadd.f32 %v3063, %v3095
    %v3112 = vadd.f32 %v3064, %v3096
    %3113 = vst [vmem:[#allocation2] sm:$0xff] %v3097
    %3114 = vst [vmem:[#allocation2 + $0x8] sm:$0xff] %v3098
    %3115 = vst [vmem:[#allocation2 + $0x10] sm:$0xff] %v3099
    %3116 = vst [vmem:[#allocation2 + $0x18] sm:$0xff] %v3100
    %3117 = vst [vmem:[#allocation2 + $0x20] sm:$0xff] %v3101
    %3118 = vst [vmem:[#allocation2 + $0x28] sm:$0xff] %v3102
    %3119 = vst [vmem:[#allocation2 + $0x30] sm:$0xff] %v3103
    %3120 = vst [vmem:[#allocation2 + $0x38] sm:$0xff] %v3104
    %3121 = vst [vmem:[#allocation2 + $0x40] sm:$0xff] %v3105
    %3122 = vst [vmem:[#allocation2 + $0x48] sm:$0xff] %v3106
    %3123 = vst [vmem:[#allocation2 + $0x50] sm:$0xff] %v3107
    %3124 = vst [vmem:[#allocation2 + $0x58] sm:$0xff] %v3108
    %3125 = vst [vmem:[#allocation2 + $0x60] sm:$0xff] %v3109
    %3126 = vst [vmem:[#allocation2 + $0x68] sm:$0xff] %v3110
    %3127 = vst [vmem:[#allocation2 + $0x70] sm:$0xff] %v3111
    %3128 = vst [vmem:[#allocation2 + $0x78] sm:$0xff] %v3112
    // Predicated region
    $region14: #{fwd.7} parent=1 // pred_check
      _
    $region15: #{fwd.7} parent=1 // pred_check_branch
      %3130 = sbr.rel (0) target = $region17
    $region16: #{fwd.7} parent=1 // pred_region
      %s3132 = ssub.s32 2048, 2048
      %3133 = vsyncadd [#allocation3], %s3132
      %s3134 = sshll.u32 [#allocation2], 4
      %s3135 = int_to_ptr.vmem [resolvable:$true] %s3134
      %3140 = dma.vmem_to_hbm [thread:$0]  %s3135, 2048, %s3, [#allocation3], 128, 128, 8
    $region17: #{fwd.7} parent=1 // pred_fallthru
      _
    // Predicated region
    $region18: #{fwd.7} parent=1 // pred_check
      _
    $region19: #{fwd.7} parent=1 // pred_check_branch
      %3142 = sbr.rel (0) target = $region21
    $region20: #{fwd.7} parent=1 // pred_region
      %3143 = dma.done [#allocation3], 2048
    $region21: #{fwd.7} parent=1 // pred_fallthru
      _
    %3144 = vsyncpa [#allocation3], 1

// kernel: fwd.5
$region0: #{fwd.5}
  #allocation0 [shape = 'u32[]', space=smem, size = 0x4, offset = 0x4, fixed_abs, tag = 'smem constant byte address 0x4 - core index']
  #allocation1 [shape = 'u32[144,128]{1,0:T(1,128)}', space=vmem, size = 0x12000, scoped, tag = 'internal scratch']
  %s0 = inlined_call_operand.vmem [shape: bf16[2,10,10,128], index: 0, kind: input, shape index: {}]
  %s1 = inlined_call_operand.vmem [shape: bf16[9,128,128], index: 1, kind: input, shape index: {}]
  %s2 = inlined_call_operand.vmem [shape: bf16[2,8,8,64], index: 2, kind: input, shape index: {}]
  %s3 = inlined_call_operand.vmem [shape: bf16[1,64,128], index: 3, kind: input, shape index: {}]
  %s4 = inlined_call_operand.vmem [shape: bf16[2,8,8,128], index: 4, kind: output, shape index: {}]
  %s5 = sld [smem:[#allocation0]]
  $region26: #{fwd.5} parent=0
    _
  %s7 = ssub.s32 1, %s5
  %s8 = scalar_select 0, %s7, %s5
  // Predicated region
  $region2: #{fwd.5} parent=0 // pred_check
    _
  $region3: #{fwd.5} parent=0 // pred_check_branch
    %10 = sbr.rel (0) target = $region5
  $region4: #{fwd.5} parent=0 // pred_region
    _
  $region5: #{fwd.5} parent=0 // pred_fallthru
    _
  // Predicated region
  $region6: #{fwd.5} parent=0 // pred_check
    _
  $region7: #{fwd.5} parent=0 // pred_check_branch
    %12 = sbr.rel (0) target = $region9
  $region8: #{fwd.5} parent=0 // pred_region
    _
  $region9: #{fwd.5} parent=0 // pred_fallthru
    _
  // Predicated region
  $region10: #{fwd.5} parent=0 // pred_check
    _
  $region11: #{fwd.5} parent=0 // pred_check_branch
    %14 = sbr.rel (0) target = $region13
  $region12: #{fwd.5} parent=0 // pred_region
    _
  $region13: #{fwd.5} parent=0 // pred_fallthru
    _
  // Predicated region
  $region14: #{fwd.5} parent=0 // pred_check
    _
  $region15: #{fwd.5} parent=0 // pred_check_branch
    %16 = sbr.rel (0) target = $region17
  $region16: #{fwd.5} parent=0 // pred_region
    _
  $region17: #{fwd.5} parent=0 // pred_fallthru
    _
  %v18 = vld [vmem:[%s0] sm:$0xf]
  %v19 = vld [vmem:[%s0 + $0x8] sm:$0xf]
  %v20 = vld [vmem:[%s0 + $0x10] sm:$0xf]
  %v21 = vld [vmem:[%s0 + $0x18] sm:$0xf]
  %v22 = vld [vmem:[%s0 + $0x20] sm:$0xf]
  %v23 = vld [vmem:[%s0 + $0x28] sm:$0xf]
  %v24 = vld [vmem:[%s0 + $0x30] sm:$0xf]
  %v25 = vld [vmem:[%s0 + $0x38] sm:$0xf]
  %v26 = vld [vmem:[%s0 + $0x50] sm:$0xf]
  %v27 = vld [vmem:[%s0 + $0x58] sm:$0xf]
  %v28 = vld [vmem:[%s0 + $0x60] sm:$0xf]
  %v29 = vld [vmem:[%s0 + $0x68] sm:$0xf]
  %v30 = vld [vmem:[%s0 + $0x70] sm:$0xf]
  %v31 = vld [vmem:[%s0 + $0x78] sm:$0xf]
  %v32 = vld [vmem:[%s0 + $0x80] sm:$0xf]
  %v33 = vld [vmem:[%s0 + $0x88] sm:$0xf]
  %v34 = vld [vmem:[%s1] sm:$0xf]
  %v35 = vld [vmem:[%s1 + $0x4] sm:$0xf]
  %v36 = vld [vmem:[%s1 + $0x8] sm:$0xf]
  %v37 = vld [vmem:[%s1 + $0xc] sm:$0xf]
  %v38 = vld [vmem:[%s1 + $0x10] sm:$0xf]
  %v39 = vld [vmem:[%s1 + $0x14] sm:$0xf]
  %v40 = vld [vmem:[%s1 + $0x18] sm:$0xf]
  %v41 = vld [vmem:[%s1 + $0x1c] sm:$0xf]
  %v42 = vld [vmem:[%s1 + $0x20] sm:$0xf]
  %v43 = vld [vmem:[%s1 + $0x24] sm:$0xf]
  %v44 = vld [vmem:[%s1 + $0x28] sm:$0xf]
  %v45 = vld [vmem:[%s1 + $0x2c] sm:$0xf]
  %v46 = vld [vmem:[%s1 + $0x30] sm:$0xf]
  %v47 = vld [vmem:[%s1 + $0x34] sm:$0xf]
  %v48 = vld [vmem:[%s1 + $0x38] sm:$0xf]
  %v49 = vld [vmem:[%s1 + $0x3c] sm:$0xf]
  %v50 = vld [vmem:[%s0 + $0x4] sm:$0x1]
  %v51 = vld [vmem:[%s0 + $0xc] sm:$0x1]
  %v52 = vld [vmem:[%s0 + $0x14] sm:$0x1]
  %v53 = vld [vmem:[%s0 + $0x1c] sm:$0x1]
  %v54 = vld [vmem:[%s0 + $0x24] sm:$0x1]
  %v55 = vld [vmem:[%s0 + $0x2c] sm:$0x1]
  %v56 = vld [vmem:[%s0 + $0x34] sm:$0x1]
  %v57 = vld [vmem:[%s0 + $0x3c] sm:$0x1]
  %v58 = vld [vmem:[%s0 + $0x54] sm:$0x1]
  %v59 = vld [vmem:[%s0 + $0x5c] sm:$0x1]
  %v60 = vld [vmem:[%s0 + $0x64] sm:$0x1]
  %v61 = vld [vmem:[%s0 + $0x6c] sm:$0x1]
  %v62 = vld [vmem:[%s0 + $0x74] sm:$0x1]
  %v63 = vld [vmem:[%s0 + $0x7c] sm:$0x1]
  %v64 = vld [vmem:[%s0 + $0x84] sm:$0x1]
  %v65 = vld [vmem:[%s0 + $0x8c] sm:$0x1]
  %vm66 = vsmask.f32 3328
  %vm67 = vsmask.f32 7440
  %vm68 = vmor %vm66, %vm67
  %v70 = vshrl.u32 %v18, 16
  %v72 = vrot.slane %v70, 4
  %v73 = vshll.u32 %v18, 16
  %v75 = vrot.slane %v73, 5
  %v76 = vor.u32 %v72, %v75
  %v77 = vrot.slane %v76, 4
  %v79 = vshll.u32 %v50, 16
  %v81 = vrot.slane %v79, 5
  %v82 = vsel %vm68, %v77, %v81
  %v84 = vshrl.u32 %v19, 16
  %v86 = vrot.slane %v84, 4
  %v87 = vshll.u32 %v19, 16
  %v89 = vrot.slane %v87, 5
  %v90 = vor.u32 %v86, %v89
  %v91 = vrot.slane %v90, 4
  %v93 = vshll.u32 %v51, 16
  %v95 = vrot.slane %v93, 5
  %v96 = vsel %vm68, %v91, %v95
  %v98 = vshrl.u32 %v20, 16
  %v100 = vrot.slane %v98, 4
  %v101 = vshll.u32 %v20, 16
  %v103 = vrot.slane %v101, 5
  %v104 = vor.u32 %v100, %v103
  %v105 = vrot.slane %v104, 4
  %v107 = vshll.u32 %v52, 16
  %v109 = vrot.slane %v107, 5
  %v110 = vsel %vm68, %v105, %v109
  %v112 = vshrl.u32 %v21, 16
  %v114 = vrot.slane %v112, 4
  %v115 = vshll.u32 %v21, 16
  %v117 = vrot.slane %v115, 5
  %v118 = vor.u32 %v114, %v117
  %v119 = vrot.slane %v118, 4
  %v121 = vshll.u32 %v53, 16
  %v123 = vrot.slane %v121, 5
  %v124 = vsel %vm68, %v119, %v123
  %v126 = vshrl.u32 %v22, 16
  %v128 = vrot.slane %v126, 4
  %v129 = vshll.u32 %v22, 16
  %v131 = vrot.slane %v129, 5
  %v132 = vor.u32 %v128, %v131
  %v133 = vrot.slane %v132, 4
  %v135 = vshll.u32 %v54, 16
  %v137 = vrot.slane %v135, 5
  %v138 = vsel %vm68, %v133, %v137
  %v140 = vshrl.u32 %v23, 16
  %v142 = vrot.slane %v140, 4
  %v143 = vshll.u32 %v23, 16
  %v145 = vrot.slane %v143, 5
  %v146 = vor.u32 %v142, %v145
  %v147 = vrot.slane %v146, 4
  %v149 = vshll.u32 %v55, 16
  %v151 = vrot.slane %v149, 5
  %v152 = vsel %vm68, %v147, %v151
  %v154 = vshrl.u32 %v24, 16
  %v156 = vrot.slane %v154, 4
  %v157 = vshll.u32 %v24, 16
  %v159 = vrot.slane %v157, 5
  %v160 = vor.u32 %v156, %v159
  %v161 = vrot.slane %v160, 4
  %v163 = vshll.u32 %v56, 16
  %v165 = vrot.slane %v163, 5
  %v166 = vsel %vm68, %v161, %v165
  %v168 = vshrl.u32 %v25, 16
  %v170 = vrot.slane %v168, 4
  %v171 = vshll.u32 %v25, 16
  %v173 = vrot.slane %v171, 5
  %v174 = vor.u32 %v170, %v173
  %v175 = vrot.slane %v174, 4
  %v177 = vshll.u32 %v57, 16
  %v179 = vrot.slane %v177, 5
  %v180 = vsel %vm68, %v175, %v179
  %v182 = vshrl.u32 %v26, 16
  %v184 = vrot.slane %v182, 4
  %v185 = vshll.u32 %v26, 16
  %v187 = vrot.slane %v185, 5
  %v188 = vor.u32 %v184, %v187
  %v189 = vrot.slane %v188, 4
  %v191 = vshll.u32 %v58, 16
  %v193 = vrot.slane %v191, 5
  %v194 = vsel %vm68, %v189, %v193
  %v196 = vshrl.u32 %v27, 16
  %v198 = vrot.slane %v196, 4
  %v199 = vshll.u32 %v27, 16
  %v201 = vrot.slane %v199, 5
  %v202 = vor.u32 %v198, %v201
  %v203 = vrot.slane %v202, 4
  %v205 = vshll.u32 %v59, 16
  %v207 = vrot.slane %v205, 5
  %v208 = vsel %vm68, %v203, %v207
  %v210 = vshrl.u32 %v28, 16
  %v212 = vrot.slane %v210, 4
  %v213 = vshll.u32 %v28, 16
  %v215 = vrot.slane %v213, 5
  %v216 = vor.u32 %v212, %v215
  %v217 = vrot.slane %v216, 4
  %v219 = vshll.u32 %v60, 16
  %v221 = vrot.slane %v219, 5
  %v222 = vsel %vm68, %v217, %v221
  %v224 = vshrl.u32 %v29, 16
  %v226 = vrot.slane %v224, 4
  %v227 = vshll.u32 %v29, 16
  %v229 = vrot.slane %v227, 5
  %v230 = vor.u32 %v226, %v229
  %v231 = vrot.slane %v230, 4
  %v233 = vshll.u32 %v61, 16
  %v235 = vrot.slane %v233, 5
  %v236 = vsel %vm68, %v231, %v235
  %v238 = vshrl.u32 %v30, 16
  %v240 = vrot.slane %v238, 4
  %v241 = vshll.u32 %v30, 16
  %v243 = vrot.slane %v241, 5
  %v244 = vor.u32 %v240, %v243
  %v245 = vrot.slane %v244, 4
  %v247 = vshll.u32 %v62, 16
  %v249 = vrot.slane %v247, 5
  %v250 = vsel %vm68, %v245, %v249
  %v252 = vshrl.u32 %v31, 16
  %v254 = vrot.slane %v252, 4
  %v255 = vshll.u32 %v31, 16
  %v257 = vrot.slane %v255, 5
  %v258 = vor.u32 %v254, %v257
  %v259 = vrot.slane %v258, 4
  %v261 = vshll.u32 %v63, 16
  %v263 = vrot.slane %v261, 5
  %v264 = vsel %vm68, %v259, %v263
  %v266 = vshrl.u32 %v32, 16
  %v268 = vrot.slane %v266, 4
  %v269 = vshll.u32 %v32, 16
  %v271 = vrot.slane %v269, 5
  %v272 = vor.u32 %v268, %v271
  %v273 = vrot.slane %v272, 4
  %v275 = vshll.u32 %v64, 16
  %v277 = vrot.slane %v275, 5
  %v278 = vsel %vm68, %v273, %v277
  %v280 = vshrl.u32 %v33, 16
  %v282 = vrot.slane %v280, 4
  %v283 = vshll.u32 %v33, 16
  %v285 = vrot.slane %v283, 5
  %v286 = vor.u32 %v282, %v285
  %v287 = vrot.slane %v286, 4
  %v289 = vshll.u32 %v65, 16
  %v291 = vrot.slane %v289, 5
  %v292 = vsel %vm68, %v287, %v291
  %s293 = scalar_lea.vmem %s1, 64
  %v294 = vld [vmem:[%s293] sm:$0xf]
  %v295 = vld [vmem:[%s293 + $0x4] sm:$0xf]
  %v296 = vld [vmem:[%s293 + $0x8] sm:$0xf]
  %v297 = vld [vmem:[%s293 + $0xc] sm:$0xf]
  %v298 = vld [vmem:[%s293 + $0x10] sm:$0xf]
  %v299 = vld [vmem:[%s293 + $0x14] sm:$0xf]
  %v300 = vld [vmem:[%s293 + $0x18] sm:$0xf]
  %v301 = vld [vmem:[%s293 + $0x1c] sm:$0xf]
  %v302 = vld [vmem:[%s293 + $0x20] sm:$0xf]
  %v303 = vld [vmem:[%s293 + $0x24] sm:$0xf]
  %v304 = vld [vmem:[%s293 + $0x28] sm:$0xf]
  %v305 = vld [vmem:[%s293 + $0x2c] sm:$0xf]
  %v306 = vld [vmem:[%s293 + $0x30] sm:$0xf]
  %v307 = vld [vmem:[%s293 + $0x34] sm:$0xf]
  %v308 = vld [vmem:[%s293 + $0x38] sm:$0xf]
  %v309 = vld [vmem:[%s293 + $0x3c] sm:$0xf]
  %v310 = vunpack.c.l.b16 %v82
  %v311 = vunpack.c.l.b16 %v96
  %v312 = vunpack.c.l.b16 %v110
  %v313 = vunpack.c.l.b16 %v124
  %v314 = vunpack.c.l.b16 %v138
  %v315 = vunpack.c.l.b16 %v152
  %v316 = vunpack.c.l.b16 %v166
  %v317 = vunpack.c.l.b16 %v180
  %v318 = vunpack.c.l.b16 %v194
  %v319 = vunpack.c.l.b16 %v208
  %v320 = vunpack.c.l.b16 %v222
  %v321 = vunpack.c.l.b16 %v236
  %v322 = vunpack.c.l.b16 %v250
  %v323 = vunpack.c.l.b16 %v264
  %v324 = vunpack.c.l.b16 %v278
  %v325 = vunpack.c.l.b16 %v292
  %v326 = vpack.c.b16 %v311, %v310
  %v327 = vpack.c.b16 %v313, %v312
  %v328 = vpack.c.b16 %v315, %v314
  %v329 = vpack.c.b16 %v317, %v316
  %v330 = vpack.c.b16 %v319, %v318
  %v331 = vpack.c.b16 %v321, %v320
  %v332 = vpack.c.b16 %v323, %v322
  %v333 = vpack.c.b16 %v325, %v324
  %v358 = vunpack.c.l.b16 %v294
  %v359 = vunpack.c.l.b16 %v295
  %v360 = vunpack.c.l.b16 %v296
  %v361 = vunpack.c.l.b16 %v297
  %v362 = vunpack.c.l.b16 %v298
  %v363 = vunpack.c.l.b16 %v299
  %v364 = vunpack.c.l.b16 %v300
  %v365 = vunpack.c.l.b16 %v301
  %v366 = vunpack.c.l.b16 %v302
  %v367 = vunpack.c.l.b16 %v303
  %v368 = vunpack.c.l.b16 %v304
  %v369 = vunpack.c.l.b16 %v305
  %v370 = vunpack.c.l.b16 %v306
  %v371 = vunpack.c.l.b16 %v307
  %v372 = vunpack.c.l.b16 %v308
  %v373 = vunpack.c.l.b16 %v309
  %v374 = vpack.c.b16 %v359, %v358
  %v375 = vpack.c.b16 %v361, %v360
  %v376 = vpack.c.b16 %v363, %v362
  %v377 = vpack.c.b16 %v365, %v364
  %v378 = vpack.c.b16 %v367, %v366
  %v379 = vpack.c.b16 %v369, %v368
  %v380 = vpack.c.b16 %v371, %v370
  %v381 = vpack.c.b16 %v373, %v372
  %390 = vmatprep.subr.bf16.mxu0 0
  %391 = vmatpush1.bf16.msra.mxu0 %v381
  %392 = vmatprep.subr.bf16.mxu0 0
  %393 = vmatpush1.bf16.msra.mxu0 %v380
  %394 = vmatprep.subr.bf16.mxu0 0
  %395 = vmatpush1.bf16.msra.mxu0 %v379
  %396 = vmatprep.subr.bf16.mxu0 0
  %397 = vmatpush1.bf16.msra.mxu0 %v378
  %398 = vmatprep.subr.bf16.mxu0 0
  %399 = vmatpush1.bf16.msra.mxu0 %v377
  %400 = vmatprep.subr.bf16.mxu0 0
  %401 = vmatpush1.bf16.msra.mxu0 %v376
  %402 = vmatprep.subr.bf16.mxu0 0
  %403 = vmatpush1.bf16.msra.mxu0 %v375
  %404 = vmatprep.subr.bf16.mxu0 0
  %405 = vmatpush1.bf16.msra.mxu0 %v374
  %406 = vmatprep.subr.bf16.mxu0 0
  %407 = vmatpush2.bf16.msra.mxu0 0
  %408 = vmatprep.subr.bf16.mxu0 0
  %409 = vmatpush2.bf16.msra.mxu0 0
  %410 = vmatprep.subr.bf16.mxu0 0
  %411 = vmatpush2.bf16.msra.mxu0 0
  %412 = vmatprep.subr.bf16.mxu0 0
  %413 = vmatpush2.bf16.msra.mxu0 0
  %414 = vmatprep.subr.bf16.mxu0 0
  %415 = vmatpush2.bf16.msra.mxu0 0
  %416 = vmatprep.subr.bf16.mxu0 0
  %417 = vmatpush2.bf16.msra.mxu0 0
  %418 = vmatprep.subr.bf16.mxu0 0
  %419 = vmatpush2.bf16.msra.mxu0 0
  %420 = vmatprep.subr.bf16.mxu0 0
  %421 = vmatpush2.bf16.msra.mxu0 0
  %422 = vmatprep.mubr.bf16.mxu0 0
  %423 = vmatmul.mubr.bf16.gmra.mxu0 %v326
  %v424 = vpop.f32.mrf.mxu0
  %v425 = vadd.f32 0.0, %v424
  %v426 = vpop.f32.mrf.mxu0
  %v427 = vpop.f32.mrf.mxu0
  %v428 = vadd.f32 0.0, %v427
  %v429 = vpop.f32.mrf.mxu0
  %430 = vmatprep.mubr.bf16.mxu0 0
  %431 = vmatmul.mubr.bf16.gmra.mxu0 %v327
  %v432 = vpop.f32.mrf.mxu0
  %v433 = vadd.f32 0.0, %v432
  %v434 = vpop.f32.mrf.mxu0
  %v435 = vpop.f32.mrf.mxu0
  %v436 = vadd.f32 0.0, %v435
  %v437 = vpop.f32.mrf.mxu0
  %438 = vmatprep.mubr.bf16.mxu0 0
  %439 = vmatmul.mubr.bf16.gmra.mxu0 %v328
  %v440 = vpop.f32.mrf.mxu0
  %v441 = vadd.f32 0.0, %v440
  %v442 = vpop.f32.mrf.mxu0
  %v443 = vpop.f32.mrf.mxu0
  %v444 = vadd.f32 0.0, %v443
  %v445 = vpop.f32.mrf.mxu0
  %446 = vmatprep.mubr.bf16.mxu0 0
  %447 = vmatmul.mubr.bf16.gmra.mxu0 %v329
  %v448 = vpop.f32.mrf.mxu0
  %v449 = vadd.f32 0.0, %v448
  %v450 = vpop.f32.mrf.mxu0
  %v451 = vpop.f32.mrf.mxu0
  %v452 = vadd.f32 0.0, %v451
  %v453 = vpop.f32.mrf.mxu0
  %454 = vmatprep.mubr.bf16.mxu0 0
  %455 = vmatmul.mubr.bf16.gmra.mxu0 %v330
  %v456 = vpop.f32.mrf.mxu0
  %v457 = vadd.f32 0.0, %v456
  %v458 = vpop.f32.mrf.mxu0
  %v459 = vpop.f32.mrf.mxu0
  %v460 = vadd.f32 0.0, %v459
  %v461 = vpop.f32.mrf.mxu0
  %462 = vmatprep.mubr.bf16.mxu0 0
  %463 = vmatmul.mubr.bf16.gmra.mxu0 %v331
  %v464 = vpop.f32.mrf.mxu0
  %v465 = vadd.f32 0.0, %v464
  %v466 = vpop.f32.mrf.mxu0
  %v467 = vpop.f32.mrf.mxu0
  %v468 = vadd.f32 0.0, %v467
  %v469 = vpop.f32.mrf.mxu0
  %470 = vmatprep.mubr.bf16.mxu0 0
  %471 = vmatmul.mubr.bf16.gmra.mxu0 %v332
  %v472 = vpop.f32.mrf.mxu0
  %v473 = vadd.f32 0.0, %v472
  %v474 = vpop.f32.mrf.mxu0
  %v475 = vpop.f32.mrf.mxu0
  %v476 = vadd.f32 0.0, %v475
  %v477 = vpop.f32.mrf.mxu0
  %478 = vmatprep.mubr.bf16.mxu0 0
  %479 = vmatmul.mubr.bf16.gmra.mxu0 %v333
  %v480 = vpop.f32.mrf.mxu0
  %v481 = vadd.f32 0.0, %v480
  %v482 = vpop.f32.mrf.mxu0
  %v483 = vpop.f32.mrf.mxu0
  %v484 = vadd.f32 0.0, %v483
  %v485 = vpop.f32.mrf.mxu0
  %486 = vdwg.mxu0
  %v503 = vunpack.c.l.b16 %v18
  %v504 = vunpack.c.l.b16 %v19
  %v505 = vunpack.c.l.b16 %v20
  %v506 = vunpack.c.l.b16 %v21
  %v507 = vunpack.c.l.b16 %v22
  %v508 = vunpack.c.l.b16 %v23
  %v509 = vunpack.c.l.b16 %v24
  %v510 = vunpack.c.l.b16 %v25
  %v511 = vunpack.c.l.b16 %v26
  %v512 = vunpack.c.l.b16 %v27
  %v513 = vunpack.c.l.b16 %v28
  %v514 = vunpack.c.l.b16 %v29
  %v515 = vunpack.c.l.b16 %v30
  %v516 = vunpack.c.l.b16 %v31
  %v517 = vunpack.c.l.b16 %v32
  %v518 = vunpack.c.l.b16 %v33
  %v519 = vpack.c.b16 %v504, %v503
  %v520 = vpack.c.b16 %v506, %v505
  %v521 = vpack.c.b16 %v508, %v507
  %v522 = vpack.c.b16 %v510, %v509
  %v523 = vpack.c.b16 %v512, %v511
  %v524 = vpack.c.b16 %v514, %v513
  %v525 = vpack.c.b16 %v516, %v515
  %v526 = vpack.c.b16 %v518, %v517
  %v551 = vunpack.c.l.b16 %v34
  %v552 = vunpack.c.l.b16 %v35
  %v553 = vunpack.c.l.b16 %v36
  %v554 = vunpack.c.l.b16 %v37
  %v555 = vunpack.c.l.b16 %v38
  %v556 = vunpack.c.l.b16 %v39
  %v557 = vunpack.c.l.b16 %v40
  %v558 = vunpack.c.l.b16 %v41
  %v559 = vunpack.c.l.b16 %v42
  %v560 = vunpack.c.l.b16 %v43
  %v561 = vunpack.c.l.b16 %v44
  %v562 = vunpack.c.l.b16 %v45
  %v563 = vunpack.c.l.b16 %v46
  %v564 = vunpack.c.l.b16 %v47
  %v565 = vunpack.c.l.b16 %v48
  %v566 = vunpack.c.l.b16 %v49
  %v567 = vpack.c.b16 %v552, %v551
  %v568 = vpack.c.b16 %v554, %v553
  %v569 = vpack.c.b16 %v556, %v555
  %v570 = vpack.c.b16 %v558, %v557
  %v571 = vpack.c.b16 %v560, %v559
  %v572 = vpack.c.b16 %v562, %v561
  %v573 = vpack.c.b16 %v564, %v563
  %v574 = vpack.c.b16 %v566, %v565
  %583 = vmatprep.subr.bf16.mxu0 0
  %584 = vmatpush1.bf16.msra.mxu0 %v574
  %585 = vmatprep.subr.bf16.mxu0 0
  %586 = vmatpush1.bf16.msra.mxu0 %v573
  %587 = vmatprep.subr.bf16.mxu0 0
  %588 = vmatpush1.bf16.msra.mxu0 %v572
  %589 = vmatprep.subr.bf16.mxu0 0
  %590 = vmatpush1.bf16.msra.mxu0 %v571
  %591 = vmatprep.subr.bf16.mxu0 0
  %592 = vmatpush1.bf16.msra.mxu0 %v570
  %593 = vmatprep.subr.bf16.mxu0 0
  %594 = vmatpush1.bf16.msra.mxu0 %v569
  %595 = vmatprep.subr.bf16.mxu0 0
  %596 = vmatpush1.bf16.msra.mxu0 %v568
  %597 = vmatprep.subr.bf16.mxu0 0
  %598 = vmatpush1.bf16.msra.mxu0 %v567
  %599 = vmatprep.subr.bf16.mxu0 0
  %600 = vmatpush2.bf16.msra.mxu0 0
  %601 = vmatprep.subr.bf16.mxu0 0
  %602 = vmatpush2.bf16.msra.mxu0 0
  %603 = vmatprep.subr.bf16.mxu0 0
  %604 = vmatpush2.bf16.msra.mxu0 0
  %605 = vmatprep.subr.bf16.mxu0 0
  %606 = vmatpush2.bf16.msra.mxu0 0
  %607 = vmatprep.subr.bf16.mxu0 0
  %608 = vmatpush2.bf16.msra.mxu0 0
  %609 = vmatprep.subr.bf16.mxu0 0
  %610 = vmatpush2.bf16.msra.mxu0 0
  %611 = vmatprep.subr.bf16.mxu0 0
  %612 = vmatpush2.bf16.msra.mxu0 0
  %613 = vmatprep.subr.bf16.mxu0 0
  %614 = vmatpush2.bf16.msra.mxu0 0
  %615 = vmatprep.mubr.bf16.mxu0 0
  %616 = vmatmul.mubr.bf16.gmra.mxu0 %v519
  %v617 = vpop.f32.mrf.mxu0
  %v618 = vadd.f32 %v425, %v617
  %v619 = vpop.f32.mrf.mxu0
  %v620 = vpop.f32.mrf.mxu0
  %v621 = vadd.f32 %v428, %v620
  %v622 = vpop.f32.mrf.mxu0
  %623 = vmatprep.mubr.bf16.mxu0 0
  %624 = vmatmul.mubr.bf16.gmra.mxu0 %v520
  %v625 = vpop.f32.mrf.mxu0
  %v626 = vadd.f32 %v433, %v625
  %v627 = vpop.f32.mrf.mxu0
  %v628 = vpop.f32.mrf.mxu0
  %v629 = vadd.f32 %v436, %v628
  %v630 = vpop.f32.mrf.mxu0
  %631 = vmatprep.mubr.bf16.mxu0 0
  %632 = vmatmul.mubr.bf16.gmra.mxu0 %v521
  %v633 = vpop.f32.mrf.mxu0
  %v634 = vadd.f32 %v441, %v633
  %v635 = vpop.f32.mrf.mxu0
  %v636 = vpop.f32.mrf.mxu0
  %v637 = vadd.f32 %v444, %v636
  %v638 = vpop.f32.mrf.mxu0
  %639 = vmatprep.mubr.bf16.mxu0 0
  %640 = vmatmul.mubr.bf16.gmra.mxu0 %v522
  %v641 = vpop.f32.mrf.mxu0
  %v642 = vadd.f32 %v449, %v641
  %v643 = vpop.f32.mrf.mxu0
  %v644 = vpop.f32.mrf.mxu0
  %v645 = vadd.f32 %v452, %v644
  %v646 = vpop.f32.mrf.mxu0
  %647 = vmatprep.mubr.bf16.mxu0 0
  %648 = vmatmul.mubr.bf16.gmra.mxu0 %v523
  %v649 = vpop.f32.mrf.mxu0
  %v650 = vadd.f32 %v457, %v649
  %v651 = vpop.f32.mrf.mxu0
  %v652 = vpop.f32.mrf.mxu0
  %v653 = vadd.f32 %v460, %v652
  %v654 = vpop.f32.mrf.mxu0
  %655 = vmatprep.mubr.bf16.mxu0 0
  %656 = vmatmul.mubr.bf16.gmra.mxu0 %v524
  %v657 = vpop.f32.mrf.mxu0
  %v658 = vadd.f32 %v465, %v657
  %v659 = vpop.f32.mrf.mxu0
  %v660 = vpop.f32.mrf.mxu0
  %v661 = vadd.f32 %v468, %v660
  %v662 = vpop.f32.mrf.mxu0
  %663 = vmatprep.mubr.bf16.mxu0 0
  %664 = vmatmul.mubr.bf16.gmra.mxu0 %v525
  %v665 = vpop.f32.mrf.mxu0
  %v666 = vadd.f32 %v473, %v665
  %v667 = vpop.f32.mrf.mxu0
  %v668 = vpop.f32.mrf.mxu0
  %v669 = vadd.f32 %v476, %v668
  %v670 = vpop.f32.mrf.mxu0
  %671 = vmatprep.mubr.bf16.mxu0 0
  %672 = vmatmul.mubr.bf16.gmra.mxu0 %v526
  %v673 = vpop.f32.mrf.mxu0
  %v674 = vadd.f32 %v481, %v673
  %v675 = vpop.f32.mrf.mxu0
  %v676 = vpop.f32.mrf.mxu0
  %v677 = vadd.f32 %v484, %v676
  %v678 = vpop.f32.mrf.mxu0
  %679 = vdwg.mxu0
  %v680 = vld [vmem:[%s0] sm:$0xe]
  %v681 = vld [vmem:[%s0 + $0x8] sm:$0xe]
  %v682 = vld [vmem:[%s0 + $0x10] sm:$0xe]
  %v683 = vld [vmem:[%s0 + $0x18] sm:$0xe]
  %v684 = vld [vmem:[%s0 + $0x20] sm:$0xe]
  %v685 = vld [vmem:[%s0 + $0x28] sm:$0xe]
  %v686 = vld [vmem:[%s0 + $0x30] sm:$0xe]
  %v687 = vld [vmem:[%s0 + $0x38] sm:$0xe]
  %v688 = vld [vmem:[%s0 + $0x50] sm:$0xe]
  %v689 = vld [vmem:[%s0 + $0x58] sm:$0xe]
  %v690 = vld [vmem:[%s0 + $0x60] sm:$0xe]
  %v691 = vld [vmem:[%s0 + $0x68] sm:$0xe]
  %v692 = vld [vmem:[%s0 + $0x70] sm:$0xe]
  %v693 = vld [vmem:[%s0 + $0x78] sm:$0xe]
  %v694 = vld [vmem:[%s0 + $0x80] sm:$0xe]
  %v695 = vld [vmem:[%s0 + $0x88] sm:$0xe]
  %vm728 = vcmask 1042432
  %vm729 = vcmask 1046532
  %vm730 = vmor %vm728, %vm729
  %v731 = vrot.slane %v680, 5
  %v732 = vrot.slane %v731, 4
  %v733 = vrot.slane %v50, 5
  %v734 = vsel %vm730, %v732, %v733
  %v735 = vrot.slane %v681, 5
  %v736 = vrot.slane %v735, 4
  %v737 = vrot.slane %v51, 5
  %v738 = vsel %vm730, %v736, %v737
  %v739 = vrot.slane %v682, 5
  %v740 = vrot.slane %v739, 4
  %v741 = vrot.slane %v52, 5
  %v742 = vsel %vm730, %v740, %v741
  %v743 = vrot.slane %v683, 5
  %v744 = vrot.slane %v743, 4
  %v745 = vrot.slane %v53, 5
  %v746 = vsel %vm730, %v744, %v745
  %v747 = vrot.slane %v684, 5
  %v748 = vrot.slane %v747, 4
  %v749 = vrot.slane %v54, 5
  %v750 = vsel %vm730, %v748, %v749
  %v751 = vrot.slane %v685, 5
  %v752 = vrot.slane %v751, 4
  %v753 = vrot.slane %v55, 5
  %v754 = vsel %vm730, %v752, %v753
  %v755 = vrot.slane %v686, 5
  %v756 = vrot.slane %v755, 4
  %v757 = vrot.slane %v56, 5
  %v758 = vsel %vm730, %v756, %v757
  %v759 = vrot.slane %v687, 5
  %v760 = vrot.slane %v759, 4
  %v761 = vrot.slane %v57, 5
  %v762 = vsel %vm730, %v760, %v761
  %v763 = vrot.slane %v688, 5
  %v764 = vrot.slane %v763, 4
  %v765 = vrot.slane %v58, 5
  %v766 = vsel %vm730, %v764, %v765
  %v767 = vrot.slane %v689, 5
  %v768 = vrot.slane %v767, 4
  %v769 = vrot.slane %v59, 5
  %v770 = vsel %vm730, %v768, %v769
  %v771 = vrot.slane %v690, 5
  %v772 = vrot.slane %v771, 4
  %v773 = vrot.slane %v60, 5
  %v774 = vsel %vm730, %v772, %v773
  %v775 = vrot.slane %v691, 5
  %v776 = vrot.slane %v775, 4
  %v777 = vrot.slane %v61, 5
  %v778 = vsel %vm730, %v776, %v777
  %v779 = vrot.slane %v692, 5
  %v780 = vrot.slane %v779, 4
  %v781 = vrot.slane %v62, 5
  %v782 = vsel %vm730, %v780, %v781
  %v783 = vrot.slane %v693, 5
  %v784 = vrot.slane %v783, 4
  %v785 = vrot.slane %v63, 5
  %v786 = vsel %vm730, %v784, %v785
  %v787 = vrot.slane %v694, 5
  %v788 = vrot.slane %v787, 4
  %v789 = vrot.slane %v64, 5
  %v790 = vsel %vm730, %v788, %v789
  %v791 = vrot.slane %v695, 5
  %v792 = vrot.slane %v791, 4
  %v793 = vrot.slane %v65, 5
  %v794 = vsel %vm730, %v792, %v793
  %s795 = scalar_lea.vmem %s1, 128
  %v796 = vld [vmem:[%s795] sm:$0xf]
  %v797 = vld [vmem:[%s795 + $0x4] sm:$0xf]
  %v798 = vld [vmem:[%s795 + $0x8] sm:$0xf]
  %v799 = vld [vmem:[%s795 + $0xc] sm:$0xf]
  %v800 = vld [vmem:[%s795 + $0x10] sm:$0xf]
  %v801 = vld [vmem:[%s795 + $0x14] sm:$0xf]
  %v802 = vld [vmem:[%s795 + $0x18] sm:$0xf]
  %v803 = vld [vmem:[%s795 + $0x1c] sm:$0xf]
  %v804 = vld [vmem:[%s795 + $0x20] sm:$0xf]
  %v805 = vld [vmem:[%s795 + $0x24] sm:$0xf]
  %v806 = vld [vmem:[%s795 + $0x28] sm:$0xf]
  %v807 = vld [vmem:[%s795 + $0x2c] sm:$0xf]
  %v808 = vld [vmem:[%s795 + $0x30] sm:$0xf]
  %v809 = vld [vmem:[%s795 + $0x34] sm:$0xf]
  %v810 = vld [vmem:[%s795 + $0x38] sm:$0xf]
  %v811 = vld [vmem:[%s795 + $0x3c] sm:$0xf]
  %v812 = vunpack.c.l.b16 %v734
  %v813 = vunpack.c.l.b16 %v738
  %v814 = vunpack.c.l.b16 %v742
  %v815 = vunpack.c.l.b16 %v746
  %v816 = vunpack.c.l.b16 %v750
  %v817 = vunpack.c.l.b16 %v754
  %v818 = vunpack.c.l.b16 %v758
  %v819 = vunpack.c.l.b16 %v762
  %v820 = vunpack.c.l.b16 %v766
  %v821 = vunpack.c.l.b16 %v770
  %v822 = vunpack.c.l.b16 %v774
  %v823 = vunpack.c.l.b16 %v778
  %v824 = vunpack.c.l.b16 %v782
  %v825 = vunpack.c.l.b16 %v786
  %v826 = vunpack.c.l.b16 %v790
  %v827 = vunpack.c.l.b16 %v794
  %v828 = vpack.c.b16 %v813, %v812
  %v829 = vpack.c.b16 %v815, %v814
  %v830 = vpack.c.b16 %v817, %v816
  %v831 = vpack.c.b16 %v819, %v818
  %v832 = vpack.c.b16 %v821, %v820
  %v833 = vpack.c.b16 %v823, %v822
  %v834 = vpack.c.b16 %v825, %v824
  %v835 = vpack.c.b16 %v827, %v826
  %v860 = vunpack.c.l.b16 %v796
  %v861 = vunpack.c.l.b16 %v797
  %v862 = vunpack.c.l.b16 %v798
  %v863 = vunpack.c.l.b16 %v799
  %v864 = vunpack.c.l.b16 %v800
  %v865 = vunpack.c.l.b16 %v801
  %v866 = vunpack.c.l.b16 %v802
  %v867 = vunpack.c.l.b16 %v803
  %v868 = vunpack.c.l.b16 %v804
  %v869 = vunpack.c.l.b16 %v805
  %v870 = vunpack.c.l.b16 %v806
  %v871 = vunpack.c.l.b16 %v807
  %v872 = vunpack.c.l.b16 %v808
  %v873 = vunpack.c.l.b16 %v809
  %v874 = vunpack.c.l.b16 %v810
  %v875 = vunpack.c.l.b16 %v811
  %v876 = vpack.c.b16 %v861, %v860
  %v877 = vpack.c.b16 %v863, %v862
  %v878 = vpack.c.b16 %v865, %v864
  %v879 = vpack.c.b16 %v867, %v866
  %v880 = vpack.c.b16 %v869, %v868
  %v881 = vpack.c.b16 %v871, %v870
  %v882 = vpack.c.b16 %v873, %v872
  %v883 = vpack.c.b16 %v875, %v874
  %892 = vmatprep.subr.bf16.mxu0 0
  %893 = vmatpush1.bf16.msra.mxu0 %v883
  %894 = vmatprep.subr.bf16.mxu0 0
  %895 = vmatpush1.bf16.msra.mxu0 %v882
  %896 = vmatprep.subr.bf16.mxu0 0
  %897 = vmatpush1.bf16.msra.mxu0 %v881
  %898 = vmatprep.subr.bf16.mxu0 0
  %899 = vmatpush1.bf16.msra.mxu0 %v880
  %900 = vmatprep.subr.bf16.mxu0 0
  %901 = vmatpush1.bf16.msra.mxu0 %v879
  %902 = vmatprep.subr.bf16.mxu0 0
  %903 = vmatpush1.bf16.msra.mxu0 %v878
  %904 = vmatprep.subr.bf16.mxu0 0
  %905 = vmatpush1.bf16.msra.mxu0 %v877
  %906 = vmatprep.subr.bf16.mxu0 0
  %907 = vmatpush1.bf16.msra.mxu0 %v876
  %908 = vmatprep.subr.bf16.mxu0 0
  %909 = vmatpush2.bf16.msra.mxu0 0
  %910 = vmatprep.subr.bf16.mxu0 0
  %911 = vmatpush2.bf16.msra.mxu0 0
  %912 = vmatprep.subr.bf16.mxu0 0
  %913 = vmatpush2.bf16.msra.mxu0 0
  %914 = vmatprep.subr.bf16.mxu0 0
  %915 = vmatpush2.bf16.msra.mxu0 0
  %916 = vmatprep.subr.bf16.mxu0 0
  %917 = vmatpush2.bf16.msra.mxu0 0
  %918 = vmatprep.subr.bf16.mxu0 0
  %919 = vmatpush2.bf16.msra.mxu0 0
  %920 = vmatprep.subr.bf16.mxu0 0
  %921 = vmatpush2.bf16.msra.mxu0 0
  %922 = vmatprep.subr.bf16.mxu0 0
  %923 = vmatpush2.bf16.msra.mxu0 0
  %924 = vmatprep.mubr.bf16.mxu0 0
  %925 = vmatmul.mubr.bf16.gmra.mxu0 %v828
  %v926 = vpop.f32.mrf.mxu0
  %v927 = vadd.f32 0.0, %v926
  %v928 = vpop.f32.mrf.mxu0
  %v929 = vpop.f32.mrf.mxu0
  %v930 = vadd.f32 0.0, %v929
  %v931 = vpop.f32.mrf.mxu0
  %932 = vmatprep.mubr.bf16.mxu0 0
  %933 = vmatmul.mubr.bf16.gmra.mxu0 %v829
  %v934 = vpop.f32.mrf.mxu0
  %v935 = vadd.f32 0.0, %v934
  %v936 = vpop.f32.mrf.mxu0
  %v937 = vpop.f32.mrf.mxu0
  %v938 = vadd.f32 0.0, %v937
  %v939 = vpop.f32.mrf.mxu0
  %940 = vmatprep.mubr.bf16.mxu0 0
  %941 = vmatmul.mubr.bf16.gmra.mxu0 %v830
  %v942 = vpop.f32.mrf.mxu0
  %v943 = vadd.f32 0.0, %v942
  %v944 = vpop.f32.mrf.mxu0
  %v945 = vpop.f32.mrf.mxu0
  %v946 = vadd.f32 0.0, %v945
  %v947 = vpop.f32.mrf.mxu0
  %948 = vmatprep.mubr.bf16.mxu0 0
  %949 = vmatmul.mubr.bf16.gmra.mxu0 %v831
  %v950 = vpop.f32.mrf.mxu0
  %v951 = vadd.f32 0.0, %v950
  %v952 = vpop.f32.mrf.mxu0
  %v953 = vpop.f32.mrf.mxu0
  %v954 = vadd.f32 0.0, %v953
  %v955 = vpop.f32.mrf.mxu0
  %956 = vmatprep.mubr.bf16.mxu0 0
  %957 = vmatmul.mubr.bf16.gmra.mxu0 %v832
  %v958 = vpop.f32.mrf.mxu0
  %v959 = vadd.f32 0.0, %v958
  %v960 = vpop.f32.mrf.mxu0
  %v961 = vpop.f32.mrf.mxu0
  %v962 = vadd.f32 0.0, %v961
  %v963 = vpop.f32.mrf.mxu0
  %964 = vmatprep.mubr.bf16.mxu0 0
  %965 = vmatmul.mubr.bf16.gmra.mxu0 %v833
  %v966 = vpop.f32.mrf.mxu0
  %v967 = vadd.f32 0.0, %v966
  %v968 = vpop.f32.mrf.mxu0
  %v969 = vpop.f32.mrf.mxu0
  %v970 = vadd.f32 0.0, %v969
  %v971 = vpop.f32.mrf.mxu0
  %972 = vmatprep.mubr.bf16.mxu0 0
  %973 = vmatmul.mubr.bf16.gmra.mxu0 %v834
  %v974 = vpop.f32.mrf.mxu0
  %v975 = vadd.f32 0.0, %v974
  %v976 = vpop.f32.mrf.mxu0
  %v977 = vpop.f32.mrf.mxu0
  %v978 = vadd.f32 0.0, %v977
  %v979 = vpop.f32.mrf.mxu0
  %980 = vmatprep.mubr.bf16.mxu0 0
  %981 = vmatmul.mubr.bf16.gmra.mxu0 %v835
  %v982 = vpop.f32.mrf.mxu0
  %v983 = vadd.f32 0.0, %v982
  %v984 = vpop.f32.mrf.mxu0
  %v985 = vpop.f32.mrf.mxu0
  %v986 = vadd.f32 0.0, %v985
  %v987 = vpop.f32.mrf.mxu0
  %988 = vdwg.mxu0
  %v989 = vadd.f32 %v618, %v927
  %v990 = vadd.f32 %v621, %v930
  %v991 = vadd.f32 %v626, %v935
  %v992 = vadd.f32 %v629, %v938
  %v993 = vadd.f32 %v634, %v943
  %v994 = vadd.f32 %v637, %v946
  %v995 = vadd.f32 %v642, %v951
  %v996 = vadd.f32 %v645, %v954
  %v997 = vadd.f32 %v650, %v959
  %v998 = vadd.f32 %v653, %v962
  %v999 = vadd.f32 %v658, %v967
  %v1000 = vadd.f32 %v661, %v970
  %v1001 = vadd.f32 %v666, %v975
  %v1002 = vadd.f32 %v669, %v978
  %v1003 = vadd.f32 %v674, %v983
  %v1004 = vadd.f32 %v677, %v986
  %s1005 = scalar_lea.vmem %s0, 8
  %v1006 = vld [vmem:[%s1005] sm:$0xf]
  %v1007 = vld [vmem:[%s1005 + $0x8] sm:$0xf]
  %v1008 = vld [vmem:[%s1005 + $0x10] sm:$0xf]
  %v1009 = vld [vmem:[%s1005 + $0x18] sm:$0xf]
  %v1010 = vld [vmem:[%s1005 + $0x20] sm:$0xf]
  %v1011 = vld [vmem:[%s1005 + $0x28] sm:$0xf]
  %v1012 = vld [vmem:[%s1005 + $0x30] sm:$0xf]
  %v1013 = vld [vmem:[%s1005 + $0x38] sm:$0xf]
  %v1014 = vld [vmem:[%s1005 + $0x50] sm:$0xf]
  %v1015 = vld [vmem:[%s1005 + $0x58] sm:$0xf]
  %v1016 = vld [vmem:[%s1005 + $0x60] sm:$0xf]
  %v1017 = vld [vmem:[%s1005 + $0x68] sm:$0xf]
  %v1018 = vld [vmem:[%s1005 + $0x70] sm:$0xf]
  %v1019 = vld [vmem:[%s1005 + $0x78] sm:$0xf]
  %v1020 = vld [vmem:[%s1005 + $0x80] sm:$0xf]
  %v1021 = vld [vmem:[%s1005 + $0x88] sm:$0xf]
  %s1022 = scalar_lea.vmem %s1, 192
  %v1023 = vld [vmem:[%s1022] sm:$0xf]
  %v1024 = vld [vmem:[%s1022 + $0x4] sm:$0xf]
  %v1025 = vld [vmem:[%s1022 + $0x8] sm:$0xf]
  %v1026 = vld [vmem:[%s1022 + $0xc] sm:$0xf]
  %v1027 = vld [vmem:[%s1022 + $0x10] sm:$0xf]
  %v1028 = vld [vmem:[%s1022 + $0x14] sm:$0xf]
  %v1029 = vld [vmem:[%s1022 + $0x18] sm:$0xf]
  %v1030 = vld [vmem:[%s1022 + $0x1c] sm:$0xf]
  %v1031 = vld [vmem:[%s1022 + $0x20] sm:$0xf]
  %v1032 = vld [vmem:[%s1022 + $0x24] sm:$0xf]
  %v1033 = vld [vmem:[%s1022 + $0x28] sm:$0xf]
  %v1034 = vld [vmem:[%s1022 + $0x2c] sm:$0xf]
  %v1035 = vld [vmem:[%s1022 + $0x30] sm:$0xf]
  %v1036 = vld [vmem:[%s1022 + $0x34] sm:$0xf]
  %v1037 = vld [vmem:[%s1022 + $0x38] sm:$0xf]
  %v1038 = vld [vmem:[%s1022 + $0x3c] sm:$0xf]
  %v1055 = vunpack.c.l.b16 %v1006
  %v1056 = vunpack.c.l.b16 %v1007
  %v1057 = vunpack.c.l.b16 %v1008
  %v1058 = vunpack.c.l.b16 %v1009
  %v1059 = vunpack.c.l.b16 %v1010
  %v1060 = vunpack.c.l.b16 %v1011
  %v1061 = vunpack.c.l.b16 %v1012
  %v1062 = vunpack.c.l.b16 %v1013
  %v1063 = vunpack.c.l.b16 %v1014
  %v1064 = vunpack.c.l.b16 %v1015
  %v1065 = vunpack.c.l.b16 %v1016
  %v1066 = vunpack.c.l.b16 %v1017
  %v1067 = vunpack.c.l.b16 %v1018
  %v1068 = vunpack.c.l.b16 %v1019
  %v1069 = vunpack.c.l.b16 %v1020
  %v1070 = vunpack.c.l.b16 %v1021
  %v1071 = vpack.c.b16 %v1056, %v1055
  %v1072 = vpack.c.b16 %v1058, %v1057
  %v1073 = vpack.c.b16 %v1060, %v1059
  %v1074 = vpack.c.b16 %v1062, %v1061
  %v1075 = vpack.c.b16 %v1064, %v1063
  %v1076 = vpack.c.b16 %v1066, %v1065
  %v1077 = vpack.c.b16 %v1068, %v1067
  %v1078 = vpack.c.b16 %v1070, %v1069
  %v1103 = vunpack.c.l.b16 %v1023
  %v1104 = vunpack.c.l.b16 %v1024
  %v1105 = vunpack.c.l.b16 %v1025
  %v1106 = vunpack.c.l.b16 %v1026
  %v1107 = vunpack.c.l.b16 %v1027
  %v1108 = vunpack.c.l.b16 %v1028
  %v1109 = vunpack.c.l.b16 %v1029
  %v1110 = vunpack.c.l.b16 %v1030
  %v1111 = vunpack.c.l.b16 %v1031
  %v1112 = vunpack.c.l.b16 %v1032
  %v1113 = vunpack.c.l.b16 %v1033
  %v1114 = vunpack.c.l.b16 %v1034
  %v1115 = vunpack.c.l.b16 %v1035
  %v1116 = vunpack.c.l.b16 %v1036
  %v1117 = vunpack.c.l.b16 %v1037
  %v1118 = vunpack.c.l.b16 %v1038
  %v1119 = vpack.c.b16 %v1104, %v1103
  %v1120 = vpack.c.b16 %v1106, %v1105
  %v1121 = vpack.c.b16 %v1108, %v1107
  %v1122 = vpack.c.b16 %v1110, %v1109
  %v1123 = vpack.c.b16 %v1112, %v1111
  %v1124 = vpack.c.b16 %v1114, %v1113
  %v1125 = vpack.c.b16 %v1116, %v1115
  %v1126 = vpack.c.b16 %v1118, %v1117
  %1135 = vmatprep.subr.bf16.mxu0 0
  %1136 = vmatpush1.bf16.msra.mxu0 %v1126
  %1137 = vmatprep.subr.bf16.mxu0 0
  %1138 = vmatpush1.bf16.msra.mxu0 %v1125
  %1139 = vmatprep.subr.bf16.mxu0 0
  %1140 = vmatpush1.bf16.msra.mxu0 %v1124
  %1141 = vmatprep.subr.bf16.mxu0 0
  %1142 = vmatpush1.bf16.msra.mxu0 %v1123
  %1143 = vmatprep.subr.bf16.mxu0 0
  %1144 = vmatpush1.bf16.msra.mxu0 %v1122
  %1145 = vmatprep.subr.bf16.mxu0 0
  %1146 = vmatpush1.bf16.msra.mxu0 %v1121
  %1147 = vmatprep.subr.bf16.mxu0 0
  %1148 = vmatpush1.bf16.msra.mxu0 %v1120
  %1149 = vmatprep.subr.bf16.mxu0 0
  %1150 = vmatpush1.bf16.msra.mxu0 %v1119
  %1151 = vmatprep.subr.bf16.mxu0 0
  %1152 = vmatpush2.bf16.msra.mxu0 0
  %1153 = vmatprep.subr.bf16.mxu0 0
  %1154 = vmatpush2.bf16.msra.mxu0 0
  %1155 = vmatprep.subr.bf16.mxu0 0
  %1156 = vmatpush2.bf16.msra.mxu0 0
  %1157 = vmatprep.subr.bf16.mxu0 0
  %1158 = vmatpush2.bf16.msra.mxu0 0
  %1159 = vmatprep.subr.bf16.mxu0 0
  %1160 = vmatpush2.bf16.msra.mxu0 0
  %1161 = vmatprep.subr.bf16.mxu0 0
  %1162 = vmatpush2.bf16.msra.mxu0 0
  %1163 = vmatprep.subr.bf16.mxu0 0
  %1164 = vmatpush2.bf16.msra.mxu0 0
  %1165 = vmatprep.subr.bf16.mxu0 0
  %1166 = vmatpush2.bf16.msra.mxu0 0
  %1167 = vmatprep.mubr.bf16.mxu0 0
  %1168 = vmatmul.mubr.bf16.gmra.mxu0 %v1071
  %v1169 = vpop.f32.mrf.mxu0
  %v1170 = vadd.f32 0.0, %v1169
  %v1171 = vpop.f32.mrf.mxu0
  %v1172 = vpop.f32.mrf.mxu0
  %v1173 = vadd.f32 0.0, %v1172
  %v1174 = vpop.f32.mrf.mxu0
  %1175 = vmatprep.mubr.bf16.mxu0 0
  %1176 = vmatmul.mubr.bf16.gmra.mxu0 %v1072
  %v1177 = vpop.f32.mrf.mxu0
  %v1178 = vadd.f32 0.0, %v1177
  %v1179 = vpop.f32.mrf.mxu0
  %v1180 = vpop.f32.mrf.mxu0
  %v1181 = vadd.f32 0.0, %v1180
  %v1182 = vpop.f32.mrf.mxu0
  %1183 = vmatprep.mubr.bf16.mxu0 0
  %1184 = vmatmul.mubr.bf16.gmra.mxu0 %v1073
  %v1185 = vpop.f32.mrf.mxu0
  %v1186 = vadd.f32 0.0, %v1185
  %v1187 = vpop.f32.mrf.mxu0
  %v1188 = vpop.f32.mrf.mxu0
  %v1189 = vadd.f32 0.0, %v1188
  %v1190 = vpop.f32.mrf.mxu0
  %1191 = vmatprep.mubr.bf16.mxu0 0
  %1192 = vmatmul.mubr.bf16.gmra.mxu0 %v1074
  %v1193 = vpop.f32.mrf.mxu0
  %v1194 = vadd.f32 0.0, %v1193
  %v1195 = vpop.f32.mrf.mxu0
  %v1196 = vpop.f32.mrf.mxu0
  %v1197 = vadd.f32 0.0, %v1196
  %v1198 = vpop.f32.mrf.mxu0
  %1199 = vmatprep.mubr.bf16.mxu0 0
  %1200 = vmatmul.mubr.bf16.gmra.mxu0 %v1075
  %v1201 = vpop.f32.mrf.mxu0
  %v1202 = vadd.f32 0.0, %v1201
  %v1203 = vpop.f32.mrf.mxu0
  %v1204 = vpop.f32.mrf.mxu0
  %v1205 = vadd.f32 0.0, %v1204
  %v1206 = vpop.f32.mrf.mxu0
  %1207 = vmatprep.mubr.bf16.mxu0 0
  %1208 = vmatmul.mubr.bf16.gmra.mxu0 %v1076
  %v1209 = vpop.f32.mrf.mxu0
  %v1210 = vadd.f32 0.0, %v1209
  %v1211 = vpop.f32.mrf.mxu0
  %v1212 = vpop.f32.mrf.mxu0
  %v1213 = vadd.f32 0.0, %v1212
  %v1214 = vpop.f32.mrf.mxu0
  %1215 = vmatprep.mubr.bf16.mxu0 0
  %1216 = vmatmul.mubr.bf16.gmra.mxu0 %v1077
  %v1217 = vpop.f32.mrf.mxu0
  %v1218 = vadd.f32 0.0, %v1217
  %v1219 = vpop.f32.mrf.mxu0
  %v1220 = vpop.f32.mrf.mxu0
  %v1221 = vadd.f32 0.0, %v1220
  %v1222 = vpop.f32.mrf.mxu0
  %1223 = vmatprep.mubr.bf16.mxu0 0
  %1224 = vmatmul.mubr.bf16.gmra.mxu0 %v1078
  %v1225 = vpop.f32.mrf.mxu0
  %v1226 = vadd.f32 0.0, %v1225
  %v1227 = vpop.f32.mrf.mxu0
  %v1228 = vpop.f32.mrf.mxu0
  %v1229 = vadd.f32 0.0, %v1228
  %v1230 = vpop.f32.mrf.mxu0
  %1231 = vdwg.mxu0
  %v1232 = vadd.f32 %v989, %v1170
  %v1233 = vadd.f32 %v990, %v1173
  %v1234 = vadd.f32 %v991, %v1178
  %v1235 = vadd.f32 %v992, %v1181
  %v1236 = vadd.f32 %v993, %v1186
  %v1237 = vadd.f32 %v994, %v1189
  %v1238 = vadd.f32 %v995, %v1194
  %v1239 = vadd.f32 %v996, %v1197
  %v1240 = vadd.f32 %v997, %v1202
  %v1241 = vadd.f32 %v998, %v1205
  %v1242 = vadd.f32 %v999, %v1210
  %v1243 = vadd.f32 %v1000, %v1213
  %v1244 = vadd.f32 %v1001, %v1218
  %v1245 = vadd.f32 %v1002, %v1221
  %v1246 = vadd.f32 %v1003, %v1226
  %v1247 = vadd.f32 %v1004, %v1229
  %v1248 = vld [vmem:[%s1005] sm:$0xf]
  %v1249 = vld [vmem:[%s1005 + $0x4] sm:$0x1]
  %v1250 = vld [vmem:[%s1005 + $0x8] sm:$0xf]
  %v1251 = vld [vmem:[%s1005 + $0xc] sm:$0x1]
  %v1252 = vld [vmem:[%s1005 + $0x10] sm:$0xf]
  %v1253 = vld [vmem:[%s1005 + $0x14] sm:$0x1]
  %v1254 = vld [vmem:[%s1005 + $0x18] sm:$0xf]
  %v1255 = vld [vmem:[%s1005 + $0x1c] sm:$0x1]
  %v1256 = vld [vmem:[%s1005 + $0x20] sm:$0xf]
  %v1257 = vld [vmem:[%s1005 + $0x24] sm:$0x1]
  %v1258 = vld [vmem:[%s1005 + $0x28] sm:$0xf]
  %v1259 = vld [vmem:[%s1005 + $0x2c] sm:$0x1]
  %v1260 = vld [vmem:[%s1005 + $0x30] sm:$0xf]
  %v1261 = vld [vmem:[%s1005 + $0x34] sm:$0x1]
  %v1262 = vld [vmem:[%s1005 + $0x38] sm:$0xf]
  %v1263 = vld [vmem:[%s1005 + $0x3c] sm:$0x1]
  %v1264 = vld [vmem:[%s1005 + $0x50] sm:$0xf]
  %v1265 = vld [vmem:[%s1005 + $0x54] sm:$0x1]
  %v1266 = vld [vmem:[%s1005 + $0x58] sm:$0xf]
  %v1267 = vld [vmem:[%s1005 + $0x5c] sm:$0x1]
  %v1268 = vld [vmem:[%s1005 + $0x60] sm:$0xf]
  %v1269 = vld [vmem:[%s1005 + $0x64] sm:$0x1]
  %v1270 = vld [vmem:[%s1005 + $0x68] sm:$0xf]
  %v1271 = vld [vmem:[%s1005 + $0x6c] sm:$0x1]
  %v1272 = vld [vmem:[%s1005 + $0x70] sm:$0xf]
  %v1273 = vld [vmem:[%s1005 + $0x74] sm:$0x1]
  %v1274 = vld [vmem:[%s1005 + $0x78] sm:$0xf]
  %v1275 = vld [vmem:[%s1005 + $0x7c] sm:$0x1]
  %v1276 = vld [vmem:[%s1005 + $0x80] sm:$0xf]
  %v1277 = vld [vmem:[%s1005 + $0x84] sm:$0x1]
  %v1278 = vld [vmem:[%s1005 + $0x88] sm:$0xf]
  %v1279 = vld [vmem:[%s1005 + $0x8c] sm:$0x1]
  %v1281 = vshrl.u32 %v1248, 16
  %v1283 = vrot.slane %v1281, 4
  %v1284 = vshll.u32 %v1248, 16
  %v1286 = vrot.slane %v1284, 5
  %v1287 = vor.u32 %v1283, %v1286
  %v1288 = vrot.slane %v1287, 4
  %v1290 = vshll.u32 %v1249, 16
  %v1292 = vrot.slane %v1290, 5
  %v1293 = vsel %vm68, %v1288, %v1292
  %v1295 = vshrl.u32 %v1250, 16
  %v1297 = vrot.slane %v1295, 4
  %v1298 = vshll.u32 %v1250, 16
  %v1300 = vrot.slane %v1298, 5
  %v1301 = vor.u32 %v1297, %v1300
  %v1302 = vrot.slane %v1301, 4
  %v1304 = vshll.u32 %v1251, 16
  %v1306 = vrot.slane %v1304, 5
  %v1307 = vsel %vm68, %v1302, %v1306
  %v1309 = vshrl.u32 %v1252, 16
  %v1311 = vrot.slane %v1309, 4
  %v1312 = vshll.u32 %v1252, 16
  %v1314 = vrot.slane %v1312, 5
  %v1315 = vor.u32 %v1311, %v1314
  %v1316 = vrot.slane %v1315, 4
  %v1318 = vshll.u32 %v1253, 16
  %v1320 = vrot.slane %v1318, 5
  %v1321 = vsel %vm68, %v1316, %v1320
  %v1323 = vshrl.u32 %v1254, 16
  %v1325 = vrot.slane %v1323, 4
  %v1326 = vshll.u32 %v1254, 16
  %v1328 = vrot.slane %v1326, 5
  %v1329 = vor.u32 %v1325, %v1328
  %v1330 = vrot.slane %v1329, 4
  %v1332 = vshll.u32 %v1255, 16
  %v1334 = vrot.slane %v1332, 5
  %v1335 = vsel %vm68, %v1330, %v1334
  %v1337 = vshrl.u32 %v1256, 16
  %v1339 = vrot.slane %v1337, 4
  %v1340 = vshll.u32 %v1256, 16
  %v1342 = vrot.slane %v1340, 5
  %v1343 = vor.u32 %v1339, %v1342
  %v1344 = vrot.slane %v1343, 4
  %v1346 = vshll.u32 %v1257, 16
  %v1348 = vrot.slane %v1346, 5
  %v1349 = vsel %vm68, %v1344, %v1348
  %v1351 = vshrl.u32 %v1258, 16
  %v1353 = vrot.slane %v1351, 4
  %v1354 = vshll.u32 %v1258, 16
  %v1356 = vrot.slane %v1354, 5
  %v1357 = vor.u32 %v1353, %v1356
  %v1358 = vrot.slane %v1357, 4
  %v1360 = vshll.u32 %v1259, 16
  %v1362 = vrot.slane %v1360, 5
  %v1363 = vsel %vm68, %v1358, %v1362
  %v1365 = vshrl.u32 %v1260, 16
  %v1367 = vrot.slane %v1365, 4
  %v1368 = vshll.u32 %v1260, 16
  %v1370 = vrot.slane %v1368, 5
  %v1371 = vor.u32 %v1367, %v1370
  %v1372 = vrot.slane %v1371, 4
  %v1374 = vshll.u32 %v1261, 16
  %v1376 = vrot.slane %v1374, 5
  %v1377 = vsel %vm68, %v1372, %v1376
  %v1379 = vshrl.u32 %v1262, 16
  %v1381 = vrot.slane %v1379, 4
  %v1382 = vshll.u32 %v1262, 16
  %v1384 = vrot.slane %v1382, 5
  %v1385 = vor.u32 %v1381, %v1384
  %v1386 = vrot.slane %v1385, 4
  %v1388 = vshll.u32 %v1263, 16
  %v1390 = vrot.slane %v1388, 5
  %v1391 = vsel %vm68, %v1386, %v1390
  %v1393 = vshrl.u32 %v1264, 16
  %v1395 = vrot.slane %v1393, 4
  %v1396 = vshll.u32 %v1264, 16
  %v1398 = vrot.slane %v1396, 5
  %v1399 = vor.u32 %v1395, %v1398
  %v1400 = vrot.slane %v1399, 4
  %v1402 = vshll.u32 %v1265, 16
  %v1404 = vrot.slane %v1402, 5
  %v1405 = vsel %vm68, %v1400, %v1404
  %v1407 = vshrl.u32 %v1266, 16
  %v1409 = vrot.slane %v1407, 4
  %v1410 = vshll.u32 %v1266, 16
  %v1412 = vrot.slane %v1410, 5
  %v1413 = vor.u32 %v1409, %v1412
  %v1414 = vrot.slane %v1413, 4
  %v1416 = vshll.u32 %v1267, 16
  %v1418 = vrot.slane %v1416, 5
  %v1419 = vsel %vm68, %v1414, %v1418
  %v1421 = vshrl.u32 %v1268, 16
  %v1423 = vrot.slane %v1421, 4
  %v1424 = vshll.u32 %v1268, 16
  %v1426 = vrot.slane %v1424, 5
  %v1427 = vor.u32 %v1423, %v1426
  %v1428 = vrot.slane %v1427, 4
  %v1430 = vshll.u32 %v1269, 16
  %v1432 = vrot.slane %v1430, 5
  %v1433 = vsel %vm68, %v1428, %v1432
  %v1435 = vshrl.u32 %v1270, 16
  %v1437 = vrot.slane %v1435, 4
  %v1438 = vshll.u32 %v1270, 16
  %v1440 = vrot.slane %v1438, 5
  %v1441 = vor.u32 %v1437, %v1440
  %v1442 = vrot.slane %v1441, 4
  %v1444 = vshll.u32 %v1271, 16
  %v1446 = vrot.slane %v1444, 5
  %v1447 = vsel %vm68, %v1442, %v1446
  %v1449 = vshrl.u32 %v1272, 16
  %v1451 = vrot.slane %v1449, 4
  %v1452 = vshll.u32 %v1272, 16
  %v1454 = vrot.slane %v1452, 5
  %v1455 = vor.u32 %v1451, %v1454
  %v1456 = vrot.slane %v1455, 4
  %v1458 = vshll.u32 %v1273, 16
  %v1460 = vrot.slane %v1458, 5
  %v1461 = vsel %vm68, %v1456, %v1460
  %v1463 = vshrl.u32 %v1274, 16
  %v1465 = vrot.slane %v1463, 4
  %v1466 = vshll.u32 %v1274, 16
  %v1468 = vrot.slane %v1466, 5
  %v1469 = vor.u32 %v1465, %v1468
  %v1470 = vrot.slane %v1469, 4
  %v1472 = vshll.u32 %v1275, 16
  %v1474 = vrot.slane %v1472, 5
  %v1475 = vsel %vm68, %v1470, %v1474
  %v1477 = vshrl.u32 %v1276, 16
  %v1479 = vrot.slane %v1477, 4
  %v1480 = vshll.u32 %v1276, 16
  %v1482 = vrot.slane %v1480, 5
  %v1483 = vor.u32 %v1479, %v1482
  %v1484 = vrot.slane %v1483, 4
  %v1486 = vshll.u32 %v1277, 16
  %v1488 = vrot.slane %v1486, 5
  %v1489 = vsel %vm68, %v1484, %v1488
  %v1491 = vshrl.u32 %v1278, 16
  %v1493 = vrot.slane %v1491, 4
  %v1494 = vshll.u32 %v1278, 16
  %v1496 = vrot.slane %v1494, 5
  %v1497 = vor.u32 %v1493, %v1496
  %v1498 = vrot.slane %v1497, 4
  %v1500 = vshll.u32 %v1279, 16
  %v1502 = vrot.slane %v1500, 5
  %v1503 = vsel %vm68, %v1498, %v1502
  %s1504 = scalar_lea.vmem %s1, 256
  %v1505 = vld [vmem:[%s1504] sm:$0xf]
  %v1506 = vld [vmem:[%s1504 + $0x4] sm:$0xf]
  %v1507 = vld [vmem:[%s1504 + $0x8] sm:$0xf]
  %v1508 = vld [vmem:[%s1504 + $0xc] sm:$0xf]
  %v1509 = vld [vmem:[%s1504 + $0x10] sm:$0xf]
  %v1510 = vld [vmem:[%s1504 + $0x14] sm:$0xf]
  %v1511 = vld [vmem:[%s1504 + $0x18] sm:$0xf]
  %v1512 = vld [vmem:[%s1504 + $0x1c] sm:$0xf]
  %v1513 = vld [vmem:[%s1504 + $0x20] sm:$0xf]
  %v1514 = vld [vmem:[%s1504 + $0x24] sm:$0xf]
  %v1515 = vld [vmem:[%s1504 + $0x28] sm:$0xf]
  %v1516 = vld [vmem:[%s1504 + $0x2c] sm:$0xf]
  %v1517 = vld [vmem:[%s1504 + $0x30] sm:$0xf]
  %v1518 = vld [vmem:[%s1504 + $0x34] sm:$0xf]
  %v1519 = vld [vmem:[%s1504 + $0x38] sm:$0xf]
  %v1520 = vld [vmem:[%s1504 + $0x3c] sm:$0xf]
  %v1521 = vunpack.c.l.b16 %v1293
  %v1522 = vunpack.c.l.b16 %v1307
  %v1523 = vunpack.c.l.b16 %v1321
  %v1524 = vunpack.c.l.b16 %v1335
  %v1525 = vunpack.c.l.b16 %v1349
  %v1526 = vunpack.c.l.b16 %v1363
  %v1527 = vunpack.c.l.b16 %v1377
  %v1528 = vunpack.c.l.b16 %v1391
  %v1529 = vunpack.c.l.b16 %v1405
  %v1530 = vunpack.c.l.b16 %v1419
  %v1531 = vunpack.c.l.b16 %v1433
  %v1532 = vunpack.c.l.b16 %v1447
  %v1533 = vunpack.c.l.b16 %v1461
  %v1534 = vunpack.c.l.b16 %v1475
  %v1535 = vunpack.c.l.b16 %v1489
  %v1536 = vunpack.c.l.b16 %v1503
  %v1537 = vpack.c.b16 %v1522, %v1521
  %v1538 = vpack.c.b16 %v1524, %v1523
  %v1539 = vpack.c.b16 %v1526, %v1525
  %v1540 = vpack.c.b16 %v1528, %v1527
  %v1541 = vpack.c.b16 %v1530, %v1529
  %v1542 = vpack.c.b16 %v1532, %v1531
  %v1543 = vpack.c.b16 %v1534, %v1533
  %v1544 = vpack.c.b16 %v1536, %v1535
  %v1569 = vunpack.c.l.b16 %v1505
  %v1570 = vunpack.c.l.b16 %v1506
  %v1571 = vunpack.c.l.b16 %v1507
  %v1572 = vunpack.c.l.b16 %v1508
  %v1573 = vunpack.c.l.b16 %v1509
  %v1574 = vunpack.c.l.b16 %v1510
  %v1575 = vunpack.c.l.b16 %v1511
  %v1576 = vunpack.c.l.b16 %v1512
  %v1577 = vunpack.c.l.b16 %v1513
  %v1578 = vunpack.c.l.b16 %v1514
  %v1579 = vunpack.c.l.b16 %v1515
  %v1580 = vunpack.c.l.b16 %v1516
  %v1581 = vunpack.c.l.b16 %v1517
  %v1582 = vunpack.c.l.b16 %v1518
  %v1583 = vunpack.c.l.b16 %v1519
  %v1584 = vunpack.c.l.b16 %v1520
  %v1585 = vpack.c.b16 %v1570, %v1569
  %v1586 = vpack.c.b16 %v1572, %v1571
  %v1587 = vpack.c.b16 %v1574, %v1573
  %v1588 = vpack.c.b16 %v1576, %v1575
  %v1589 = vpack.c.b16 %v1578, %v1577
  %v1590 = vpack.c.b16 %v1580, %v1579
  %v1591 = vpack.c.b16 %v1582, %v1581
  %v1592 = vpack.c.b16 %v1584, %v1583
  %1601 = vmatprep.subr.bf16.mxu0 0
  %1602 = vmatpush1.bf16.msra.mxu0 %v1592
  %1603 = vmatprep.subr.bf16.mxu0 0
  %1604 = vmatpush1.bf16.msra.mxu0 %v1591
  %1605 = vmatprep.subr.bf16.mxu0 0
  %1606 = vmatpush1.bf16.msra.mxu0 %v1590
  %1607 = vmatprep.subr.bf16.mxu0 0
  %1608 = vmatpush1.bf16.msra.mxu0 %v1589
  %1609 = vmatprep.subr.bf16.mxu0 0
  %1610 = vmatpush1.bf16.msra.mxu0 %v1588
  %1611 = vmatprep.subr.bf16.mxu0 0
  %1612 = vmatpush1.bf16.msra.mxu0 %v1587
  %1613 = vmatprep.subr.bf16.mxu0 0
  %1614 = vmatpush1.bf16.msra.mxu0 %v1586
  %1615 = vmatprep.subr.bf16.mxu0 0
  %1616 = vmatpush1.bf16.msra.mxu0 %v1585
  %1617 = vmatprep.subr.bf16.mxu0 0
  %1618 = vmatpush2.bf16.msra.mxu0 0
  %1619 = vmatprep.subr.bf16.mxu0 0
  %1620 = vmatpush2.bf16.msra.mxu0 0
  %1621 = vmatprep.subr.bf16.mxu0 0
  %1622 = vmatpush2.bf16.msra.mxu0 0
  %1623 = vmatprep.subr.bf16.mxu0 0
  %1624 = vmatpush2.bf16.msra.mxu0 0
  %1625 = vmatprep.subr.bf16.mxu0 0
  %1626 = vmatpush2.bf16.msra.mxu0 0
  %1627 = vmatprep.subr.bf16.mxu0 0
  %1628 = vmatpush2.bf16.msra.mxu0 0
  %1629 = vmatprep.subr.bf16.mxu0 0
  %1630 = vmatpush2.bf16.msra.mxu0 0
  %1631 = vmatprep.subr.bf16.mxu0 0
  %1632 = vmatpush2.bf16.msra.mxu0 0
  %1633 = vmatprep.mubr.bf16.mxu0 0
  %1634 = vmatmul.mubr.bf16.gmra.mxu0 %v1537
  %v1635 = vpop.f32.mrf.mxu0
  %v1636 = vadd.f32 0.0, %v1635
  %v1637 = vpop.f32.mrf.mxu0
  %v1638 = vpop.f32.mrf.mxu0
  %v1639 = vadd.f32 0.0, %v1638
  %v1640 = vpop.f32.mrf.mxu0
  %1641 = vmatprep.mubr.bf16.mxu0 0
  %1642 = vmatmul.mubr.bf16.gmra.mxu0 %v1538
  %v1643 = vpop.f32.mrf.mxu0
  %v1644 = vadd.f32 0.0, %v1643
  %v1645 = vpop.f32.mrf.mxu0
  %v1646 = vpop.f32.mrf.mxu0
  %v1647 = vadd.f32 0.0, %v1646
  %v1648 = vpop.f32.mrf.mxu0
  %1649 = vmatprep.mubr.bf16.mxu0 0
  %1650 = vmatmul.mubr.bf16.gmra.mxu0 %v1539
  %v1651 = vpop.f32.mrf.mxu0
  %v1652 = vadd.f32 0.0, %v1651
  %v1653 = vpop.f32.mrf.mxu0
  %v1654 = vpop.f32.mrf.mxu0
  %v1655 = vadd.f32 0.0, %v1654
  %v1656 = vpop.f32.mrf.mxu0
  %1657 = vmatprep.mubr.bf16.mxu0 0
  %1658 = vmatmul.mubr.bf16.gmra.mxu0 %v1540
  %v1659 = vpop.f32.mrf.mxu0
  %v1660 = vadd.f32 0.0, %v1659
  %v1661 = vpop.f32.mrf.mxu0
  %v1662 = vpop.f32.mrf.mxu0
  %v1663 = vadd.f32 0.0, %v1662
  %v1664 = vpop.f32.mrf.mxu0
  %1665 = vmatprep.mubr.bf16.mxu0 0
  %1666 = vmatmul.mubr.bf16.gmra.mxu0 %v1541
  %v1667 = vpop.f32.mrf.mxu0
  %v1668 = vadd.f32 0.0, %v1667
  %v1669 = vpop.f32.mrf.mxu0
  %v1670 = vpop.f32.mrf.mxu0
  %v1671 = vadd.f32 0.0, %v1670
  %v1672 = vpop.f32.mrf.mxu0
  %1673 = vmatprep.mubr.bf16.mxu0 0
  %1674 = vmatmul.mubr.bf16.gmra.mxu0 %v1542
  %v1675 = vpop.f32.mrf.mxu0
  %v1676 = vadd.f32 0.0, %v1675
  %v1677 = vpop.f32.mrf.mxu0
  %v1678 = vpop.f32.mrf.mxu0
  %v1679 = vadd.f32 0.0, %v1678
  %v1680 = vpop.f32.mrf.mxu0
  %1681 = vmatprep.mubr.bf16.mxu0 0
  %1682 = vmatmul.mubr.bf16.gmra.mxu0 %v1543
  %v1683 = vpop.f32.mrf.mxu0
  %v1684 = vadd.f32 0.0, %v1683
  %v1685 = vpop.f32.mrf.mxu0
  %v1686 = vpop.f32.mrf.mxu0
  %v1687 = vadd.f32 0.0, %v1686
  %v1688 = vpop.f32.mrf.mxu0
  %1689 = vmatprep.mubr.bf16.mxu0 0
  %1690 = vmatmul.mubr.bf16.gmra.mxu0 %v1544
  %v1691 = vpop.f32.mrf.mxu0
  %v1692 = vadd.f32 0.0, %v1691
  %v1693 = vpop.f32.mrf.mxu0
  %v1694 = vpop.f32.mrf.mxu0
  %v1695 = vadd.f32 0.0, %v1694
  %v1696 = vpop.f32.mrf.mxu0
  %1697 = vdwg.mxu0
  %v1698 = vadd.f32 %v1232, %v1636
  %v1699 = vadd.f32 %v1233, %v1639
  %v1700 = vadd.f32 %v1234, %v1644
  %v1701 = vadd.f32 %v1235, %v1647
  %v1702 = vadd.f32 %v1236, %v1652
  %v1703 = vadd.f32 %v1237, %v1655
  %v1704 = vadd.f32 %v1238, %v1660
  %v1705 = vadd.f32 %v1239, %v1663
  %v1706 = vadd.f32 %v1240, %v1668
  %v1707 = vadd.f32 %v1241, %v1671
  %v1708 = vadd.f32 %v1242, %v1676
  %v1709 = vadd.f32 %v1243, %v1679
  %v1710 = vadd.f32 %v1244, %v1684
  %v1711 = vadd.f32 %v1245, %v1687
  %v1712 = vadd.f32 %v1246, %v1692
  %v1713 = vadd.f32 %v1247, %v1695
  %v1714 = vld [vmem:[%s1005] sm:$0xe]
  %v1715 = vld [vmem:[%s1005 + $0x8] sm:$0xe]
  %v1716 = vld [vmem:[%s1005 + $0x10] sm:$0xe]
  %v1717 = vld [vmem:[%s1005 + $0x18] sm:$0xe]
  %v1718 = vld [vmem:[%s1005 + $0x20] sm:$0xe]
  %v1719 = vld [vmem:[%s1005 + $0x28] sm:$0xe]
  %v1720 = vld [vmem:[%s1005 + $0x30] sm:$0xe]
  %v1721 = vld [vmem:[%s1005 + $0x38] sm:$0xe]
  %v1722 = vld [vmem:[%s1005 + $0x50] sm:$0xe]
  %v1723 = vld [vmem:[%s1005 + $0x58] sm:$0xe]
  %v1724 = vld [vmem:[%s1005 + $0x60] sm:$0xe]
  %v1725 = vld [vmem:[%s1005 + $0x68] sm:$0xe]
  %v1726 = vld [vmem:[%s1005 + $0x70] sm:$0xe]
  %v1727 = vld [vmem:[%s1005 + $0x78] sm:$0xe]
  %v1728 = vld [vmem:[%s1005 + $0x80] sm:$0xe]
  %v1729 = vld [vmem:[%s1005 + $0x88] sm:$0xe]
  %v1762 = vrot.slane %v1714, 5
  %v1763 = vrot.slane %v1762, 4
  %v1764 = vrot.slane %v1249, 5
  %v1765 = vsel %vm730, %v1763, %v1764
  %v1766 = vrot.slane %v1715, 5
  %v1767 = vrot.slane %v1766, 4
  %v1768 = vrot.slane %v1251, 5
  %v1769 = vsel %vm730, %v1767, %v1768
  %v1770 = vrot.slane %v1716, 5
  %v1771 = vrot.slane %v1770, 4
  %v1772 = vrot.slane %v1253, 5
  %v1773 = vsel %vm730, %v1771, %v1772
  %v1774 = vrot.slane %v1717, 5
  %v1775 = vrot.slane %v1774, 4
  %v1776 = vrot.slane %v1255, 5
  %v1777 = vsel %vm730, %v1775, %v1776
  %v1778 = vrot.slane %v1718, 5
  %v1779 = vrot.slane %v1778, 4
  %v1780 = vrot.slane %v1257, 5
  %v1781 = vsel %vm730, %v1779, %v1780
  %v1782 = vrot.slane %v1719, 5
  %v1783 = vrot.slane %v1782, 4
  %v1784 = vrot.slane %v1259, 5
  %v1785 = vsel %vm730, %v1783, %v1784
  %v1786 = vrot.slane %v1720, 5
  %v1787 = vrot.slane %v1786, 4
  %v1788 = vrot.slane %v1261, 5
  %v1789 = vsel %vm730, %v1787, %v1788
  %v1790 = vrot.slane %v1721, 5
  %v1791 = vrot.slane %v1790, 4
  %v1792 = vrot.slane %v1263, 5
  %v1793 = vsel %vm730, %v1791, %v1792
  %v1794 = vrot.slane %v1722, 5
  %v1795 = vrot.slane %v1794, 4
  %v1796 = vrot.slane %v1265, 5
  %v1797 = vsel %vm730, %v1795, %v1796
  %v1798 = vrot.slane %v1723, 5
  %v1799 = vrot.slane %v1798, 4
  %v1800 = vrot.slane %v1267, 5
  %v1801 = vsel %vm730, %v1799, %v1800
  %v1802 = vrot.slane %v1724, 5
  %v1803 = vrot.slane %v1802, 4
  %v1804 = vrot.slane %v1269, 5
  %v1805 = vsel %vm730, %v1803, %v1804
  %v1806 = vrot.slane %v1725, 5
  %v1807 = vrot.slane %v1806, 4
  %v1808 = vrot.slane %v1271, 5
  %v1809 = vsel %vm730, %v1807, %v1808
  %v1810 = vrot.slane %v1726, 5
  %v1811 = vrot.slane %v1810, 4
  %v1812 = vrot.slane %v1273, 5
  %v1813 = vsel %vm730, %v1811, %v1812
  %v1814 = vrot.slane %v1727, 5
  %v1815 = vrot.slane %v1814, 4
  %v1816 = vrot.slane %v1275, 5
  %v1817 = vsel %vm730, %v1815, %v1816
  %v1818 = vrot.slane %v1728, 5
  %v1819 = vrot.slane %v1818, 4
  %v1820 = vrot.slane %v1277, 5
  %v1821 = vsel %vm730, %v1819, %v1820
  %v1822 = vrot.slane %v1729, 5
  %v1823 = vrot.slane %v1822, 4
  %v1824 = vrot.slane %v1279, 5
  %v1825 = vsel %vm730, %v1823, %v1824
  %s1826 = scalar_lea.vmem %s1, 320
  %v1827 = vld [vmem:[%s1826] sm:$0xf]
  %v1828 = vld [vmem:[%s1826 + $0x4] sm:$0xf]
  %v1829 = vld [vmem:[%s1826 + $0x8] sm:$0xf]
  %v1830 = vld [vmem:[%s1826 + $0xc] sm:$0xf]
  %v1831 = vld [vmem:[%s1826 + $0x10] sm:$0xf]
  %v1832 = vld [vmem:[%s1826 + $0x14] sm:$0xf]
  %v1833 = vld [vmem:[%s1826 + $0x18] sm:$0xf]
  %v1834 = vld [vmem:[%s1826 + $0x1c] sm:$0xf]
  %v1835 = vld [vmem:[%s1826 + $0x20] sm:$0xf]
  %v1836 = vld [vmem:[%s1826 + $0x24] sm:$0xf]
  %v1837 = vld [vmem:[%s1826 + $0x28] sm:$0xf]
  %v1838 = vld [vmem:[%s1826 + $0x2c] sm:$0xf]
  %v1839 = vld [vmem:[%s1826 + $0x30] sm:$0xf]
  %v1840 = vld [vmem:[%s1826 + $0x34] sm:$0xf]
  %v1841 = vld [vmem:[%s1826 + $0x38] sm:$0xf]
  %v1842 = vld [vmem:[%s1826 + $0x3c] sm:$0xf]
  %v1843 = vunpack.c.l.b16 %v1765
  %v1844 = vunpack.c.l.b16 %v1769
  %v1845 = vunpack.c.l.b16 %v1773
  %v1846 = vunpack.c.l.b16 %v1777
  %v1847 = vunpack.c.l.b16 %v1781
  %v1848 = vunpack.c.l.b16 %v1785
  %v1849 = vunpack.c.l.b16 %v1789
  %v1850 = vunpack.c.l.b16 %v1793
  %v1851 = vunpack.c.l.b16 %v1797
  %v1852 = vunpack.c.l.b16 %v1801
  %v1853 = vunpack.c.l.b16 %v1805
  %v1854 = vunpack.c.l.b16 %v1809
  %v1855 = vunpack.c.l.b16 %v1813
  %v1856 = vunpack.c.l.b16 %v1817
  %v1857 = vunpack.c.l.b16 %v1821
  %v1858 = vunpack.c.l.b16 %v1825
  %v1859 = vpack.c.b16 %v1844, %v1843
  %v1860 = vpack.c.b16 %v1846, %v1845
  %v1861 = vpack.c.b16 %v1848, %v1847
  %v1862 = vpack.c.b16 %v1850, %v1849
  %v1863 = vpack.c.b16 %v1852, %v1851
  %v1864 = vpack.c.b16 %v1854, %v1853
  %v1865 = vpack.c.b16 %v1856, %v1855
  %v1866 = vpack.c.b16 %v1858, %v1857
  %v1891 = vunpack.c.l.b16 %v1827
  %v1892 = vunpack.c.l.b16 %v1828
  %v1893 = vunpack.c.l.b16 %v1829
  %v1894 = vunpack.c.l.b16 %v1830
  %v1895 = vunpack.c.l.b16 %v1831
  %v1896 = vunpack.c.l.b16 %v1832
  %v1897 = vunpack.c.l.b16 %v1833
  %v1898 = vunpack.c.l.b16 %v1834
  %v1899 = vunpack.c.l.b16 %v1835
  %v1900 = vunpack.c.l.b16 %v1836
  %v1901 = vunpack.c.l.b16 %v1837
  %v1902 = vunpack.c.l.b16 %v1838
  %v1903 = vunpack.c.l.b16 %v1839
  %v1904 = vunpack.c.l.b16 %v1840
  %v1905 = vunpack.c.l.b16 %v1841
  %v1906 = vunpack.c.l.b16 %v1842
  %v1907 = vpack.c.b16 %v1892, %v1891
  %v1908 = vpack.c.b16 %v1894, %v1893
  %v1909 = vpack.c.b16 %v1896, %v1895
  %v1910 = vpack.c.b16 %v1898, %v1897
  %v1911 = vpack.c.b16 %v1900, %v1899
  %v1912 = vpack.c.b16 %v1902, %v1901
  %v1913 = vpack.c.b16 %v1904, %v1903
  %v1914 = vpack.c.b16 %v1906, %v1905
  %1923 = vmatprep.subr.bf16.mxu0 0
  %1924 = vmatpush1.bf16.msra.mxu0 %v1914
  %1925 = vmatprep.subr.bf16.mxu0 0
  %1926 = vmatpush1.bf16.msra.mxu0 %v1913
  %1927 = vmatprep.subr.bf16.mxu0 0
  %1928 = vmatpush1.bf16.msra.mxu0 %v1912
  %1929 = vmatprep.subr.bf16.mxu0 0
  %1930 = vmatpush1.bf16.msra.mxu0 %v1911
  %1931 = vmatprep.subr.bf16.mxu0 0
  %1932 = vmatpush1.bf16.msra.mxu0 %v1910
  %1933 = vmatprep.subr.bf16.mxu0 0
  %1934 = vmatpush1.bf16.msra.mxu0 %v1909
  %1935 = vmatprep.subr.bf16.mxu0 0
  %1936 = vmatpush1.bf16.msra.mxu0 %v1908
  %1937 = vmatprep.subr.bf16.mxu0 0
  %1938 = vmatpush1.bf16.msra.mxu0 %v1907
  %1939 = vmatprep.subr.bf16.mxu0 0
  %1940 = vmatpush2.bf16.msra.mxu0 0
  %1941 = vmatprep.subr.bf16.mxu0 0
  %1942 = vmatpush2.bf16.msra.mxu0 0
  %1943 = vmatprep.subr.bf16.mxu0 0
  %1944 = vmatpush2.bf16.msra.mxu0 0
  %1945 = vmatprep.subr.bf16.mxu0 0
  %1946 = vmatpush2.bf16.msra.mxu0 0
  %1947 = vmatprep.subr.bf16.mxu0 0
  %1948 = vmatpush2.bf16.msra.mxu0 0
  %1949 = vmatprep.subr.bf16.mxu0 0
  %1950 = vmatpush2.bf16.msra.mxu0 0
  %1951 = vmatprep.subr.bf16.mxu0 0
  %1952 = vmatpush2.bf16.msra.mxu0 0
  %1953 = vmatprep.subr.bf16.mxu0 0
  %1954 = vmatpush2.bf16.msra.mxu0 0
  %1955 = vmatprep.mubr.bf16.mxu0 0
  %1956 = vmatmul.mubr.bf16.gmra.mxu0 %v1859
  %v1957 = vpop.f32.mrf.mxu0
  %v1958 = vadd.f32 0.0, %v1957
  %v1959 = vpop.f32.mrf.mxu0
  %v1960 = vpop.f32.mrf.mxu0
  %v1961 = vadd.f32 0.0, %v1960
  %v1962 = vpop.f32.mrf.mxu0
  %1963 = vmatprep.mubr.bf16.mxu0 0
  %1964 = vmatmul.mubr.bf16.gmra.mxu0 %v1860
  %v1965 = vpop.f32.mrf.mxu0
  %v1966 = vadd.f32 0.0, %v1965
  %v1967 = vpop.f32.mrf.mxu0
  %v1968 = vpop.f32.mrf.mxu0
  %v1969 = vadd.f32 0.0, %v1968
  %v1970 = vpop.f32.mrf.mxu0
  %1971 = vmatprep.mubr.bf16.mxu0 0
  %1972 = vmatmul.mubr.bf16.gmra.mxu0 %v1861
  %v1973 = vpop.f32.mrf.mxu0
  %v1974 = vadd.f32 0.0, %v1973
  %v1975 = vpop.f32.mrf.mxu0
  %v1976 = vpop.f32.mrf.mxu0
  %v1977 = vadd.f32 0.0, %v1976
  %v1978 = vpop.f32.mrf.mxu0
  %1979 = vmatprep.mubr.bf16.mxu0 0
  %1980 = vmatmul.mubr.bf16.gmra.mxu0 %v1862
  %v1981 = vpop.f32.mrf.mxu0
  %v1982 = vadd.f32 0.0, %v1981
  %v1983 = vpop.f32.mrf.mxu0
  %v1984 = vpop.f32.mrf.mxu0
  %v1985 = vadd.f32 0.0, %v1984
  %v1986 = vpop.f32.mrf.mxu0
  %1987 = vmatprep.mubr.bf16.mxu0 0
  %1988 = vmatmul.mubr.bf16.gmra.mxu0 %v1863
  %v1989 = vpop.f32.mrf.mxu0
  %v1990 = vadd.f32 0.0, %v1989
  %v1991 = vpop.f32.mrf.mxu0
  %v1992 = vpop.f32.mrf.mxu0
  %v1993 = vadd.f32 0.0, %v1992
  %v1994 = vpop.f32.mrf.mxu0
  %1995 = vmatprep.mubr.bf16.mxu0 0
  %1996 = vmatmul.mubr.bf16.gmra.mxu0 %v1864
  %v1997 = vpop.f32.mrf.mxu0
  %v1998 = vadd.f32 0.0, %v1997
  %v1999 = vpop.f32.mrf.mxu0
  %v2000 = vpop.f32.mrf.mxu0
  %v2001 = vadd.f32 0.0, %v2000
  %v2002 = vpop.f32.mrf.mxu0
  %2003 = vmatprep.mubr.bf16.mxu0 0
  %2004 = vmatmul.mubr.bf16.gmra.mxu0 %v1865
  %v2005 = vpop.f32.mrf.mxu0
  %v2006 = vadd.f32 0.0, %v2005
  %v2007 = vpop.f32.mrf.mxu0
  %v2008 = vpop.f32.mrf.mxu0
  %v2009 = vadd.f32 0.0, %v2008
  %v2010 = vpop.f32.mrf.mxu0
  %2011 = vmatprep.mubr.bf16.mxu0 0
  %2012 = vmatmul.mubr.bf16.gmra.mxu0 %v1866
  %v2013 = vpop.f32.mrf.mxu0
  %v2014 = vadd.f32 0.0, %v2013
  %v2015 = vpop.f32.mrf.mxu0
  %v2016 = vpop.f32.mrf.mxu0
  %v2017 = vadd.f32 0.0, %v2016
  %v2018 = vpop.f32.mrf.mxu0
  %2019 = vdwg.mxu0
  %v2020 = vadd.f32 %v1698, %v1958
  %v2021 = vadd.f32 %v1699, %v1961
  %v2022 = vadd.f32 %v1700, %v1966
  %v2023 = vadd.f32 %v1701, %v1969
  %v2024 = vadd.f32 %v1702, %v1974
  %v2025 = vadd.f32 %v1703, %v1977
  %v2026 = vadd.f32 %v1704, %v1982
  %v2027 = vadd.f32 %v1705, %v1985
  %v2028 = vadd.f32 %v1706, %v1990
  %v2029 = vadd.f32 %v1707, %v1993
  %v2030 = vadd.f32 %v1708, %v1998
  %v2031 = vadd.f32 %v1709, %v2001
  %v2032 = vadd.f32 %v1710, %v2006
  %v2033 = vadd.f32 %v1711, %v2009
  %v2034 = vadd.f32 %v1712, %v2014
  %v2035 = vadd.f32 %v1713, %v2017
  %s2036 = scalar_lea.vmem %s0, 16
  %v2037 = vld [vmem:[%s2036] sm:$0xf]
  %v2038 = vld [vmem:[%s2036 + $0x8] sm:$0xf]
  %v2039 = vld [vmem:[%s2036 + $0x10] sm:$0xf]
  %v2040 = vld [vmem:[%s2036 + $0x18] sm:$0xf]
  %v2041 = vld [vmem:[%s2036 + $0x20] sm:$0xf]
  %v2042 = vld [vmem:[%s2036 + $0x28] sm:$0xf]
  %v2043 = vld [vmem:[%s2036 + $0x30] sm:$0xf]
  %v2044 = vld [vmem:[%s2036 + $0x38] sm:$0xf]
  %v2045 = vld [vmem:[%s2036 + $0x50] sm:$0xf]
  %v2046 = vld [vmem:[%s2036 + $0x58] sm:$0xf]
  %v2047 = vld [vmem:[%s2036 + $0x60] sm:$0xf]
  %v2048 = vld [vmem:[%s2036 + $0x68] sm:$0xf]
  %v2049 = vld [vmem:[%s2036 + $0x70] sm:$0xf]
  %v2050 = vld [vmem:[%s2036 + $0x78] sm:$0xf]
  %v2051 = vld [vmem:[%s2036 + $0x80] sm:$0xf]
  %v2052 = vld [vmem:[%s2036 + $0x88] sm:$0xf]
  %s2053 = scalar_lea.vmem %s1, 384
  %v2054 = vld [vmem:[%s2053] sm:$0xf]
  %v2055 = vld [vmem:[%s2053 + $0x4] sm:$0xf]
  %v2056 = vld [vmem:[%s2053 + $0x8] sm:$0xf]
  %v2057 = vld [vmem:[%s2053 + $0xc] sm:$0xf]
  %v2058 = vld [vmem:[%s2053 + $0x10] sm:$0xf]
  %v2059 = vld [vmem:[%s2053 + $0x14] sm:$0xf]
  %v2060 = vld [vmem:[%s2053 + $0x18] sm:$0xf]
  %v2061 = vld [vmem:[%s2053 + $0x1c] sm:$0xf]
  %v2062 = vld [vmem:[%s2053 + $0x20] sm:$0xf]
  %v2063 = vld [vmem:[%s2053 + $0x24] sm:$0xf]
  %v2064 = vld [vmem:[%s2053 + $0x28] sm:$0xf]
  %v2065 = vld [vmem:[%s2053 + $0x2c] sm:$0xf]
  %v2066 = vld [vmem:[%s2053 + $0x30] sm:$0xf]
  %v2067 = vld [vmem:[%s2053 + $0x34] sm:$0xf]
  %v2068 = vld [vmem:[%s2053 + $0x38] sm:$0xf]
  %v2069 = vld [vmem:[%s2053 + $0x3c] sm:$0xf]
  %v2086 = vunpack.c.l.b16 %v2037
  %v2087 = vunpack.c.l.b16 %v2038
  %v2088 = vunpack.c.l.b16 %v2039
  %v2089 = vunpack.c.l.b16 %v2040
  %v2090 = vunpack.c.l.b16 %v2041
  %v2091 = vunpack.c.l.b16 %v2042
  %v2092 = vunpack.c.l.b16 %v2043
  %v2093 = vunpack.c.l.b16 %v2044
  %v2094 = vunpack.c.l.b16 %v2045
  %v2095 = vunpack.c.l.b16 %v2046
  %v2096 = vunpack.c.l.b16 %v2047
  %v2097 = vunpack.c.l.b16 %v2048
  %v2098 = vunpack.c.l.b16 %v2049
  %v2099 = vunpack.c.l.b16 %v2050
  %v2100 = vunpack.c.l.b16 %v2051
  %v2101 = vunpack.c.l.b16 %v2052
  %v2102 = vpack.c.b16 %v2087, %v2086
  %v2103 = vpack.c.b16 %v2089, %v2088
  %v2104 = vpack.c.b16 %v2091, %v2090
  %v2105 = vpack.c.b16 %v2093, %v2092
  %v2106 = vpack.c.b16 %v2095, %v2094
  %v2107 = vpack.c.b16 %v2097, %v2096
  %v2108 = vpack.c.b16 %v2099, %v2098
  %v2109 = vpack.c.b16 %v2101, %v2100
  %v2134 = vunpack.c.l.b16 %v2054
  %v2135 = vunpack.c.l.b16 %v2055
  %v2136 = vunpack.c.l.b16 %v2056
  %v2137 = vunpack.c.l.b16 %v2057
  %v2138 = vunpack.c.l.b16 %v2058
  %v2139 = vunpack.c.l.b16 %v2059
  %v2140 = vunpack.c.l.b16 %v2060
  %v2141 = vunpack.c.l.b16 %v2061
  %v2142 = vunpack.c.l.b16 %v2062
  %v2143 = vunpack.c.l.b16 %v2063
  %v2144 = vunpack.c.l.b16 %v2064
  %v2145 = vunpack.c.l.b16 %v2065
  %v2146 = vunpack.c.l.b16 %v2066
  %v2147 = vunpack.c.l.b16 %v2067
  %v2148 = vunpack.c.l.b16 %v2068
  %v2149 = vunpack.c.l.b16 %v2069
  %v2150 = vpack.c.b16 %v2135, %v2134
  %v2151 = vpack.c.b16 %v2137, %v2136
  %v2152 = vpack.c.b16 %v2139, %v2138
  %v2153 = vpack.c.b16 %v2141, %v2140
  %v2154 = vpack.c.b16 %v2143, %v2142
  %v2155 = vpack.c.b16 %v2145, %v2144
  %v2156 = vpack.c.b16 %v2147, %v2146
  %v2157 = vpack.c.b16 %v2149, %v2148
  %2166 = vmatprep.subr.bf16.mxu0 0
  %2167 = vmatpush1.bf16.msra.mxu0 %v2157
  %2168 = vmatprep.subr.bf16.mxu0 0
  %2169 = vmatpush1.bf16.msra.mxu0 %v2156
  %2170 = vmatprep.subr.bf16.mxu0 0
  %2171 = vmatpush1.bf16.msra.mxu0 %v2155
  %2172 = vmatprep.subr.bf16.mxu0 0
  %2173 = vmatpush1.bf16.msra.mxu0 %v2154
  %2174 = vmatprep.subr.bf16.mxu0 0
  %2175 = vmatpush1.bf16.msra.mxu0 %v2153
  %2176 = vmatprep.subr.bf16.mxu0 0
  %2177 = vmatpush1.bf16.msra.mxu0 %v2152
  %2178 = vmatprep.subr.bf16.mxu0 0
  %2179 = vmatpush1.bf16.msra.mxu0 %v2151
  %2180 = vmatprep.subr.bf16.mxu0 0
  %2181 = vmatpush1.bf16.msra.mxu0 %v2150
  %2182 = vmatprep.subr.bf16.mxu0 0
  %2183 = vmatpush2.bf16.msra.mxu0 0
  %2184 = vmatprep.subr.bf16.mxu0 0
  %2185 = vmatpush2.bf16.msra.mxu0 0
  %2186 = vmatprep.subr.bf16.mxu0 0
  %2187 = vmatpush2.bf16.msra.mxu0 0
  %2188 = vmatprep.subr.bf16.mxu0 0
  %2189 = vmatpush2.bf16.msra.mxu0 0
  %2190 = vmatprep.subr.bf16.mxu0 0
  %2191 = vmatpush2.bf16.msra.mxu0 0
  %2192 = vmatprep.subr.bf16.mxu0 0
  %2193 = vmatpush2.bf16.msra.mxu0 0
  %2194 = vmatprep.subr.bf16.mxu0 0
  %2195 = vmatpush2.bf16.msra.mxu0 0
  %2196 = vmatprep.subr.bf16.mxu0 0
  %2197 = vmatpush2.bf16.msra.mxu0 0
  %2198 = vmatprep.mubr.bf16.mxu0 0
  %2199 = vmatmul.mubr.bf16.gmra.mxu0 %v2102
  %v2200 = vpop.f32.mrf.mxu0
  %v2201 = vadd.f32 0.0, %v2200
  %v2202 = vpop.f32.mrf.mxu0
  %v2203 = vpop.f32.mrf.mxu0
  %v2204 = vadd.f32 0.0, %v2203
  %v2205 = vpop.f32.mrf.mxu0
  %2206 = vmatprep.mubr.bf16.mxu0 0
  %2207 = vmatmul.mubr.bf16.gmra.mxu0 %v2103
  %v2208 = vpop.f32.mrf.mxu0
  %v2209 = vadd.f32 0.0, %v2208
  %v2210 = vpop.f32.mrf.mxu0
  %v2211 = vpop.f32.mrf.mxu0
  %v2212 = vadd.f32 0.0, %v2211
  %v2213 = vpop.f32.mrf.mxu0
  %2214 = vmatprep.mubr.bf16.mxu0 0
  %2215 = vmatmul.mubr.bf16.gmra.mxu0 %v2104
  %v2216 = vpop.f32.mrf.mxu0
  %v2217 = vadd.f32 0.0, %v2216
  %v2218 = vpop.f32.mrf.mxu0
  %v2219 = vpop.f32.mrf.mxu0
  %v2220 = vadd.f32 0.0, %v2219
  %v2221 = vpop.f32.mrf.mxu0
  %2222 = vmatprep.mubr.bf16.mxu0 0
  %2223 = vmatmul.mubr.bf16.gmra.mxu0 %v2105
  %v2224 = vpop.f32.mrf.mxu0
  %v2225 = vadd.f32 0.0, %v2224
  %v2226 = vpop.f32.mrf.mxu0
  %v2227 = vpop.f32.mrf.mxu0
  %v2228 = vadd.f32 0.0, %v2227
  %v2229 = vpop.f32.mrf.mxu0
  %2230 = vmatprep.mubr.bf16.mxu0 0
  %2231 = vmatmul.mubr.bf16.gmra.mxu0 %v2106
  %v2232 = vpop.f32.mrf.mxu0
  %v2233 = vadd.f32 0.0, %v2232
  %v2234 = vpop.f32.mrf.mxu0
  %v2235 = vpop.f32.mrf.mxu0
  %v2236 = vadd.f32 0.0, %v2235
  %v2237 = vpop.f32.mrf.mxu0
  %2238 = vmatprep.mubr.bf16.mxu0 0
  %2239 = vmatmul.mubr.bf16.gmra.mxu0 %v2107
  %v2240 = vpop.f32.mrf.mxu0
  %v2241 = vadd.f32 0.0, %v2240
  %v2242 = vpop.f32.mrf.mxu0
  %v2243 = vpop.f32.mrf.mxu0
  %v2244 = vadd.f32 0.0, %v2243
  %v2245 = vpop.f32.mrf.mxu0
  %2246 = vmatprep.mubr.bf16.mxu0 0
  %2247 = vmatmul.mubr.bf16.gmra.mxu0 %v2108
  %v2248 = vpop.f32.mrf.mxu0
  %v2249 = vadd.f32 0.0, %v2248
  %v2250 = vpop.f32.mrf.mxu0
  %v2251 = vpop.f32.mrf.mxu0
  %v2252 = vadd.f32 0.0, %v2251
  %v2253 = vpop.f32.mrf.mxu0
  %2254 = vmatprep.mubr.bf16.mxu0 0
  %2255 = vmatmul.mubr.bf16.gmra.mxu0 %v2109
  %v2256 = vpop.f32.mrf.mxu0
  %v2257 = vadd.f32 0.0, %v2256
  %v2258 = vpop.f32.mrf.mxu0
  %v2259 = vpop.f32.mrf.mxu0
  %v2260 = vadd.f32 0.0, %v2259
  %v2261 = vpop.f32.mrf.mxu0
  %2262 = vdwg.mxu0
  %v2263 = vadd.f32 %v2020, %v2201
  %v2264 = vadd.f32 %v2021, %v2204
  %v2265 = vadd.f32 %v2022, %v2209
  %v2266 = vadd.f32 %v2023, %v2212
  %v2267 = vadd.f32 %v2024, %v2217
  %v2268 = vadd.f32 %v2025, %v2220
  %v2269 = vadd.f32 %v2026, %v2225
  %v2270 = vadd.f32 %v2027, %v2228
  %v2271 = vadd.f32 %v2028, %v2233
  %v2272 = vadd.f32 %v2029, %v2236
  %v2273 = vadd.f32 %v2030, %v2241
  %v2274 = vadd.f32 %v2031, %v2244
  %v2275 = vadd.f32 %v2032, %v2249
  %v2276 = vadd.f32 %v2033, %v2252
  %v2277 = vadd.f32 %v2034, %v2257
  %v2278 = vadd.f32 %v2035, %v2260
  %v2279 = vld [vmem:[%s2036] sm:$0xf]
  %v2280 = vld [vmem:[%s2036 + $0x4] sm:$0x1]
  %v2281 = vld [vmem:[%s2036 + $0x8] sm:$0xf]
  %v2282 = vld [vmem:[%s2036 + $0xc] sm:$0x1]
  %v2283 = vld [vmem:[%s2036 + $0x10] sm:$0xf]
  %v2284 = vld [vmem:[%s2036 + $0x14] sm:$0x1]
  %v2285 = vld [vmem:[%s2036 + $0x18] sm:$0xf]
  %v2286 = vld [vmem:[%s2036 + $0x1c] sm:$0x1]
  %v2287 = vld [vmem:[%s2036 + $0x20] sm:$0xf]
  %v2288 = vld [vmem:[%s2036 + $0x24] sm:$0x1]
  %v2289 = vld [vmem:[%s2036 + $0x28] sm:$0xf]
  %v2290 = vld [vmem:[%s2036 + $0x2c] sm:$0x1]
  %v2291 = vld [vmem:[%s2036 + $0x30] sm:$0xf]
  %v2292 = vld [vmem:[%s2036 + $0x34] sm:$0x1]
  %v2293 = vld [vmem:[%s2036 + $0x38] sm:$0xf]
  %v2294 = vld [vmem:[%s2036 + $0x3c] sm:$0x1]
  %v2295 = vld [vmem:[%s2036 + $0x50] sm:$0xf]
  %v2296 = vld [vmem:[%s2036 + $0x54] sm:$0x1]
  %v2297 = vld [vmem:[%s2036 + $0x58] sm:$0xf]
  %v2298 = vld [vmem:[%s2036 + $0x5c] sm:$0x1]
  %v2299 = vld [vmem:[%s2036 + $0x60] sm:$0xf]
  %v2300 = vld [vmem:[%s2036 + $0x64] sm:$0x1]
  %v2301 = vld [vmem:[%s2036 + $0x68] sm:$0xf]
  %v2302 = vld [vmem:[%s2036 + $0x6c] sm:$0x1]
  %v2303 = vld [vmem:[%s2036 + $0x70] sm:$0xf]
  %v2304 = vld [vmem:[%s2036 + $0x74] sm:$0x1]
  %v2305 = vld [vmem:[%s2036 + $0x78] sm:$0xf]
  %v2306 = vld [vmem:[%s2036 + $0x7c] sm:$0x1]
  %v2307 = vld [vmem:[%s2036 + $0x80] sm:$0xf]
  %v2308 = vld [vmem:[%s2036 + $0x84] sm:$0x1]
  %v2309 = vld [vmem:[%s2036 + $0x88] sm:$0xf]
  %v2310 = vld [vmem:[%s2036 + $0x8c] sm:$0x1]
  %v2312 = vshrl.u32 %v2279, 16
  %v2314 = vrot.slane %v2312, 4
  %v2315 = vshll.u32 %v2279, 16
  %v2317 = vrot.slane %v2315, 5
  %v2318 = vor.u32 %v2314, %v2317
  %v2319 = vrot.slane %v2318, 4
  %v2321 = vshll.u32 %v2280, 16
  %v2323 = vrot.slane %v2321, 5
  %v2324 = vsel %vm68, %v2319, %v2323
  %v2326 = vshrl.u32 %v2281, 16
  %v2328 = vrot.slane %v2326, 4
  %v2329 = vshll.u32 %v2281, 16
  %v2331 = vrot.slane %v2329, 5
  %v2332 = vor.u32 %v2328, %v2331
  %v2333 = vrot.slane %v2332, 4
  %v2335 = vshll.u32 %v2282, 16
  %v2337 = vrot.slane %v2335, 5
  %v2338 = vsel %vm68, %v2333, %v2337
  %v2340 = vshrl.u32 %v2283, 16
  %v2342 = vrot.slane %v2340, 4
  %v2343 = vshll.u32 %v2283, 16
  %v2345 = vrot.slane %v2343, 5
  %v2346 = vor.u32 %v2342, %v2345
  %v2347 = vrot.slane %v2346, 4
  %v2349 = vshll.u32 %v2284, 16
  %v2351 = vrot.slane %v2349, 5
  %v2352 = vsel %vm68, %v2347, %v2351
  %v2354 = vshrl.u32 %v2285, 16
  %v2356 = vrot.slane %v2354, 4
  %v2357 = vshll.u32 %v2285, 16
  %v2359 = vrot.slane %v2357, 5
  %v2360 = vor.u32 %v2356, %v2359
  %v2361 = vrot.slane %v2360, 4
  %v2363 = vshll.u32 %v2286, 16
  %v2365 = vrot.slane %v2363, 5
  %v2366 = vsel %vm68, %v2361, %v2365
  %v2368 = vshrl.u32 %v2287, 16
  %v2370 = vrot.slane %v2368, 4
  %v2371 = vshll.u32 %v2287, 16
  %v2373 = vrot.slane %v2371, 5
  %v2374 = vor.u32 %v2370, %v2373
  %v2375 = vrot.slane %v2374, 4
  %v2377 = vshll.u32 %v2288, 16
  %v2379 = vrot.slane %v2377, 5
  %v2380 = vsel %vm68, %v2375, %v2379
  %v2382 = vshrl.u32 %v2289, 16
  %v2384 = vrot.slane %v2382, 4
  %v2385 = vshll.u32 %v2289, 16
  %v2387 = vrot.slane %v2385, 5
  %v2388 = vor.u32 %v2384, %v2387
  %v2389 = vrot.slane %v2388, 4
  %v2391 = vshll.u32 %v2290, 16
  %v2393 = vrot.slane %v2391, 5
  %v2394 = vsel %vm68, %v2389, %v2393
  %v2396 = vshrl.u32 %v2291, 16
  %v2398 = vrot.slane %v2396, 4
  %v2399 = vshll.u32 %v2291, 16
  %v2401 = vrot.slane %v2399, 5
  %v2402 = vor.u32 %v2398, %v2401
  %v2403 = vrot.slane %v2402, 4
  %v2405 = vshll.u32 %v2292, 16
  %v2407 = vrot.slane %v2405, 5
  %v2408 = vsel %vm68, %v2403, %v2407
  %v2410 = vshrl.u32 %v2293, 16
  %v2412 = vrot.slane %v2410, 4
  %v2413 = vshll.u32 %v2293, 16
  %v2415 = vrot.slane %v2413, 5
  %v2416 = vor.u32 %v2412, %v2415
  %v2417 = vrot.slane %v2416, 4
  %v2419 = vshll.u32 %v2294, 16
  %v2421 = vrot.slane %v2419, 5
  %v2422 = vsel %vm68, %v2417, %v2421
  %v2424 = vshrl.u32 %v2295, 16
  %v2426 = vrot.slane %v2424, 4
  %v2427 = vshll.u32 %v2295, 16
  %v2429 = vrot.slane %v2427, 5
  %v2430 = vor.u32 %v2426, %v2429
  %v2431 = vrot.slane %v2430, 4
  %v2433 = vshll.u32 %v2296, 16
  %v2435 = vrot.slane %v2433, 5
  %v2436 = vsel %vm68, %v2431, %v2435
  %v2438 = vshrl.u32 %v2297, 16
  %v2440 = vrot.slane %v2438, 4
  %v2441 = vshll.u32 %v2297, 16
  %v2443 = vrot.slane %v2441, 5
  %v2444 = vor.u32 %v2440, %v2443
  %v2445 = vrot.slane %v2444, 4
  %v2447 = vshll.u32 %v2298, 16
  %v2449 = vrot.slane %v2447, 5
  %v2450 = vsel %vm68, %v2445, %v2449
  %v2452 = vshrl.u32 %v2299, 16
  %v2454 = vrot.slane %v2452, 4
  %v2455 = vshll.u32 %v2299, 16
  %v2457 = vrot.slane %v2455, 5
  %v2458 = vor.u32 %v2454, %v2457
  %v2459 = vrot.slane %v2458, 4
  %v2461 = vshll.u32 %v2300, 16
  %v2463 = vrot.slane %v2461, 5
  %v2464 = vsel %vm68, %v2459, %v2463
  %v2466 = vshrl.u32 %v2301, 16
  %v2468 = vrot.slane %v2466, 4
  %v2469 = vshll.u32 %v2301, 16
  %v2471 = vrot.slane %v2469, 5
  %v2472 = vor.u32 %v2468, %v2471
  %v2473 = vrot.slane %v2472, 4
  %v2475 = vshll.u32 %v2302, 16
  %v2477 = vrot.slane %v2475, 5
  %v2478 = vsel %vm68, %v2473, %v2477
  %v2480 = vshrl.u32 %v2303, 16
  %v2482 = vrot.slane %v2480, 4
  %v2483 = vshll.u32 %v2303, 16
  %v2485 = vrot.slane %v2483, 5
  %v2486 = vor.u32 %v2482, %v2485
  %v2487 = vrot.slane %v2486, 4
  %v2489 = vshll.u32 %v2304, 16
  %v2491 = vrot.slane %v2489, 5
  %v2492 = vsel %vm68, %v2487, %v2491
  %v2494 = vshrl.u32 %v2305, 16
  %v2496 = vrot.slane %v2494, 4
  %v2497 = vshll.u32 %v2305, 16
  %v2499 = vrot.slane %v2497, 5
  %v2500 = vor.u32 %v2496, %v2499
  %v2501 = vrot.slane %v2500, 4
  %v2503 = vshll.u32 %v2306, 16
  %v2505 = vrot.slane %v2503, 5
  %v2506 = vsel %vm68, %v2501, %v2505
  %v2508 = vshrl.u32 %v2307, 16
  %v2510 = vrot.slane %v2508, 4
  %v2511 = vshll.u32 %v2307, 16
  %v2513 = vrot.slane %v2511, 5
  %v2514 = vor.u32 %v2510, %v2513
  %v2515 = vrot.slane %v2514, 4
  %v2517 = vshll.u32 %v2308, 16
  %v2519 = vrot.slane %v2517, 5
  %v2520 = vsel %vm68, %v2515, %v2519
  %v2522 = vshrl.u32 %v2309, 16
  %v2524 = vrot.slane %v2522, 4
  %v2525 = vshll.u32 %v2309, 16
  %v2527 = vrot.slane %v2525, 5
  %v2528 = vor.u32 %v2524, %v2527
  %v2529 = vrot.slane %v2528, 4
  %v2531 = vshll.u32 %v2310, 16
  %v2533 = vrot.slane %v2531, 5
  %v2534 = vsel %vm68, %v2529, %v2533
  %s2535 = scalar_lea.vmem %s1, 448
  %v2536 = vld [vmem:[%s2535] sm:$0xf]
  %v2537 = vld [vmem:[%s2535 + $0x4] sm:$0xf]
  %v2538 = vld [vmem:[%s2535 + $0x8] sm:$0xf]
  %v2539 = vld [vmem:[%s2535 + $0xc] sm:$0xf]
  %v2540 = vld [vmem:[%s2535 + $0x10] sm:$0xf]
  %v2541 = vld [vmem:[%s2535 + $0x14] sm:$0xf]
  %v2542 = vld [vmem:[%s2535 + $0x18] sm:$0xf]
  %v2543 = vld [vmem:[%s2535 + $0x1c] sm:$0xf]
  %v2544 = vld [vmem:[%s2535 + $0x20] sm:$0xf]
  %v2545 = vld [vmem:[%s2535 + $0x24] sm:$0xf]
  %v2546 = vld [vmem:[%s2535 + $0x28] sm:$0xf]
  %v2547 = vld [vmem:[%s2535 + $0x2c] sm:$0xf]
  %v2548 = vld [vmem:[%s2535 + $0x30] sm:$0xf]
  %v2549 = vld [vmem:[%s2535 + $0x34] sm:$0xf]
  %v2550 = vld [vmem:[%s2535 + $0x38] sm:$0xf]
  %v2551 = vld [vmem:[%s2535 + $0x3c] sm:$0xf]
  %v2552 = vunpack.c.l.b16 %v2324
  %v2553 = vunpack.c.l.b16 %v2338
  %v2554 = vunpack.c.l.b16 %v2352
  %v2555 = vunpack.c.l.b16 %v2366
  %v2556 = vunpack.c.l.b16 %v2380
  %v2557 = vunpack.c.l.b16 %v2394
  %v2558 = vunpack.c.l.b16 %v2408
  %v2559 = vunpack.c.l.b16 %v2422
  %v2560 = vunpack.c.l.b16 %v2436
  %v2561 = vunpack.c.l.b16 %v2450
  %v2562 = vunpack.c.l.b16 %v2464
  %v2563 = vunpack.c.l.b16 %v2478
  %v2564 = vunpack.c.l.b16 %v2492
  %v2565 = vunpack.c.l.b16 %v2506
  %v2566 = vunpack.c.l.b16 %v2520
  %v2567 = vunpack.c.l.b16 %v2534
  %v2568 = vpack.c.b16 %v2553, %v2552
  %v2569 = vpack.c.b16 %v2555, %v2554
  %v2570 = vpack.c.b16 %v2557, %v2556
  %v2571 = vpack.c.b16 %v2559, %v2558
  %v2572 = vpack.c.b16 %v2561, %v2560
  %v2573 = vpack.c.b16 %v2563, %v2562
  %v2574 = vpack.c.b16 %v2565, %v2564
  %v2575 = vpack.c.b16 %v2567, %v2566
  %v2600 = vunpack.c.l.b16 %v2536
  %v2601 = vunpack.c.l.b16 %v2537
  %v2602 = vunpack.c.l.b16 %v2538
  %v2603 = vunpack.c.l.b16 %v2539
  %v2604 = vunpack.c.l.b16 %v2540
  %v2605 = vunpack.c.l.b16 %v2541
  %v2606 = vunpack.c.l.b16 %v2542
  %v2607 = vunpack.c.l.b16 %v2543
  %v2608 = vunpack.c.l.b16 %v2544
  %v2609 = vunpack.c.l.b16 %v2545
  %v2610 = vunpack.c.l.b16 %v2546
  %v2611 = vunpack.c.l.b16 %v2547
  %v2612 = vunpack.c.l.b16 %v2548
  %v2613 = vunpack.c.l.b16 %v2549
  %v2614 = vunpack.c.l.b16 %v2550
  %v2615 = vunpack.c.l.b16 %v2551
  %v2616 = vpack.c.b16 %v2601, %v2600
  %v2617 = vpack.c.b16 %v2603, %v2602
  %v2618 = vpack.c.b16 %v2605, %v2604
  %v2619 = vpack.c.b16 %v2607, %v2606
  %v2620 = vpack.c.b16 %v2609, %v2608
  %v2621 = vpack.c.b16 %v2611, %v2610
  %v2622 = vpack.c.b16 %v2613, %v2612
  %v2623 = vpack.c.b16 %v2615, %v2614
  %2632 = vmatprep.subr.bf16.mxu0 0
  %2633 = vmatpush1.bf16.msra.mxu0 %v2623
  %2634 = vmatprep.subr.bf16.mxu0 0
  %2635 = vmatpush1.bf16.msra.mxu0 %v2622
  %2636 = vmatprep.subr.bf16.mxu0 0
  %2637 = vmatpush1.bf16.msra.mxu0 %v2621
  %2638 = vmatprep.subr.bf16.mxu0 0
  %2639 = vmatpush1.bf16.msra.mxu0 %v2620
  %2640 = vmatprep.subr.bf16.mxu0 0
  %2641 = vmatpush1.bf16.msra.mxu0 %v2619
  %2642 = vmatprep.subr.bf16.mxu0 0
  %2643 = vmatpush1.bf16.msra.mxu0 %v2618
  %2644 = vmatprep.subr.bf16.mxu0 0
  %2645 = vmatpush1.bf16.msra.mxu0 %v2617
  %2646 = vmatprep.subr.bf16.mxu0 0
  %2647 = vmatpush1.bf16.msra.mxu0 %v2616
  %2648 = vmatprep.subr.bf16.mxu0 0
  %2649 = vmatpush2.bf16.msra.mxu0 0
  %2650 = vmatprep.subr.bf16.mxu0 0
  %2651 = vmatpush2.bf16.msra.mxu0 0
  %2652 = vmatprep.subr.bf16.mxu0 0
  %2653 = vmatpush2.bf16.msra.mxu0 0
  %2654 = vmatprep.subr.bf16.mxu0 0
  %2655 = vmatpush2.bf16.msra.mxu0 0
  %2656 = vmatprep.subr.bf16.mxu0 0
  %2657 = vmatpush2.bf16.msra.mxu0 0
  %2658 = vmatprep.subr.bf16.mxu0 0
  %2659 = vmatpush2.bf16.msra.mxu0 0
  %2660 = vmatprep.subr.bf16.mxu0 0
  %2661 = vmatpush2.bf16.msra.mxu0 0
  %2662 = vmatprep.subr.bf16.mxu0 0
  %2663 = vmatpush2.bf16.msra.mxu0 0
  %2664 = vmatprep.mubr.bf16.mxu0 0
  %2665 = vmatmul.mubr.bf16.gmra.mxu0 %v2568
  %v2666 = vpop.f32.mrf.mxu0
  %v2667 = vadd.f32 0.0, %v2666
  %v2668 = vpop.f32.mrf.mxu0
  %v2669 = vpop.f32.mrf.mxu0
  %v2670 = vadd.f32 0.0, %v2669
  %v2671 = vpop.f32.mrf.mxu0
  %2672 = vmatprep.mubr.bf16.mxu0 0
  %2673 = vmatmul.mubr.bf16.gmra.mxu0 %v2569
  %v2674 = vpop.f32.mrf.mxu0
  %v2675 = vadd.f32 0.0, %v2674
  %v2676 = vpop.f32.mrf.mxu0
  %v2677 = vpop.f32.mrf.mxu0
  %v2678 = vadd.f32 0.0, %v2677
  %v2679 = vpop.f32.mrf.mxu0
  %2680 = vmatprep.mubr.bf16.mxu0 0
  %2681 = vmatmul.mubr.bf16.gmra.mxu0 %v2570
  %v2682 = vpop.f32.mrf.mxu0
  %v2683 = vadd.f32 0.0, %v2682
  %v2684 = vpop.f32.mrf.mxu0
  %v2685 = vpop.f32.mrf.mxu0
  %v2686 = vadd.f32 0.0, %v2685
  %v2687 = vpop.f32.mrf.mxu0
  %2688 = vmatprep.mubr.bf16.mxu0 0
  %2689 = vmatmul.mubr.bf16.gmra.mxu0 %v2571
  %v2690 = vpop.f32.mrf.mxu0
  %v2691 = vadd.f32 0.0, %v2690
  %v2692 = vpop.f32.mrf.mxu0
  %v2693 = vpop.f32.mrf.mxu0
  %v2694 = vadd.f32 0.0, %v2693
  %v2695 = vpop.f32.mrf.mxu0
  %2696 = vmatprep.mubr.bf16.mxu0 0
  %2697 = vmatmul.mubr.bf16.gmra.mxu0 %v2572
  %v2698 = vpop.f32.mrf.mxu0
  %v2699 = vadd.f32 0.0, %v2698
  %v2700 = vpop.f32.mrf.mxu0
  %v2701 = vpop.f32.mrf.mxu0
  %v2702 = vadd.f32 0.0, %v2701
  %v2703 = vpop.f32.mrf.mxu0
  %2704 = vmatprep.mubr.bf16.mxu0 0
  %2705 = vmatmul.mubr.bf16.gmra.mxu0 %v2573
  %v2706 = vpop.f32.mrf.mxu0
  %v2707 = vadd.f32 0.0, %v2706
  %v2708 = vpop.f32.mrf.mxu0
  %v2709 = vpop.f32.mrf.mxu0
  %v2710 = vadd.f32 0.0, %v2709
  %v2711 = vpop.f32.mrf.mxu0
  %2712 = vmatprep.mubr.bf16.mxu0 0
  %2713 = vmatmul.mubr.bf16.gmra.mxu0 %v2574
  %v2714 = vpop.f32.mrf.mxu0
  %v2715 = vadd.f32 0.0, %v2714
  %v2716 = vpop.f32.mrf.mxu0
  %v2717 = vpop.f32.mrf.mxu0
  %v2718 = vadd.f32 0.0, %v2717
  %v2719 = vpop.f32.mrf.mxu0
  %2720 = vmatprep.mubr.bf16.mxu0 0
  %2721 = vmatmul.mubr.bf16.gmra.mxu0 %v2575
  %v2722 = vpop.f32.mrf.mxu0
  %v2723 = vadd.f32 0.0, %v2722
  %v2724 = vpop.f32.mrf.mxu0
  %v2725 = vpop.f32.mrf.mxu0
  %v2726 = vadd.f32 0.0, %v2725
  %v2727 = vpop.f32.mrf.mxu0
  %2728 = vdwg.mxu0
  %v2729 = vadd.f32 %v2263, %v2667
  %v2730 = vadd.f32 %v2264, %v2670
  %v2731 = vadd.f32 %v2265, %v2675
  %v2732 = vadd.f32 %v2266, %v2678
  %v2733 = vadd.f32 %v2267, %v2683
  %v2734 = vadd.f32 %v2268, %v2686
  %v2735 = vadd.f32 %v2269, %v2691
  %v2736 = vadd.f32 %v2270, %v2694
  %v2737 = vadd.f32 %v2271, %v2699
  %v2738 = vadd.f32 %v2272, %v2702
  %v2739 = vadd.f32 %v2273, %v2707
  %v2740 = vadd.f32 %v2274, %v2710
  %v2741 = vadd.f32 %v2275, %v2715
  %v2742 = vadd.f32 %v2276, %v2718
  %v2743 = vadd.f32 %v2277, %v2723
  %v2744 = vadd.f32 %v2278, %v2726
  %v2745 = vld [vmem:[%s2036] sm:$0xe]
  %v2746 = vld [vmem:[%s2036 + $0x8] sm:$0xe]
  %v2747 = vld [vmem:[%s2036 + $0x10] sm:$0xe]
  %v2748 = vld [vmem:[%s2036 + $0x18] sm:$0xe]
  %v2749 = vld [vmem:[%s2036 + $0x20] sm:$0xe]
  %v2750 = vld [vmem:[%s2036 + $0x28] sm:$0xe]
  %v2751 = vld [vmem:[%s2036 + $0x30] sm:$0xe]
  %v2752 = vld [vmem:[%s2036 + $0x38] sm:$0xe]
  %v2753 = vld [vmem:[%s2036 + $0x50] sm:$0xe]
  %v2754 = vld [vmem:[%s2036 + $0x58] sm:$0xe]
  %v2755 = vld [vmem:[%s2036 + $0x60] sm:$0xe]
  %v2756 = vld [vmem:[%s2036 + $0x68] sm:$0xe]
  %v2757 = vld [vmem:[%s2036 + $0x70] sm:$0xe]
  %v2758 = vld [vmem:[%s2036 + $0x78] sm:$0xe]
  %v2759 = vld [vmem:[%s2036 + $0x80] sm:$0xe]
  %v2760 = vld [vmem:[%s2036 + $0x88] sm:$0xe]
  %v2793 = vrot.slane %v2745, 5
  %v2794 = vrot.slane %v2793, 4
  %v2795 = vrot.slane %v2280, 5
  %v2796 = vsel %vm730, %v2794, %v2795
  %v2797 = vrot.slane %v2746, 5
  %v2798 = vrot.slane %v2797, 4
  %v2799 = vrot.slane %v2282, 5
  %v2800 = vsel %vm730, %v2798, %v2799
  %v2801 = vrot.slane %v2747, 5
  %v2802 = vrot.slane %v2801, 4
  %v2803 = vrot.slane %v2284, 5
  %v2804 = vsel %vm730, %v2802, %v2803
  %v2805 = vrot.slane %v2748, 5
  %v2806 = vrot.slane %v2805, 4
  %v2807 = vrot.slane %v2286, 5
  %v2808 = vsel %vm730, %v2806, %v2807
  %v2809 = vrot.slane %v2749, 5
  %v2810 = vrot.slane %v2809, 4
  %v2811 = vrot.slane %v2288, 5
  %v2812 = vsel %vm730, %v2810, %v2811
  %v2813 = vrot.slane %v2750, 5
  %v2814 = vrot.slane %v2813, 4
  %v2815 = vrot.slane %v2290, 5
  %v2816 = vsel %vm730, %v2814, %v2815
  %v2817 = vrot.slane %v2751, 5
  %v2818 = vrot.slane %v2817, 4
  %v2819 = vrot.slane %v2292, 5
  %v2820 = vsel %vm730, %v2818, %v2819
  %v2821 = vrot.slane %v2752, 5
  %v2822 = vrot.slane %v2821, 4
  %v2823 = vrot.slane %v2294, 5
  %v2824 = vsel %vm730, %v2822, %v2823
  %v2825 = vrot.slane %v2753, 5
  %v2826 = vrot.slane %v2825, 4
  %v2827 = vrot.slane %v2296, 5
  %v2828 = vsel %vm730, %v2826, %v2827
  %v2829 = vrot.slane %v2754, 5
  %v2830 = vrot.slane %v2829, 4
  %v2831 = vrot.slane %v2298, 5
  %v2832 = vsel %vm730, %v2830, %v2831
  %v2833 = vrot.slane %v2755, 5
  %v2834 = vrot.slane %v2833, 4
  %v2835 = vrot.slane %v2300, 5
  %v2836 = vsel %vm730, %v2834, %v2835
  %v2837 = vrot.slane %v2756, 5
  %v2838 = vrot.slane %v2837, 4
  %v2839 = vrot.slane %v2302, 5
  %v2840 = vsel %vm730, %v2838, %v2839
  %v2841 = vrot.slane %v2757, 5
  %v2842 = vrot.slane %v2841, 4
  %v2843 = vrot.slane %v2304, 5
  %v2844 = vsel %vm730, %v2842, %v2843
  %v2845 = vrot.slane %v2758, 5
  %v2846 = vrot.slane %v2845, 4
  %v2847 = vrot.slane %v2306, 5
  %v2848 = vsel %vm730, %v2846, %v2847
  %v2849 = vrot.slane %v2759, 5
  %v2850 = vrot.slane %v2849, 4
  %v2851 = vrot.slane %v2308, 5
  %v2852 = vsel %vm730, %v2850, %v2851
  %v2853 = vrot.slane %v2760, 5
  %v2854 = vrot.slane %v2853, 4
  %v2855 = vrot.slane %v2310, 5
  %v2856 = vsel %vm730, %v2854, %v2855
  %s2857 = scalar_lea.vmem %s1, 512
  %v2858 = vld [vmem:[%s2857] sm:$0xf]
  %v2859 = vld [vmem:[%s2857 + $0x4] sm:$0xf]
  %v2860 = vld [vmem:[%s2857 + $0x8] sm:$0xf]
  %v2861 = vld [vmem:[%s2857 + $0xc] sm:$0xf]
  %v2862 = vld [vmem:[%s2857 + $0x10] sm:$0xf]
  %v2863 = vld [vmem:[%s2857 + $0x14] sm:$0xf]
  %v2864 = vld [vmem:[%s2857 + $0x18] sm:$0xf]
  %v2865 = vld [vmem:[%s2857 + $0x1c] sm:$0xf]
  %v2866 = vld [vmem:[%s2857 + $0x20] sm:$0xf]
  %v2867 = vld [vmem:[%s2857 + $0x24] sm:$0xf]
  %v2868 = vld [vmem:[%s2857 + $0x28] sm:$0xf]
  %v2869 = vld [vmem:[%s2857 + $0x2c] sm:$0xf]
  %v2870 = vld [vmem:[%s2857 + $0x30] sm:$0xf]
  %v2871 = vld [vmem:[%s2857 + $0x34] sm:$0xf]
  %v2872 = vld [vmem:[%s2857 + $0x38] sm:$0xf]
  %v2873 = vld [vmem:[%s2857 + $0x3c] sm:$0xf]
  %v2874 = vunpack.c.l.b16 %v2796
  %v2875 = vunpack.c.l.b16 %v2800
  %v2876 = vunpack.c.l.b16 %v2804
  %v2877 = vunpack.c.l.b16 %v2808
  %v2878 = vunpack.c.l.b16 %v2812
  %v2879 = vunpack.c.l.b16 %v2816
  %v2880 = vunpack.c.l.b16 %v2820
  %v2881 = vunpack.c.l.b16 %v2824
  %v2882 = vunpack.c.l.b16 %v2828
  %v2883 = vunpack.c.l.b16 %v2832
  %v2884 = vunpack.c.l.b16 %v2836
  %v2885 = vunpack.c.l.b16 %v2840
  %v2886 = vunpack.c.l.b16 %v2844
  %v2887 = vunpack.c.l.b16 %v2848
  %v2888 = vunpack.c.l.b16 %v2852
  %v2889 = vunpack.c.l.b16 %v2856
  %v2890 = vpack.c.b16 %v2875, %v2874
  %v2891 = vpack.c.b16 %v2877, %v2876
  %v2892 = vpack.c.b16 %v2879, %v2878
  %v2893 = vpack.c.b16 %v2881, %v2880
  %v2894 = vpack.c.b16 %v2883, %v2882
  %v2895 = vpack.c.b16 %v2885, %v2884
  %v2896 = vpack.c.b16 %v2887, %v2886
  %v2897 = vpack.c.b16 %v2889, %v2888
  %v2922 = vunpack.c.l.b16 %v2858
  %v2923 = vunpack.c.l.b16 %v2859
  %v2924 = vunpack.c.l.b16 %v2860
  %v2925 = vunpack.c.l.b16 %v2861
  %v2926 = vunpack.c.l.b16 %v2862
  %v2927 = vunpack.c.l.b16 %v2863
  %v2928 = vunpack.c.l.b16 %v2864
  %v2929 = vunpack.c.l.b16 %v2865
  %v2930 = vunpack.c.l.b16 %v2866
  %v2931 = vunpack.c.l.b16 %v2867
  %v2932 = vunpack.c.l.b16 %v2868
  %v2933 = vunpack.c.l.b16 %v2869
  %v2934 = vunpack.c.l.b16 %v2870
  %v2935 = vunpack.c.l.b16 %v2871
  %v2936 = vunpack.c.l.b16 %v2872
  %v2937 = vunpack.c.l.b16 %v2873
  %v2938 = vpack.c.b16 %v2923, %v2922
  %v2939 = vpack.c.b16 %v2925, %v2924
  %v2940 = vpack.c.b16 %v2927, %v2926
  %v2941 = vpack.c.b16 %v2929, %v2928
  %v2942 = vpack.c.b16 %v2931, %v2930
  %v2943 = vpack.c.b16 %v2933, %v2932
  %v2944 = vpack.c.b16 %v2935, %v2934
  %v2945 = vpack.c.b16 %v2937, %v2936
  %2954 = vmatprep.subr.bf16.mxu0 0
  %2955 = vmatpush1.bf16.msra.mxu0 %v2945
  %2956 = vmatprep.subr.bf16.mxu0 0
  %2957 = vmatpush1.bf16.msra.mxu0 %v2944
  %2958 = vmatprep.subr.bf16.mxu0 0
  %2959 = vmatpush1.bf16.msra.mxu0 %v2943
  %2960 = vmatprep.subr.bf16.mxu0 0
  %2961 = vmatpush1.bf16.msra.mxu0 %v2942
  %2962 = vmatprep.subr.bf16.mxu0 0
  %2963 = vmatpush1.bf16.msra.mxu0 %v2941
  %2964 = vmatprep.subr.bf16.mxu0 0
  %2965 = vmatpush1.bf16.msra.mxu0 %v2940
  %2966 = vmatprep.subr.bf16.mxu0 0
  %2967 = vmatpush1.bf16.msra.mxu0 %v2939
  %2968 = vmatprep.subr.bf16.mxu0 0
  %2969 = vmatpush1.bf16.msra.mxu0 %v2938
  %2970 = vmatprep.subr.bf16.mxu0 0
  %2971 = vmatpush2.bf16.msra.mxu0 0
  %2972 = vmatprep.subr.bf16.mxu0 0
  %2973 = vmatpush2.bf16.msra.mxu0 0
  %2974 = vmatprep.subr.bf16.mxu0 0
  %2975 = vmatpush2.bf16.msra.mxu0 0
  %2976 = vmatprep.subr.bf16.mxu0 0
  %2977 = vmatpush2.bf16.msra.mxu0 0
  %2978 = vmatprep.subr.bf16.mxu0 0
  %2979 = vmatpush2.bf16.msra.mxu0 0
  %2980 = vmatprep.subr.bf16.mxu0 0
  %2981 = vmatpush2.bf16.msra.mxu0 0
  %2982 = vmatprep.subr.bf16.mxu0 0
  %2983 = vmatpush2.bf16.msra.mxu0 0
  %2984 = vmatprep.subr.bf16.mxu0 0
  %2985 = vmatpush2.bf16.msra.mxu0 0
  %2986 = vmatprep.mubr.bf16.mxu0 0
  %2987 = vmatmul.mubr.bf16.gmra.mxu0 %v2890
  %v2988 = vpop.f32.mrf.mxu0
  %v2989 = vadd.f32 0.0, %v2988
  %v2990 = vpop.f32.mrf.mxu0
  %v2991 = vpop.f32.mrf.mxu0
  %v2992 = vadd.f32 0.0, %v2991
  %v2993 = vpop.f32.mrf.mxu0
  %2994 = vmatprep.mubr.bf16.mxu0 0
  %2995 = vmatmul.mubr.bf16.gmra.mxu0 %v2891
  %v2996 = vpop.f32.mrf.mxu0
  %v2997 = vadd.f32 0.0, %v2996
  %v2998 = vpop.f32.mrf.mxu0
  %v2999 = vpop.f32.mrf.mxu0
  %v3000 = vadd.f32 0.0, %v2999
  %v3001 = vpop.f32.mrf.mxu0
  %3002 = vmatprep.mubr.bf16.mxu0 0
  %3003 = vmatmul.mubr.bf16.gmra.mxu0 %v2892
  %v3004 = vpop.f32.mrf.mxu0
  %v3005 = vadd.f32 0.0, %v3004
  %v3006 = vpop.f32.mrf.mxu0
  %v3007 = vpop.f32.mrf.mxu0
  %v3008 = vadd.f32 0.0, %v3007
  %v3009 = vpop.f32.mrf.mxu0
  %3010 = vmatprep.mubr.bf16.mxu0 0
  %3011 = vmatmul.mubr.bf16.gmra.mxu0 %v2893
  %v3012 = vpop.f32.mrf.mxu0
  %v3013 = vadd.f32 0.0, %v3012
  %v3014 = vpop.f32.mrf.mxu0
  %v3015 = vpop.f32.mrf.mxu0
  %v3016 = vadd.f32 0.0, %v3015
  %v3017 = vpop.f32.mrf.mxu0
  %3018 = vmatprep.mubr.bf16.mxu0 0
  %3019 = vmatmul.mubr.bf16.gmra.mxu0 %v2894
  %v3020 = vpop.f32.mrf.mxu0
  %v3021 = vadd.f32 0.0, %v3020
  %v3022 = vpop.f32.mrf.mxu0
  %v3023 = vpop.f32.mrf.mxu0
  %v3024 = vadd.f32 0.0, %v3023
  %v3025 = vpop.f32.mrf.mxu0
  %3026 = vmatprep.mubr.bf16.mxu0 0
  %3027 = vmatmul.mubr.bf16.gmra.mxu0 %v2895
  %v3028 = vpop.f32.mrf.mxu0
  %v3029 = vadd.f32 0.0, %v3028
  %v3030 = vpop.f32.mrf.mxu0
  %v3031 = vpop.f32.mrf.mxu0
  %v3032 = vadd.f32 0.0, %v3031
  %v3033 = vpop.f32.mrf.mxu0
  %3034 = vmatprep.mubr.bf16.mxu0 0
  %3035 = vmatmul.mubr.bf16.gmra.mxu0 %v2896
  %v3036 = vpop.f32.mrf.mxu0
  %v3037 = vadd.f32 0.0, %v3036
  %v3038 = vpop.f32.mrf.mxu0
  %v3039 = vpop.f32.mrf.mxu0
  %v3040 = vadd.f32 0.0, %v3039
  %v3041 = vpop.f32.mrf.mxu0
  %3042 = vmatprep.mubr.bf16.mxu0 0
  %3043 = vmatmul.mubr.bf16.gmra.mxu0 %v2897
  %v3044 = vpop.f32.mrf.mxu0
  %v3045 = vadd.f32 0.0, %v3044
  %v3046 = vpop.f32.mrf.mxu0
  %v3047 = vpop.f32.mrf.mxu0
  %v3048 = vadd.f32 0.0, %v3047
  %v3049 = vpop.f32.mrf.mxu0
  %3050 = vdwg.mxu0
  %v3051 = vadd.f32 %v2729, %v2989
  %v3052 = vadd.f32 %v2730, %v2992
  %v3053 = vadd.f32 %v2731, %v2997
  %v3054 = vadd.f32 %v2732, %v3000
  %v3055 = vadd.f32 %v2733, %v3005
  %v3056 = vadd.f32 %v2734, %v3008
  %v3057 = vadd.f32 %v2735, %v3013
  %v3058 = vadd.f32 %v2736, %v3016
  %v3059 = vadd.f32 %v2737, %v3021
  %v3060 = vadd.f32 %v2738, %v3024
  %v3061 = vadd.f32 %v2739, %v3029
  %v3062 = vadd.f32 %v2740, %v3032
  %v3063 = vadd.f32 %v2741, %v3037
  %v3064 = vadd.f32 %v2742, %v3040
  %v3065 = vadd.f32 %v2743, %v3045
  %v3066 = vadd.f32 %v2744, %v3048
  %v3067 = vld [vmem:[%s2] sm:$0xf]
  %v3068 = vld [vmem:[%s2 + $0x4] sm:$0xf]
  %v3069 = vld [vmem:[%s2 + $0x8] sm:$0xf]
  %v3070 = vld [vmem:[%s2 + $0xc] sm:$0xf]
  %v3071 = vld [vmem:[%s2 + $0x10] sm:$0xf]
  %v3072 = vld [vmem:[%s2 + $0x14] sm:$0xf]
  %v3073 = vld [vmem:[%s2 + $0x18] sm:$0xf]
  %v3074 = vld [vmem:[%s2 + $0x1c] sm:$0xf]
  %v3075 = vld [vmem:[%s2 + $0x20] sm:$0xf]
  %v3076 = vld [vmem:[%s2 + $0x24] sm:$0xf]
  %v3077 = vld [vmem:[%s2 + $0x28] sm:$0xf]
  %v3078 = vld [vmem:[%s2 + $0x2c] sm:$0xf]
  %v3079 = vld [vmem:[%s2 + $0x30] sm:$0xf]
  %v3080 = vld [vmem:[%s2 + $0x34] sm:$0xf]
  %v3081 = vld [vmem:[%s2 + $0x38] sm:$0xf]
  %v3082 = vld [vmem:[%s2 + $0x3c] sm:$0xf]
  %v3083 = vld [vmem:[%s3] sm:$0xf]
  %v3084 = vld [vmem:[%s3 + $0x4] sm:$0xf]
  %v3085 = vld [vmem:[%s3 + $0x8] sm:$0xf]
  %v3086 = vld [vmem:[%s3 + $0xc] sm:$0xf]
  %v3087 = vld [vmem:[%s3 + $0x10] sm:$0xf]
  %v3088 = vld [vmem:[%s3 + $0x14] sm:$0xf]
  %v3089 = vld [vmem:[%s3 + $0x18] sm:$0xf]
  %v3090 = vld [vmem:[%s3 + $0x1c] sm:$0xf]
  %v3107 = vunpack.c.l.b16 %v3067
  %v3108 = vunpack.c.l.b16 %v3068
  %v3109 = vunpack.c.l.b16 %v3069
  %v3110 = vunpack.c.l.b16 %v3070
  %v3111 = vunpack.c.l.b16 %v3071
  %v3112 = vunpack.c.l.b16 %v3072
  %v3113 = vunpack.c.l.b16 %v3073
  %v3114 = vunpack.c.l.b16 %v3074
  %v3115 = vunpack.c.l.b16 %v3075
  %v3116 = vunpack.c.l.b16 %v3076
  %v3117 = vunpack.c.l.b16 %v3077
  %v3118 = vunpack.c.l.b16 %v3078
  %v3119 = vunpack.c.l.b16 %v3079
  %v3120 = vunpack.c.l.b16 %v3080
  %v3121 = vunpack.c.l.b16 %v3081
  %v3122 = vunpack.c.l.b16 %v3082
  %v3123 = vpack.c.b16 %v3108, %v3107
  %v3124 = vpack.c.b16 %v3110, %v3109
  %v3125 = vpack.c.b16 %v3112, %v3111
  %v3126 = vpack.c.b16 %v3114, %v3113
  %v3127 = vpack.c.b16 %v3116, %v3115
  %v3128 = vpack.c.b16 %v3118, %v3117
  %v3129 = vpack.c.b16 %v3120, %v3119
  %v3130 = vpack.c.b16 %v3122, %v3121
  %v3139 = vunpack.c.l.b16 %v3083
  %v3140 = vunpack.c.l.b16 %v3084
  %v3141 = vunpack.c.l.b16 %v3085
  %v3142 = vunpack.c.l.b16 %v3086
  %v3143 = vunpack.c.l.b16 %v3087
  %v3144 = vunpack.c.l.b16 %v3088
  %v3145 = vunpack.c.l.b16 %v3089
  %v3146 = vunpack.c.l.b16 %v3090
  %v3147 = vpack.c.b16 %v3140, %v3139
  %v3148 = vpack.c.b16 %v3142, %v3141
  %v3149 = vpack.c.b16 %v3144, %v3143
  %v3150 = vpack.c.b16 %v3146, %v3145
  %vm3155 = vcmask 523264
  %v3157 = vsel %vm3155, %v3123, 0
  %v3160 = vsel %vm3155, %v3124, 0
  %v3163 = vsel %vm3155, %v3125, 0
  %v3166 = vsel %vm3155, %v3126, 0
  %v3169 = vsel %vm3155, %v3127, 0
  %v3172 = vsel %vm3155, %v3128, 0
  %v3175 = vsel %vm3155, %v3129, 0
  %v3178 = vsel %vm3155, %v3130, 0
  %3180 = vmatprep.subr.bf16.mxu0 0
  %3181 = vmatpush1.bf16.msra.mxu0 0
  %3182 = vmatprep.subr.bf16.mxu0 0
  %3183 = vmatpush1.bf16.msra.mxu0 0
  %3184 = vmatprep.subr.bf16.mxu0 0
  %3185 = vmatpush1.bf16.msra.mxu0 0
  %3186 = vmatprep.subr.bf16.mxu0 0
  %3187 = vmatpush1.bf16.msra.mxu0 0
  %3188 = vmatprep.subr.bf16.mxu0 0
  %3189 = vmatpush1.bf16.msra.mxu0 %v3150
  %3190 = vmatprep.subr.bf16.mxu0 0
  %3191 = vmatpush1.bf16.msra.mxu0 %v3149
  %3192 = vmatprep.subr.bf16.mxu0 0
  %3193 = vmatpush1.bf16.msra.mxu0 %v3148
  %3194 = vmatprep.subr.bf16.mxu0 0
  %3195 = vmatpush1.bf16.msra.mxu0 %v3147
  %3196 = vmatprep.subr.bf16.mxu0 0
  %3197 = vmatpush2.bf16.msra.mxu0 0
  %3198 = vmatprep.subr.bf16.mxu0 0
  %3199 = vmatpush2.bf16.msra.mxu0 0
  %3200 = vmatprep.subr.bf16.mxu0 0
  %3201 = vmatpush2.bf16.msra.mxu0 0
  %3202 = vmatprep.subr.bf16.mxu0 0
  %3203 = vmatpush2.bf16.msra.mxu0 0
  %3204 = vmatprep.subr.bf16.mxu0 0
  %3205 = vmatpush2.bf16.msra.mxu0 0
  %3206 = vmatprep.subr.bf16.mxu0 0
  %3207 = vmatpush2.bf16.msra.mxu0 0
  %3208 = vmatprep.subr.bf16.mxu0 0
  %3209 = vmatpush2.bf16.msra.mxu0 0
  %3210 = vmatprep.subr.bf16.mxu0 0
  %3211 = vmatpush2.bf16.msra.mxu0 0
  %3212 = vmatprep.mubr.bf16.mxu0 0
  %3213 = vmatmul.mubr.bf16.gmra.mxu0 %v3157
  %v3214 = vpop.f32.mrf.mxu0
  %v3215 = vadd.f32 0.0, %v3214
  %v3216 = vpop.f32.mrf.mxu0
  %v3217 = vpop.f32.mrf.mxu0
  %v3218 = vadd.f32 0.0, %v3217
  %v3219 = vpop.f32.mrf.mxu0
  %3220 = vmatprep.mubr.bf16.mxu0 0
  %3221 = vmatmul.mubr.bf16.gmra.mxu0 %v3160
  %v3222 = vpop.f32.mrf.mxu0
  %v3223 = vadd.f32 0.0, %v3222
  %v3224 = vpop.f32.mrf.mxu0
  %v3225 = vpop.f32.mrf.mxu0
  %v3226 = vadd.f32 0.0, %v3225
  %v3227 = vpop.f32.mrf.mxu0
  %3228 = vmatprep.mubr.bf16.mxu0 0
  %3229 = vmatmul.mubr.bf16.gmra.mxu0 %v3163
  %v3230 = vpop.f32.mrf.mxu0
  %v3231 = vadd.f32 0.0, %v3230
  %v3232 = vpop.f32.mrf.mxu0
  %v3233 = vpop.f32.mrf.mxu0
  %v3234 = vadd.f32 0.0, %v3233
  %v3235 = vpop.f32.mrf.mxu0
  %3236 = vmatprep.mubr.bf16.mxu0 0
  %3237 = vmatmul.mubr.bf16.gmra.mxu0 %v3166
  %v3238 = vpop.f32.mrf.mxu0
  %v3239 = vadd.f32 0.0, %v3238
  %v3240 = vpop.f32.mrf.mxu0
  %v3241 = vpop.f32.mrf.mxu0
  %v3242 = vadd.f32 0.0, %v3241
  %v3243 = vpop.f32.mrf.mxu0
  %3244 = vmatprep.mubr.bf16.mxu0 0
  %3245 = vmatmul.mubr.bf16.gmra.mxu0 %v3169
  %v3246 = vpop.f32.mrf.mxu0
  %v3247 = vadd.f32 0.0, %v3246
  %v3248 = vpop.f32.mrf.mxu0
  %v3249 = vpop.f32.mrf.mxu0
  %v3250 = vadd.f32 0.0, %v3249
  %v3251 = vpop.f32.mrf.mxu0
  %3252 = vmatprep.mubr.bf16.mxu0 0
  %3253 = vmatmul.mubr.bf16.gmra.mxu0 %v3172
  %v3254 = vpop.f32.mrf.mxu0
  %v3255 = vadd.f32 0.0, %v3254
  %v3256 = vpop.f32.mrf.mxu0
  %v3257 = vpop.f32.mrf.mxu0
  %v3258 = vadd.f32 0.0, %v3257
  %v3259 = vpop.f32.mrf.mxu0
  %3260 = vmatprep.mubr.bf16.mxu0 0
  %3261 = vmatmul.mubr.bf16.gmra.mxu0 %v3175
  %v3262 = vpop.f32.mrf.mxu0
  %v3263 = vadd.f32 0.0, %v3262
  %v3264 = vpop.f32.mrf.mxu0
  %v3265 = vpop.f32.mrf.mxu0
  %v3266 = vadd.f32 0.0, %v3265
  %v3267 = vpop.f32.mrf.mxu0
  %3268 = vmatprep.mubr.bf16.mxu0 0
  %3269 = vmatmul.mubr.bf16.gmra.mxu0 %v3178
  %v3270 = vpop.f32.mrf.mxu0
  %v3271 = vadd.f32 0.0, %v3270
  %v3272 = vpop.f32.mrf.mxu0
  %v3273 = vpop.f32.mrf.mxu0
  %v3274 = vadd.f32 0.0, %v3273
  %v3275 = vpop.f32.mrf.mxu0
  %3276 = vdwg.mxu0
  %v3277 = vadd.f32 %v3051, %v3215
  %v3278 = vadd.f32 %v3052, %v3218
  %v3279 = vadd.f32 %v3053, %v3223
  %v3280 = vadd.f32 %v3054, %v3226
  %v3281 = vadd.f32 %v3055, %v3231
  %v3282 = vadd.f32 %v3056, %v3234
  %v3283 = vadd.f32 %v3057, %v3239
  %v3284 = vadd.f32 %v3058, %v3242
  %v3285 = vadd.f32 %v3059, %v3247
  %v3286 = vadd.f32 %v3060, %v3250
  %v3287 = vadd.f32 %v3061, %v3255
  %v3288 = vadd.f32 %v3062, %v3258
  %v3289 = vadd.f32 %v3063, %v3263
  %v3290 = vadd.f32 %v3064, %v3266
  %v3291 = vadd.f32 %v3065, %v3271
  %v3292 = vadd.f32 %v3066, %v3274
  %v3293 = vpack.c.bf16 %v3277, %v3277
  %v3294 = vpack.c.bf16 %v3278, %v3278
  %v3295 = vpack.c.bf16 %v3279, %v3279
  %v3296 = vpack.c.bf16 %v3280, %v3280
  %v3297 = vpack.c.bf16 %v3281, %v3281
  %v3298 = vpack.c.bf16 %v3282, %v3282
  %v3299 = vpack.c.bf16 %v3283, %v3283
  %v3300 = vpack.c.bf16 %v3284, %v3284
  %v3301 = vpack.c.bf16 %v3285, %v3285
  %v3302 = vpack.c.bf16 %v3286, %v3286
  %v3303 = vpack.c.bf16 %v3287, %v3287
  %v3304 = vpack.c.bf16 %v3288, %v3288
  %v3305 = vpack.c.bf16 %v3289, %v3289
  %v3306 = vpack.c.bf16 %v3290, %v3290
  %v3307 = vpack.c.bf16 %v3291, %v3291
  %v3308 = vpack.c.bf16 %v3292, %v3292
  %3309 = vst [vmem:[%s4] sm:$0xf] %v3293
  %3310 = vst [vmem:[%s4 + $0x4] sm:$0xf] %v3294
  %3311 = vst [vmem:[%s4 + $0x8] sm:$0xf] %v3295
  %3312 = vst [vmem:[%s4 + $0xc] sm:$0xf] %v3296
  %3313 = vst [vmem:[%s4 + $0x10] sm:$0xf] %v3297
  %3314 = vst [vmem:[%s4 + $0x14] sm:$0xf] %v3298
  %3315 = vst [vmem:[%s4 + $0x18] sm:$0xf] %v3299
  %3316 = vst [vmem:[%s4 + $0x1c] sm:$0xf] %v3300
  %3317 = vst [vmem:[%s4 + $0x20] sm:$0xf] %v3301
  %3318 = vst [vmem:[%s4 + $0x24] sm:$0xf] %v3302
  %3319 = vst [vmem:[%s4 + $0x28] sm:$0xf] %v3303
  %3320 = vst [vmem:[%s4 + $0x2c] sm:$0xf] %v3304
  %3321 = vst [vmem:[%s4 + $0x30] sm:$0xf] %v3305
  %3322 = vst [vmem:[%s4 + $0x34] sm:$0xf] %v3306
  %3323 = vst [vmem:[%s4 + $0x38] sm:$0xf] %v3307
  %3324 = vst [vmem:[%s4 + $0x3c] sm:$0xf] %v3308
  // Predicated region
  $region18: #{fwd.5} parent=0 // pred_check
    _
  $region19: #{fwd.5} parent=0 // pred_check_branch
    %3326 = sbr.rel (0) target = $region21
  $region20: #{fwd.5} parent=0 // pred_region
    _
  $region21: #{fwd.5} parent=0 // pred_fallthru
    _
  // Predicated region
  $region22: #{fwd.5} parent=0 // pred_check
    _
  $region23: #{fwd.5} parent=0 // pred_check_branch
    %3328 = sbr.rel (0) target = $region25
  $region24: #{fwd.5} parent=0 // pred_region
    _
  $region25: #{fwd.5} parent=0 // pred_fallthru
    _

</llo_original>
